<compile_context>
chip_gen: v6e
topology: v6e:2x2x1
jax: 0.10.0
libtpu: 0.0.40
codegen_flags: <defaults>
</compile_context>

<pallas_src>
import jax
import jax.numpy as jnp
from jax.experimental import pallas as pl
from jax.experimental.pallas import tpu as pltpu

_LANE = 128
_EPS = 1e-5


def _round_up(x, m):
    return (x + m - 1) // m * m


# ----------------------------- kernel bodies ------------------------------ #

def _im2col_conv(tap, w_ref, H, W, Cp):
    """3x3 'SAME' conv as a single MXU matmul.

    tap(dy, dx) returns the bf16 input slice of shape (H, W, Cp) for kernel
    tap (dy, dx); w_ref holds the (9*Cp, Cp) bf16 weight.  Returns the f32
    (H*W, Cp) conv output.
    """
    cols = []
    for dy in range(3):
        for dx in range(3):
            cols.append(tap(dy, dx).reshape(H * W, Cp))
    patches = jnp.concatenate(cols, axis=1)              # (H*W, 9*Cp) bf16
    return jnp.dot(patches, w_ref[...], preferred_element_type=jnp.float32)


def _write_conv_and_stats(acc, y_ref, s_ref, ss_ref, H, W, Cp):
    y_ref[...] = acc.reshape(1, H, W, Cp)
    s_ref[...] = jnp.sum(acc, axis=0, keepdims=True).reshape(1, 1, Cp)
    ss_ref[...] = jnp.sum(acc * acc, axis=0, keepdims=True).reshape(1, 1, Cp)


def conv_stats_kernel(xp_ref, w_ref, y_ref, s_ref, ss_ref):
    """conv1 on the spatially pre-padded bf16 input + BN1 partial stats."""
    _, Hp, Wp, Cp = xp_ref.shape
    H, W = Hp - 2, Wp - 2
    acc = _im2col_conv(lambda dy, dx: xp_ref[0, dy:dy + H, dx:dx + W, :],
                       w_ref, H, W, Cp)
    _write_conv_and_stats(acc, y_ref, s_ref, ss_ref, H, W, Cp)


def bn_relu_conv_stats_kernel(y1p_ref, w_ref, g_ref, b_ref, m_ref, inv_ref,
                              y_ref, s_ref, ss_ref):
    """bn1 (given global stats) + relu fused into conv2, + BN2 partial stats."""
    _, Hp, Wp, Cp = y1p_ref.shape
    H, W = Hp - 2, Wp - 2
    raw = y1p_ref[0]                                     # (Hp, Wp, Cp) f32
    act = (raw - m_ref[...]) * (inv_ref[...] * g_ref[...]) + b_ref[...]
    act = jnp.maximum(act, 0.0)
    # The spatial halo of y1p is zero *pre*-BN; conv2's SAME padding needs it
    # to be zero *post*-activation, so mask the 1-wide ring back to zero.
    row = jax.lax.broadcasted_iota(jnp.int32, (Hp, Wp, Cp), 0)
    col = jax.lax.broadcasted_iota(jnp.int32, (Hp, Wp, Cp), 1)
    interior = (row >= 1) & (row <= H) & (col >= 1) & (col <= W)
    act = jnp.where(interior, act, 0.0).astype(jnp.bfloat16)
    acc = _im2col_conv(lambda dy, dx: act[dy:dy + H, dx:dx + W, :],
                       w_ref, H, W, Cp)
    _write_conv_and_stats(acc, y_ref, s_ref, ss_ref, H, W, Cp)


def bn_add_relu_kernel(y2_ref, x_ref, g_ref, b_ref, m_ref, inv_ref, o_ref):
    """bn2 (given global stats) + identity residual + relu, lane-dense store."""
    y2 = y2_ref[...]                                     # (1, TH, W, Cp) f32
    xid = x_ref[...].astype(jnp.float32)
    out = (y2 - m_ref[...]) * (inv_ref[...] * g_ref[...]) + b_ref[...] + xid
    o_ref[...] = jnp.maximum(out, 0.0)


# ------------------------------- wrapper ----------------------------------- #

def basic_block_forward(x_nchw, w1_oihw, bn1_gamma, bn1_beta,
                        w2_oihw, bn2_gamma, bn2_beta):
    """BasicBlock forward (stride=1, downsample=None, training-mode BN).

    x_nchw  : (N, C, H, W)            float
    w*_oihw : (planes, C, 3, 3)       conv weights (PyTorch layout, no bias)
    bn*_    : (planes,)               BatchNorm affine parameters
    returns : (N, planes, H, W)       float32
    """
    N, C, H, W = x_nchw.shape
    planes = w1_oihw.shape[0]
    assert planes == C and w2_oihw.shape == (planes, planes, 3, 3), \
        "BasicBlock with downsample=None needs inplanes == planes, stride=1"
    Cp = _round_up(C, _LANE)
    Hp, Wp = H + 2, W + 2
    Mtot = N * H * W

    # ---- layout / dtype prep (NCHW->NHWC, channel pad to lane width, bf16) --
    x_nhwc = jnp.transpose(x_nchw.astype(jnp.bfloat16), (0, 2, 3, 1))
    x_cp = jnp.pad(x_nhwc, ((0, 0), (0, 0), (0, 0), (0, Cp - C)))
    x_sp = jnp.pad(x_cp, ((0, 0), (1, 1), (1, 1), (0, 0)))      # (N,Hp,Wp,Cp)

    def prep_w(w):
        w = jnp.transpose(w.astype(jnp.bfloat16), (2, 3, 1, 0))  # -> HWIO
        w = jnp.pad(w, ((0, 0), (0, 0), (0, Cp - C), (0, Cp - planes)))
        return w.reshape(9 * Cp, Cp)                             # tap-major K

    def prep_p(p):
        return jnp.pad(p.astype(jnp.float32), (0, Cp - planes)).reshape(1, Cp)

    w1f, w2f = prep_w(w1_oihw), prep_w(w2_oihw)
    g1, b1, g2, b2 = map(prep_p, (bn1_gamma, bn1_beta, bn2_gamma, bn2_beta))

    par1 = pltpu.CompilerParams(dimension_semantics=("parallel",))

    # ---- pass 1: conv1 + BN1 partial statistics (grid over batch) ----------
    y1, s1, ss1 = pl.pallas_call(
        conv_stats_kernel,
        out_shape=(jax.ShapeDtypeStruct((N, H, W, Cp), jnp.float32),
                   jax.ShapeDtypeStruct((N, 1, Cp), jnp.float32),
                   jax.ShapeDtypeStruct((N, 1, Cp), jnp.float32)),
        grid=(N,),
        in_specs=[pl.BlockSpec((1, Hp, Wp, Cp), lambda n: (n, 0, 0, 0)),
                  pl.BlockSpec((9 * Cp, Cp), lambda n: (0, 0))],
        out_specs=(pl.BlockSpec((1, H, W, Cp), lambda n: (n, 0, 0, 0)),
                   pl.BlockSpec((1, 1, Cp), lambda n: (n, 0, 0)),
                   pl.BlockSpec((1, 1, Cp), lambda n: (n, 0, 0))),
        compiler_params=par1,
    )(x_sp, w1f)

    def finish_stats(s, ss):
        mean = jnp.sum(s, axis=0) / Mtot                         # (1, Cp)
        var = jnp.maximum(jnp.sum(ss, axis=0) / Mtot - mean * mean, 0.0)
        return mean, jax.lax.rsqrt(var + _EPS)

    m1, inv1 = finish_stats(s1, ss1)

    # ---- pass 2: bn1 + relu fused into conv2, + BN2 partial statistics -----
    y1p = jnp.pad(y1, ((0, 0), (1, 1), (1, 1), (0, 0)))          # (N,Hp,Wp,Cp)
    y2, s2, ss2 = pl.pallas_call(
        bn_relu_conv_stats_kernel,
        out_shape=(jax.ShapeDtypeStruct((N, H, W, Cp), jnp.float32),
                   jax.ShapeDtypeStruct((N, 1, Cp), jnp.float32),
                   jax.ShapeDtypeStruct((N, 1, Cp), jnp.float32)),
        grid=(N,),
        in_specs=[pl.BlockSpec((1, Hp, Wp, Cp), lambda n: (n, 0, 0, 0)),
                  pl.BlockSpec((9 * Cp, Cp), lambda n: (0, 0)),
                  pl.BlockSpec((1, Cp), lambda n: (0, 0)),
                  pl.BlockSpec((1, Cp), lambda n: (0, 0)),
                  pl.BlockSpec((1, Cp), lambda n: (0, 0)),
                  pl.BlockSpec((1, Cp), lambda n: (0, 0))],
        out_specs=(pl.BlockSpec((1, H, W, Cp), lambda n: (n, 0, 0, 0)),
                   pl.BlockSpec((1, 1, Cp), lambda n: (n, 0, 0)),
                   pl.BlockSpec((1, 1, Cp), lambda n: (n, 0, 0))),
        compiler_params=par1,
    )(y1p, w2f, g1, b1, m1, inv1)

    m2, inv2 = finish_stats(s2, ss2)

    # ---- pass 3: bn2 + residual + relu, tiled over (batch, row-blocks) -----
    TH = 8 if H % 8 == 0 else H
    out = pl.pallas_call(
        bn_add_relu_kernel,
        out_shape=jax.ShapeDtypeStruct((N, H, W, Cp), jnp.float32),
        grid=(N, H // TH),
        in_specs=[pl.BlockSpec((1, TH, W, Cp), lambda n, h: (n, h, 0, 0)),
                  pl.BlockSpec((1, TH, W, Cp), lambda n, h: (n, h, 0, 0)),
                  pl.BlockSpec((1, Cp), lambda n, h: (0, 0)),
                  pl.BlockSpec((1, Cp), lambda n, h: (0, 0)),
                  pl.BlockSpec((1, Cp), lambda n, h: (0, 0)),
                  pl.BlockSpec((1, Cp), lambda n, h: (0, 0))],
        out_specs=pl.BlockSpec((1, TH, W, Cp), lambda n, h: (n, h, 0, 0)),
        compiler_params=pltpu.CompilerParams(
            dimension_semantics=("parallel", "parallel")),
    )(y2, x_cp, g2, b2, m2, inv2)

    # drop channel padding, back to NCHW
    return jnp.transpose(out[..., :planes], (0, 3, 1, 2))


# ------------------------------ reference ---------------------------------- #

def reference_forward(x, w1, g1, b1, w2, g2, b2, eps=_EPS):
    """Pure-JAX/XLA reference (NCHW), mirroring the kernel's precision choices
    (bf16 conv inputs, f32 accumulation and batch statistics)."""
    conv = lambda a, w: jax.lax.conv_general_dilated(
        a, w, (1, 1), "SAME", dimension_numbers=("NCHW", "OIHW", "NCHW"),
        preferred_element_type=jnp.float32)

    def bn(y, g, b):
        m = y.mean(axis=(0, 2, 3), keepdims=True)
        v = (y * y).mean(axis=(0, 2, 3), keepdims=True) - m * m
        return ((y - m) * jax.lax.rsqrt(v + eps) * g.reshape(1, -1, 1, 1)
                + b.reshape(1, -1, 1, 1))

    xb = x.astype(jnp.bfloat16)
    a1 = jax.nn.relu(bn(conv(xb, w1.astype(jnp.bfloat16)), g1, b1))
    y2 = bn(conv(a1.astype(jnp.bfloat16), w2.astype(jnp.bfloat16)), g2, b2)
    return jax.nn.relu(y2 + xb.astype(jnp.float32))


if __name__ == "__main__":
    # Small shapes consistent with the module (inplanes == planes, stride=1,
    # downsample=None).  PyTorch NCHW interface.
    N, C, H, W = 2, 8, 16, 16
    planes = C

    key = jax.random.PRNGKey(0)
    kx, kw1, kw2, kg1, kb1, kg2, kb2 = jax.random.split(key, 7)

    x = jax.random.normal(kx, (N, C, H, W), jnp.float32)
    w1 = jax.random.normal(kw1, (planes, C, 3, 3), jnp.float32) / jnp.sqrt(9.0 * C)
    w2 = jax.random.normal(kw2, (planes, planes, 3, 3), jnp.float32) / jnp.sqrt(9.0 * planes)
    g1 = 1.0 + 0.1 * jax.random.normal(kg1, (planes,), jnp.float32)
    b1 = 0.1 * jax.random.normal(kb1, (planes,), jnp.float32)
    g2 = 1.0 + 0.1 * jax.random.normal(kg2, (planes,), jnp.float32)
    b2 = 0.1 * jax.random.normal(kb2, (planes,), jnp.float32)

    fwd = jax.jit(basic_block_forward)
    out = jax.block_until_ready(fwd(x, w1, g1, b1, w2, g2, b2))

    ref = reference_forward(x, w1, g1, b1, w2, g2, b2)
    assert out.shape == (N, planes, H, W)
    # bf16 MXU inputs -> small rounding differences vs the XLA conv reference;
    # real bugs would show up as O(0.1 - 1) errors.
    err = float(jnp.max(jnp.abs(out - ref)))
    assert err < 5e-3, f"max abs err {err}"

    print("KERNEL_OK")
</pallas_src>

<mosaic_0001>
module attributes {stable_mosaic.version = 11 : i64} {
  func.func @conv_stats_kernel(%arg0: i32, %arg1: memref<1x18x18x128xbf16, #tpu.memory_space<vmem>>, %arg2: memref<1152x128xbf16, #tpu.memory_space<vmem>>, %arg3: memref<1x16x16x128xf32, #tpu.memory_space<vmem>>, %arg4: memref<1x1x128xf32, #tpu.memory_space<vmem>>, %arg5: memref<1x1x128xf32, #tpu.memory_space<vmem>>) attributes {dimension_semantics = [#tpu.dimension_semantics<parallel>], iteration_bounds = array<i64: 2>, scalar_prefetch = 0 : i64, scratch_operands = 0 : i64, tpu.core_type = #tpu.core_type<tc>, window_params = [{transform_indices = @transform_0, window_bounds = array<i64: 1, 18, 18, 128>}, {pipeline_mode = #tpu.pipeline_mode<synchronous>, transform_indices = @transform_1, window_bounds = array<i64: 1152, 128>}, {transform_indices = @transform_2, window_bounds = array<i64: 1, 16, 16, 128>}, {transform_indices = @transform_3, window_bounds = array<i64: 1, 1, 128>}, {transform_indices = @transform_4, window_bounds = array<i64: 1, 1, 128>}]} {
    %c0 = arith.constant 0 : index
    %c0_0 = arith.constant 0 : index
    %c0_1 = arith.constant 0 : index
    %c0_2 = arith.constant 0 : index
    %0 = vector.load %arg1[%c0, %c0_0, %c0_1, %c0_2] : memref<1x18x18x128xbf16, #tpu.memory_space<vmem>>, vector<1x16x16x128xbf16>
    %1 = vector.shape_cast %0 : vector<1x16x16x128xbf16> to vector<16x16x128xbf16>
    %2 = vector.shape_cast %1 : vector<16x16x128xbf16> to vector<256x128xbf16>
    %c0_3 = arith.constant 0 : index
    %c0_4 = arith.constant 0 : index
    %c1 = arith.constant 1 : index
    %c0_5 = arith.constant 0 : index
    %3 = vector.load %arg1[%c0_3, %c0_4, %c1, %c0_5] : memref<1x18x18x128xbf16, #tpu.memory_space<vmem>>, vector<1x16x16x128xbf16>
    %4 = vector.shape_cast %3 : vector<1x16x16x128xbf16> to vector<16x16x128xbf16>
    %5 = vector.shape_cast %4 : vector<16x16x128xbf16> to vector<256x128xbf16>
    %c0_6 = arith.constant 0 : index
    %c0_7 = arith.constant 0 : index
    %c2 = arith.constant 2 : index
    %c0_8 = arith.constant 0 : index
    %6 = vector.load %arg1[%c0_6, %c0_7, %c2, %c0_8] : memref<1x18x18x128xbf16, #tpu.memory_space<vmem>>, vector<1x16x16x128xbf16>
    %7 = vector.shape_cast %6 : vector<1x16x16x128xbf16> to vector<16x16x128xbf16>
    %8 = vector.shape_cast %7 : vector<16x16x128xbf16> to vector<256x128xbf16>
    %c0_9 = arith.constant 0 : index
    %c1_10 = arith.constant 1 : index
    %c0_11 = arith.constant 0 : index
    %c0_12 = arith.constant 0 : index
    %9 = vector.load %arg1[%c0_9, %c1_10, %c0_11, %c0_12] : memref<1x18x18x128xbf16, #tpu.memory_space<vmem>>, vector<1x16x16x128xbf16>
    %10 = vector.shape_cast %9 : vector<1x16x16x128xbf16> to vector<16x16x128xbf16>
    %11 = vector.shape_cast %10 : vector<16x16x128xbf16> to vector<256x128xbf16>
    %c0_13 = arith.constant 0 : index
    %c1_14 = arith.constant 1 : index
    %c1_15 = arith.constant 1 : index
    %c0_16 = arith.constant 0 : index
    %12 = vector.load %arg1[%c0_13, %c1_14, %c1_15, %c0_16] : memref<1x18x18x128xbf16, #tpu.memory_space<vmem>>, vector<1x16x16x128xbf16>
    %13 = vector.shape_cast %12 : vector<1x16x16x128xbf16> to vector<16x16x128xbf16>
    %14 = vector.shape_cast %13 : vector<16x16x128xbf16> to vector<256x128xbf16>
    %c0_17 = arith.constant 0 : index
    %c1_18 = arith.constant 1 : index
    %c2_19 = arith.constant 2 : index
    %c0_20 = arith.constant 0 : index
    %15 = vector.load %arg1[%c0_17, %c1_18, %c2_19, %c0_20] : memref<1x18x18x128xbf16, #tpu.memory_space<vmem>>, vector<1x16x16x128xbf16>
    %16 = vector.shape_cast %15 : vector<1x16x16x128xbf16> to vector<16x16x128xbf16>
    %17 = vector.shape_cast %16 : vector<16x16x128xbf16> to vector<256x128xbf16>
    %c0_21 = arith.constant 0 : index
    %c2_22 = arith.constant 2 : index
    %c0_23 = arith.constant 0 : index
    %c0_24 = arith.constant 0 : index
    %18 = vector.load %arg1[%c0_21, %c2_22, %c0_23, %c0_24] : memref<1x18x18x128xbf16, #tpu.memory_space<vmem>>, vector<1x16x16x128xbf16>
    %19 = vector.shape_cast %18 : vector<1x16x16x128xbf16> to vector<16x16x128xbf16>
    %20 = vector.shape_cast %19 : vector<16x16x128xbf16> to vector<256x128xbf16>
    %c0_25 = arith.constant 0 : index
    %c2_26 = arith.constant 2 : index
    %c1_27 = arith.constant 1 : index
    %c0_28 = arith.constant 0 : index
    %21 = vector.load %arg1[%c0_25, %c2_26, %c1_27, %c0_28] : memref<1x18x18x128xbf16, #tpu.memory_space<vmem>>, vector<1x16x16x128xbf16>
    %22 = vector.shape_cast %21 : vector<1x16x16x128xbf16> to vector<16x16x128xbf16>
    %23 = vector.shape_cast %22 : vector<16x16x128xbf16> to vector<256x128xbf16>
    %c0_29 = arith.constant 0 : index
    %c2_30 = arith.constant 2 : index
    %c2_31 = arith.constant 2 : index
    %c0_32 = arith.constant 0 : index
    %24 = vector.load %arg1[%c0_29, %c2_30, %c2_31, %c0_32] : memref<1x18x18x128xbf16, #tpu.memory_space<vmem>>, vector<1x16x16x128xbf16>
    %25 = vector.shape_cast %24 : vector<1x16x16x128xbf16> to vector<16x16x128xbf16>
    %26 = vector.shape_cast %25 : vector<16x16x128xbf16> to vector<256x128xbf16>
    %27 = tpu.concatenate %2, %5, %8, %11, %14, %17, %20, %23, %26 in 1 : vector<256x128xbf16>, vector<256x128xbf16>, vector<256x128xbf16>, vector<256x128xbf16>, vector<256x128xbf16>, vector<256x128xbf16>, vector<256x128xbf16>, vector<256x128xbf16>, vector<256x128xbf16> -> vector<256x1152xbf16>
    %c0_33 = arith.constant 0 : index
    %c0_34 = arith.constant 0 : index
    %28 = vector.load %arg2[%c0_33, %c0_34] : memref<1152x128xbf16, #tpu.memory_space<vmem>>, vector<1152x128xbf16>
    %cst = arith.constant dense<0.000000e+00> : vector<256x128xf32>
    %29 = tpu.matmul %27, %28, %cst {dimension_numbers = #tpu.dot_dimension_numbers<[1], [0], [0], [1], [0, 0, 1, 1], [], []>} : vector<256x1152xbf16>, vector<1152x128xbf16>, vector<256x128xf32> -> vector<256x128xf32>
    %30 = vector.shape_cast %29 : vector<256x128xf32> to vector<1x16x16x128xf32>
    %c0_35 = arith.constant 0 : index
    %c0_36 = arith.constant 0 : index
    %c0_37 = arith.constant 0 : index
    %c0_38 = arith.constant 0 : index
    %31 = vector.load %arg3[%c0_35, %c0_36, %c0_37, %c0_38] : memref<1x16x16x128xf32, #tpu.memory_space<vmem>>, vector<1x16x16x128xf32>
    tpu.vector_store %arg3[%c0_35, %c0_36, %c0_37, %c0_38], %30 {strides = array<i32>} : memref<1x16x16x128xf32, #tpu.memory_space<vmem>>, vector<1x16x16x128xf32>,
    %cst_39 = arith.constant dense<0.000000e+00> : vector<128xf32>
    %32 = vector.multi_reduction <add>, %29, %cst_39 [0] : vector<256x128xf32> to vector<128xf32>
    %33 = vector.shape_cast %32 : vector<128xf32> to vector<1x128xf32>
    %34 = vector.shape_cast %33 : vector<1x128xf32> to vector<1x1x128xf32>
    %c0_40 = arith.constant 0 : index
    %c0_41 = arith.constant 0 : index
    %c0_42 = arith.constant 0 : index
    %35 = vector.load %arg4[%c0_40, %c0_41, %c0_42] : memref<1x1x128xf32, #tpu.memory_space<vmem>>, vector<1x1x128xf32>
    tpu.vector_store %arg4[%c0_40, %c0_41, %c0_42], %34 {strides = array<i32>} : memref<1x1x128xf32, #tpu.memory_space<vmem>>, vector<1x1x128xf32>,
    %36 = arith.mulf %29, %29 : vector<256x128xf32>
    %cst_43 = arith.constant dense<0.000000e+00> : vector<128xf32>
    %37 = vector.multi_reduction <add>, %36, %cst_43 [0] : vector<256x128xf32> to vector<128xf32>
    %38 = vector.shape_cast %37 : vector<128xf32> to vector<1x128xf32>
    %39 = vector.shape_cast %38 : vector<1x128xf32> to vector<1x1x128xf32>
    %c0_44 = arith.constant 0 : index
    %c0_45 = arith.constant 0 : index
    %c0_46 = arith.constant 0 : index
    %40 = vector.load %arg5[%c0_44, %c0_45, %c0_46] : memref<1x1x128xf32, #tpu.memory_space<vmem>>, vector<1x1x128xf32>
    tpu.vector_store %arg5[%c0_44, %c0_45, %c0_46], %39 {strides = array<i32>} : memref<1x1x128xf32, #tpu.memory_space<vmem>>, vector<1x1x128xf32>,
    return
  }
  func.func @transform_0(%arg0: i32) -> (i32, i32, i32, i32) {
    %c0_i32 = arith.constant 0 : i32
    %c0_i32_0 = arith.constant 0 : i32
    %c0_i32_1 = arith.constant 0 : i32
    %c0_i32_2 = arith.constant 0 : i32
    return %arg0, %c0_i32, %c0_i32_0, %c0_i32_1 : i32, i32, i32, i32
  }
  func.func @transform_1(%arg0: i32) -> (i32, i32) {
    %c0_i32 = arith.constant 0 : i32
    %c0_i32_0 = arith.constant 0 : i32
    %c0_i32_1 = arith.constant 0 : i32
    return %c0_i32, %c0_i32_0 : i32, i32
  }
  func.func @transform_2(%arg0: i32) -> (i32, i32, i32, i32) {
    %c0_i32 = arith.constant 0 : i32
    %c0_i32_0 = arith.constant 0 : i32
    %c0_i32_1 = arith.constant 0 : i32
    %c0_i32_2 = arith.constant 0 : i32
    return %arg0, %c0_i32, %c0_i32_0, %c0_i32_1 : i32, i32, i32, i32
  }
  func.func @transform_3(%arg0: i32) -> (i32, i32, i32) {
    %c0_i32 = arith.constant 0 : i32
    %c0_i32_0 = arith.constant 0 : i32
    %c0_i32_1 = arith.constant 0 : i32
    return %arg0, %c0_i32, %c0_i32_0 : i32, i32, i32
  }
  func.func @transform_4(%arg0: i32) -> (i32, i32, i32) {
    %c0_i32 = arith.constant 0 : i32
    %c0_i32_0 = arith.constant 0 : i32
    %c0_i32_1 = arith.constant 0 : i32
    return %arg0, %c0_i32, %c0_i32_0 : i32, i32, i32
  }
}

module attributes {stable_mosaic.version = 11 : i64} {
  func.func @bn_relu_conv_stats_kernel(%arg0: i32, %arg1: memref<1x18x18x128xf32, #tpu.memory_space<vmem>>, %arg2: memref<1152x128xbf16, #tpu.memory_space<vmem>>, %arg3: memref<1x128xf32, #tpu.memory_space<vmem>>, %arg4: memref<1x128xf32, #tpu.memory_space<vmem>>, %arg5: memref<1x128xf32, #tpu.memory_space<vmem>>, %arg6: memref<1x128xf32, #tpu.memory_space<vmem>>, %arg7: memref<1x16x16x128xf32, #tpu.memory_space<vmem>>, %arg8: memref<1x1x128xf32, #tpu.memory_space<vmem>>, %arg9: memref<1x1x128xf32, #tpu.memory_space<vmem>>) attributes {dimension_semantics = [#tpu.dimension_semantics<parallel>], iteration_bounds = array<i64: 2>, scalar_prefetch = 0 : i64, scratch_operands = 0 : i64, tpu.core_type = #tpu.core_type<tc>, window_params = [{transform_indices = @transform_0, window_bounds = array<i64: 1, 18, 18, 128>}, {pipeline_mode = #tpu.pipeline_mode<synchronous>, transform_indices = @transform_1, window_bounds = array<i64: 1152, 128>}, {pipeline_mode = #tpu.pipeline_mode<synchronous>, transform_indices = @transform_2, window_bounds = array<i64: 1, 128>}, {pipeline_mode = #tpu.pipeline_mode<synchronous>, transform_indices = @transform_3, window_bounds = array<i64: 1, 128>}, {pipeline_mode = #tpu.pipeline_mode<synchronous>, transform_indices = @transform_4, window_bounds = array<i64: 1, 128>}, {pipeline_mode = #tpu.pipeline_mode<synchronous>, transform_indices = @transform_5, window_bounds = array<i64: 1, 128>}, {transform_indices = @transform_6, window_bounds = array<i64: 1, 16, 16, 128>}, {transform_indices = @transform_7, window_bounds = array<i64: 1, 1, 128>}, {transform_indices = @transform_8, window_bounds = array<i64: 1, 1, 128>}]} {
    %c0 = arith.constant 0 : index
    %c0_0 = arith.constant 0 : index
    %c0_1 = arith.constant 0 : index
    %c0_2 = arith.constant 0 : index
    %0 = vector.load %arg1[%c0, %c0_0, %c0_1, %c0_2] : memref<1x18x18x128xf32, #tpu.memory_space<vmem>>, vector<1x18x18x128xf32>
    %1 = vector.shape_cast %0 : vector<1x18x18x128xf32> to vector<18x18x128xf32>
    %c0_3 = arith.constant 0 : index
    %c0_4 = arith.constant 0 : index
    %2 = vector.load %arg5[%c0_3, %c0_4] : memref<1x128xf32, #tpu.memory_space<vmem>>, vector<1x128xf32>
    %3 = vector.shape_cast %2 : vector<1x128xf32> to vector<1x1x128xf32>
    %4 = vector.broadcast %3 : vector<1x1x128xf32> to vector<18x18x128xf32>
    %5 = arith.subf %1, %4 : vector<18x18x128xf32>
    %c0_5 = arith.constant 0 : index
    %c0_6 = arith.constant 0 : index
    %6 = vector.load %arg6[%c0_5, %c0_6] : memref<1x128xf32, #tpu.memory_space<vmem>>, vector<1x128xf32>
    %c0_7 = arith.constant 0 : index
    %c0_8 = arith.constant 0 : index
    %7 = vector.load %arg3[%c0_7, %c0_8] : memref<1x128xf32, #tpu.memory_space<vmem>>, vector<1x128xf32>
    %8 = arith.mulf %6, %7 : vector<1x128xf32>
    %9 = vector.shape_cast %8 : vector<1x128xf32> to vector<1x1x128xf32>
    %10 = vector.broadcast %9 : vector<1x1x128xf32> to vector<18x18x128xf32>
    %11 = arith.mulf %5, %10 : vector<18x18x128xf32>
    %c0_9 = arith.constant 0 : index
    %c0_10 = arith.constant 0 : index
    %12 = vector.load %arg4[%c0_9, %c0_10] : memref<1x128xf32, #tpu.memory_space<vmem>>, vector<1x128xf32>
    %13 = vector.shape_cast %12 : vector<1x128xf32> to vector<1x1x128xf32>
    %14 = vector.broadcast %13 : vector<1x1x128xf32> to vector<18x18x128xf32>
    %15 = arith.addf %11, %14 : vector<18x18x128xf32>
    %cst = arith.constant 0.000000e+00 : f32
    %16 = vector.broadcast %cst : f32 to vector<18x18x128xf32>
    %17 = arith.maximumf %15, %16 : vector<18x18x128xf32>
    %18 = tpu.iota {dimensions = array<i32: 0>} : vector<18x18x128xi32>
    %19 = tpu.iota {dimensions = array<i32: 1>} : vector<18x18x128xi32>
    %c1_i32 = arith.constant 1 : i32
    %20 = vector.broadcast %c1_i32 : i32 to vector<18x18x128xi32>
    %21 = arith.cmpi sge, %18, %20 : vector<18x18x128xi32>
    %c16_i32 = arith.constant 16 : i32
    %22 = vector.broadcast %c16_i32 : i32 to vector<18x18x128xi32>
    %23 = arith.cmpi sle, %18, %22 : vector<18x18x128xi32>
    %24 = arith.andi %21, %23 : vector<18x18x128xi1>
    %c1_i32_11 = arith.constant 1 : i32
    %25 = vector.broadcast %c1_i32_11 : i32 to vector<18x18x128xi32>
    %26 = arith.cmpi sge, %19, %25 : vector<18x18x128xi32>
    %27 = arith.andi %24, %26 : vector<18x18x128xi1>
    %c16_i32_12 = arith.constant 16 : i32
    %28 = vector.broadcast %c16_i32_12 : i32 to vector<18x18x128xi32>
    %29 = arith.cmpi sle, %19, %28 : vector<18x18x128xi32>
    %30 = arith.andi %27, %29 : vector<18x18x128xi1>
    %cst_13 = arith.constant 0.000000e+00 : f32
    %31 = vector.broadcast %cst_13 : f32 to vector<18x18x128xf32>
    %32 = arith.select %30, %17, %31 : vector<18x18x128xi1>, vector<18x18x128xf32>
    %33 = arith.truncf %32 : vector<18x18x128xf32> to vector<18x18x128xbf16>
    %34 = vector.extract_strided_slice %33 {offsets = [0, 0, 0], sizes = [16, 16, 128], strides = [1, 1, 1]} : vector<18x18x128xbf16> to vector<16x16x128xbf16>
    %35 = vector.shape_cast %34 : vector<16x16x128xbf16> to vector<256x128xbf16>
    %36 = vector.extract_strided_slice %33 {offsets = [0, 1, 0], sizes = [16, 16, 128], strides = [1, 1, 1]} : vector<18x18x128xbf16> to vector<16x16x128xbf16>
    %37 = vector.shape_cast %36 : vector<16x16x128xbf16> to vector<256x128xbf16>
    %38 = vector.extract_strided_slice %33 {offsets = [0, 2, 0], sizes = [16, 16, 128], strides = [1, 1, 1]} : vector<18x18x128xbf16> to vector<16x16x128xbf16>
    %39 = vector.shape_cast %38 : vector<16x16x128xbf16> to vector<256x128xbf16>
    %40 = vector.extract_strided_slice %33 {offsets = [1, 0, 0], sizes = [16, 16, 128], strides = [1, 1, 1]} : vector<18x18x128xbf16> to vector<16x16x128xbf16>
    %41 = vector.shape_cast %40 : vector<16x16x128xbf16> to vector<256x128xbf16>
    %42 = vector.extract_strided_slice %33 {offsets = [1, 1, 0], sizes = [16, 16, 128], strides = [1, 1, 1]} : vector<18x18x128xbf16> to vector<16x16x128xbf16>
    %43 = vector.shape_cast %42 : vector<16x16x128xbf16> to vector<256x128xbf16>
    %44 = vector.extract_strided_slice %33 {offsets = [1, 2, 0], sizes = [16, 16, 128], strides = [1, 1, 1]} : vector<18x18x128xbf16> to vector<16x16x128xbf16>
    %45 = vector.shape_cast %44 : vector<16x16x128xbf16> to vector<256x128xbf16>
    %46 = vector.extract_strided_slice %33 {offsets = [2, 0, 0], sizes = [16, 16, 128], strides = [1, 1, 1]} : vector<18x18x128xbf16> to vector<16x16x128xbf16>
    %47 = vector.shape_cast %46 : vector<16x16x128xbf16> to vector<256x128xbf16>
    %48 = vector.extract_strided_slice %33 {offsets = [2, 1, 0], sizes = [16, 16, 128], strides = [1, 1, 1]} : vector<18x18x128xbf16> to vector<16x16x128xbf16>
    %49 = vector.shape_cast %48 : vector<16x16x128xbf16> to vector<256x128xbf16>
    %50 = vector.extract_strided_slice %33 {offsets = [2, 2, 0], sizes = [16, 16, 128], strides = [1, 1, 1]} : vector<18x18x128xbf16> to vector<16x16x128xbf16>
    %51 = vector.shape_cast %50 : vector<16x16x128xbf16> to vector<256x128xbf16>
    %52 = tpu.concatenate %35, %37, %39, %41, %43, %45, %47, %49, %51 in 1 : vector<256x128xbf16>, vector<256x128xbf16>, vector<256x128xbf16>, vector<256x128xbf16>, vector<256x128xbf16>, vector<256x128xbf16>, vector<256x128xbf16>, vector<256x128xbf16>, vector<256x128xbf16> -> vector<256x1152xbf16>
    %c0_14 = arith.constant 0 : index
    %c0_15 = arith.constant 0 : index
    %53 = vector.load %arg2[%c0_14, %c0_15] : memref<1152x128xbf16, #tpu.memory_space<vmem>>, vector<1152x128xbf16>
    %cst_16 = arith.constant dense<0.000000e+00> : vector<256x128xf32>
    %54 = tpu.matmul %52, %53, %cst_16 {dimension_numbers = #tpu.dot_dimension_numbers<[1], [0], [0], [1], [0, 0, 1, 1], [], []>} : vector<256x1152xbf16>, vector<1152x128xbf16>, vector<256x128xf32> -> vector<256x128xf32>
    %55 = vector.shape_cast %54 : vector<256x128xf32> to vector<1x16x16x128xf32>
    %c0_17 = arith.constant 0 : index
    %c0_18 = arith.constant 0 : index
    %c0_19 = arith.constant 0 : index
    %c0_20 = arith.constant 0 : index
    %56 = vector.load %arg7[%c0_17, %c0_18, %c0_19, %c0_20] : memref<1x16x16x128xf32, #tpu.memory_space<vmem>>, vector<1x16x16x128xf32>
    tpu.vector_store %arg7[%c0_17, %c0_18, %c0_19, %c0_20], %55 {strides = array<i32>} : memref<1x16x16x128xf32, #tpu.memory_space<vmem>>, vector<1x16x16x128xf32>,
    %cst_21 = arith.constant dense<0.000000e+00> : vector<128xf32>
    %57 = vector.multi_reduction <add>, %54, %cst_21 [0] : vector<256x128xf32> to vector<128xf32>
    %58 = vector.shape_cast %57 : vector<128xf32> to vector<1x128xf32>
    %59 = vector.shape_cast %58 : vector<1x128xf32> to vector<1x1x128xf32>
    %c0_22 = arith.constant 0 : index
    %c0_23 = arith.constant 0 : index
    %c0_24 = arith.constant 0 : index
    %60 = vector.load %arg8[%c0_22, %c0_23, %c0_24] : memref<1x1x128xf32, #tpu.memory_space<vmem>>, vector<1x1x128xf32>
    tpu.vector_store %arg8[%c0_22, %c0_23, %c0_24], %59 {strides = array<i32>} : memref<1x1x128xf32, #tpu.memory_space<vmem>>, vector<1x1x128xf32>,
    %61 = arith.mulf %54, %54 : vector<256x128xf32>
    %cst_25 = arith.constant dense<0.000000e+00> : vector<128xf32>
    %62 = vector.multi_reduction <add>, %61, %cst_25 [0] : vector<256x128xf32> to vector<128xf32>
    %63 = vector.shape_cast %62 : vector<128xf32> to vector<1x128xf32>
    %64 = vector.shape_cast %63 : vector<1x128xf32> to vector<1x1x128xf32>
    %c0_26 = arith.constant 0 : index
    %c0_27 = arith.constant 0 : index
    %c0_28 = arith.constant 0 : index
    %65 = vector.load %arg9[%c0_26, %c0_27, %c0_28] : memref<1x1x128xf32, #tpu.memory_space<vmem>>, vector<1x1x128xf32>
    tpu.vector_store %arg9[%c0_26, %c0_27, %c0_28], %64 {strides = array<i32>} : memref<1x1x128xf32, #tpu.memory_space<vmem>>, vector<1x1x128xf32>,
    return
  }
  func.func @transform_0(%arg0: i32) -> (i32, i32, i32, i32) {
    %c0_i32 = arith.constant 0 : i32
    %c0_i32_0 = arith.constant 0 : i32
    %c0_i32_1 = arith.constant 0 : i32
    %c0_i32_2 = arith.constant 0 : i32
    return %arg0, %c0_i32, %c0_i32_0, %c0_i32_1 : i32, i32, i32, i32
  }
  func.func @transform_1(%arg0: i32) -> (i32, i32) {
    %c0_i32 = arith.constant 0 : i32
    %c0_i32_0 = arith.constant 0 : i32
    %c0_i32_1 = arith.constant 0 : i32
    return %c0_i32, %c0_i32_0 : i32, i32
  }
  func.func @transform_2(%arg0: i32) -> (i32, i32) {
    %c0_i32 = arith.constant 0 : i32
    %c0_i32_0 = arith.constant 0 : i32
    %c0_i32_1 = arith.constant 0 : i32
    return %c0_i32, %c0_i32_0 : i32, i32
  }
  func.func @transform_3(%arg0: i32) -> (i32, i32) {
    %c0_i32 = arith.constant 0 : i32
    %c0_i32_0 = arith.constant 0 : i32
    %c0_i32_1 = arith.constant 0 : i32
    return %c0_i32, %c0_i32_0 : i32, i32
  }
  func.func @transform_4(%arg0: i32) -> (i32, i32) {
    %c0_i32 = arith.constant 0 : i32
    %c0_i32_0 = arith.constant 0 : i32
    %c0_i32_1 = arith.constant 0 : i32
    return %c0_i32, %c0_i32_0 : i32, i32
  }
  func.func @transform_5(%arg0: i32) -> (i32, i32) {
    %c0_i32 = arith.constant 0 : i32
    %c0_i32_0 = arith.constant 0 : i32
    %c0_i32_1 = arith.constant 0 : i32
    return %c0_i32, %c0_i32_0 : i32, i32
  }
  func.func @transform_6(%arg0: i32) -> (i32, i32, i32, i32) {
    %c0_i32 = arith.constant 0 : i32
    %c0_i32_0 = arith.constant 0 : i32
    %c0_i32_1 = arith.constant 0 : i32
    %c0_i32_2 = arith.constant 0 : i32
    return %arg0, %c0_i32, %c0_i32_0, %c0_i32_1 : i32, i32, i32, i32
  }
  func.func @transform_7(%arg0: i32) -> (i32, i32, i32) {
    %c0_i32 = arith.constant 0 : i32
    %c0_i32_0 = arith.constant 0 : i32
    %c0_i32_1 = arith.constant 0 : i32
    return %arg0, %c0_i32, %c0_i32_0 : i32, i32, i32
  }
  func.func @transform_8(%arg0: i32) -> (i32, i32, i32) {
    %c0_i32 = arith.constant 0 : i32
    %c0_i32_0 = arith.constant 0 : i32
    %c0_i32_1 = arith.constant 0 : i32
    return %arg0, %c0_i32, %c0_i32_0 : i32, i32, i32
  }
}

module attributes {stable_mosaic.version = 11 : i64} {
  func.func @bn_add_relu_kernel(%arg0: i32, %arg1: i32, %arg2: memref<1x8x16x128xf32, #tpu.memory_space<vmem>>, %arg3: memref<1x8x16x128xbf16, #tpu.memory_space<vmem>>, %arg4: memref<1x128xf32, #tpu.memory_space<vmem>>, %arg5: memref<1x128xf32, #tpu.memory_space<vmem>>, %arg6: memref<1x128xf32, #tpu.memory_space<vmem>>, %arg7: memref<1x128xf32, #tpu.memory_space<vmem>>, %arg8: memref<1x8x16x128xf32, #tpu.memory_space<vmem>>) attributes {dimension_semantics = [#tpu.dimension_semantics<parallel>, #tpu.dimension_semantics<parallel>], iteration_bounds = array<i64: 2, 2>, scalar_prefetch = 0 : i64, scratch_operands = 0 : i64, tpu.core_type = #tpu.core_type<tc>, window_params = [{transform_indices = @transform_0, window_bounds = array<i64: 1, 8, 16, 128>}, {transform_indices = @transform_1, window_bounds = array<i64: 1, 8, 16, 128>}, {pipeline_mode = #tpu.pipeline_mode<synchronous>, transform_indices = @transform_2, window_bounds = array<i64: 1, 128>}, {pipeline_mode = #tpu.pipeline_mode<synchronous>, transform_indices = @transform_3, window_bounds = array<i64: 1, 128>}, {pipeline_mode = #tpu.pipeline_mode<synchronous>, transform_indices = @transform_4, window_bounds = array<i64: 1, 128>}, {pipeline_mode = #tpu.pipeline_mode<synchronous>, transform_indices = @transform_5, window_bounds = array<i64: 1, 128>}, {transform_indices = @transform_6, window_bounds = array<i64: 1, 8, 16, 128>}]} {
    %c0 = arith.constant 0 : index
    %c0_0 = arith.constant 0 : index
    %c0_1 = arith.constant 0 : index
    %c0_2 = arith.constant 0 : index
    %0 = vector.load %arg2[%c0, %c0_0, %c0_1, %c0_2] : memref<1x8x16x128xf32, #tpu.memory_space<vmem>>, vector<1x8x16x128xf32>
    %c0_3 = arith.constant 0 : index
    %c0_4 = arith.constant 0 : index
    %c0_5 = arith.constant 0 : index
    %c0_6 = arith.constant 0 : index
    %1 = vector.load %arg3[%c0_3, %c0_4, %c0_5, %c0_6] : memref<1x8x16x128xbf16, #tpu.memory_space<vmem>>, vector<1x8x16x128xbf16>
    %2 = arith.extf %1 : vector<1x8x16x128xbf16> to vector<1x8x16x128xf32>
    %c0_7 = arith.constant 0 : index
    %c0_8 = arith.constant 0 : index
    %3 = vector.load %arg6[%c0_7, %c0_8] : memref<1x128xf32, #tpu.memory_space<vmem>>, vector<1x128xf32>
    %4 = vector.shape_cast %3 : vector<1x128xf32> to vector<1x1x1x128xf32>
    %5 = vector.broadcast %4 : vector<1x1x1x128xf32> to vector<1x8x16x128xf32>
    %6 = arith.subf %0, %5 : vector<1x8x16x128xf32>
    %c0_9 = arith.constant 0 : index
    %c0_10 = arith.constant 0 : index
    %7 = vector.load %arg7[%c0_9, %c0_10] : memref<1x128xf32, #tpu.memory_space<vmem>>, vector<1x128xf32>
    %c0_11 = arith.constant 0 : index
    %c0_12 = arith.constant 0 : index
    %8 = vector.load %arg4[%c0_11, %c0_12] : memref<1x128xf32, #tpu.memory_space<vmem>>, vector<1x128xf32>
    %9 = arith.mulf %7, %8 : vector<1x128xf32>
    %10 = vector.shape_cast %9 : vector<1x128xf32> to vector<1x1x1x128xf32>
    %11 = vector.broadcast %10 : vector<1x1x1x128xf32> to vector<1x8x16x128xf32>
    %12 = arith.mulf %6, %11 : vector<1x8x16x128xf32>
    %c0_13 = arith.constant 0 : index
    %c0_14 = arith.constant 0 : index
    %13 = vector.load %arg5[%c0_13, %c0_14] : memref<1x128xf32, #tpu.memory_space<vmem>>, vector<1x128xf32>
    %14 = vector.shape_cast %13 : vector<1x128xf32> to vector<1x1x1x128xf32>
    %15 = vector.broadcast %14 : vector<1x1x1x128xf32> to vector<1x8x16x128xf32>
    %16 = arith.addf %12, %15 : vector<1x8x16x128xf32>
    %17 = arith.addf %16, %2 : vector<1x8x16x128xf32>
    %cst = arith.constant 0.000000e+00 : f32
    %18 = vector.broadcast %cst : f32 to vector<1x8x16x128xf32>
    %19 = arith.maximumf %17, %18 : vector<1x8x16x128xf32>
    %c0_15 = arith.constant 0 : index
    %c0_16 = arith.constant 0 : index
    %c0_17 = arith.constant 0 : index
    %c0_18 = arith.constant 0 : index
    %20 = vector.load %arg8[%c0_15, %c0_16, %c0_17, %c0_18] : memref<1x8x16x128xf32, #tpu.memory_space<vmem>>, vector<1x8x16x128xf32>
    tpu.vector_store %arg8[%c0_15, %c0_16, %c0_17, %c0_18], %19 {strides = array<i32>} : memref<1x8x16x128xf32, #tpu.memory_space<vmem>>, vector<1x8x16x128xf32>,
    return
  }
  func.func @transform_0(%arg0: i32, %arg1: i32) -> (i32, i32, i32, i32) {
    %c0_i32 = arith.constant 0 : i32
    %c0_i32_0 = arith.constant 0 : i32
    %c0_i32_1 = arith.constant 0 : i32
    return %arg0, %arg1, %c0_i32, %c0_i32_0 : i32, i32, i32, i32
  }
  func.func @transform_1(%arg0: i32, %arg1: i32) -> (i32, i32, i32, i32) {
    %c0_i32 = arith.constant 0 : i32
    %c0_i32_0 = arith.constant 0 : i32
    %c0_i32_1 = arith.constant 0 : i32
    return %arg0, %arg1, %c0_i32, %c0_i32_0 : i32, i32, i32, i32
  }
  func.func @transform_2(%arg0: i32, %arg1: i32) -> (i32, i32) {
    %c0_i32 = arith.constant 0 : i32
    %c0_i32_0 = arith.constant 0 : i32
    %c0_i32_1 = arith.constant 0 : i32
    return %c0_i32, %c0_i32_0 : i32, i32
  }
  func.func @transform_3(%arg0: i32, %arg1: i32) -> (i32, i32) {
    %c0_i32 = arith.constant 0 : i32
    %c0_i32_0 = arith.constant 0 : i32
    %c0_i32_1 = arith.constant 0 : i32
    return %c0_i32, %c0_i32_0 : i32, i32
  }
  func.func @transform_4(%arg0: i32, %arg1: i32) -> (i32, i32) {
    %c0_i32 = arith.constant 0 : i32
    %c0_i32_0 = arith.constant 0 : i32
    %c0_i32_1 = arith.constant 0 : i32
    return %c0_i32, %c0_i32_0 : i32, i32
  }
  func.func @transform_5(%arg0: i32, %arg1: i32) -> (i32, i32) {
    %c0_i32 = arith.constant 0 : i32
    %c0_i32_0 = arith.constant 0 : i32
    %c0_i32_1 = arith.constant 0 : i32
    return %c0_i32, %c0_i32_0 : i32, i32
  }
  func.func @transform_6(%arg0: i32, %arg1: i32) -> (i32, i32, i32, i32) {
    %c0_i32 = arith.constant 0 : i32
    %c0_i32_0 = arith.constant 0 : i32
    %c0_i32_1 = arith.constant 0 : i32
    return %arg0, %arg1, %c0_i32, %c0_i32_0 : i32, i32, i32, i32
  }
}

</mosaic_0001>

<llo_original>
// kernel: basic_block_forward.5
$region0: #{basic_block_forward.5}
  #allocation0 [shape = 'u32[]', space=smem, size = 0x4, offset = 0x4, fixed_abs, tag = 'smem constant byte address 0x4 - core index']
  #allocation1 [shape = 'u32[144,128]{1,0:T(1,128)}', space=vmem, size = 0x12000, scoped, tag = 'internal scratch']
  %s0 = inlined_call_operand.vmem [shape: f32[2,16,16,128], index: 0, kind: input, shape index: {}]
  %s1 = inlined_call_operand.vmem [shape: bf16[2,16,16,128], index: 1, kind: input, shape index: {}]
  %s2 = inlined_call_operand.vmem [shape: f32[1,128], index: 2, kind: input, shape index: {}]
  %s3 = inlined_call_operand.vmem [shape: f32[1,128], index: 3, kind: input, shape index: {}]
  %s4 = inlined_call_operand.vmem [shape: f32[1,128], index: 4, kind: input, shape index: {}]
  %s5 = inlined_call_operand.vmem [shape: f32[1,128], index: 5, kind: input, shape index: {}]
  %s6 = inlined_call_operand.vmem [shape: f32[2,16,16,128], index: 6, kind: output, shape index: {}]
  %s7 = sld [smem:[#allocation0]]
  $region57: #{basic_block_forward.5} parent=0
    _
  %s9 = ssub.s32 1, %s7
  %s10 = scalar_select 0, %s9, %s7
  loop: start=0, step=1, limit=6
  $region2: #{basic_block_forward.5} parent=0 // loop_pre_header
    _
  $region3: #{basic_block_forward.5} parent=0 // loop_header
    %s12 = sphi 0, %s16
    %p13 = scmp.ge.s32.totalorder %s12, 6
    %s19 = sphi 0, %s31
    %s20 = sphi 0, %s27
    %s21 = sphi 0, %s19
    %s22 = sphi 0, %s20
    %s23 = sphi 0, %s21
    %s24 = sphi 0, %s22
    %s36 = sphi 0, %s38
    %s39 = sphi 0, %s36
    %s40 = sphi 0, %s39
    %s56 = sphi 0, %s40
    %s64 = sphi 0, %s66
    %s67 = sphi 0, %s64
    %s68 = sphi 0, %s67
    %s84 = sphi 0, %s68
    %s88 = sphi 0, %s88
    %s90 = sphi 0, %s88
    %s91 = sphi 0, %s90
    %s105 = sphi 0, %s91
    %s109 = sphi 0, %s109
    %s111 = sphi 0, %s109
    %s112 = sphi 0, %s111
    %s126 = sphi 0, %s112
    %s130 = sphi 0, %s130
    %s132 = sphi 0, %s130
    %s133 = sphi 0, %s132
    %s147 = sphi 0, %s133
    %s151 = sphi 0, %s151
    %s153 = sphi 0, %s151
    %s154 = sphi 0, %s153
    %s168 = sphi 0, %s154
    %s176 = sphi 0, %s178
    %s179 = sphi 0, %s176
    %s180 = sphi 0, %s179
    %s196 = sphi 0, %s180
  $region4: #{basic_block_forward.5} parent=0 // loop_header_branch
    %15 = sbr.rel (%p13) target = $region8
  $region5: #{basic_block_forward.5} parent=0 // loop_body
    %s17 = ssub.s32 %s12, 1
    %s18 = ssub.s32 %s12, 2
    %s25 = sadd.s32 1, %s20
    %p26 = scmp.ge.s32.totalorder %s25, 2
    %s27 = scalar_select %p26, 0, %s25
    %s28 = sadd.s32 1, %s19
    %s29 = scalar_select %p26, %s28, %s19
    %p30 = scmp.ge.s32.totalorder %s29, 2
    %s31 = scalar_select %p30, 0, %s29
    %s32 = ssub.s32 %s19, %s31
    %s33 = ssub.s32 %s20, %s27
    %s34 = sor.u32 %s32, %s33
    %p35 = scmp.eq.s32.totalorder %s34, 0
    %s37 = sadd.s32 %s36, 1
    %s38 = scalar_select %p35, %s36, %s37
    %p41 = pneg %p35
    %p42 = scmp.eq.s32.totalorder %s12, 3
    %p43 = por %p41, %p42
    %p44 = scmp.ne.s32.totalorder %s36, %s39
    %p45 = scmp.eq.s32.totalorder %s12, 0
    %p46 = por %p44, %p45
    %p47 = scmp.ne.s32.totalorder %s36, %s39
    %p48 = scmp.eq.s32.totalorder %s17, 3
    %p49 = por %p47, %p48
    %p50 = scmp.ne.s32.totalorder %s39, %s40
    %p51 = scmp.eq.s32.totalorder %s17, 0
    %p52 = por %p50, %p51
    %p53 = scmp.ne.s32.totalorder %s39, %s40
    %p54 = scmp.eq.s32.totalorder %s18, 3
    %p55 = por %p53, %p54
    %p57 = scmp.ne.s32.totalorder %s40, %s56
    %p58 = scmp.eq.s32.totalorder %s18, 0
    %p59 = por %p57, %p58
    %s60 = ssub.s32 %s19, %s31
    %s61 = ssub.s32 %s20, %s27
    %s62 = sor.u32 %s60, %s61
    %p63 = scmp.eq.s32.totalorder %s62, 0
    %s65 = sadd.s32 %s64, 1
    %s66 = scalar_select %p63, %s64, %s65
    %p69 = pneg %p63
    %p70 = scmp.eq.s32.totalorder %s12, 3
    %p71 = por %p69, %p70
    %p72 = scmp.ne.s32.totalorder %s64, %s67
    %p73 = scmp.eq.s32.totalorder %s12, 0
    %p74 = por %p72, %p73
    %p75 = scmp.ne.s32.totalorder %s64, %s67
    %p76 = scmp.eq.s32.totalorder %s17, 3
    %p77 = por %p75, %p76
    %p78 = scmp.ne.s32.totalorder %s67, %s68
    %p79 = scmp.eq.s32.totalorder %s17, 0
    %p80 = por %p78, %p79
    %p81 = scmp.ne.s32.totalorder %s67, %s68
    %p82 = scmp.eq.s32.totalorder %s18, 3
    %p83 = por %p81, %p82
    %p85 = scmp.ne.s32.totalorder %s68, %s84
    %p86 = scmp.eq.s32.totalorder %s18, 0
    %p87 = por %p85, %p86
    %s89 = sadd.s32 %s88, 1
    %p92 = scmp.eq.s32.totalorder %s12, 3
    %p93 = scmp.ne.s32.totalorder %s88, %s90
    %p94 = scmp.eq.s32.totalorder %s12, 0
    %p95 = por %p93, %p94
    %p96 = scmp.ne.s32.totalorder %s88, %s90
    %p97 = scmp.eq.s32.totalorder %s17, 3
    %p98 = por %p96, %p97
    %p99 = scmp.ne.s32.totalorder %s90, %s91
    %p100 = scmp.eq.s32.totalorder %s17, 0
    %p101 = por %p99, %p100
    %p102 = scmp.ne.s32.totalorder %s90, %s91
    %p103 = scmp.eq.s32.totalorder %s18, 3
    %p104 = por %p102, %p103
    %p106 = scmp.ne.s32.totalorder %s91, %s105
    %p107 = scmp.eq.s32.totalorder %s18, 0
    %p108 = por %p106, %p107
    %s110 = sadd.s32 %s109, 1
    %p113 = scmp.eq.s32.totalorder %s12, 3
    %p114 = scmp.ne.s32.totalorder %s109, %s111
    %p115 = scmp.eq.s32.totalorder %s12, 0
    %p116 = por %p114, %p115
    %p117 = scmp.ne.s32.totalorder %s109, %s111
    %p118 = scmp.eq.s32.totalorder %s17, 3
    %p119 = por %p117, %p118
    %p120 = scmp.ne.s32.totalorder %s111, %s112
    %p121 = scmp.eq.s32.totalorder %s17, 0
    %p122 = por %p120, %p121
    %p123 = scmp.ne.s32.totalorder %s111, %s112
    %p124 = scmp.eq.s32.totalorder %s18, 3
    %p125 = por %p123, %p124
    %p127 = scmp.ne.s32.totalorder %s112, %s126
    %p128 = scmp.eq.s32.totalorder %s18, 0
    %p129 = por %p127, %p128
    %s131 = sadd.s32 %s130, 1
    %p134 = scmp.eq.s32.totalorder %s12, 3
    %p135 = scmp.ne.s32.totalorder %s130, %s132
    %p136 = scmp.eq.s32.totalorder %s12, 0
    %p137 = por %p135, %p136
    %p138 = scmp.ne.s32.totalorder %s130, %s132
    %p139 = scmp.eq.s32.totalorder %s17, 3
    %p140 = por %p138, %p139
    %p141 = scmp.ne.s32.totalorder %s132, %s133
    %p142 = scmp.eq.s32.totalorder %s17, 0
    %p143 = por %p141, %p142
    %p144 = scmp.ne.s32.totalorder %s132, %s133
    %p145 = scmp.eq.s32.totalorder %s18, 3
    %p146 = por %p144, %p145
    %p148 = scmp.ne.s32.totalorder %s133, %s147
    %p149 = scmp.eq.s32.totalorder %s18, 0
    %p150 = por %p148, %p149
    %s152 = sadd.s32 %s151, 1
    %p155 = scmp.eq.s32.totalorder %s12, 3
    %p156 = scmp.ne.s32.totalorder %s151, %s153
    %p157 = scmp.eq.s32.totalorder %s12, 0
    %p158 = por %p156, %p157
    %p159 = scmp.ne.s32.totalorder %s151, %s153
    %p160 = scmp.eq.s32.totalorder %s17, 3
    %p161 = por %p159, %p160
    %p162 = scmp.ne.s32.totalorder %s153, %s154
    %p163 = scmp.eq.s32.totalorder %s17, 0
    %p164 = por %p162, %p163
    %p165 = scmp.ne.s32.totalorder %s153, %s154
    %p166 = scmp.eq.s32.totalorder %s18, 3
    %p167 = por %p165, %p166
    %p169 = scmp.ne.s32.totalorder %s154, %s168
    %p170 = scmp.eq.s32.totalorder %s18, 0
    %p171 = por %p169, %p170
    %s172 = ssub.s32 %s19, %s31
    %s173 = ssub.s32 %s20, %s27
    %s174 = sor.u32 %s172, %s173
    %p175 = scmp.eq.s32.totalorder %s174, 0
    %s177 = sadd.s32 %s176, 1
    %s178 = scalar_select %p175, %s176, %s177
    %p181 = pneg %p175
    %p182 = scmp.eq.s32.totalorder %s12, 3
    %p183 = por %p181, %p182
    %p184 = scmp.ne.s32.totalorder %s176, %s179
    %p185 = scmp.eq.s32.totalorder %s12, 0
    %p186 = por %p184, %p185
    %p187 = scmp.ne.s32.totalorder %s176, %s179
    %p188 = scmp.eq.s32.totalorder %s17, 3
    %p189 = por %p187, %p188
    %p190 = scmp.ne.s32.totalorder %s179, %s180
    %p191 = scmp.eq.s32.totalorder %s17, 0
    %p192 = por %p190, %p191
    %p193 = scmp.ne.s32.totalorder %s179, %s180
    %p194 = scmp.eq.s32.totalorder %s18, 3
    %p195 = por %p193, %p194
    %p197 = scmp.ne.s32.totalorder %s180, %s196
    %p198 = scmp.eq.s32.totalorder %s18, 0
    %p199 = por %p197, %p198
    %p200 = scmp.le.s32.totalorder 1, %s12
    %p201 = scmp.lt.s32.totalorder %s12, 5
    %p202 = pnand %p200, %p201
    %p203 = pneg %p202
    // Predicated region
    $region9: #{basic_block_forward.5} parent=5 // pred_check
      _
    $region10: #{basic_block_forward.5} parent=5 // pred_check_branch
      %205 = sbr.rel (%p202) target = $region12
    $region11: #{basic_block_forward.5} parent=5 // pred_region
      %s206 = ssub.s32 %s12, 1
      // Predicated region
      $region13: #{basic_block_forward.5} parent=11 // pred_check
        %p207 = pneg %p101
      $region14: #{basic_block_forward.5} parent=11 // pred_check_branch
        %209 = sbr.rel (%p207) target = $region16
      $region15: #{basic_block_forward.5} parent=11 // pred_region
        _
      $region16: #{basic_block_forward.5} parent=11 // pred_fallthru
        _
      // Predicated region
      $region17: #{basic_block_forward.5} parent=11 // pred_check
        %p210 = pneg %p122
      $region18: #{basic_block_forward.5} parent=11 // pred_check_branch
        %212 = sbr.rel (%p210) target = $region20
      $region19: #{basic_block_forward.5} parent=11 // pred_region
        _
      $region20: #{basic_block_forward.5} parent=11 // pred_fallthru
        _
      // Predicated region
      $region21: #{basic_block_forward.5} parent=11 // pred_check
        %p213 = pneg %p143
      $region22: #{basic_block_forward.5} parent=11 // pred_check_branch
        %215 = sbr.rel (%p213) target = $region24
      $region23: #{basic_block_forward.5} parent=11 // pred_region
        _
      $region24: #{basic_block_forward.5} parent=11 // pred_fallthru
        _
      // Predicated region
      $region25: #{basic_block_forward.5} parent=11 // pred_check
        %p216 = pneg %p164
      $region26: #{basic_block_forward.5} parent=11 // pred_check_branch
        %218 = sbr.rel (%p216) target = $region28
      $region27: #{basic_block_forward.5} parent=11 // pred_region
        _
      $region28: #{basic_block_forward.5} parent=11 // pred_fallthru
        _
    $region12: #{basic_block_forward.5} parent=5 // pred_fallthru
      _
    %p219 = scmp.lt.s32.totalorder %s12, 4
    // Predicated region
    $region29: #{basic_block_forward.5} parent=5 // pred_check
      %p220 = pneg %p219
    $region30: #{basic_block_forward.5} parent=5 // pred_check_branch
      %222 = sbr.rel (%p220) target = $region32
    $region31: #{basic_block_forward.5} parent=5 // pred_region
      // Predicated region
      $region33: #{basic_block_forward.5} parent=31 // pred_check
        %p223 = pneg %p46
      $region34: #{basic_block_forward.5} parent=31 // pred_check_branch
        %225 = sbr.rel (%p223) target = $region36
      $region35: #{basic_block_forward.5} parent=31 // pred_region
        %s226 = smul.u32 8, %s20
        %p227 = scmp.lt.s32.totalorder %s19, 1
        %s228 = scalar_select %p227, %s19, 1
        %p229 = scmp.lt.s32.totalorder %s226, 15
        %s230 = scalar_select %p229, %s226, 15
        %s231 = smul.addr %s230, 2
        %s232 = smul.addr %s228, 32
        %s233 = sadd.s32 %s231, %s232
        %s234 = smul.addr %s233, 8
        %s235 = scalar_lea.vmem %s0, %s234
        %s236 = smul.u32 8, %s20
      $region36: #{basic_block_forward.5} parent=31 // pred_fallthru
        _
      // Predicated region
      $region37: #{basic_block_forward.5} parent=31 // pred_check
        %p237 = pneg %p74
      $region38: #{basic_block_forward.5} parent=31 // pred_check_branch
        %239 = sbr.rel (%p237) target = $region40
      $region39: #{basic_block_forward.5} parent=31 // pred_region
        %s240 = smul.u32 8, %s20
        %p241 = scmp.lt.s32.totalorder %s19, 1
        %s242 = scalar_select %p241, %s19, 1
        %p243 = scmp.lt.s32.totalorder %s240, 15
        %s244 = scalar_select %p243, %s240, 15
        %s245 = smul.addr %s244, 2
        %s246 = smul.addr %s242, 32
        %s247 = sadd.s32 %s245, %s246
        %s248 = smul.addr %s247, 4
        %s249 = scalar_lea.vmem %s1, %s248
        %s250 = smul.u32 8, %s20
      $region40: #{basic_block_forward.5} parent=31 // pred_fallthru
        _
    $region32: #{basic_block_forward.5} parent=5 // pred_fallthru
      _
    %p251 = scmp.le.s32.totalorder 1, %s12
    %p252 = scmp.lt.s32.totalorder %s12, 5
    %p253 = pnand %p251, %p252
    %p254 = pneg %p253
    // Predicated region
    $region41: #{basic_block_forward.5} parent=5 // pred_check
      _
    $region42: #{basic_block_forward.5} parent=5 // pred_check_branch
      %256 = sbr.rel (%p253) target = $region44
    $region43: #{basic_block_forward.5} parent=5 // pred_region
      %s257 = ssub.s32 %s12, 1
      %s258 = smul.u32 8, %s22
      %p259 = scmp.lt.s32.totalorder %s21, 1
      %s260 = scalar_select %p259, %s21, 1
      %p261 = scmp.lt.s32.totalorder %s258, 15
      %s262 = scalar_select %p261, %s258, 15
      %s263 = smul.addr %s262, 2
      %s264 = smul.addr %s260, 32
      %s265 = sadd.s32 %s263, %s264
      %s266 = smul.addr %s265, 8
      %s267 = scalar_lea.vmem %s0, %s266
      %p268 = pneg %p52
      %p269 = pneg %p49
      %s270 = smul.u32 8, %s22
      %p271 = scmp.lt.s32.totalorder %s21, 1
      %s272 = scalar_select %p271, %s21, 1
      %p273 = scmp.lt.s32.totalorder %s270, 15
      %s274 = scalar_select %p273, %s270, 15
      %s275 = smul.addr %s274, 2
      %s276 = smul.addr %s272, 32
      %s277 = sadd.s32 %s275, %s276
      %s278 = smul.addr %s277, 4
      %s279 = scalar_lea.vmem %s1, %s278
      %p280 = pneg %p80
      %p281 = pneg %p77
      %p282 = pneg %p101
      %p283 = pneg %p98
      %p284 = pneg %p122
      %p285 = pneg %p119
      %p286 = pneg %p143
      %p287 = pneg %p140
      %p288 = pneg %p164
      %p289 = pneg %p161
      %p290 = pneg %p192
      %p291 = pneg %p189
      %s292 = smul.u32 8, %s22
      %p293 = scmp.lt.s32.totalorder %s21, 1
      %s294 = scalar_select %p293, %s21, 1
      %p295 = scmp.lt.s32.totalorder %s292, 15
      %s296 = scalar_select %p295, %s292, 15
      %s297 = smul.addr %s296, 2
      %s298 = smul.addr %s294, 32
      %s299 = sadd.s32 %s297, %s298
      %s300 = smul.addr %s299, 8
      %s301 = scalar_lea.vmem %s6, %s300
      %s302 = smul.u32 8, %s22
      %p303 = scmp.lt.s32.totalorder %s21, 1
      %s304 = scalar_select %p303, %s21, 1
      %p305 = scmp.lt.s32.totalorder %s302, 15
      %s306 = scalar_select %p305, %s302, 15
      %s307 = smul.addr %s306, 2
      %s308 = smul.addr %s304, 32
      %s309 = sadd.s32 %s307, %s308
      %s310 = smul.addr %s309, 8
      %s311 = scalar_lea.vmem %s0, %s310
      %s312 = smul.u32 8, %s22
      %s313 = smul.u32 8, %s22
      %p314 = scmp.lt.s32.totalorder %s21, 1
      %s315 = scalar_select %p314, %s21, 1
      %p316 = scmp.lt.s32.totalorder %s313, 15
      %s317 = scalar_select %p316, %s313, 15
      %s318 = smul.addr %s317, 2
      %s319 = smul.addr %s315, 32
      %s320 = sadd.s32 %s318, %s319
      %s321 = smul.addr %s320, 4
      %s322 = scalar_lea.vmem %s1, %s321
      %s323 = smul.u32 8, %s22
      %s324 = smul.u32 8, %s22
      %p325 = scmp.lt.s32.totalorder %s21, 1
      %s326 = scalar_select %p325, %s21, 1
      %p327 = scmp.lt.s32.totalorder %s324, 15
      %s328 = scalar_select %p327, %s324, 15
      %s329 = smul.addr %s328, 2
      %s330 = smul.addr %s326, 32
      %s331 = sadd.s32 %s329, %s330
      %s332 = smul.addr %s331, 8
      %s333 = scalar_lea.vmem %s6, %s332
      %s334 = smul.u32 8, %s22
      %v335 = vld [vmem:[%s311] sm:$0xff]
      %v336 = vld [vmem:[%s311 + $0x8] sm:$0xff]
      %v337 = vld [vmem:[%s311 + $0x10] sm:$0xff]
      %v338 = vld [vmem:[%s311 + $0x18] sm:$0xff]
      %v339 = vld [vmem:[%s311 + $0x20] sm:$0xff]
      %v340 = vld [vmem:[%s311 + $0x28] sm:$0xff]
      %v341 = vld [vmem:[%s311 + $0x30] sm:$0xff]
      %v342 = vld [vmem:[%s311 + $0x38] sm:$0xff]
      %v343 = vld [vmem:[%s311 + $0x40] sm:$0xff]
      %v344 = vld [vmem:[%s311 + $0x48] sm:$0xff]
      %v345 = vld [vmem:[%s311 + $0x50] sm:$0xff]
      %v346 = vld [vmem:[%s311 + $0x58] sm:$0xff]
      %v347 = vld [vmem:[%s311 + $0x60] sm:$0xff]
      %v348 = vld [vmem:[%s311 + $0x68] sm:$0xff]
      %v349 = vld [vmem:[%s311 + $0x70] sm:$0xff]
      %v350 = vld [vmem:[%s311 + $0x78] sm:$0xff]
      %v351 = vld [vmem:[%s322] sm:$0xf]
      %v352 = vld [vmem:[%s322 + $0x4] sm:$0xf]
      %v353 = vld [vmem:[%s322 + $0x8] sm:$0xf]
      %v354 = vld [vmem:[%s322 + $0xc] sm:$0xf]
      %v355 = vld [vmem:[%s322 + $0x10] sm:$0xf]
      %v356 = vld [vmem:[%s322 + $0x14] sm:$0xf]
      %v357 = vld [vmem:[%s322 + $0x18] sm:$0xf]
      %v358 = vld [vmem:[%s322 + $0x1c] sm:$0xf]
      %v359 = vld [vmem:[%s322 + $0x20] sm:$0xf]
      %v360 = vld [vmem:[%s322 + $0x24] sm:$0xf]
      %v361 = vld [vmem:[%s322 + $0x28] sm:$0xf]
      %v362 = vld [vmem:[%s322 + $0x2c] sm:$0xf]
      %v363 = vld [vmem:[%s322 + $0x30] sm:$0xf]
      %v364 = vld [vmem:[%s322 + $0x34] sm:$0xf]
      %v365 = vld [vmem:[%s322 + $0x38] sm:$0xf]
      %v366 = vld [vmem:[%s322 + $0x3c] sm:$0xf]
      %v367 = vunpack.c.l.bf16 %v351
      %v368 = vunpack.c.l.bf16 %v352
      %v369 = vunpack.c.l.bf16 %v353
      %v370 = vunpack.c.l.bf16 %v354
      %v371 = vunpack.c.l.bf16 %v355
      %v372 = vunpack.c.l.bf16 %v356
      %v373 = vunpack.c.l.bf16 %v357
      %v374 = vunpack.c.l.bf16 %v358
      %v375 = vunpack.c.l.bf16 %v359
      %v376 = vunpack.c.l.bf16 %v360
      %v377 = vunpack.c.l.bf16 %v361
      %v378 = vunpack.c.l.bf16 %v362
      %v379 = vunpack.c.l.bf16 %v363
      %v380 = vunpack.c.l.bf16 %v364
      %v381 = vunpack.c.l.bf16 %v365
      %v382 = vunpack.c.l.bf16 %v366
      %v383 = vld [vmem:[%s4] sm:$0x1]
      %v385 = vlaneseq
      %v386 = vshrl.u32 %v385, 7
      %v387 = vsub.s32 0, %v386
      %v388 = vrot.slane %v383, %v387
      %v390 = vsub.f32 %v335, %v388
      %v391 = vsub.f32 %v336, %v388
      %v392 = vsub.f32 %v337, %v388
      %v393 = vsub.f32 %v338, %v388
      %v394 = vsub.f32 %v339, %v388
      %v395 = vsub.f32 %v340, %v388
      %v396 = vsub.f32 %v341, %v388
      %v397 = vsub.f32 %v342, %v388
      %v398 = vsub.f32 %v343, %v388
      %v399 = vsub.f32 %v344, %v388
      %v400 = vsub.f32 %v345, %v388
      %v401 = vsub.f32 %v346, %v388
      %v402 = vsub.f32 %v347, %v388
      %v403 = vsub.f32 %v348, %v388
      %v404 = vsub.f32 %v349, %v388
      %v405 = vsub.f32 %v350, %v388
      %v406 = vld [vmem:[%s5] sm:$0x1]
      %v407 = vld [vmem:[%s2] sm:$0x1]
      %v408 = vmul.f32 %v406, %v407
      %v410 = vlaneseq
      %v411 = vshrl.u32 %v410, 7
      %v412 = vsub.s32 0, %v411
      %v413 = vrot.slane %v408, %v412
      %v415 = vmul.f32 %v390, %v413
      %v416 = vmul.f32 %v391, %v413
      %v417 = vmul.f32 %v392, %v413
      %v418 = vmul.f32 %v393, %v413
      %v419 = vmul.f32 %v394, %v413
      %v420 = vmul.f32 %v395, %v413
      %v421 = vmul.f32 %v396, %v413
      %v422 = vmul.f32 %v397, %v413
      %v423 = vmul.f32 %v398, %v413
      %v424 = vmul.f32 %v399, %v413
      %v425 = vmul.f32 %v400, %v413
      %v426 = vmul.f32 %v401, %v413
      %v427 = vmul.f32 %v402, %v413
      %v428 = vmul.f32 %v403, %v413
      %v429 = vmul.f32 %v404, %v413
      %v430 = vmul.f32 %v405, %v413
      %v431 = vld [vmem:[%s3] sm:$0x1]
      %v433 = vlaneseq
      %v434 = vshrl.u32 %v433, 7
      %v435 = vsub.s32 0, %v434
      %v436 = vrot.slane %v431, %v435
      %v438 = vadd.f32 %v415, %v436
      %v439 = vadd.f32 %v416, %v436
      %v440 = vadd.f32 %v417, %v436
      %v441 = vadd.f32 %v418, %v436
      %v442 = vadd.f32 %v419, %v436
      %v443 = vadd.f32 %v420, %v436
      %v444 = vadd.f32 %v421, %v436
      %v445 = vadd.f32 %v422, %v436
      %v446 = vadd.f32 %v423, %v436
      %v447 = vadd.f32 %v424, %v436
      %v448 = vadd.f32 %v425, %v436
      %v449 = vadd.f32 %v426, %v436
      %v450 = vadd.f32 %v427, %v436
      %v451 = vadd.f32 %v428, %v436
      %v452 = vadd.f32 %v429, %v436
      %v453 = vadd.f32 %v430, %v436
      %v454 = vadd.f32 %v438, %v367
      %v455 = vadd.f32 %v439, %v368
      %v456 = vadd.f32 %v440, %v369
      %v457 = vadd.f32 %v441, %v370
      %v458 = vadd.f32 %v442, %v371
      %v459 = vadd.f32 %v443, %v372
      %v460 = vadd.f32 %v444, %v373
      %v461 = vadd.f32 %v445, %v374
      %v462 = vadd.f32 %v446, %v375
      %v463 = vadd.f32 %v447, %v376
      %v464 = vadd.f32 %v448, %v377
      %v465 = vadd.f32 %v449, %v378
      %v466 = vadd.f32 %v450, %v379
      %v467 = vadd.f32 %v451, %v380
      %v468 = vadd.f32 %v452, %v381
      %v469 = vadd.f32 %v453, %v382
      %v470 = vmax.f32 %v454, 0.0
      %v471 = vmax.f32 %v455, 0.0
      %v472 = vmax.f32 %v456, 0.0
      %v473 = vmax.f32 %v457, 0.0
      %v474 = vmax.f32 %v458, 0.0
      %v475 = vmax.f32 %v459, 0.0
      %v476 = vmax.f32 %v460, 0.0
      %v477 = vmax.f32 %v461, 0.0
      %v478 = vmax.f32 %v462, 0.0
      %v479 = vmax.f32 %v463, 0.0
      %v480 = vmax.f32 %v464, 0.0
      %v481 = vmax.f32 %v465, 0.0
      %v482 = vmax.f32 %v466, 0.0
      %v483 = vmax.f32 %v467, 0.0
      %v484 = vmax.f32 %v468, 0.0
      %v485 = vmax.f32 %v469, 0.0
      %486 = vst [vmem:[%s333] sm:$0xff] %v470
      %487 = vst [vmem:[%s333 + $0x8] sm:$0xff] %v471
      %488 = vst [vmem:[%s333 + $0x10] sm:$0xff] %v472
      %489 = vst [vmem:[%s333 + $0x18] sm:$0xff] %v473
      %490 = vst [vmem:[%s333 + $0x20] sm:$0xff] %v474
      %491 = vst [vmem:[%s333 + $0x28] sm:$0xff] %v475
      %492 = vst [vmem:[%s333 + $0x30] sm:$0xff] %v476
      %493 = vst [vmem:[%s333 + $0x38] sm:$0xff] %v477
      %494 = vst [vmem:[%s333 + $0x40] sm:$0xff] %v478
      %495 = vst [vmem:[%s333 + $0x48] sm:$0xff] %v479
      %496 = vst [vmem:[%s333 + $0x50] sm:$0xff] %v480
      %497 = vst [vmem:[%s333 + $0x58] sm:$0xff] %v481
      %498 = vst [vmem:[%s333 + $0x60] sm:$0xff] %v482
      %499 = vst [vmem:[%s333 + $0x68] sm:$0xff] %v483
      %500 = vst [vmem:[%s333 + $0x70] sm:$0xff] %v484
      %501 = vst [vmem:[%s333 + $0x78] sm:$0xff] %v485
      %s502 = smul.u32 8, %s22
      %p503 = scmp.lt.s32.totalorder %s21, 1
      %s504 = scalar_select %p503, %s21, 1
      %p505 = scmp.lt.s32.totalorder %s502, 15
      %s506 = scalar_select %p505, %s502, 15
      %s507 = smul.addr %s506, 2
      %s508 = smul.addr %s504, 32
      %s509 = sadd.s32 %s507, %s508
      %s510 = smul.addr %s509, 8
      %s511 = scalar_lea.vmem %s6, %s510
      // Predicated region
      $region45: #{basic_block_forward.5} parent=43 // pred_check
        %p512 = pneg %p189
      $region46: #{basic_block_forward.5} parent=43 // pred_check_branch
        %514 = sbr.rel (%p512) target = $region48
      $region47: #{basic_block_forward.5} parent=43 // pred_region
        %s515 = smul.u32 8, %s22
      $region48: #{basic_block_forward.5} parent=43 // pred_fallthru
        _
    $region44: #{basic_block_forward.5} parent=5 // pred_fallthru
      _
    %p516 = scmp.le.s32.totalorder 2, %s12
    // Predicated region
    $region49: #{basic_block_forward.5} parent=5 // pred_check
      %p517 = pneg %p516
    $region50: #{basic_block_forward.5} parent=5 // pred_check_branch
      %519 = sbr.rel (%p517) target = $region52
    $region51: #{basic_block_forward.5} parent=5 // pred_region
      %s520 = ssub.s32 %s12, 2
      // Predicated region
      $region53: #{basic_block_forward.5} parent=51 // pred_check
        %p521 = pneg %p195
      $region54: #{basic_block_forward.5} parent=51 // pred_check_branch
        %523 = sbr.rel (%p521) target = $region56
      $region55: #{basic_block_forward.5} parent=51 // pred_region
        %s524 = smul.u32 8, %s24
        %p525 = scmp.lt.s32.totalorder %s23, 1
        %s526 = scalar_select %p525, %s23, 1
        %p527 = scmp.lt.s32.totalorder %s524, 15
        %s528 = scalar_select %p527, %s524, 15
        %s529 = smul.addr %s528, 2
        %s530 = smul.addr %s526, 32
        %s531 = sadd.s32 %s529, %s530
        %s532 = smul.addr %s531, 8
        %s533 = scalar_lea.vmem %s6, %s532
      $region56: #{basic_block_forward.5} parent=51 // pred_fallthru
        _
    $region52: #{basic_block_forward.5} parent=5 // pred_fallthru
      _
  $region6: #{basic_block_forward.5} parent=0 // loop_footer
    %s16 = sadd.s32 1, %s12
  $region7: #{basic_block_forward.5} parent=0 // loop_footer_branch
    %11 = sbr.rel target = $region3
  $region8: #{basic_block_forward.5} parent=0 // loop_exit
    _

// kernel: basic_block_forward.4
$region0: #{basic_block_forward.4}
  #allocation0 [shape = 'u32[]', space=smem, size = 0x4, offset = 0x4, fixed_abs, tag = 'smem constant byte address 0x4 - core index']
  #allocation1 [shape = 'u32[144,128]{1,0:T(1,128)}', space=vmem, size = 0x12000, scoped, tag = 'internal scratch']
  %s0 = inlined_call_operand.vmem [shape: f32[2,18,18,128], index: 0, kind: input, shape index: {}]
  %s1 = inlined_call_operand.vmem [shape: bf16[1152,128], index: 1, kind: input, shape index: {}]
  %s2 = inlined_call_operand.vmem [shape: f32[1,128], index: 2, kind: input, shape index: {}]
  %s3 = inlined_call_operand.vmem [shape: f32[1,128], index: 3, kind: input, shape index: {}]
  %s4 = inlined_call_operand.vmem [shape: f32[1,128], index: 4, kind: input, shape index: {}]
  %s5 = inlined_call_operand.vmem [shape: f32[1,128], index: 5, kind: input, shape index: {}]
  %s6 = inlined_call_operand.vmem [shape: f32[2,16,16,128], index: 6, kind: output, shape index: {0}]
  %s7 = inlined_call_operand.vmem [shape: f32[2,1,128], index: 7, kind: output, shape index: {1}]
  %s8 = inlined_call_operand.vmem [shape: f32[2,1,128], index: 8, kind: output, shape index: {2}]
  %9 = xla_tuple %s6, %s7, %s8
  %s10 = sld [smem:[#allocation0]]
  $region73: #{basic_block_forward.4} parent=0
    _
  %s12 = ssub.s32 1, %s10
  %s13 = scalar_select 0, %s12, %s10
  loop: start=0, step=1, limit=4
  $region2: #{basic_block_forward.4} parent=0 // loop_pre_header
    _
  $region3: #{basic_block_forward.4} parent=0 // loop_header
    %s15 = sphi 0, %s19
    %p16 = scmp.ge.s32.totalorder %s15, 4
    %s25 = sphi 0, %s27
    %s28 = sphi 0, %s25
    %s29 = sphi 0, %s28
    %s45 = sphi 0, %s29
    %s49 = sphi 0, %s49
    %s51 = sphi 0, %s49
    %s52 = sphi 0, %s51
    %s66 = sphi 0, %s52
    %s70 = sphi 0, %s70
    %s72 = sphi 0, %s70
    %s73 = sphi 0, %s72
    %s87 = sphi 0, %s73
    %s91 = sphi 0, %s91
    %s93 = sphi 0, %s91
    %s94 = sphi 0, %s93
    %s108 = sphi 0, %s94
    %s112 = sphi 0, %s112
    %s114 = sphi 0, %s112
    %s115 = sphi 0, %s114
    %s129 = sphi 0, %s115
    %s133 = sphi 0, %s133
    %s135 = sphi 0, %s133
    %s136 = sphi 0, %s135
    %s150 = sphi 0, %s136
    %s156 = sphi 0, %s158
    %s159 = sphi 0, %s156
    %s160 = sphi 0, %s159
    %s176 = sphi 0, %s160
    %s182 = sphi 0, %s184
    %s185 = sphi 0, %s182
    %s186 = sphi 0, %s185
    %s202 = sphi 0, %s186
    %s208 = sphi 0, %s210
    %s211 = sphi 0, %s208
    %s212 = sphi 0, %s211
    %s228 = sphi 0, %s212
  $region4: #{basic_block_forward.4} parent=0 // loop_header_branch
    %18 = sbr.rel (%p16) target = $region8
  $region5: #{basic_block_forward.4} parent=0 // loop_body
    %s20 = ssub.s32 %s15, 1
    %s21 = ssub.s32 %s15, 2
    %s22 = sadd.s32 %s15, 1
    %s23 = ssub.s32 %s15, %s22
    %p24 = scmp.eq.s32.totalorder %s23, 0
    %s26 = sadd.s32 %s25, 1
    %s27 = scalar_select %p24, %s25, %s26
    %p30 = pneg %p24
    %p31 = scmp.eq.s32.totalorder %s15, 1
    %p32 = por %p30, %p31
    %p33 = scmp.ne.s32.totalorder %s25, %s28
    %p34 = scmp.eq.s32.totalorder %s15, 0
    %p35 = por %p33, %p34
    %p36 = scmp.ne.s32.totalorder %s25, %s28
    %p37 = scmp.eq.s32.totalorder %s20, 1
    %p38 = por %p36, %p37
    %p39 = scmp.ne.s32.totalorder %s28, %s29
    %p40 = scmp.eq.s32.totalorder %s20, 0
    %p41 = por %p39, %p40
    %p42 = scmp.ne.s32.totalorder %s28, %s29
    %p43 = scmp.eq.s32.totalorder %s21, 1
    %p44 = por %p42, %p43
    %p46 = scmp.ne.s32.totalorder %s29, %s45
    %p47 = scmp.eq.s32.totalorder %s21, 0
    %p48 = por %p46, %p47
    %s50 = sadd.s32 %s49, 1
    %p53 = scmp.eq.s32.totalorder %s15, 1
    %p54 = scmp.ne.s32.totalorder %s49, %s51
    %p55 = scmp.eq.s32.totalorder %s15, 0
    %p56 = por %p54, %p55
    %p57 = scmp.ne.s32.totalorder %s49, %s51
    %p58 = scmp.eq.s32.totalorder %s20, 1
    %p59 = por %p57, %p58
    %p60 = scmp.ne.s32.totalorder %s51, %s52
    %p61 = scmp.eq.s32.totalorder %s20, 0
    %p62 = por %p60, %p61
    %p63 = scmp.ne.s32.totalorder %s51, %s52
    %p64 = scmp.eq.s32.totalorder %s21, 1
    %p65 = por %p63, %p64
    %p67 = scmp.ne.s32.totalorder %s52, %s66
    %p68 = scmp.eq.s32.totalorder %s21, 0
    %p69 = por %p67, %p68
    %s71 = sadd.s32 %s70, 1
    %p74 = scmp.eq.s32.totalorder %s15, 1
    %p75 = scmp.ne.s32.totalorder %s70, %s72
    %p76 = scmp.eq.s32.totalorder %s15, 0
    %p77 = por %p75, %p76
    %p78 = scmp.ne.s32.totalorder %s70, %s72
    %p79 = scmp.eq.s32.totalorder %s20, 1
    %p80 = por %p78, %p79
    %p81 = scmp.ne.s32.totalorder %s72, %s73
    %p82 = scmp.eq.s32.totalorder %s20, 0
    %p83 = por %p81, %p82
    %p84 = scmp.ne.s32.totalorder %s72, %s73
    %p85 = scmp.eq.s32.totalorder %s21, 1
    %p86 = por %p84, %p85
    %p88 = scmp.ne.s32.totalorder %s73, %s87
    %p89 = scmp.eq.s32.totalorder %s21, 0
    %p90 = por %p88, %p89
    %s92 = sadd.s32 %s91, 1
    %p95 = scmp.eq.s32.totalorder %s15, 1
    %p96 = scmp.ne.s32.totalorder %s91, %s93
    %p97 = scmp.eq.s32.totalorder %s15, 0
    %p98 = por %p96, %p97
    %p99 = scmp.ne.s32.totalorder %s91, %s93
    %p100 = scmp.eq.s32.totalorder %s20, 1
    %p101 = por %p99, %p100
    %p102 = scmp.ne.s32.totalorder %s93, %s94
    %p103 = scmp.eq.s32.totalorder %s20, 0
    %p104 = por %p102, %p103
    %p105 = scmp.ne.s32.totalorder %s93, %s94
    %p106 = scmp.eq.s32.totalorder %s21, 1
    %p107 = por %p105, %p106
    %p109 = scmp.ne.s32.totalorder %s94, %s108
    %p110 = scmp.eq.s32.totalorder %s21, 0
    %p111 = por %p109, %p110
    %s113 = sadd.s32 %s112, 1
    %p116 = scmp.eq.s32.totalorder %s15, 1
    %p117 = scmp.ne.s32.totalorder %s112, %s114
    %p118 = scmp.eq.s32.totalorder %s15, 0
    %p119 = por %p117, %p118
    %p120 = scmp.ne.s32.totalorder %s112, %s114
    %p121 = scmp.eq.s32.totalorder %s20, 1
    %p122 = por %p120, %p121
    %p123 = scmp.ne.s32.totalorder %s114, %s115
    %p124 = scmp.eq.s32.totalorder %s20, 0
    %p125 = por %p123, %p124
    %p126 = scmp.ne.s32.totalorder %s114, %s115
    %p127 = scmp.eq.s32.totalorder %s21, 1
    %p128 = por %p126, %p127
    %p130 = scmp.ne.s32.totalorder %s115, %s129
    %p131 = scmp.eq.s32.totalorder %s21, 0
    %p132 = por %p130, %p131
    %s134 = sadd.s32 %s133, 1
    %p137 = scmp.eq.s32.totalorder %s15, 1
    %p138 = scmp.ne.s32.totalorder %s133, %s135
    %p139 = scmp.eq.s32.totalorder %s15, 0
    %p140 = por %p138, %p139
    %p141 = scmp.ne.s32.totalorder %s133, %s135
    %p142 = scmp.eq.s32.totalorder %s20, 1
    %p143 = por %p141, %p142
    %p144 = scmp.ne.s32.totalorder %s135, %s136
    %p145 = scmp.eq.s32.totalorder %s20, 0
    %p146 = por %p144, %p145
    %p147 = scmp.ne.s32.totalorder %s135, %s136
    %p148 = scmp.eq.s32.totalorder %s21, 1
    %p149 = por %p147, %p148
    %p151 = scmp.ne.s32.totalorder %s136, %s150
    %p152 = scmp.eq.s32.totalorder %s21, 0
    %p153 = por %p151, %p152
    %s154 = ssub.s32 %s15, %s22
    %p155 = scmp.eq.s32.totalorder %s154, 0
    %s157 = sadd.s32 %s156, 1
    %s158 = scalar_select %p155, %s156, %s157
    %p161 = pneg %p155
    %p162 = scmp.eq.s32.totalorder %s15, 1
    %p163 = por %p161, %p162
    %p164 = scmp.ne.s32.totalorder %s156, %s159
    %p165 = scmp.eq.s32.totalorder %s15, 0
    %p166 = por %p164, %p165
    %p167 = scmp.ne.s32.totalorder %s156, %s159
    %p168 = scmp.eq.s32.totalorder %s20, 1
    %p169 = por %p167, %p168
    %p170 = scmp.ne.s32.totalorder %s159, %s160
    %p171 = scmp.eq.s32.totalorder %s20, 0
    %p172 = por %p170, %p171
    %p173 = scmp.ne.s32.totalorder %s159, %s160
    %p174 = scmp.eq.s32.totalorder %s21, 1
    %p175 = por %p173, %p174
    %p177 = scmp.ne.s32.totalorder %s160, %s176
    %p178 = scmp.eq.s32.totalorder %s21, 0
    %p179 = por %p177, %p178
    %s180 = ssub.s32 %s15, %s22
    %p181 = scmp.eq.s32.totalorder %s180, 0
    %s183 = sadd.s32 %s182, 1
    %s184 = scalar_select %p181, %s182, %s183
    %p187 = pneg %p181
    %p188 = scmp.eq.s32.totalorder %s15, 1
    %p189 = por %p187, %p188
    %p190 = scmp.ne.s32.totalorder %s182, %s185
    %p191 = scmp.eq.s32.totalorder %s15, 0
    %p192 = por %p190, %p191
    %p193 = scmp.ne.s32.totalorder %s182, %s185
    %p194 = scmp.eq.s32.totalorder %s20, 1
    %p195 = por %p193, %p194
    %p196 = scmp.ne.s32.totalorder %s185, %s186
    %p197 = scmp.eq.s32.totalorder %s20, 0
    %p198 = por %p196, %p197
    %p199 = scmp.ne.s32.totalorder %s185, %s186
    %p200 = scmp.eq.s32.totalorder %s21, 1
    %p201 = por %p199, %p200
    %p203 = scmp.ne.s32.totalorder %s186, %s202
    %p204 = scmp.eq.s32.totalorder %s21, 0
    %p205 = por %p203, %p204
    %s206 = ssub.s32 %s15, %s22
    %p207 = scmp.eq.s32.totalorder %s206, 0
    %s209 = sadd.s32 %s208, 1
    %s210 = scalar_select %p207, %s208, %s209
    %p213 = pneg %p207
    %p214 = scmp.eq.s32.totalorder %s15, 1
    %p215 = por %p213, %p214
    %p216 = scmp.ne.s32.totalorder %s208, %s211
    %p217 = scmp.eq.s32.totalorder %s15, 0
    %p218 = por %p216, %p217
    %p219 = scmp.ne.s32.totalorder %s208, %s211
    %p220 = scmp.eq.s32.totalorder %s20, 1
    %p221 = por %p219, %p220
    %p222 = scmp.ne.s32.totalorder %s211, %s212
    %p223 = scmp.eq.s32.totalorder %s20, 0
    %p224 = por %p222, %p223
    %p225 = scmp.ne.s32.totalorder %s211, %s212
    %p226 = scmp.eq.s32.totalorder %s21, 1
    %p227 = por %p225, %p226
    %p229 = scmp.ne.s32.totalorder %s212, %s228
    %p230 = scmp.eq.s32.totalorder %s21, 0
    %p231 = por %p229, %p230
    %p232 = scmp.le.s32.totalorder 1, %s15
    %p233 = scmp.lt.s32.totalorder %s15, 3
    %p234 = pnand %p232, %p233
    %p235 = pneg %p234
    // Predicated region
    $region9: #{basic_block_forward.4} parent=5 // pred_check
      _
    $region10: #{basic_block_forward.4} parent=5 // pred_check_branch
      %237 = sbr.rel (%p234) target = $region12
    $region11: #{basic_block_forward.4} parent=5 // pred_region
      %s238 = ssub.s32 %s15, 1
      // Predicated region
      $region13: #{basic_block_forward.4} parent=11 // pred_check
        %p239 = pneg %p62
      $region14: #{basic_block_forward.4} parent=11 // pred_check_branch
        %241 = sbr.rel (%p239) target = $region16
      $region15: #{basic_block_forward.4} parent=11 // pred_region
        _
      $region16: #{basic_block_forward.4} parent=11 // pred_fallthru
        _
      // Predicated region
      $region17: #{basic_block_forward.4} parent=11 // pred_check
        %p242 = pneg %p83
      $region18: #{basic_block_forward.4} parent=11 // pred_check_branch
        %244 = sbr.rel (%p242) target = $region20
      $region19: #{basic_block_forward.4} parent=11 // pred_region
        _
      $region20: #{basic_block_forward.4} parent=11 // pred_fallthru
        _
      // Predicated region
      $region21: #{basic_block_forward.4} parent=11 // pred_check
        %p245 = pneg %p104
      $region22: #{basic_block_forward.4} parent=11 // pred_check_branch
        %247 = sbr.rel (%p245) target = $region24
      $region23: #{basic_block_forward.4} parent=11 // pred_region
        _
      $region24: #{basic_block_forward.4} parent=11 // pred_fallthru
        _
      // Predicated region
      $region25: #{basic_block_forward.4} parent=11 // pred_check
        %p248 = pneg %p125
      $region26: #{basic_block_forward.4} parent=11 // pred_check_branch
        %250 = sbr.rel (%p248) target = $region28
      $region27: #{basic_block_forward.4} parent=11 // pred_region
        _
      $region28: #{basic_block_forward.4} parent=11 // pred_fallthru
        _
      // Predicated region
      $region29: #{basic_block_forward.4} parent=11 // pred_check
        %p251 = pneg %p146
      $region30: #{basic_block_forward.4} parent=11 // pred_check_branch
        %253 = sbr.rel (%p251) target = $region32
      $region31: #{basic_block_forward.4} parent=11 // pred_region
        _
      $region32: #{basic_block_forward.4} parent=11 // pred_fallthru
        _
    $region12: #{basic_block_forward.4} parent=5 // pred_fallthru
      _
    %p254 = scmp.lt.s32.totalorder %s15, 2
    // Predicated region
    $region33: #{basic_block_forward.4} parent=5 // pred_check
      %p255 = pneg %p254
    $region34: #{basic_block_forward.4} parent=5 // pred_check_branch
      %257 = sbr.rel (%p255) target = $region36
    $region35: #{basic_block_forward.4} parent=5 // pred_region
      // Predicated region
      $region37: #{basic_block_forward.4} parent=35 // pred_check
        %p258 = pneg %p35
      $region38: #{basic_block_forward.4} parent=35 // pred_check_branch
        %260 = sbr.rel (%p258) target = $region40
      $region39: #{basic_block_forward.4} parent=35 // pred_region
        %p261 = scmp.lt.s32.totalorder %s15, 1
        %s262 = scalar_select %p261, %s15, 1
        %s263 = smul.addr %s262, 54
        %s264 = smul.addr %s263, 8
        %s265 = scalar_lea.vmem %s0, %s264
      $region40: #{basic_block_forward.4} parent=35 // pred_fallthru
        _
    $region36: #{basic_block_forward.4} parent=5 // pred_fallthru
      _
    %p266 = scmp.le.s32.totalorder 1, %s15
    %p267 = scmp.lt.s32.totalorder %s15, 3
    %p268 = pnand %p266, %p267
    %p269 = pneg %p268
    // Predicated region
    $region41: #{basic_block_forward.4} parent=5 // pred_check
      _
    $region42: #{basic_block_forward.4} parent=5 // pred_check_branch
      %271 = sbr.rel (%p268) target = $region44
    $region43: #{basic_block_forward.4} parent=5 // pred_region
      %s272 = ssub.s32 %s15, 1
      %p273 = scmp.lt.s32.totalorder %s20, 1
      %s274 = scalar_select %p273, %s20, 1
      %s275 = smul.addr %s274, 54
      %s276 = smul.addr %s275, 8
      %s277 = scalar_lea.vmem %s0, %s276
      %p278 = pneg %p41
      %p279 = pneg %p38
      %p280 = pneg %p62
      %p281 = pneg %p59
      %p282 = pneg %p83
      %p283 = pneg %p80
      %p284 = pneg %p104
      %p285 = pneg %p101
      %p286 = pneg %p125
      %p287 = pneg %p122
      %p288 = pneg %p146
      %p289 = pneg %p143
      %p290 = pneg %p172
      %p291 = pneg %p169
      %p292 = scmp.lt.s32.totalorder %s20, 1
      %s293 = scalar_select %p292, %s20, 1
      %s294 = smul.addr %s293, 32
      %s295 = smul.addr %s294, 8
      %s296 = scalar_lea.vmem %s6, %s295
      %p297 = pneg %p198
      %p298 = pneg %p195
      %p299 = scmp.lt.s32.totalorder %s20, 1
      %s300 = scalar_select %p299, %s20, 1
      %s301 = scalar_lea.vmem %s7, %s300
      %p302 = pneg %p224
      %p303 = pneg %p221
      %p304 = scmp.lt.s32.totalorder %s20, 1
      %s305 = scalar_select %p304, %s20, 1
      %s306 = scalar_lea.vmem %s8, %s305
      %p307 = scmp.lt.s32.totalorder %s20, 1
      %s308 = scalar_select %p307, %s20, 1
      %s309 = smul.addr %s308, 54
      %s310 = smul.addr %s309, 8
      %s311 = scalar_lea.vmem %s0, %s310
      %p312 = scmp.lt.s32.totalorder %s20, 1
      %s313 = scalar_select %p312, %s20, 1
      %s314 = smul.addr %s313, 32
      %s315 = smul.addr %s314, 8
      %s316 = scalar_lea.vmem %s6, %s315
      %p317 = scmp.lt.s32.totalorder %s20, 1
      %s318 = scalar_select %p317, %s20, 1
      %s319 = scalar_lea.vmem %s7, %s318
      %p320 = scmp.lt.s32.totalorder %s20, 1
      %s321 = scalar_select %p320, %s20, 1
      %s322 = scalar_lea.vmem %s8, %s321
      %v324 = vld [vmem:[%s311] sm:$0xff]
      %v325 = vld [vmem:[%s311 + $0x8] sm:$0xff]
      %v326 = vld [vmem:[%s311 + $0x10] sm:$0x3]
      %v327 = vld [vmem:[%s311 + $0x18] sm:$0xff]
      %v328 = vld [vmem:[%s311 + $0x20] sm:$0xff]
      %v329 = vld [vmem:[%s311 + $0x28] sm:$0x3]
      %v330 = vld [vmem:[%s311 + $0x30] sm:$0xff]
      %v331 = vld [vmem:[%s311 + $0x38] sm:$0xff]
      %v332 = vld [vmem:[%s311 + $0x40] sm:$0x3]
      %v333 = vld [vmem:[%s311 + $0x48] sm:$0xff]
      %v334 = vld [vmem:[%s311 + $0x50] sm:$0xff]
      %v335 = vld [vmem:[%s311 + $0x58] sm:$0x3]
      %v336 = vld [vmem:[%s311 + $0x60] sm:$0xff]
      %v337 = vld [vmem:[%s311 + $0x68] sm:$0xff]
      %v338 = vld [vmem:[%s311 + $0x70] sm:$0x3]
      %v339 = vld [vmem:[%s311 + $0x78] sm:$0xff]
      %v340 = vld [vmem:[%s311 + $0x80] sm:$0xff]
      %v341 = vld [vmem:[%s311 + $0x88] sm:$0x3]
      %v342 = vld [vmem:[%s311 + $0x90] sm:$0xff]
      %v343 = vld [vmem:[%s311 + $0x98] sm:$0xff]
      %v344 = vld [vmem:[%s311 + $0xa0] sm:$0x3]
      %v345 = vld [vmem:[%s311 + $0xa8] sm:$0xff]
      %v346 = vld [vmem:[%s311 + $0xb0] sm:$0xff]
      %v347 = vld [vmem:[%s311 + $0xb8] sm:$0x3]
      %v348 = vld [vmem:[%s311 + $0xc0] sm:$0xff]
      %v349 = vld [vmem:[%s311 + $0xc8] sm:$0xff]
      %v350 = vld [vmem:[%s311 + $0xd0] sm:$0x3]
      %v351 = vld [vmem:[%s311 + $0xd8] sm:$0xff]
      %v352 = vld [vmem:[%s311 + $0xe0] sm:$0xff]
      %v353 = vld [vmem:[%s311 + $0xe8] sm:$0x3]
      %v354 = vld [vmem:[%s311 + $0xf0] sm:$0xff]
      %v355 = vld [vmem:[%s311 + $0xf8] sm:$0xff]
      %v356 = vld [vmem:[%s311 + $0x100] sm:$0x3]
      %v357 = vld [vmem:[%s311 + $0x108] sm:$0xff]
      %v358 = vld [vmem:[%s311 + $0x110] sm:$0xff]
      %v359 = vld [vmem:[%s311 + $0x118] sm:$0x3]
      %v360 = vld [vmem:[%s311 + $0x120] sm:$0xff]
      %v361 = vld [vmem:[%s311 + $0x128] sm:$0xff]
      %v362 = vld [vmem:[%s311 + $0x130] sm:$0x3]
      %v363 = vld [vmem:[%s311 + $0x138] sm:$0xff]
      %v364 = vld [vmem:[%s311 + $0x140] sm:$0xff]
      %v365 = vld [vmem:[%s311 + $0x148] sm:$0x3]
      %v366 = vld [vmem:[%s311 + $0x150] sm:$0xff]
      %v367 = vld [vmem:[%s311 + $0x158] sm:$0xff]
      %v368 = vld [vmem:[%s311 + $0x160] sm:$0x3]
      %v369 = vld [vmem:[%s311 + $0x168] sm:$0xff]
      %v370 = vld [vmem:[%s311 + $0x170] sm:$0xff]
      %v371 = vld [vmem:[%s311 + $0x178] sm:$0x3]
      %v372 = vld [vmem:[%s311 + $0x180] sm:$0xff]
      %v373 = vld [vmem:[%s311 + $0x188] sm:$0xff]
      %v374 = vld [vmem:[%s311 + $0x190] sm:$0x3]
      %v375 = vld [vmem:[%s311 + $0x198] sm:$0xff]
      %v376 = vld [vmem:[%s311 + $0x1a0] sm:$0xff]
      %v377 = vld [vmem:[%s311 + $0x1a8] sm:$0x3]
      %v378 = vld [vmem:[%s4] sm:$0x1]
      %v380 = vlaneseq
      %v381 = vshrl.u32 %v380, 7
      %v382 = vsub.s32 0, %v381
      %v383 = vrot.slane %v378, %v382
      %v385 = vsub.f32 %v324, %v383
      %v386 = vsub.f32 %v325, %v383
      %v387 = vsub.f32 %v326, %v383
      %v388 = vsub.f32 %v327, %v383
      %v389 = vsub.f32 %v328, %v383
      %v390 = vsub.f32 %v329, %v383
      %v391 = vsub.f32 %v330, %v383
      %v392 = vsub.f32 %v331, %v383
      %v393 = vsub.f32 %v332, %v383
      %v394 = vsub.f32 %v333, %v383
      %v395 = vsub.f32 %v334, %v383
      %v396 = vsub.f32 %v335, %v383
      %v397 = vsub.f32 %v336, %v383
      %v398 = vsub.f32 %v337, %v383
      %v399 = vsub.f32 %v338, %v383
      %v400 = vsub.f32 %v339, %v383
      %v401 = vsub.f32 %v340, %v383
      %v402 = vsub.f32 %v341, %v383
      %v403 = vsub.f32 %v342, %v383
      %v404 = vsub.f32 %v343, %v383
      %v405 = vsub.f32 %v344, %v383
      %v406 = vsub.f32 %v345, %v383
      %v407 = vsub.f32 %v346, %v383
      %v408 = vsub.f32 %v347, %v383
      %v409 = vsub.f32 %v348, %v383
      %v410 = vsub.f32 %v349, %v383
      %v411 = vsub.f32 %v350, %v383
      %v412 = vsub.f32 %v351, %v383
      %v413 = vsub.f32 %v352, %v383
      %v414 = vsub.f32 %v353, %v383
      %v415 = vsub.f32 %v354, %v383
      %v416 = vsub.f32 %v355, %v383
      %v417 = vsub.f32 %v356, %v383
      %v418 = vsub.f32 %v357, %v383
      %v419 = vsub.f32 %v358, %v383
      %v420 = vsub.f32 %v359, %v383
      %v421 = vsub.f32 %v360, %v383
      %v422 = vsub.f32 %v361, %v383
      %v423 = vsub.f32 %v362, %v383
      %v424 = vsub.f32 %v363, %v383
      %v425 = vsub.f32 %v364, %v383
      %v426 = vsub.f32 %v365, %v383
      %v427 = vsub.f32 %v366, %v383
      %v428 = vsub.f32 %v367, %v383
      %v429 = vsub.f32 %v368, %v383
      %v430 = vsub.f32 %v369, %v383
      %v431 = vsub.f32 %v370, %v383
      %v432 = vsub.f32 %v371, %v383
      %v433 = vsub.f32 %v372, %v383
      %v434 = vsub.f32 %v373, %v383
      %v435 = vsub.f32 %v374, %v383
      %v436 = vsub.f32 %v375, %v383
      %v437 = vsub.f32 %v376, %v383
      %v438 = vsub.f32 %v377, %v383
      %v439 = vld [vmem:[%s5] sm:$0x1]
      %v440 = vld [vmem:[%s2] sm:$0x1]
      %v441 = vmul.f32 %v439, %v440
      %v443 = vlaneseq
      %v444 = vshrl.u32 %v443, 7
      %v445 = vsub.s32 0, %v444
      %v446 = vrot.slane %v441, %v445
      %v448 = vmul.f32 %v385, %v446
      %v449 = vmul.f32 %v386, %v446
      %v450 = vmul.f32 %v387, %v446
      %v451 = vmul.f32 %v388, %v446
      %v452 = vmul.f32 %v389, %v446
      %v453 = vmul.f32 %v390, %v446
      %v454 = vmul.f32 %v391, %v446
      %v455 = vmul.f32 %v392, %v446
      %v456 = vmul.f32 %v393, %v446
      %v457 = vmul.f32 %v394, %v446
      %v458 = vmul.f32 %v395, %v446
      %v459 = vmul.f32 %v396, %v446
      %v460 = vmul.f32 %v397, %v446
      %v461 = vmul.f32 %v398, %v446
      %v462 = vmul.f32 %v399, %v446
      %v463 = vmul.f32 %v400, %v446
      %v464 = vmul.f32 %v401, %v446
      %v465 = vmul.f32 %v402, %v446
      %v466 = vmul.f32 %v403, %v446
      %v467 = vmul.f32 %v404, %v446
      %v468 = vmul.f32 %v405, %v446
      %v469 = vmul.f32 %v406, %v446
      %v470 = vmul.f32 %v407, %v446
      %v471 = vmul.f32 %v408, %v446
      %v472 = vmul.f32 %v409, %v446
      %v473 = vmul.f32 %v410, %v446
      %v474 = vmul.f32 %v411, %v446
      %v475 = vmul.f32 %v412, %v446
      %v476 = vmul.f32 %v413, %v446
      %v477 = vmul.f32 %v414, %v446
      %v478 = vmul.f32 %v415, %v446
      %v479 = vmul.f32 %v416, %v446
      %v480 = vmul.f32 %v417, %v446
      %v481 = vmul.f32 %v418, %v446
      %v482 = vmul.f32 %v419, %v446
      %v483 = vmul.f32 %v420, %v446
      %v484 = vmul.f32 %v421, %v446
      %v485 = vmul.f32 %v422, %v446
      %v486 = vmul.f32 %v423, %v446
      %v487 = vmul.f32 %v424, %v446
      %v488 = vmul.f32 %v425, %v446
      %v489 = vmul.f32 %v426, %v446
      %v490 = vmul.f32 %v427, %v446
      %v491 = vmul.f32 %v428, %v446
      %v492 = vmul.f32 %v429, %v446
      %v493 = vmul.f32 %v430, %v446
      %v494 = vmul.f32 %v431, %v446
      %v495 = vmul.f32 %v432, %v446
      %v496 = vmul.f32 %v433, %v446
      %v497 = vmul.f32 %v434, %v446
      %v498 = vmul.f32 %v435, %v446
      %v499 = vmul.f32 %v436, %v446
      %v500 = vmul.f32 %v437, %v446
      %v501 = vmul.f32 %v438, %v446
      %v502 = vld [vmem:[%s3] sm:$0x1]
      %v504 = vlaneseq
      %v505 = vshrl.u32 %v504, 7
      %v506 = vsub.s32 0, %v505
      %v507 = vrot.slane %v502, %v506
      %v509 = vadd.f32 %v448, %v507
      %v510 = vadd.f32 %v449, %v507
      %v511 = vadd.f32 %v450, %v507
      %v512 = vadd.f32 %v451, %v507
      %v513 = vadd.f32 %v452, %v507
      %v514 = vadd.f32 %v453, %v507
      %v515 = vadd.f32 %v454, %v507
      %v516 = vadd.f32 %v455, %v507
      %v517 = vadd.f32 %v456, %v507
      %v518 = vadd.f32 %v457, %v507
      %v519 = vadd.f32 %v458, %v507
      %v520 = vadd.f32 %v459, %v507
      %v521 = vadd.f32 %v460, %v507
      %v522 = vadd.f32 %v461, %v507
      %v523 = vadd.f32 %v462, %v507
      %v524 = vadd.f32 %v463, %v507
      %v525 = vadd.f32 %v464, %v507
      %v526 = vadd.f32 %v465, %v507
      %v527 = vadd.f32 %v466, %v507
      %v528 = vadd.f32 %v467, %v507
      %v529 = vadd.f32 %v468, %v507
      %v530 = vadd.f32 %v469, %v507
      %v531 = vadd.f32 %v470, %v507
      %v532 = vadd.f32 %v471, %v507
      %v533 = vadd.f32 %v472, %v507
      %v534 = vadd.f32 %v473, %v507
      %v535 = vadd.f32 %v474, %v507
      %v536 = vadd.f32 %v475, %v507
      %v537 = vadd.f32 %v476, %v507
      %v538 = vadd.f32 %v477, %v507
      %v539 = vadd.f32 %v478, %v507
      %v540 = vadd.f32 %v479, %v507
      %v541 = vadd.f32 %v480, %v507
      %v542 = vadd.f32 %v481, %v507
      %v543 = vadd.f32 %v482, %v507
      %v544 = vadd.f32 %v483, %v507
      %v545 = vadd.f32 %v484, %v507
      %v546 = vadd.f32 %v485, %v507
      %v547 = vadd.f32 %v486, %v507
      %v548 = vadd.f32 %v487, %v507
      %v549 = vadd.f32 %v488, %v507
      %v550 = vadd.f32 %v489, %v507
      %v551 = vadd.f32 %v490, %v507
      %v552 = vadd.f32 %v491, %v507
      %v553 = vadd.f32 %v492, %v507
      %v554 = vadd.f32 %v493, %v507
      %v555 = vadd.f32 %v494, %v507
      %v556 = vadd.f32 %v495, %v507
      %v557 = vadd.f32 %v496, %v507
      %v558 = vadd.f32 %v497, %v507
      %v559 = vadd.f32 %v498, %v507
      %v560 = vadd.f32 %v499, %v507
      %v561 = vadd.f32 %v500, %v507
      %v562 = vadd.f32 %v501, %v507
      %v563 = vmax.f32 %v509, 0.0
      %v564 = vmax.f32 %v510, 0.0
      %v565 = vmax.f32 %v511, 0.0
      %v566 = vmax.f32 %v512, 0.0
      %v567 = vmax.f32 %v513, 0.0
      %v568 = vmax.f32 %v514, 0.0
      %v569 = vmax.f32 %v515, 0.0
      %v570 = vmax.f32 %v516, 0.0
      %v571 = vmax.f32 %v517, 0.0
      %v572 = vmax.f32 %v518, 0.0
      %v573 = vmax.f32 %v519, 0.0
      %v574 = vmax.f32 %v520, 0.0
      %v575 = vmax.f32 %v521, 0.0
      %v576 = vmax.f32 %v522, 0.0
      %v577 = vmax.f32 %v523, 0.0
      %v578 = vmax.f32 %v524, 0.0
      %v579 = vmax.f32 %v525, 0.0
      %v580 = vmax.f32 %v526, 0.0
      %v581 = vmax.f32 %v527, 0.0
      %v582 = vmax.f32 %v528, 0.0
      %v583 = vmax.f32 %v529, 0.0
      %v584 = vmax.f32 %v530, 0.0
      %v585 = vmax.f32 %v531, 0.0
      %v586 = vmax.f32 %v532, 0.0
      %v587 = vmax.f32 %v533, 0.0
      %v588 = vmax.f32 %v534, 0.0
      %v589 = vmax.f32 %v535, 0.0
      %v590 = vmax.f32 %v536, 0.0
      %v591 = vmax.f32 %v537, 0.0
      %v592 = vmax.f32 %v538, 0.0
      %v593 = vmax.f32 %v539, 0.0
      %v594 = vmax.f32 %v540, 0.0
      %v595 = vmax.f32 %v541, 0.0
      %v596 = vmax.f32 %v542, 0.0
      %v597 = vmax.f32 %v543, 0.0
      %v598 = vmax.f32 %v544, 0.0
      %v599 = vmax.f32 %v545, 0.0
      %v600 = vmax.f32 %v546, 0.0
      %v601 = vmax.f32 %v547, 0.0
      %v602 = vmax.f32 %v548, 0.0
      %v603 = vmax.f32 %v549, 0.0
      %v604 = vmax.f32 %v550, 0.0
      %v605 = vmax.f32 %v551, 0.0
      %v606 = vmax.f32 %v552, 0.0
      %v607 = vmax.f32 %v553, 0.0
      %v608 = vmax.f32 %v554, 0.0
      %v609 = vmax.f32 %v555, 0.0
      %v610 = vmax.f32 %v556, 0.0
      %v611 = vmax.f32 %v557, 0.0
      %v612 = vmax.f32 %v558, 0.0
      %v613 = vmax.f32 %v559, 0.0
      %v614 = vmax.f32 %v560, 0.0
      %v615 = vmax.f32 %v561, 0.0
      %v616 = vmax.f32 %v562, 0.0
      %v617 = vlaneseq
      %v618 = vshrl.u32 %v617, 7
      %v619 = vadd.s32 %v618, 8
      %v620 = vadd.s32 %v618, 16
      %vm621 = vcmp.ge.s32.totalorder %v618, 1
      %vm622 = vcmp.ge.s32.totalorder %v619, 1
      %vm623 = vcmp.ge.s32.totalorder %v620, 1
      %vm624 = vmand 0, %vm621
      %vm625 = vmand 0, %vm622
      %vm626 = vmand 0, %vm623
      %vm627 = vmand 1, %vm621
      %vm628 = vmand 1, %vm622
      %vm629 = vmand 1, %vm623
      %vm630 = vcmp.le.s32.totalorder %v618, 16
      %vm631 = vcmp.le.s32.totalorder %v619, 16
      %vm632 = vcmp.le.s32.totalorder %v620, 16
      %vm633 = vmand %vm624, %vm630
      %vm634 = vmand %vm625, %vm631
      %vm635 = vmand %vm626, %vm632
      %vm636 = vmand %vm627, %vm630
      %vm637 = vmand %vm628, %vm631
      %vm638 = vmand %vm629, %vm632
      %v639 = vsel %vm633, %v563, 0.0
      %v640 = vsel %vm634, %v564, 0.0
      %v641 = vsel %vm635, %v565, 0.0
      %v642 = vsel %vm636, %v566, 0.0
      %v643 = vsel %vm637, %v567, 0.0
      %v644 = vsel %vm638, %v568, 0.0
      %v645 = vsel %vm636, %v569, 0.0
      %v646 = vsel %vm637, %v570, 0.0
      %v647 = vsel %vm638, %v571, 0.0
      %v648 = vsel %vm636, %v572, 0.0
      %v649 = vsel %vm637, %v573, 0.0
      %v650 = vsel %vm638, %v574, 0.0
      %v651 = vsel %vm636, %v575, 0.0
      %v652 = vsel %vm637, %v576, 0.0
      %v653 = vsel %vm638, %v577, 0.0
      %v654 = vsel %vm636, %v578, 0.0
      %v655 = vsel %vm637, %v579, 0.0
      %v656 = vsel %vm638, %v580, 0.0
      %v657 = vsel %vm636, %v581, 0.0
      %v658 = vsel %vm637, %v582, 0.0
      %v659 = vsel %vm638, %v583, 0.0
      %v660 = vsel %vm636, %v584, 0.0
      %v661 = vsel %vm637, %v585, 0.0
      %v662 = vsel %vm638, %v586, 0.0
      %v663 = vsel %vm636, %v587, 0.0
      %v664 = vsel %vm637, %v588, 0.0
      %v665 = vsel %vm638, %v589, 0.0
      %v666 = vsel %vm636, %v590, 0.0
      %v667 = vsel %vm637, %v591, 0.0
      %v668 = vsel %vm638, %v592, 0.0
      %v669 = vsel %vm636, %v593, 0.0
      %v670 = vsel %vm637, %v594, 0.0
      %v671 = vsel %vm638, %v595, 0.0
      %v672 = vsel %vm636, %v596, 0.0
      %v673 = vsel %vm637, %v597, 0.0
      %v674 = vsel %vm638, %v598, 0.0
      %v675 = vsel %vm636, %v599, 0.0
      %v676 = vsel %vm637, %v600, 0.0
      %v677 = vsel %vm638, %v601, 0.0
      %v678 = vsel %vm636, %v602, 0.0
      %v679 = vsel %vm637, %v603, 0.0
      %v680 = vsel %vm638, %v604, 0.0
      %v681 = vsel %vm636, %v605, 0.0
      %v682 = vsel %vm637, %v606, 0.0
      %v683 = vsel %vm638, %v607, 0.0
      %v684 = vsel %vm636, %v608, 0.0
      %v685 = vsel %vm637, %v609, 0.0
      %v686 = vsel %vm638, %v610, 0.0
      %v687 = vsel %vm636, %v611, 0.0
      %v688 = vsel %vm637, %v612, 0.0
      %v689 = vsel %vm638, %v613, 0.0
      %v690 = vsel %vm633, %v614, 0.0
      %v691 = vsel %vm634, %v615, 0.0
      %v692 = vsel %vm635, %v616, 0.0
      %v693 = vpack.c.bf16 %v640, %v639
      %v694 = vpack.c.bf16 %v641, %v641
      %v695 = vpack.c.bf16 %v643, %v642
      %v696 = vpack.c.bf16 %v644, %v644
      %v697 = vpack.c.bf16 %v646, %v645
      %v698 = vpack.c.bf16 %v647, %v647
      %v699 = vpack.c.bf16 %v649, %v648
      %v700 = vpack.c.bf16 %v650, %v650
      %v701 = vpack.c.bf16 %v652, %v651
      %v702 = vpack.c.bf16 %v653, %v653
      %v703 = vpack.c.bf16 %v655, %v654
      %v704 = vpack.c.bf16 %v656, %v656
      %v705 = vpack.c.bf16 %v658, %v657
      %v706 = vpack.c.bf16 %v659, %v659
      %v707 = vpack.c.bf16 %v661, %v660
      %v708 = vpack.c.bf16 %v662, %v662
      %v709 = vpack.c.bf16 %v664, %v663
      %v710 = vpack.c.bf16 %v665, %v665
      %v711 = vpack.c.bf16 %v667, %v666
      %v712 = vpack.c.bf16 %v668, %v668
      %v713 = vpack.c.bf16 %v670, %v669
      %v714 = vpack.c.bf16 %v671, %v671
      %v715 = vpack.c.bf16 %v673, %v672
      %v716 = vpack.c.bf16 %v674, %v674
      %v717 = vpack.c.bf16 %v676, %v675
      %v718 = vpack.c.bf16 %v677, %v677
      %v719 = vpack.c.bf16 %v679, %v678
      %v720 = vpack.c.bf16 %v680, %v680
      %v721 = vpack.c.bf16 %v682, %v681
      %v722 = vpack.c.bf16 %v683, %v683
      %v723 = vpack.c.bf16 %v685, %v684
      %v724 = vpack.c.bf16 %v686, %v686
      %v725 = vpack.c.bf16 %v688, %v687
      %v726 = vpack.c.bf16 %v689, %v689
      %v727 = vpack.c.bf16 %v691, %v690
      %v728 = vpack.c.bf16 %v692, %v692
      %vm729 = vsmask.f32 7424
      %v731 = vshrl.u32 %v693, 16
      %v733 = vshll.u32 %v693, 16
      %v735 = vrot.slane %v733, 1
      %v736 = vor.u32 %v731, %v735
      %v738 = vshll.u32 %v694, 16
      %v740 = vrot.slane %v738, 1
      %v741 = vsel %vm729, %v736, %v740
      %v743 = vshrl.u32 %v695, 16
      %v745 = vshll.u32 %v695, 16
      %v747 = vrot.slane %v745, 1
      %v748 = vor.u32 %v743, %v747
      %v750 = vshll.u32 %v696, 16
      %v752 = vrot.slane %v750, 1
      %v753 = vsel %vm729, %v748, %v752
      %v755 = vshrl.u32 %v697, 16
      %v757 = vshll.u32 %v697, 16
      %v759 = vrot.slane %v757, 1
      %v760 = vor.u32 %v755, %v759
      %v762 = vshll.u32 %v698, 16
      %v764 = vrot.slane %v762, 1
      %v765 = vsel %vm729, %v760, %v764
      %v767 = vshrl.u32 %v699, 16
      %v769 = vshll.u32 %v699, 16
      %v771 = vrot.slane %v769, 1
      %v772 = vor.u32 %v767, %v771
      %v774 = vshll.u32 %v700, 16
      %v776 = vrot.slane %v774, 1
      %v777 = vsel %vm729, %v772, %v776
      %v779 = vshrl.u32 %v701, 16
      %v781 = vshll.u32 %v701, 16
      %v783 = vrot.slane %v781, 1
      %v784 = vor.u32 %v779, %v783
      %v786 = vshll.u32 %v702, 16
      %v788 = vrot.slane %v786, 1
      %v789 = vsel %vm729, %v784, %v788
      %v791 = vshrl.u32 %v703, 16
      %v793 = vshll.u32 %v703, 16
      %v795 = vrot.slane %v793, 1
      %v796 = vor.u32 %v791, %v795
      %v798 = vshll.u32 %v704, 16
      %v800 = vrot.slane %v798, 1
      %v801 = vsel %vm729, %v796, %v800
      %v803 = vshrl.u32 %v705, 16
      %v805 = vshll.u32 %v705, 16
      %v807 = vrot.slane %v805, 1
      %v808 = vor.u32 %v803, %v807
      %v810 = vshll.u32 %v706, 16
      %v812 = vrot.slane %v810, 1
      %v813 = vsel %vm729, %v808, %v812
      %v815 = vshrl.u32 %v707, 16
      %v817 = vshll.u32 %v707, 16
      %v819 = vrot.slane %v817, 1
      %v820 = vor.u32 %v815, %v819
      %v822 = vshll.u32 %v708, 16
      %v824 = vrot.slane %v822, 1
      %v825 = vsel %vm729, %v820, %v824
      %v827 = vshrl.u32 %v709, 16
      %v829 = vshll.u32 %v709, 16
      %v831 = vrot.slane %v829, 1
      %v832 = vor.u32 %v827, %v831
      %v834 = vshll.u32 %v710, 16
      %v836 = vrot.slane %v834, 1
      %v837 = vsel %vm729, %v832, %v836
      %v839 = vshrl.u32 %v711, 16
      %v841 = vshll.u32 %v711, 16
      %v843 = vrot.slane %v841, 1
      %v844 = vor.u32 %v839, %v843
      %v846 = vshll.u32 %v712, 16
      %v848 = vrot.slane %v846, 1
      %v849 = vsel %vm729, %v844, %v848
      %v851 = vshrl.u32 %v713, 16
      %v853 = vshll.u32 %v713, 16
      %v855 = vrot.slane %v853, 1
      %v856 = vor.u32 %v851, %v855
      %v858 = vshll.u32 %v714, 16
      %v860 = vrot.slane %v858, 1
      %v861 = vsel %vm729, %v856, %v860
      %v863 = vshrl.u32 %v715, 16
      %v865 = vshll.u32 %v715, 16
      %v867 = vrot.slane %v865, 1
      %v868 = vor.u32 %v863, %v867
      %v870 = vshll.u32 %v716, 16
      %v872 = vrot.slane %v870, 1
      %v873 = vsel %vm729, %v868, %v872
      %v875 = vshrl.u32 %v717, 16
      %v877 = vshll.u32 %v717, 16
      %v879 = vrot.slane %v877, 1
      %v880 = vor.u32 %v875, %v879
      %v882 = vshll.u32 %v718, 16
      %v884 = vrot.slane %v882, 1
      %v885 = vsel %vm729, %v880, %v884
      %v887 = vshrl.u32 %v719, 16
      %v889 = vshll.u32 %v719, 16
      %v891 = vrot.slane %v889, 1
      %v892 = vor.u32 %v887, %v891
      %v894 = vshll.u32 %v720, 16
      %v896 = vrot.slane %v894, 1
      %v897 = vsel %vm729, %v892, %v896
      %v899 = vshrl.u32 %v721, 16
      %v901 = vshll.u32 %v721, 16
      %v903 = vrot.slane %v901, 1
      %v904 = vor.u32 %v899, %v903
      %v906 = vshll.u32 %v722, 16
      %v908 = vrot.slane %v906, 1
      %v909 = vsel %vm729, %v904, %v908
      %v911 = vshrl.u32 %v723, 16
      %v913 = vshll.u32 %v723, 16
      %v915 = vrot.slane %v913, 1
      %v916 = vor.u32 %v911, %v915
      %v918 = vshll.u32 %v724, 16
      %v920 = vrot.slane %v918, 1
      %v921 = vsel %vm729, %v916, %v920
      %vm970 = vcmask 1046528
      %v971 = vrot.slane %v693, 1
      %v972 = vrot.slane %v694, 1
      %v973 = vsel %vm970, %v971, %v972
      %v974 = vrot.slane %v695, 1
      %v975 = vrot.slane %v696, 1
      %v976 = vsel %vm970, %v974, %v975
      %v977 = vrot.slane %v697, 1
      %v978 = vrot.slane %v698, 1
      %v979 = vsel %vm970, %v977, %v978
      %v980 = vrot.slane %v699, 1
      %v981 = vrot.slane %v700, 1
      %v982 = vsel %vm970, %v980, %v981
      %v983 = vrot.slane %v701, 1
      %v984 = vrot.slane %v702, 1
      %v985 = vsel %vm970, %v983, %v984
      %v986 = vrot.slane %v703, 1
      %v987 = vrot.slane %v704, 1
      %v988 = vsel %vm970, %v986, %v987
      %v989 = vrot.slane %v705, 1
      %v990 = vrot.slane %v706, 1
      %v991 = vsel %vm970, %v989, %v990
      %v992 = vrot.slane %v707, 1
      %v993 = vrot.slane %v708, 1
      %v994 = vsel %vm970, %v992, %v993
      %v995 = vrot.slane %v709, 1
      %v996 = vrot.slane %v710, 1
      %v997 = vsel %vm970, %v995, %v996
      %v998 = vrot.slane %v711, 1
      %v999 = vrot.slane %v712, 1
      %v1000 = vsel %vm970, %v998, %v999
      %v1001 = vrot.slane %v713, 1
      %v1002 = vrot.slane %v714, 1
      %v1003 = vsel %vm970, %v1001, %v1002
      %v1004 = vrot.slane %v715, 1
      %v1005 = vrot.slane %v716, 1
      %v1006 = vsel %vm970, %v1004, %v1005
      %v1007 = vrot.slane %v717, 1
      %v1008 = vrot.slane %v718, 1
      %v1009 = vsel %vm970, %v1007, %v1008
      %v1010 = vrot.slane %v719, 1
      %v1011 = vrot.slane %v720, 1
      %v1012 = vsel %vm970, %v1010, %v1011
      %v1013 = vrot.slane %v721, 1
      %v1014 = vrot.slane %v722, 1
      %v1015 = vsel %vm970, %v1013, %v1014
      %v1016 = vrot.slane %v723, 1
      %v1017 = vrot.slane %v724, 1
      %v1018 = vsel %vm970, %v1016, %v1017
      %v1036 = vshrl.u32 %v725, 16
      %v1038 = vshll.u32 %v725, 16
      %v1040 = vrot.slane %v1038, 1
      %v1041 = vor.u32 %v1036, %v1040
      %v1043 = vshll.u32 %v726, 16
      %v1045 = vrot.slane %v1043, 1
      %v1046 = vsel %vm729, %v1041, %v1045
      %v1050 = vrot.slane %v725, 1
      %v1051 = vrot.slane %v726, 1
      %v1052 = vsel %vm970, %v1050, %v1051
      %v1055 = vshrl.u32 %v727, 16
      %v1057 = vshll.u32 %v727, 16
      %v1059 = vrot.slane %v1057, 1
      %v1060 = vor.u32 %v1055, %v1059
      %v1062 = vshll.u32 %v728, 16
      %v1064 = vrot.slane %v1062, 1
      %v1065 = vsel %vm729, %v1060, %v1064
      %v1069 = vrot.slane %v727, 1
      %v1070 = vrot.slane %v728, 1
      %v1071 = vsel %vm970, %v1069, %v1070
      %v1073 = vld [vmem:[%s1] sm:$0xf]
      %v1074 = vld [vmem:[%s1 + $0x4] sm:$0xf]
      %v1075 = vld [vmem:[%s1 + $0x8] sm:$0xf]
      %v1076 = vld [vmem:[%s1 + $0xc] sm:$0xf]
      %v1077 = vld [vmem:[%s1 + $0x10] sm:$0xf]
      %v1078 = vld [vmem:[%s1 + $0x14] sm:$0xf]
      %v1079 = vld [vmem:[%s1 + $0x18] sm:$0xf]
      %v1080 = vld [vmem:[%s1 + $0x1c] sm:$0xf]
      %v1081 = vld [vmem:[%s1 + $0x20] sm:$0xf]
      %v1082 = vld [vmem:[%s1 + $0x24] sm:$0xf]
      %v1083 = vld [vmem:[%s1 + $0x28] sm:$0xf]
      %v1084 = vld [vmem:[%s1 + $0x2c] sm:$0xf]
      %v1085 = vld [vmem:[%s1 + $0x30] sm:$0xf]
      %v1086 = vld [vmem:[%s1 + $0x34] sm:$0xf]
      %v1087 = vld [vmem:[%s1 + $0x38] sm:$0xf]
      %v1088 = vld [vmem:[%s1 + $0x3c] sm:$0xf]
      %v1089 = vld [vmem:[%s1 + $0x40] sm:$0xf]
      %v1090 = vld [vmem:[%s1 + $0x44] sm:$0xf]
      %v1091 = vld [vmem:[%s1 + $0x48] sm:$0xf]
      %v1092 = vld [vmem:[%s1 + $0x4c] sm:$0xf]
      %v1093 = vld [vmem:[%s1 + $0x50] sm:$0xf]
      %v1094 = vld [vmem:[%s1 + $0x54] sm:$0xf]
      %v1095 = vld [vmem:[%s1 + $0x58] sm:$0xf]
      %v1096 = vld [vmem:[%s1 + $0x5c] sm:$0xf]
      %v1097 = vld [vmem:[%s1 + $0x60] sm:$0xf]
      %v1098 = vld [vmem:[%s1 + $0x64] sm:$0xf]
      %v1099 = vld [vmem:[%s1 + $0x68] sm:$0xf]
      %v1100 = vld [vmem:[%s1 + $0x6c] sm:$0xf]
      %v1101 = vld [vmem:[%s1 + $0x70] sm:$0xf]
      %v1102 = vld [vmem:[%s1 + $0x74] sm:$0xf]
      %v1103 = vld [vmem:[%s1 + $0x78] sm:$0xf]
      %v1104 = vld [vmem:[%s1 + $0x7c] sm:$0xf]
      %v1105 = vld [vmem:[%s1 + $0x80] sm:$0xf]
      %v1106 = vld [vmem:[%s1 + $0x84] sm:$0xf]
      %v1107 = vld [vmem:[%s1 + $0x88] sm:$0xf]
      %v1108 = vld [vmem:[%s1 + $0x8c] sm:$0xf]
      %v1109 = vld [vmem:[%s1 + $0x90] sm:$0xf]
      %v1110 = vld [vmem:[%s1 + $0x94] sm:$0xf]
      %v1111 = vld [vmem:[%s1 + $0x98] sm:$0xf]
      %v1112 = vld [vmem:[%s1 + $0x9c] sm:$0xf]
      %v1113 = vld [vmem:[%s1 + $0xa0] sm:$0xf]
      %v1114 = vld [vmem:[%s1 + $0xa4] sm:$0xf]
      %v1115 = vld [vmem:[%s1 + $0xa8] sm:$0xf]
      %v1116 = vld [vmem:[%s1 + $0xac] sm:$0xf]
      %v1117 = vld [vmem:[%s1 + $0xb0] sm:$0xf]
      %v1118 = vld [vmem:[%s1 + $0xb4] sm:$0xf]
      %v1119 = vld [vmem:[%s1 + $0xb8] sm:$0xf]
      %v1120 = vld [vmem:[%s1 + $0xbc] sm:$0xf]
      %v1121 = vld [vmem:[%s1 + $0xc0] sm:$0xf]
      %v1122 = vld [vmem:[%s1 + $0xc4] sm:$0xf]
      %v1123 = vld [vmem:[%s1 + $0xc8] sm:$0xf]
      %v1124 = vld [vmem:[%s1 + $0xcc] sm:$0xf]
      %v1125 = vld [vmem:[%s1 + $0xd0] sm:$0xf]
      %v1126 = vld [vmem:[%s1 + $0xd4] sm:$0xf]
      %v1127 = vld [vmem:[%s1 + $0xd8] sm:$0xf]
      %v1128 = vld [vmem:[%s1 + $0xdc] sm:$0xf]
      %v1129 = vld [vmem:[%s1 + $0xe0] sm:$0xf]
      %v1130 = vld [vmem:[%s1 + $0xe4] sm:$0xf]
      %v1131 = vld [vmem:[%s1 + $0xe8] sm:$0xf]
      %v1132 = vld [vmem:[%s1 + $0xec] sm:$0xf]
      %v1133 = vld [vmem:[%s1 + $0xf0] sm:$0xf]
      %v1134 = vld [vmem:[%s1 + $0xf4] sm:$0xf]
      %v1135 = vld [vmem:[%s1 + $0xf8] sm:$0xf]
      %v1136 = vld [vmem:[%s1 + $0xfc] sm:$0xf]
      %v1137 = vld [vmem:[%s1 + $0x100] sm:$0xf]
      %v1138 = vld [vmem:[%s1 + $0x104] sm:$0xf]
      %v1139 = vld [vmem:[%s1 + $0x108] sm:$0xf]
      %v1140 = vld [vmem:[%s1 + $0x10c] sm:$0xf]
      %v1141 = vld [vmem:[%s1 + $0x110] sm:$0xf]
      %v1142 = vld [vmem:[%s1 + $0x114] sm:$0xf]
      %v1143 = vld [vmem:[%s1 + $0x118] sm:$0xf]
      %v1144 = vld [vmem:[%s1 + $0x11c] sm:$0xf]
      %v1145 = vld [vmem:[%s1 + $0x120] sm:$0xf]
      %v1146 = vld [vmem:[%s1 + $0x124] sm:$0xf]
      %v1147 = vld [vmem:[%s1 + $0x128] sm:$0xf]
      %v1148 = vld [vmem:[%s1 + $0x12c] sm:$0xf]
      %v1149 = vld [vmem:[%s1 + $0x130] sm:$0xf]
      %v1150 = vld [vmem:[%s1 + $0x134] sm:$0xf]
      %v1151 = vld [vmem:[%s1 + $0x138] sm:$0xf]
      %v1152 = vld [vmem:[%s1 + $0x13c] sm:$0xf]
      %v1153 = vld [vmem:[%s1 + $0x140] sm:$0xf]
      %v1154 = vld [vmem:[%s1 + $0x144] sm:$0xf]
      %v1155 = vld [vmem:[%s1 + $0x148] sm:$0xf]
      %v1156 = vld [vmem:[%s1 + $0x14c] sm:$0xf]
      %v1157 = vld [vmem:[%s1 + $0x150] sm:$0xf]
      %v1158 = vld [vmem:[%s1 + $0x154] sm:$0xf]
      %v1159 = vld [vmem:[%s1 + $0x158] sm:$0xf]
      %v1160 = vld [vmem:[%s1 + $0x15c] sm:$0xf]
      %v1161 = vld [vmem:[%s1 + $0x160] sm:$0xf]
      %v1162 = vld [vmem:[%s1 + $0x164] sm:$0xf]
      %v1163 = vld [vmem:[%s1 + $0x168] sm:$0xf]
      %v1164 = vld [vmem:[%s1 + $0x16c] sm:$0xf]
      %v1165 = vld [vmem:[%s1 + $0x170] sm:$0xf]
      %v1166 = vld [vmem:[%s1 + $0x174] sm:$0xf]
      %v1167 = vld [vmem:[%s1 + $0x178] sm:$0xf]
      %v1168 = vld [vmem:[%s1 + $0x17c] sm:$0xf]
      %v1169 = vld [vmem:[%s1 + $0x180] sm:$0xf]
      %v1170 = vld [vmem:[%s1 + $0x184] sm:$0xf]
      %v1171 = vld [vmem:[%s1 + $0x188] sm:$0xf]
      %v1172 = vld [vmem:[%s1 + $0x18c] sm:$0xf]
      %v1173 = vld [vmem:[%s1 + $0x190] sm:$0xf]
      %v1174 = vld [vmem:[%s1 + $0x194] sm:$0xf]
      %v1175 = vld [vmem:[%s1 + $0x198] sm:$0xf]
      %v1176 = vld [vmem:[%s1 + $0x19c] sm:$0xf]
      %v1177 = vld [vmem:[%s1 + $0x1a0] sm:$0xf]
      %v1178 = vld [vmem:[%s1 + $0x1a4] sm:$0xf]
      %v1179 = vld [vmem:[%s1 + $0x1a8] sm:$0xf]
      %v1180 = vld [vmem:[%s1 + $0x1ac] sm:$0xf]
      %v1181 = vld [vmem:[%s1 + $0x1b0] sm:$0xf]
      %v1182 = vld [vmem:[%s1 + $0x1b4] sm:$0xf]
      %v1183 = vld [vmem:[%s1 + $0x1b8] sm:$0xf]
      %v1184 = vld [vmem:[%s1 + $0x1bc] sm:$0xf]
      %v1185 = vld [vmem:[%s1 + $0x1c0] sm:$0xf]
      %v1186 = vld [vmem:[%s1 + $0x1c4] sm:$0xf]
      %v1187 = vld [vmem:[%s1 + $0x1c8] sm:$0xf]
      %v1188 = vld [vmem:[%s1 + $0x1cc] sm:$0xf]
      %v1189 = vld [vmem:[%s1 + $0x1d0] sm:$0xf]
      %v1190 = vld [vmem:[%s1 + $0x1d4] sm:$0xf]
      %v1191 = vld [vmem:[%s1 + $0x1d8] sm:$0xf]
      %v1192 = vld [vmem:[%s1 + $0x1dc] sm:$0xf]
      %v1193 = vld [vmem:[%s1 + $0x1e0] sm:$0xf]
      %v1194 = vld [vmem:[%s1 + $0x1e4] sm:$0xf]
      %v1195 = vld [vmem:[%s1 + $0x1e8] sm:$0xf]
      %v1196 = vld [vmem:[%s1 + $0x1ec] sm:$0xf]
      %v1197 = vld [vmem:[%s1 + $0x1f0] sm:$0xf]
      %v1198 = vld [vmem:[%s1 + $0x1f4] sm:$0xf]
      %v1199 = vld [vmem:[%s1 + $0x1f8] sm:$0xf]
      %v1200 = vld [vmem:[%s1 + $0x1fc] sm:$0xf]
      %v1201 = vld [vmem:[%s1 + $0x200] sm:$0xf]
      %v1202 = vld [vmem:[%s1 + $0x204] sm:$0xf]
      %v1203 = vld [vmem:[%s1 + $0x208] sm:$0xf]
      %v1204 = vld [vmem:[%s1 + $0x20c] sm:$0xf]
      %v1205 = vld [vmem:[%s1 + $0x210] sm:$0xf]
      %v1206 = vld [vmem:[%s1 + $0x214] sm:$0xf]
      %v1207 = vld [vmem:[%s1 + $0x218] sm:$0xf]
      %v1208 = vld [vmem:[%s1 + $0x21c] sm:$0xf]
      %v1209 = vld [vmem:[%s1 + $0x220] sm:$0xf]
      %v1210 = vld [vmem:[%s1 + $0x224] sm:$0xf]
      %v1211 = vld [vmem:[%s1 + $0x228] sm:$0xf]
      %v1212 = vld [vmem:[%s1 + $0x22c] sm:$0xf]
      %v1213 = vld [vmem:[%s1 + $0x230] sm:$0xf]
      %v1214 = vld [vmem:[%s1 + $0x234] sm:$0xf]
      %v1215 = vld [vmem:[%s1 + $0x238] sm:$0xf]
      %v1216 = vld [vmem:[%s1 + $0x23c] sm:$0xf]
      %v1361 = vunpack.c.l.b16 %v1073
      %v1362 = vunpack.c.l.b16 %v1074
      %v1363 = vunpack.c.l.b16 %v1075
      %v1364 = vunpack.c.l.b16 %v1076
      %v1365 = vunpack.c.l.b16 %v1077
      %v1366 = vunpack.c.l.b16 %v1078
      %v1367 = vunpack.c.l.b16 %v1079
      %v1368 = vunpack.c.l.b16 %v1080
      %v1369 = vunpack.c.l.b16 %v1081
      %v1370 = vunpack.c.l.b16 %v1082
      %v1371 = vunpack.c.l.b16 %v1083
      %v1372 = vunpack.c.l.b16 %v1084
      %v1373 = vunpack.c.l.b16 %v1085
      %v1374 = vunpack.c.l.b16 %v1086
      %v1375 = vunpack.c.l.b16 %v1087
      %v1376 = vunpack.c.l.b16 %v1088
      %v1377 = vunpack.c.l.b16 %v1089
      %v1378 = vunpack.c.l.b16 %v1090
      %v1379 = vunpack.c.l.b16 %v1091
      %v1380 = vunpack.c.l.b16 %v1092
      %v1381 = vunpack.c.l.b16 %v1093
      %v1382 = vunpack.c.l.b16 %v1094
      %v1383 = vunpack.c.l.b16 %v1095
      %v1384 = vunpack.c.l.b16 %v1096
      %v1385 = vunpack.c.l.b16 %v1097
      %v1386 = vunpack.c.l.b16 %v1098
      %v1387 = vunpack.c.l.b16 %v1099
      %v1388 = vunpack.c.l.b16 %v1100
      %v1389 = vunpack.c.l.b16 %v1101
      %v1390 = vunpack.c.l.b16 %v1102
      %v1391 = vunpack.c.l.b16 %v1103
      %v1392 = vunpack.c.l.b16 %v1104
      %v1393 = vunpack.c.l.b16 %v1105
      %v1394 = vunpack.c.l.b16 %v1106
      %v1395 = vunpack.c.l.b16 %v1107
      %v1396 = vunpack.c.l.b16 %v1108
      %v1397 = vunpack.c.l.b16 %v1109
      %v1398 = vunpack.c.l.b16 %v1110
      %v1399 = vunpack.c.l.b16 %v1111
      %v1400 = vunpack.c.l.b16 %v1112
      %v1401 = vunpack.c.l.b16 %v1113
      %v1402 = vunpack.c.l.b16 %v1114
      %v1403 = vunpack.c.l.b16 %v1115
      %v1404 = vunpack.c.l.b16 %v1116
      %v1405 = vunpack.c.l.b16 %v1117
      %v1406 = vunpack.c.l.b16 %v1118
      %v1407 = vunpack.c.l.b16 %v1119
      %v1408 = vunpack.c.l.b16 %v1120
      %v1409 = vunpack.c.l.b16 %v1121
      %v1410 = vunpack.c.l.b16 %v1122
      %v1411 = vunpack.c.l.b16 %v1123
      %v1412 = vunpack.c.l.b16 %v1124
      %v1413 = vunpack.c.l.b16 %v1125
      %v1414 = vunpack.c.l.b16 %v1126
      %v1415 = vunpack.c.l.b16 %v1127
      %v1416 = vunpack.c.l.b16 %v1128
      %v1417 = vunpack.c.l.b16 %v1129
      %v1418 = vunpack.c.l.b16 %v1130
      %v1419 = vunpack.c.l.b16 %v1131
      %v1420 = vunpack.c.l.b16 %v1132
      %v1421 = vunpack.c.l.b16 %v1133
      %v1422 = vunpack.c.l.b16 %v1134
      %v1423 = vunpack.c.l.b16 %v1135
      %v1424 = vunpack.c.l.b16 %v1136
      %v1425 = vunpack.c.l.b16 %v1137
      %v1426 = vunpack.c.l.b16 %v1138
      %v1427 = vunpack.c.l.b16 %v1139
      %v1428 = vunpack.c.l.b16 %v1140
      %v1429 = vunpack.c.l.b16 %v1141
      %v1430 = vunpack.c.l.b16 %v1142
      %v1431 = vunpack.c.l.b16 %v1143
      %v1432 = vunpack.c.l.b16 %v1144
      %v1433 = vunpack.c.l.b16 %v1145
      %v1434 = vunpack.c.l.b16 %v1146
      %v1435 = vunpack.c.l.b16 %v1147
      %v1436 = vunpack.c.l.b16 %v1148
      %v1437 = vunpack.c.l.b16 %v1149
      %v1438 = vunpack.c.l.b16 %v1150
      %v1439 = vunpack.c.l.b16 %v1151
      %v1440 = vunpack.c.l.b16 %v1152
      %v1441 = vunpack.c.l.b16 %v1153
      %v1442 = vunpack.c.l.b16 %v1154
      %v1443 = vunpack.c.l.b16 %v1155
      %v1444 = vunpack.c.l.b16 %v1156
      %v1445 = vunpack.c.l.b16 %v1157
      %v1446 = vunpack.c.l.b16 %v1158
      %v1447 = vunpack.c.l.b16 %v1159
      %v1448 = vunpack.c.l.b16 %v1160
      %v1449 = vunpack.c.l.b16 %v1161
      %v1450 = vunpack.c.l.b16 %v1162
      %v1451 = vunpack.c.l.b16 %v1163
      %v1452 = vunpack.c.l.b16 %v1164
      %v1453 = vunpack.c.l.b16 %v1165
      %v1454 = vunpack.c.l.b16 %v1166
      %v1455 = vunpack.c.l.b16 %v1167
      %v1456 = vunpack.c.l.b16 %v1168
      %v1457 = vunpack.c.l.b16 %v1169
      %v1458 = vunpack.c.l.b16 %v1170
      %v1459 = vunpack.c.l.b16 %v1171
      %v1460 = vunpack.c.l.b16 %v1172
      %v1461 = vunpack.c.l.b16 %v1173
      %v1462 = vunpack.c.l.b16 %v1174
      %v1463 = vunpack.c.l.b16 %v1175
      %v1464 = vunpack.c.l.b16 %v1176
      %v1465 = vunpack.c.l.b16 %v1177
      %v1466 = vunpack.c.l.b16 %v1178
      %v1467 = vunpack.c.l.b16 %v1179
      %v1468 = vunpack.c.l.b16 %v1180
      %v1469 = vunpack.c.l.b16 %v1181
      %v1470 = vunpack.c.l.b16 %v1182
      %v1471 = vunpack.c.l.b16 %v1183
      %v1472 = vunpack.c.l.b16 %v1184
      %v1473 = vunpack.c.l.b16 %v1185
      %v1474 = vunpack.c.l.b16 %v1186
      %v1475 = vunpack.c.l.b16 %v1187
      %v1476 = vunpack.c.l.b16 %v1188
      %v1477 = vunpack.c.l.b16 %v1189
      %v1478 = vunpack.c.l.b16 %v1190
      %v1479 = vunpack.c.l.b16 %v1191
      %v1480 = vunpack.c.l.b16 %v1192
      %v1481 = vunpack.c.l.b16 %v1193
      %v1482 = vunpack.c.l.b16 %v1194
      %v1483 = vunpack.c.l.b16 %v1195
      %v1484 = vunpack.c.l.b16 %v1196
      %v1485 = vunpack.c.l.b16 %v1197
      %v1486 = vunpack.c.l.b16 %v1198
      %v1487 = vunpack.c.l.b16 %v1199
      %v1488 = vunpack.c.l.b16 %v1200
      %v1489 = vunpack.c.l.b16 %v1201
      %v1490 = vunpack.c.l.b16 %v1202
      %v1491 = vunpack.c.l.b16 %v1203
      %v1492 = vunpack.c.l.b16 %v1204
      %v1493 = vunpack.c.l.b16 %v1205
      %v1494 = vunpack.c.l.b16 %v1206
      %v1495 = vunpack.c.l.b16 %v1207
      %v1496 = vunpack.c.l.b16 %v1208
      %v1497 = vunpack.c.l.b16 %v1209
      %v1498 = vunpack.c.l.b16 %v1210
      %v1499 = vunpack.c.l.b16 %v1211
      %v1500 = vunpack.c.l.b16 %v1212
      %v1501 = vunpack.c.l.b16 %v1213
      %v1502 = vunpack.c.l.b16 %v1214
      %v1503 = vunpack.c.l.b16 %v1215
      %v1504 = vunpack.c.l.b16 %v1216
      %v1505 = vpack.c.b16 %v1362, %v1361
      %v1506 = vpack.c.b16 %v1364, %v1363
      %v1507 = vpack.c.b16 %v1366, %v1365
      %v1508 = vpack.c.b16 %v1368, %v1367
      %v1509 = vpack.c.b16 %v1370, %v1369
      %v1510 = vpack.c.b16 %v1372, %v1371
      %v1511 = vpack.c.b16 %v1374, %v1373
      %v1512 = vpack.c.b16 %v1376, %v1375
      %v1513 = vpack.c.b16 %v1378, %v1377
      %v1514 = vpack.c.b16 %v1380, %v1379
      %v1515 = vpack.c.b16 %v1382, %v1381
      %v1516 = vpack.c.b16 %v1384, %v1383
      %v1517 = vpack.c.b16 %v1386, %v1385
      %v1518 = vpack.c.b16 %v1388, %v1387
      %v1519 = vpack.c.b16 %v1390, %v1389
      %v1520 = vpack.c.b16 %v1392, %v1391
      %v1521 = vpack.c.b16 %v1394, %v1393
      %v1522 = vpack.c.b16 %v1396, %v1395
      %v1523 = vpack.c.b16 %v1398, %v1397
      %v1524 = vpack.c.b16 %v1400, %v1399
      %v1525 = vpack.c.b16 %v1402, %v1401
      %v1526 = vpack.c.b16 %v1404, %v1403
      %v1527 = vpack.c.b16 %v1406, %v1405
      %v1528 = vpack.c.b16 %v1408, %v1407
      %v1529 = vpack.c.b16 %v1410, %v1409
      %v1530 = vpack.c.b16 %v1412, %v1411
      %v1531 = vpack.c.b16 %v1414, %v1413
      %v1532 = vpack.c.b16 %v1416, %v1415
      %v1533 = vpack.c.b16 %v1418, %v1417
      %v1534 = vpack.c.b16 %v1420, %v1419
      %v1535 = vpack.c.b16 %v1422, %v1421
      %v1536 = vpack.c.b16 %v1424, %v1423
      %v1537 = vpack.c.b16 %v1426, %v1425
      %v1538 = vpack.c.b16 %v1428, %v1427
      %v1539 = vpack.c.b16 %v1430, %v1429
      %v1540 = vpack.c.b16 %v1432, %v1431
      %v1541 = vpack.c.b16 %v1434, %v1433
      %v1542 = vpack.c.b16 %v1436, %v1435
      %v1543 = vpack.c.b16 %v1438, %v1437
      %v1544 = vpack.c.b16 %v1440, %v1439
      %v1545 = vpack.c.b16 %v1442, %v1441
      %v1546 = vpack.c.b16 %v1444, %v1443
      %v1547 = vpack.c.b16 %v1446, %v1445
      %v1548 = vpack.c.b16 %v1448, %v1447
      %v1549 = vpack.c.b16 %v1450, %v1449
      %v1550 = vpack.c.b16 %v1452, %v1451
      %v1551 = vpack.c.b16 %v1454, %v1453
      %v1552 = vpack.c.b16 %v1456, %v1455
      %v1553 = vpack.c.b16 %v1458, %v1457
      %v1554 = vpack.c.b16 %v1460, %v1459
      %v1555 = vpack.c.b16 %v1462, %v1461
      %v1556 = vpack.c.b16 %v1464, %v1463
      %v1557 = vpack.c.b16 %v1466, %v1465
      %v1558 = vpack.c.b16 %v1468, %v1467
      %v1559 = vpack.c.b16 %v1470, %v1469
      %v1560 = vpack.c.b16 %v1472, %v1471
      %v1561 = vpack.c.b16 %v1474, %v1473
      %v1562 = vpack.c.b16 %v1476, %v1475
      %v1563 = vpack.c.b16 %v1478, %v1477
      %v1564 = vpack.c.b16 %v1480, %v1479
      %v1565 = vpack.c.b16 %v1482, %v1481
      %v1566 = vpack.c.b16 %v1484, %v1483
      %v1567 = vpack.c.b16 %v1486, %v1485
      %v1568 = vpack.c.b16 %v1488, %v1487
      %v1569 = vpack.c.b16 %v1490, %v1489
      %v1570 = vpack.c.b16 %v1492, %v1491
      %v1571 = vpack.c.b16 %v1494, %v1493
      %v1572 = vpack.c.b16 %v1496, %v1495
      %v1573 = vpack.c.b16 %v1498, %v1497
      %v1574 = vpack.c.b16 %v1500, %v1499
      %v1575 = vpack.c.b16 %v1502, %v1501
      %v1576 = vpack.c.b16 %v1504, %v1503
      %1649 = vmatprep.subr.bf16.mxu0 0
      %1650 = vmatpush1.bf16.msra.mxu0 %v1512
      %1651 = vmatprep.subr.bf16.mxu0 0
      %1652 = vmatpush1.bf16.msra.mxu0 %v1511
      %1653 = vmatprep.subr.bf16.mxu0 0
      %1654 = vmatpush1.bf16.msra.mxu0 %v1510
      %1655 = vmatprep.subr.bf16.mxu0 0
      %1656 = vmatpush1.bf16.msra.mxu0 %v1509
      %1657 = vmatprep.subr.bf16.mxu0 0
      %1658 = vmatpush1.bf16.msra.mxu0 %v1508
      %1659 = vmatprep.subr.bf16.mxu0 0
      %1660 = vmatpush1.bf16.msra.mxu0 %v1507
      %1661 = vmatprep.subr.bf16.mxu0 0
      %1662 = vmatpush1.bf16.msra.mxu0 %v1506
      %1663 = vmatprep.subr.bf16.mxu0 0
      %1664 = vmatpush1.bf16.msra.mxu0 %v1505
      %1665 = vmatprep.subr.bf16.mxu0 0
      %1666 = vmatpush2.bf16.msra.mxu0 %v1520
      %1667 = vmatprep.subr.bf16.mxu0 0
      %1668 = vmatpush2.bf16.msra.mxu0 %v1519
      %1669 = vmatprep.subr.bf16.mxu0 0
      %1670 = vmatpush2.bf16.msra.mxu0 %v1518
      %1671 = vmatprep.subr.bf16.mxu0 0
      %1672 = vmatpush2.bf16.msra.mxu0 %v1517
      %1673 = vmatprep.subr.bf16.mxu0 0
      %1674 = vmatpush2.bf16.msra.mxu0 %v1516
      %1675 = vmatprep.subr.bf16.mxu0 0
      %1676 = vmatpush2.bf16.msra.mxu0 %v1515
      %1677 = vmatprep.subr.bf16.mxu0 0
      %1678 = vmatpush2.bf16.msra.mxu0 %v1514
      %1679 = vmatprep.subr.bf16.mxu0 0
      %1680 = vmatpush2.bf16.msra.mxu0 %v1513
      %1681 = vmatprep.mubr.bf16.mxu0 %v741
      %1682 = vmatmul.mubr.bf16.gmra.mxu0 %v693
      %v1683 = vpop.f32.mrf.mxu0
      %v1684 = vadd.f32 0.0, %v1683
      %v1685 = vpop.f32.mrf.mxu0
      %v1686 = vpop.f32.mrf.mxu0
      %v1687 = vadd.f32 0.0, %v1686
      %v1688 = vpop.f32.mrf.mxu0
      %1689 = vmatprep.mubr.bf16.mxu0 %v753
      %1690 = vmatmul.mubr.bf16.gmra.mxu0 %v695
      %v1691 = vpop.f32.mrf.mxu0
      %v1692 = vadd.f32 0.0, %v1691
      %v1693 = vpop.f32.mrf.mxu0
      %v1694 = vpop.f32.mrf.mxu0
      %v1695 = vadd.f32 0.0, %v1694
      %v1696 = vpop.f32.mrf.mxu0
      %1697 = vmatprep.mubr.bf16.mxu0 %v765
      %1698 = vmatmul.mubr.bf16.gmra.mxu0 %v697
      %v1699 = vpop.f32.mrf.mxu0
      %v1700 = vadd.f32 0.0, %v1699
      %v1701 = vpop.f32.mrf.mxu0
      %v1702 = vpop.f32.mrf.mxu0
      %v1703 = vadd.f32 0.0, %v1702
      %v1704 = vpop.f32.mrf.mxu0
      %1705 = vmatprep.mubr.bf16.mxu0 %v777
      %1706 = vmatmul.mubr.bf16.gmra.mxu0 %v699
      %v1707 = vpop.f32.mrf.mxu0
      %v1708 = vadd.f32 0.0, %v1707
      %v1709 = vpop.f32.mrf.mxu0
      %v1710 = vpop.f32.mrf.mxu0
      %v1711 = vadd.f32 0.0, %v1710
      %v1712 = vpop.f32.mrf.mxu0
      %1713 = vmatprep.mubr.bf16.mxu0 %v789
      %1714 = vmatmul.mubr.bf16.gmra.mxu0 %v701
      %v1715 = vpop.f32.mrf.mxu0
      %v1716 = vadd.f32 0.0, %v1715
      %v1717 = vpop.f32.mrf.mxu0
      %v1718 = vpop.f32.mrf.mxu0
      %v1719 = vadd.f32 0.0, %v1718
      %v1720 = vpop.f32.mrf.mxu0
      %1721 = vmatprep.mubr.bf16.mxu0 %v801
      %1722 = vmatmul.mubr.bf16.gmra.mxu0 %v703
      %v1723 = vpop.f32.mrf.mxu0
      %v1724 = vadd.f32 0.0, %v1723
      %v1725 = vpop.f32.mrf.mxu0
      %v1726 = vpop.f32.mrf.mxu0
      %v1727 = vadd.f32 0.0, %v1726
      %v1728 = vpop.f32.mrf.mxu0
      %1729 = vmatprep.mubr.bf16.mxu0 %v813
      %1730 = vmatmul.mubr.bf16.gmra.mxu0 %v705
      %v1731 = vpop.f32.mrf.mxu0
      %v1732 = vadd.f32 0.0, %v1731
      %v1733 = vpop.f32.mrf.mxu0
      %v1734 = vpop.f32.mrf.mxu0
      %v1735 = vadd.f32 0.0, %v1734
      %v1736 = vpop.f32.mrf.mxu0
      %1737 = vmatprep.mubr.bf16.mxu0 %v825
      %1738 = vmatmul.mubr.bf16.gmra.mxu0 %v707
      %v1739 = vpop.f32.mrf.mxu0
      %v1740 = vadd.f32 0.0, %v1739
      %v1741 = vpop.f32.mrf.mxu0
      %v1742 = vpop.f32.mrf.mxu0
      %v1743 = vadd.f32 0.0, %v1742
      %v1744 = vpop.f32.mrf.mxu0
      %1745 = vmatprep.mubr.bf16.mxu0 %v837
      %1746 = vmatmul.mubr.bf16.gmra.mxu0 %v709
      %v1747 = vpop.f32.mrf.mxu0
      %v1748 = vadd.f32 0.0, %v1747
      %v1749 = vpop.f32.mrf.mxu0
      %v1750 = vpop.f32.mrf.mxu0
      %v1751 = vadd.f32 0.0, %v1750
      %v1752 = vpop.f32.mrf.mxu0
      %1753 = vmatprep.mubr.bf16.mxu0 %v849
      %1754 = vmatmul.mubr.bf16.gmra.mxu0 %v711
      %v1755 = vpop.f32.mrf.mxu0
      %v1756 = vadd.f32 0.0, %v1755
      %v1757 = vpop.f32.mrf.mxu0
      %v1758 = vpop.f32.mrf.mxu0
      %v1759 = vadd.f32 0.0, %v1758
      %v1760 = vpop.f32.mrf.mxu0
      %1761 = vmatprep.mubr.bf16.mxu0 %v861
      %1762 = vmatmul.mubr.bf16.gmra.mxu0 %v713
      %v1763 = vpop.f32.mrf.mxu0
      %v1764 = vadd.f32 0.0, %v1763
      %v1765 = vpop.f32.mrf.mxu0
      %v1766 = vpop.f32.mrf.mxu0
      %v1767 = vadd.f32 0.0, %v1766
      %v1768 = vpop.f32.mrf.mxu0
      %1769 = vmatprep.mubr.bf16.mxu0 %v873
      %1770 = vmatmul.mubr.bf16.gmra.mxu0 %v715
      %v1771 = vpop.f32.mrf.mxu0
      %v1772 = vadd.f32 0.0, %v1771
      %v1773 = vpop.f32.mrf.mxu0
      %v1774 = vpop.f32.mrf.mxu0
      %v1775 = vadd.f32 0.0, %v1774
      %v1776 = vpop.f32.mrf.mxu0
      %1777 = vmatprep.mubr.bf16.mxu0 %v885
      %1778 = vmatmul.mubr.bf16.gmra.mxu0 %v717
      %v1779 = vpop.f32.mrf.mxu0
      %v1780 = vadd.f32 0.0, %v1779
      %v1781 = vpop.f32.mrf.mxu0
      %v1782 = vpop.f32.mrf.mxu0
      %v1783 = vadd.f32 0.0, %v1782
      %v1784 = vpop.f32.mrf.mxu0
      %1785 = vmatprep.mubr.bf16.mxu0 %v897
      %1786 = vmatmul.mubr.bf16.gmra.mxu0 %v719
      %v1787 = vpop.f32.mrf.mxu0
      %v1788 = vadd.f32 0.0, %v1787
      %v1789 = vpop.f32.mrf.mxu0
      %v1790 = vpop.f32.mrf.mxu0
      %v1791 = vadd.f32 0.0, %v1790
      %v1792 = vpop.f32.mrf.mxu0
      %1793 = vmatprep.mubr.bf16.mxu0 %v909
      %1794 = vmatmul.mubr.bf16.gmra.mxu0 %v721
      %v1795 = vpop.f32.mrf.mxu0
      %v1796 = vadd.f32 0.0, %v1795
      %v1797 = vpop.f32.mrf.mxu0
      %v1798 = vpop.f32.mrf.mxu0
      %v1799 = vadd.f32 0.0, %v1798
      %v1800 = vpop.f32.mrf.mxu0
      %1801 = vmatprep.mubr.bf16.mxu0 %v921
      %1802 = vmatmul.mubr.bf16.gmra.mxu0 %v723
      %v1803 = vpop.f32.mrf.mxu0
      %v1804 = vadd.f32 0.0, %v1803
      %v1805 = vpop.f32.mrf.mxu0
      %v1806 = vpop.f32.mrf.mxu0
      %v1807 = vadd.f32 0.0, %v1806
      %v1808 = vpop.f32.mrf.mxu0
      %1809 = vdwg.mxu0
      %1810 = vmatprep.subr.bf16.mxu0 0
      %1811 = vmatpush1.bf16.msra.mxu0 %v1528
      %1812 = vmatprep.subr.bf16.mxu0 0
      %1813 = vmatpush1.bf16.msra.mxu0 %v1527
      %1814 = vmatprep.subr.bf16.mxu0 0
      %1815 = vmatpush1.bf16.msra.mxu0 %v1526
      %1816 = vmatprep.subr.bf16.mxu0 0
      %1817 = vmatpush1.bf16.msra.mxu0 %v1525
      %1818 = vmatprep.subr.bf16.mxu0 0
      %1819 = vmatpush1.bf16.msra.mxu0 %v1524
      %1820 = vmatprep.subr.bf16.mxu0 0
      %1821 = vmatpush1.bf16.msra.mxu0 %v1523
      %1822 = vmatprep.subr.bf16.mxu0 0
      %1823 = vmatpush1.bf16.msra.mxu0 %v1522
      %1824 = vmatprep.subr.bf16.mxu0 0
      %1825 = vmatpush1.bf16.msra.mxu0 %v1521
      %1826 = vmatprep.subr.bf16.mxu0 0
      %1827 = vmatpush2.bf16.msra.mxu0 %v1536
      %1828 = vmatprep.subr.bf16.mxu0 0
      %1829 = vmatpush2.bf16.msra.mxu0 %v1535
      %1830 = vmatprep.subr.bf16.mxu0 0
      %1831 = vmatpush2.bf16.msra.mxu0 %v1534
      %1832 = vmatprep.subr.bf16.mxu0 0
      %1833 = vmatpush2.bf16.msra.mxu0 %v1533
      %1834 = vmatprep.subr.bf16.mxu0 0
      %1835 = vmatpush2.bf16.msra.mxu0 %v1532
      %1836 = vmatprep.subr.bf16.mxu0 0
      %1837 = vmatpush2.bf16.msra.mxu0 %v1531
      %1838 = vmatprep.subr.bf16.mxu0 0
      %1839 = vmatpush2.bf16.msra.mxu0 %v1530
      %1840 = vmatprep.subr.bf16.mxu0 0
      %1841 = vmatpush2.bf16.msra.mxu0 %v1529
      %1842 = vmatprep.mubr.bf16.mxu0 %v695
      %1843 = vmatmul.mubr.bf16.gmra.mxu0 %v973
      %v1844 = vpop.f32.mrf.mxu0
      %v1845 = vadd.f32 %v1684, %v1844
      %v1846 = vpop.f32.mrf.mxu0
      %v1847 = vpop.f32.mrf.mxu0
      %v1848 = vadd.f32 %v1687, %v1847
      %v1849 = vpop.f32.mrf.mxu0
      %1850 = vmatprep.mubr.bf16.mxu0 %v697
      %1851 = vmatmul.mubr.bf16.gmra.mxu0 %v976
      %v1852 = vpop.f32.mrf.mxu0
      %v1853 = vadd.f32 %v1692, %v1852
      %v1854 = vpop.f32.mrf.mxu0
      %v1855 = vpop.f32.mrf.mxu0
      %v1856 = vadd.f32 %v1695, %v1855
      %v1857 = vpop.f32.mrf.mxu0
      %1858 = vmatprep.mubr.bf16.mxu0 %v699
      %1859 = vmatmul.mubr.bf16.gmra.mxu0 %v979
      %v1860 = vpop.f32.mrf.mxu0
      %v1861 = vadd.f32 %v1700, %v1860
      %v1862 = vpop.f32.mrf.mxu0
      %v1863 = vpop.f32.mrf.mxu0
      %v1864 = vadd.f32 %v1703, %v1863
      %v1865 = vpop.f32.mrf.mxu0
      %1866 = vmatprep.mubr.bf16.mxu0 %v701
      %1867 = vmatmul.mubr.bf16.gmra.mxu0 %v982
      %v1868 = vpop.f32.mrf.mxu0
      %v1869 = vadd.f32 %v1708, %v1868
      %v1870 = vpop.f32.mrf.mxu0
      %v1871 = vpop.f32.mrf.mxu0
      %v1872 = vadd.f32 %v1711, %v1871
      %v1873 = vpop.f32.mrf.mxu0
      %1874 = vmatprep.mubr.bf16.mxu0 %v703
      %1875 = vmatmul.mubr.bf16.gmra.mxu0 %v985
      %v1876 = vpop.f32.mrf.mxu0
      %v1877 = vadd.f32 %v1716, %v1876
      %v1878 = vpop.f32.mrf.mxu0
      %v1879 = vpop.f32.mrf.mxu0
      %v1880 = vadd.f32 %v1719, %v1879
      %v1881 = vpop.f32.mrf.mxu0
      %1882 = vmatprep.mubr.bf16.mxu0 %v705
      %1883 = vmatmul.mubr.bf16.gmra.mxu0 %v988
      %v1884 = vpop.f32.mrf.mxu0
      %v1885 = vadd.f32 %v1724, %v1884
      %v1886 = vpop.f32.mrf.mxu0
      %v1887 = vpop.f32.mrf.mxu0
      %v1888 = vadd.f32 %v1727, %v1887
      %v1889 = vpop.f32.mrf.mxu0
      %1890 = vmatprep.mubr.bf16.mxu0 %v707
      %1891 = vmatmul.mubr.bf16.gmra.mxu0 %v991
      %v1892 = vpop.f32.mrf.mxu0
      %v1893 = vadd.f32 %v1732, %v1892
      %v1894 = vpop.f32.mrf.mxu0
      %v1895 = vpop.f32.mrf.mxu0
      %v1896 = vadd.f32 %v1735, %v1895
      %v1897 = vpop.f32.mrf.mxu0
      %1898 = vmatprep.mubr.bf16.mxu0 %v709
      %1899 = vmatmul.mubr.bf16.gmra.mxu0 %v994
      %v1900 = vpop.f32.mrf.mxu0
      %v1901 = vadd.f32 %v1740, %v1900
      %v1902 = vpop.f32.mrf.mxu0
      %v1903 = vpop.f32.mrf.mxu0
      %v1904 = vadd.f32 %v1743, %v1903
      %v1905 = vpop.f32.mrf.mxu0
      %1906 = vmatprep.mubr.bf16.mxu0 %v711
      %1907 = vmatmul.mubr.bf16.gmra.mxu0 %v997
      %v1908 = vpop.f32.mrf.mxu0
      %v1909 = vadd.f32 %v1748, %v1908
      %v1910 = vpop.f32.mrf.mxu0
      %v1911 = vpop.f32.mrf.mxu0
      %v1912 = vadd.f32 %v1751, %v1911
      %v1913 = vpop.f32.mrf.mxu0
      %1914 = vmatprep.mubr.bf16.mxu0 %v713
      %1915 = vmatmul.mubr.bf16.gmra.mxu0 %v1000
      %v1916 = vpop.f32.mrf.mxu0
      %v1917 = vadd.f32 %v1756, %v1916
      %v1918 = vpop.f32.mrf.mxu0
      %v1919 = vpop.f32.mrf.mxu0
      %v1920 = vadd.f32 %v1759, %v1919
      %v1921 = vpop.f32.mrf.mxu0
      %1922 = vmatprep.mubr.bf16.mxu0 %v715
      %1923 = vmatmul.mubr.bf16.gmra.mxu0 %v1003
      %v1924 = vpop.f32.mrf.mxu0
      %v1925 = vadd.f32 %v1764, %v1924
      %v1926 = vpop.f32.mrf.mxu0
      %v1927 = vpop.f32.mrf.mxu0
      %v1928 = vadd.f32 %v1767, %v1927
      %v1929 = vpop.f32.mrf.mxu0
      %1930 = vmatprep.mubr.bf16.mxu0 %v717
      %1931 = vmatmul.mubr.bf16.gmra.mxu0 %v1006
      %v1932 = vpop.f32.mrf.mxu0
      %v1933 = vadd.f32 %v1772, %v1932
      %v1934 = vpop.f32.mrf.mxu0
      %v1935 = vpop.f32.mrf.mxu0
      %v1936 = vadd.f32 %v1775, %v1935
      %v1937 = vpop.f32.mrf.mxu0
      %1938 = vmatprep.mubr.bf16.mxu0 %v719
      %1939 = vmatmul.mubr.bf16.gmra.mxu0 %v1009
      %v1940 = vpop.f32.mrf.mxu0
      %v1941 = vadd.f32 %v1780, %v1940
      %v1942 = vpop.f32.mrf.mxu0
      %v1943 = vpop.f32.mrf.mxu0
      %v1944 = vadd.f32 %v1783, %v1943
      %v1945 = vpop.f32.mrf.mxu0
      %1946 = vmatprep.mubr.bf16.mxu0 %v721
      %1947 = vmatmul.mubr.bf16.gmra.mxu0 %v1012
      %v1948 = vpop.f32.mrf.mxu0
      %v1949 = vadd.f32 %v1788, %v1948
      %v1950 = vpop.f32.mrf.mxu0
      %v1951 = vpop.f32.mrf.mxu0
      %v1952 = vadd.f32 %v1791, %v1951
      %v1953 = vpop.f32.mrf.mxu0
      %1954 = vmatprep.mubr.bf16.mxu0 %v723
      %1955 = vmatmul.mubr.bf16.gmra.mxu0 %v1015
      %v1956 = vpop.f32.mrf.mxu0
      %v1957 = vadd.f32 %v1796, %v1956
      %v1958 = vpop.f32.mrf.mxu0
      %v1959 = vpop.f32.mrf.mxu0
      %v1960 = vadd.f32 %v1799, %v1959
      %v1961 = vpop.f32.mrf.mxu0
      %1962 = vmatprep.mubr.bf16.mxu0 %v725
      %1963 = vmatmul.mubr.bf16.gmra.mxu0 %v1018
      %v1964 = vpop.f32.mrf.mxu0
      %v1965 = vadd.f32 %v1804, %v1964
      %v1966 = vpop.f32.mrf.mxu0
      %v1967 = vpop.f32.mrf.mxu0
      %v1968 = vadd.f32 %v1807, %v1967
      %v1969 = vpop.f32.mrf.mxu0
      %1970 = vdwg.mxu0
      %1971 = vmatprep.subr.bf16.mxu0 0
      %1972 = vmatpush1.bf16.msra.mxu0 %v1544
      %1973 = vmatprep.subr.bf16.mxu0 0
      %1974 = vmatpush1.bf16.msra.mxu0 %v1543
      %1975 = vmatprep.subr.bf16.mxu0 0
      %1976 = vmatpush1.bf16.msra.mxu0 %v1542
      %1977 = vmatprep.subr.bf16.mxu0 0
      %1978 = vmatpush1.bf16.msra.mxu0 %v1541
      %1979 = vmatprep.subr.bf16.mxu0 0
      %1980 = vmatpush1.bf16.msra.mxu0 %v1540
      %1981 = vmatprep.subr.bf16.mxu0 0
      %1982 = vmatpush1.bf16.msra.mxu0 %v1539
      %1983 = vmatprep.subr.bf16.mxu0 0
      %1984 = vmatpush1.bf16.msra.mxu0 %v1538
      %1985 = vmatprep.subr.bf16.mxu0 0
      %1986 = vmatpush1.bf16.msra.mxu0 %v1537
      %1987 = vmatprep.subr.bf16.mxu0 0
      %1988 = vmatpush2.bf16.msra.mxu0 %v1552
      %1989 = vmatprep.subr.bf16.mxu0 0
      %1990 = vmatpush2.bf16.msra.mxu0 %v1551
      %1991 = vmatprep.subr.bf16.mxu0 0
      %1992 = vmatpush2.bf16.msra.mxu0 %v1550
      %1993 = vmatprep.subr.bf16.mxu0 0
      %1994 = vmatpush2.bf16.msra.mxu0 %v1549
      %1995 = vmatprep.subr.bf16.mxu0 0
      %1996 = vmatpush2.bf16.msra.mxu0 %v1548
      %1997 = vmatprep.subr.bf16.mxu0 0
      %1998 = vmatpush2.bf16.msra.mxu0 %v1547
      %1999 = vmatprep.subr.bf16.mxu0 0
      %2000 = vmatpush2.bf16.msra.mxu0 %v1546
      %2001 = vmatprep.subr.bf16.mxu0 0
      %2002 = vmatpush2.bf16.msra.mxu0 %v1545
      %2003 = vmatprep.mubr.bf16.mxu0 %v976
      %2004 = vmatmul.mubr.bf16.gmra.mxu0 %v753
      %v2005 = vpop.f32.mrf.mxu0
      %v2006 = vadd.f32 %v1845, %v2005
      %v2007 = vpop.f32.mrf.mxu0
      %v2008 = vpop.f32.mrf.mxu0
      %v2009 = vadd.f32 %v1848, %v2008
      %v2010 = vpop.f32.mrf.mxu0
      %2011 = vmatprep.mubr.bf16.mxu0 %v979
      %2012 = vmatmul.mubr.bf16.gmra.mxu0 %v765
      %v2013 = vpop.f32.mrf.mxu0
      %v2014 = vadd.f32 %v1853, %v2013
      %v2015 = vpop.f32.mrf.mxu0
      %v2016 = vpop.f32.mrf.mxu0
      %v2017 = vadd.f32 %v1856, %v2016
      %v2018 = vpop.f32.mrf.mxu0
      %2019 = vmatprep.mubr.bf16.mxu0 %v982
      %2020 = vmatmul.mubr.bf16.gmra.mxu0 %v777
      %v2021 = vpop.f32.mrf.mxu0
      %v2022 = vadd.f32 %v1861, %v2021
      %v2023 = vpop.f32.mrf.mxu0
      %v2024 = vpop.f32.mrf.mxu0
      %v2025 = vadd.f32 %v1864, %v2024
      %v2026 = vpop.f32.mrf.mxu0
      %2027 = vmatprep.mubr.bf16.mxu0 %v985
      %2028 = vmatmul.mubr.bf16.gmra.mxu0 %v789
      %v2029 = vpop.f32.mrf.mxu0
      %v2030 = vadd.f32 %v1869, %v2029
      %v2031 = vpop.f32.mrf.mxu0
      %v2032 = vpop.f32.mrf.mxu0
      %v2033 = vadd.f32 %v1872, %v2032
      %v2034 = vpop.f32.mrf.mxu0
      %2035 = vmatprep.mubr.bf16.mxu0 %v988
      %2036 = vmatmul.mubr.bf16.gmra.mxu0 %v801
      %v2037 = vpop.f32.mrf.mxu0
      %v2038 = vadd.f32 %v1877, %v2037
      %v2039 = vpop.f32.mrf.mxu0
      %v2040 = vpop.f32.mrf.mxu0
      %v2041 = vadd.f32 %v1880, %v2040
      %v2042 = vpop.f32.mrf.mxu0
      %2043 = vmatprep.mubr.bf16.mxu0 %v991
      %2044 = vmatmul.mubr.bf16.gmra.mxu0 %v813
      %v2045 = vpop.f32.mrf.mxu0
      %v2046 = vadd.f32 %v1885, %v2045
      %v2047 = vpop.f32.mrf.mxu0
      %v2048 = vpop.f32.mrf.mxu0
      %v2049 = vadd.f32 %v1888, %v2048
      %v2050 = vpop.f32.mrf.mxu0
      %2051 = vmatprep.mubr.bf16.mxu0 %v994
      %2052 = vmatmul.mubr.bf16.gmra.mxu0 %v825
      %v2053 = vpop.f32.mrf.mxu0
      %v2054 = vadd.f32 %v1893, %v2053
      %v2055 = vpop.f32.mrf.mxu0
      %v2056 = vpop.f32.mrf.mxu0
      %v2057 = vadd.f32 %v1896, %v2056
      %v2058 = vpop.f32.mrf.mxu0
      %2059 = vmatprep.mubr.bf16.mxu0 %v997
      %2060 = vmatmul.mubr.bf16.gmra.mxu0 %v837
      %v2061 = vpop.f32.mrf.mxu0
      %v2062 = vadd.f32 %v1901, %v2061
      %v2063 = vpop.f32.mrf.mxu0
      %v2064 = vpop.f32.mrf.mxu0
      %v2065 = vadd.f32 %v1904, %v2064
      %v2066 = vpop.f32.mrf.mxu0
      %2067 = vmatprep.mubr.bf16.mxu0 %v1000
      %2068 = vmatmul.mubr.bf16.gmra.mxu0 %v849
      %v2069 = vpop.f32.mrf.mxu0
      %v2070 = vadd.f32 %v1909, %v2069
      %v2071 = vpop.f32.mrf.mxu0
      %v2072 = vpop.f32.mrf.mxu0
      %v2073 = vadd.f32 %v1912, %v2072
      %v2074 = vpop.f32.mrf.mxu0
      %2075 = vmatprep.mubr.bf16.mxu0 %v1003
      %2076 = vmatmul.mubr.bf16.gmra.mxu0 %v861
      %v2077 = vpop.f32.mrf.mxu0
      %v2078 = vadd.f32 %v1917, %v2077
      %v2079 = vpop.f32.mrf.mxu0
      %v2080 = vpop.f32.mrf.mxu0
      %v2081 = vadd.f32 %v1920, %v2080
      %v2082 = vpop.f32.mrf.mxu0
      %2083 = vmatprep.mubr.bf16.mxu0 %v1006
      %2084 = vmatmul.mubr.bf16.gmra.mxu0 %v873
      %v2085 = vpop.f32.mrf.mxu0
      %v2086 = vadd.f32 %v1925, %v2085
      %v2087 = vpop.f32.mrf.mxu0
      %v2088 = vpop.f32.mrf.mxu0
      %v2089 = vadd.f32 %v1928, %v2088
      %v2090 = vpop.f32.mrf.mxu0
      %2091 = vmatprep.mubr.bf16.mxu0 %v1009
      %2092 = vmatmul.mubr.bf16.gmra.mxu0 %v885
      %v2093 = vpop.f32.mrf.mxu0
      %v2094 = vadd.f32 %v1933, %v2093
      %v2095 = vpop.f32.mrf.mxu0
      %v2096 = vpop.f32.mrf.mxu0
      %v2097 = vadd.f32 %v1936, %v2096
      %v2098 = vpop.f32.mrf.mxu0
      %2099 = vmatprep.mubr.bf16.mxu0 %v1012
      %2100 = vmatmul.mubr.bf16.gmra.mxu0 %v897
      %v2101 = vpop.f32.mrf.mxu0
      %v2102 = vadd.f32 %v1941, %v2101
      %v2103 = vpop.f32.mrf.mxu0
      %v2104 = vpop.f32.mrf.mxu0
      %v2105 = vadd.f32 %v1944, %v2104
      %v2106 = vpop.f32.mrf.mxu0
      %2107 = vmatprep.mubr.bf16.mxu0 %v1015
      %2108 = vmatmul.mubr.bf16.gmra.mxu0 %v909
      %v2109 = vpop.f32.mrf.mxu0
      %v2110 = vadd.f32 %v1949, %v2109
      %v2111 = vpop.f32.mrf.mxu0
      %v2112 = vpop.f32.mrf.mxu0
      %v2113 = vadd.f32 %v1952, %v2112
      %v2114 = vpop.f32.mrf.mxu0
      %2115 = vmatprep.mubr.bf16.mxu0 %v1018
      %2116 = vmatmul.mubr.bf16.gmra.mxu0 %v921
      %v2117 = vpop.f32.mrf.mxu0
      %v2118 = vadd.f32 %v1957, %v2117
      %v2119 = vpop.f32.mrf.mxu0
      %v2120 = vpop.f32.mrf.mxu0
      %v2121 = vadd.f32 %v1960, %v2120
      %v2122 = vpop.f32.mrf.mxu0
      %2123 = vmatprep.mubr.bf16.mxu0 %v1052
      %2124 = vmatmul.mubr.bf16.gmra.mxu0 %v1046
      %v2125 = vpop.f32.mrf.mxu0
      %v2126 = vadd.f32 %v1965, %v2125
      %v2127 = vpop.f32.mrf.mxu0
      %v2128 = vpop.f32.mrf.mxu0
      %v2129 = vadd.f32 %v1968, %v2128
      %v2130 = vpop.f32.mrf.mxu0
      %2131 = vdwg.mxu0
      %2132 = vmatprep.subr.bf16.mxu0 0
      %2133 = vmatpush1.bf16.msra.mxu0 %v1560
      %2134 = vmatprep.subr.bf16.mxu0 0
      %2135 = vmatpush1.bf16.msra.mxu0 %v1559
      %2136 = vmatprep.subr.bf16.mxu0 0
      %2137 = vmatpush1.bf16.msra.mxu0 %v1558
      %2138 = vmatprep.subr.bf16.mxu0 0
      %2139 = vmatpush1.bf16.msra.mxu0 %v1557
      %2140 = vmatprep.subr.bf16.mxu0 0
      %2141 = vmatpush1.bf16.msra.mxu0 %v1556
      %2142 = vmatprep.subr.bf16.mxu0 0
      %2143 = vmatpush1.bf16.msra.mxu0 %v1555
      %2144 = vmatprep.subr.bf16.mxu0 0
      %2145 = vmatpush1.bf16.msra.mxu0 %v1554
      %2146 = vmatprep.subr.bf16.mxu0 0
      %2147 = vmatpush1.bf16.msra.mxu0 %v1553
      %2148 = vmatprep.subr.bf16.mxu0 0
      %2149 = vmatpush2.bf16.msra.mxu0 %v1568
      %2150 = vmatprep.subr.bf16.mxu0 0
      %2151 = vmatpush2.bf16.msra.mxu0 %v1567
      %2152 = vmatprep.subr.bf16.mxu0 0
      %2153 = vmatpush2.bf16.msra.mxu0 %v1566
      %2154 = vmatprep.subr.bf16.mxu0 0
      %2155 = vmatpush2.bf16.msra.mxu0 %v1565
      %2156 = vmatprep.subr.bf16.mxu0 0
      %2157 = vmatpush2.bf16.msra.mxu0 %v1564
      %2158 = vmatprep.subr.bf16.mxu0 0
      %2159 = vmatpush2.bf16.msra.mxu0 %v1563
      %2160 = vmatprep.subr.bf16.mxu0 0
      %2161 = vmatpush2.bf16.msra.mxu0 %v1562
      %2162 = vmatprep.subr.bf16.mxu0 0
      %2163 = vmatpush2.bf16.msra.mxu0 %v1561
      %2164 = vmatprep.mubr.bf16.mxu0 %v765
      %2165 = vmatmul.mubr.bf16.gmra.mxu0 %v697
      %v2166 = vpop.f32.mrf.mxu0
      %v2167 = vadd.f32 %v2006, %v2166
      %v2168 = vpop.f32.mrf.mxu0
      %v2169 = vpop.f32.mrf.mxu0
      %v2170 = vadd.f32 %v2009, %v2169
      %v2171 = vpop.f32.mrf.mxu0
      %2172 = vmatprep.mubr.bf16.mxu0 %v777
      %2173 = vmatmul.mubr.bf16.gmra.mxu0 %v699
      %v2174 = vpop.f32.mrf.mxu0
      %v2175 = vadd.f32 %v2014, %v2174
      %v2176 = vpop.f32.mrf.mxu0
      %v2177 = vpop.f32.mrf.mxu0
      %v2178 = vadd.f32 %v2017, %v2177
      %v2179 = vpop.f32.mrf.mxu0
      %2180 = vmatprep.mubr.bf16.mxu0 %v789
      %2181 = vmatmul.mubr.bf16.gmra.mxu0 %v701
      %v2182 = vpop.f32.mrf.mxu0
      %v2183 = vadd.f32 %v2022, %v2182
      %v2184 = vpop.f32.mrf.mxu0
      %v2185 = vpop.f32.mrf.mxu0
      %v2186 = vadd.f32 %v2025, %v2185
      %v2187 = vpop.f32.mrf.mxu0
      %2188 = vmatprep.mubr.bf16.mxu0 %v801
      %2189 = vmatmul.mubr.bf16.gmra.mxu0 %v703
      %v2190 = vpop.f32.mrf.mxu0
      %v2191 = vadd.f32 %v2030, %v2190
      %v2192 = vpop.f32.mrf.mxu0
      %v2193 = vpop.f32.mrf.mxu0
      %v2194 = vadd.f32 %v2033, %v2193
      %v2195 = vpop.f32.mrf.mxu0
      %2196 = vmatprep.mubr.bf16.mxu0 %v813
      %2197 = vmatmul.mubr.bf16.gmra.mxu0 %v705
      %v2198 = vpop.f32.mrf.mxu0
      %v2199 = vadd.f32 %v2038, %v2198
      %v2200 = vpop.f32.mrf.mxu0
      %v2201 = vpop.f32.mrf.mxu0
      %v2202 = vadd.f32 %v2041, %v2201
      %v2203 = vpop.f32.mrf.mxu0
      %2204 = vmatprep.mubr.bf16.mxu0 %v825
      %2205 = vmatmul.mubr.bf16.gmra.mxu0 %v707
      %v2206 = vpop.f32.mrf.mxu0
      %v2207 = vadd.f32 %v2046, %v2206
      %v2208 = vpop.f32.mrf.mxu0
      %v2209 = vpop.f32.mrf.mxu0
      %v2210 = vadd.f32 %v2049, %v2209
      %v2211 = vpop.f32.mrf.mxu0
      %2212 = vmatprep.mubr.bf16.mxu0 %v837
      %2213 = vmatmul.mubr.bf16.gmra.mxu0 %v709
      %v2214 = vpop.f32.mrf.mxu0
      %v2215 = vadd.f32 %v2054, %v2214
      %v2216 = vpop.f32.mrf.mxu0
      %v2217 = vpop.f32.mrf.mxu0
      %v2218 = vadd.f32 %v2057, %v2217
      %v2219 = vpop.f32.mrf.mxu0
      %2220 = vmatprep.mubr.bf16.mxu0 %v849
      %2221 = vmatmul.mubr.bf16.gmra.mxu0 %v711
      %v2222 = vpop.f32.mrf.mxu0
      %v2223 = vadd.f32 %v2062, %v2222
      %v2224 = vpop.f32.mrf.mxu0
      %v2225 = vpop.f32.mrf.mxu0
      %v2226 = vadd.f32 %v2065, %v2225
      %v2227 = vpop.f32.mrf.mxu0
      %2228 = vmatprep.mubr.bf16.mxu0 %v861
      %2229 = vmatmul.mubr.bf16.gmra.mxu0 %v713
      %v2230 = vpop.f32.mrf.mxu0
      %v2231 = vadd.f32 %v2070, %v2230
      %v2232 = vpop.f32.mrf.mxu0
      %v2233 = vpop.f32.mrf.mxu0
      %v2234 = vadd.f32 %v2073, %v2233
      %v2235 = vpop.f32.mrf.mxu0
      %2236 = vmatprep.mubr.bf16.mxu0 %v873
      %2237 = vmatmul.mubr.bf16.gmra.mxu0 %v715
      %v2238 = vpop.f32.mrf.mxu0
      %v2239 = vadd.f32 %v2078, %v2238
      %v2240 = vpop.f32.mrf.mxu0
      %v2241 = vpop.f32.mrf.mxu0
      %v2242 = vadd.f32 %v2081, %v2241
      %v2243 = vpop.f32.mrf.mxu0
      %2244 = vmatprep.mubr.bf16.mxu0 %v885
      %2245 = vmatmul.mubr.bf16.gmra.mxu0 %v717
      %v2246 = vpop.f32.mrf.mxu0
      %v2247 = vadd.f32 %v2086, %v2246
      %v2248 = vpop.f32.mrf.mxu0
      %v2249 = vpop.f32.mrf.mxu0
      %v2250 = vadd.f32 %v2089, %v2249
      %v2251 = vpop.f32.mrf.mxu0
      %2252 = vmatprep.mubr.bf16.mxu0 %v897
      %2253 = vmatmul.mubr.bf16.gmra.mxu0 %v719
      %v2254 = vpop.f32.mrf.mxu0
      %v2255 = vadd.f32 %v2094, %v2254
      %v2256 = vpop.f32.mrf.mxu0
      %v2257 = vpop.f32.mrf.mxu0
      %v2258 = vadd.f32 %v2097, %v2257
      %v2259 = vpop.f32.mrf.mxu0
      %2260 = vmatprep.mubr.bf16.mxu0 %v909
      %2261 = vmatmul.mubr.bf16.gmra.mxu0 %v721
      %v2262 = vpop.f32.mrf.mxu0
      %v2263 = vadd.f32 %v2102, %v2262
      %v2264 = vpop.f32.mrf.mxu0
      %v2265 = vpop.f32.mrf.mxu0
      %v2266 = vadd.f32 %v2105, %v2265
      %v2267 = vpop.f32.mrf.mxu0
      %2268 = vmatprep.mubr.bf16.mxu0 %v921
      %2269 = vmatmul.mubr.bf16.gmra.mxu0 %v723
      %v2270 = vpop.f32.mrf.mxu0
      %v2271 = vadd.f32 %v2110, %v2270
      %v2272 = vpop.f32.mrf.mxu0
      %v2273 = vpop.f32.mrf.mxu0
      %v2274 = vadd.f32 %v2113, %v2273
      %v2275 = vpop.f32.mrf.mxu0
      %2276 = vmatprep.mubr.bf16.mxu0 %v1046
      %2277 = vmatmul.mubr.bf16.gmra.mxu0 %v725
      %v2278 = vpop.f32.mrf.mxu0
      %v2279 = vadd.f32 %v2118, %v2278
      %v2280 = vpop.f32.mrf.mxu0
      %v2281 = vpop.f32.mrf.mxu0
      %v2282 = vadd.f32 %v2121, %v2281
      %v2283 = vpop.f32.mrf.mxu0
      %2284 = vmatprep.mubr.bf16.mxu0 %v1065
      %2285 = vmatmul.mubr.bf16.gmra.mxu0 %v727
      %v2286 = vpop.f32.mrf.mxu0
      %v2287 = vadd.f32 %v2126, %v2286
      %v2288 = vpop.f32.mrf.mxu0
      %v2289 = vpop.f32.mrf.mxu0
      %v2290 = vadd.f32 %v2129, %v2289
      %v2291 = vpop.f32.mrf.mxu0
      %2292 = vdwg.mxu0
      %2293 = vmatprep.subr.bf16.mxu0 0
      %2294 = vmatpush1.bf16.msra.mxu0 %v1576
      %2295 = vmatprep.subr.bf16.mxu0 0
      %2296 = vmatpush1.bf16.msra.mxu0 %v1575
      %2297 = vmatprep.subr.bf16.mxu0 0
      %2298 = vmatpush1.bf16.msra.mxu0 %v1574
      %2299 = vmatprep.subr.bf16.mxu0 0
      %2300 = vmatpush1.bf16.msra.mxu0 %v1573
      %2301 = vmatprep.subr.bf16.mxu0 0
      %2302 = vmatpush1.bf16.msra.mxu0 %v1572
      %2303 = vmatprep.subr.bf16.mxu0 0
      %2304 = vmatpush1.bf16.msra.mxu0 %v1571
      %2305 = vmatprep.subr.bf16.mxu0 0
      %2306 = vmatpush1.bf16.msra.mxu0 %v1570
      %2307 = vmatprep.subr.bf16.mxu0 0
      %2308 = vmatpush1.bf16.msra.mxu0 %v1569
      %2309 = vmatprep.subr.bf16.mxu0 0
      %2310 = vmatpush2.bf16.msra.mxu0 0
      %2311 = vmatprep.subr.bf16.mxu0 0
      %2312 = vmatpush2.bf16.msra.mxu0 0
      %2313 = vmatprep.subr.bf16.mxu0 0
      %2314 = vmatpush2.bf16.msra.mxu0 0
      %2315 = vmatprep.subr.bf16.mxu0 0
      %2316 = vmatpush2.bf16.msra.mxu0 0
      %2317 = vmatprep.subr.bf16.mxu0 0
      %2318 = vmatpush2.bf16.msra.mxu0 0
      %2319 = vmatprep.subr.bf16.mxu0 0
      %2320 = vmatpush2.bf16.msra.mxu0 0
      %2321 = vmatprep.subr.bf16.mxu0 0
      %2322 = vmatpush2.bf16.msra.mxu0 0
      %2323 = vmatprep.subr.bf16.mxu0 0
      %2324 = vmatpush2.bf16.msra.mxu0 0
      %2325 = vmatprep.mubr.bf16.mxu0 0
      %2326 = vmatmul.mubr.bf16.gmra.mxu0 %v979
      %v2327 = vpop.f32.mrf.mxu0
      %v2328 = vadd.f32 %v2167, %v2327
      %v2329 = vpop.f32.mrf.mxu0
      %v2330 = vpop.f32.mrf.mxu0
      %v2331 = vadd.f32 %v2170, %v2330
      %v2332 = vpop.f32.mrf.mxu0
      %2333 = vmatprep.mubr.bf16.mxu0 0
      %2334 = vmatmul.mubr.bf16.gmra.mxu0 %v982
      %v2335 = vpop.f32.mrf.mxu0
      %v2336 = vadd.f32 %v2175, %v2335
      %v2337 = vpop.f32.mrf.mxu0
      %v2338 = vpop.f32.mrf.mxu0
      %v2339 = vadd.f32 %v2178, %v2338
      %v2340 = vpop.f32.mrf.mxu0
      %2341 = vmatprep.mubr.bf16.mxu0 0
      %2342 = vmatmul.mubr.bf16.gmra.mxu0 %v985
      %v2343 = vpop.f32.mrf.mxu0
      %v2344 = vadd.f32 %v2183, %v2343
      %v2345 = vpop.f32.mrf.mxu0
      %v2346 = vpop.f32.mrf.mxu0
      %v2347 = vadd.f32 %v2186, %v2346
      %v2348 = vpop.f32.mrf.mxu0
      %2349 = vmatprep.mubr.bf16.mxu0 0
      %2350 = vmatmul.mubr.bf16.gmra.mxu0 %v988
      %v2351 = vpop.f32.mrf.mxu0
      %v2352 = vadd.f32 %v2191, %v2351
      %v2353 = vpop.f32.mrf.mxu0
      %v2354 = vpop.f32.mrf.mxu0
      %v2355 = vadd.f32 %v2194, %v2354
      %v2356 = vpop.f32.mrf.mxu0
      %2357 = vmatprep.mubr.bf16.mxu0 0
      %2358 = vmatmul.mubr.bf16.gmra.mxu0 %v991
      %v2359 = vpop.f32.mrf.mxu0
      %v2360 = vadd.f32 %v2199, %v2359
      %v2361 = vpop.f32.mrf.mxu0
      %v2362 = vpop.f32.mrf.mxu0
      %v2363 = vadd.f32 %v2202, %v2362
      %v2364 = vpop.f32.mrf.mxu0
      %2365 = vmatprep.mubr.bf16.mxu0 0
      %2366 = vmatmul.mubr.bf16.gmra.mxu0 %v994
      %v2367 = vpop.f32.mrf.mxu0
      %v2368 = vadd.f32 %v2207, %v2367
      %v2369 = vpop.f32.mrf.mxu0
      %v2370 = vpop.f32.mrf.mxu0
      %v2371 = vadd.f32 %v2210, %v2370
      %v2372 = vpop.f32.mrf.mxu0
      %2373 = vmatprep.mubr.bf16.mxu0 0
      %2374 = vmatmul.mubr.bf16.gmra.mxu0 %v997
      %v2375 = vpop.f32.mrf.mxu0
      %v2376 = vadd.f32 %v2215, %v2375
      %v2377 = vpop.f32.mrf.mxu0
      %v2378 = vpop.f32.mrf.mxu0
      %v2379 = vadd.f32 %v2218, %v2378
      %v2380 = vpop.f32.mrf.mxu0
      %2381 = vmatprep.mubr.bf16.mxu0 0
      %2382 = vmatmul.mubr.bf16.gmra.mxu0 %v1000
      %v2383 = vpop.f32.mrf.mxu0
      %v2384 = vadd.f32 %v2223, %v2383
      %v2385 = vpop.f32.mrf.mxu0
      %v2386 = vpop.f32.mrf.mxu0
      %v2387 = vadd.f32 %v2226, %v2386
      %v2388 = vpop.f32.mrf.mxu0
      %2389 = vmatprep.mubr.bf16.mxu0 0
      %2390 = vmatmul.mubr.bf16.gmra.mxu0 %v1003
      %v2391 = vpop.f32.mrf.mxu0
      %v2392 = vadd.f32 %v2231, %v2391
      %v2393 = vpop.f32.mrf.mxu0
      %v2394 = vpop.f32.mrf.mxu0
      %v2395 = vadd.f32 %v2234, %v2394
      %v2396 = vpop.f32.mrf.mxu0
      %2397 = vmatprep.mubr.bf16.mxu0 0
      %2398 = vmatmul.mubr.bf16.gmra.mxu0 %v1006
      %v2399 = vpop.f32.mrf.mxu0
      %v2400 = vadd.f32 %v2239, %v2399
      %v2401 = vpop.f32.mrf.mxu0
      %v2402 = vpop.f32.mrf.mxu0
      %v2403 = vadd.f32 %v2242, %v2402
      %v2404 = vpop.f32.mrf.mxu0
      %2405 = vmatprep.mubr.bf16.mxu0 0
      %2406 = vmatmul.mubr.bf16.gmra.mxu0 %v1009
      %v2407 = vpop.f32.mrf.mxu0
      %v2408 = vadd.f32 %v2247, %v2407
      %v2409 = vpop.f32.mrf.mxu0
      %v2410 = vpop.f32.mrf.mxu0
      %v2411 = vadd.f32 %v2250, %v2410
      %v2412 = vpop.f32.mrf.mxu0
      %2413 = vmatprep.mubr.bf16.mxu0 0
      %2414 = vmatmul.mubr.bf16.gmra.mxu0 %v1012
      %v2415 = vpop.f32.mrf.mxu0
      %v2416 = vadd.f32 %v2255, %v2415
      %v2417 = vpop.f32.mrf.mxu0
      %v2418 = vpop.f32.mrf.mxu0
      %v2419 = vadd.f32 %v2258, %v2418
      %v2420 = vpop.f32.mrf.mxu0
      %2421 = vmatprep.mubr.bf16.mxu0 0
      %2422 = vmatmul.mubr.bf16.gmra.mxu0 %v1015
      %v2423 = vpop.f32.mrf.mxu0
      %v2424 = vadd.f32 %v2263, %v2423
      %v2425 = vpop.f32.mrf.mxu0
      %v2426 = vpop.f32.mrf.mxu0
      %v2427 = vadd.f32 %v2266, %v2426
      %v2428 = vpop.f32.mrf.mxu0
      %2429 = vmatprep.mubr.bf16.mxu0 0
      %2430 = vmatmul.mubr.bf16.gmra.mxu0 %v1018
      %v2431 = vpop.f32.mrf.mxu0
      %v2432 = vadd.f32 %v2271, %v2431
      %v2433 = vpop.f32.mrf.mxu0
      %v2434 = vpop.f32.mrf.mxu0
      %v2435 = vadd.f32 %v2274, %v2434
      %v2436 = vpop.f32.mrf.mxu0
      %2437 = vmatprep.mubr.bf16.mxu0 0
      %2438 = vmatmul.mubr.bf16.gmra.mxu0 %v1052
      %v2439 = vpop.f32.mrf.mxu0
      %v2440 = vadd.f32 %v2279, %v2439
      %v2441 = vpop.f32.mrf.mxu0
      %v2442 = vpop.f32.mrf.mxu0
      %v2443 = vadd.f32 %v2282, %v2442
      %v2444 = vpop.f32.mrf.mxu0
      %2445 = vmatprep.mubr.bf16.mxu0 0
      %2446 = vmatmul.mubr.bf16.gmra.mxu0 %v1071
      %v2447 = vpop.f32.mrf.mxu0
      %v2448 = vadd.f32 %v2287, %v2447
      %v2449 = vpop.f32.mrf.mxu0
      %v2450 = vpop.f32.mrf.mxu0
      %v2451 = vadd.f32 %v2290, %v2450
      %v2452 = vpop.f32.mrf.mxu0
      %2453 = vdwg.mxu0
      %2454 = vst [vmem:[%s316] sm:$0xff] %v2328
      %2455 = vst [vmem:[%s316 + $0x8] sm:$0xff] %v2331
      %2456 = vst [vmem:[%s316 + $0x10] sm:$0xff] %v2336
      %2457 = vst [vmem:[%s316 + $0x18] sm:$0xff] %v2339
      %2458 = vst [vmem:[%s316 + $0x20] sm:$0xff] %v2344
      %2459 = vst [vmem:[%s316 + $0x28] sm:$0xff] %v2347
      %2460 = vst [vmem:[%s316 + $0x30] sm:$0xff] %v2352
      %2461 = vst [vmem:[%s316 + $0x38] sm:$0xff] %v2355
      %2462 = vst [vmem:[%s316 + $0x40] sm:$0xff] %v2360
      %2463 = vst [vmem:[%s316 + $0x48] sm:$0xff] %v2363
      %2464 = vst [vmem:[%s316 + $0x50] sm:$0xff] %v2368
      %2465 = vst [vmem:[%s316 + $0x58] sm:$0xff] %v2371
      %2466 = vst [vmem:[%s316 + $0x60] sm:$0xff] %v2376
      %2467 = vst [vmem:[%s316 + $0x68] sm:$0xff] %v2379
      %2468 = vst [vmem:[%s316 + $0x70] sm:$0xff] %v2384
      %2469 = vst [vmem:[%s316 + $0x78] sm:$0xff] %v2387
      %2470 = vst [vmem:[%s316 + $0x80] sm:$0xff] %v2392
      %2471 = vst [vmem:[%s316 + $0x88] sm:$0xff] %v2395
      %2472 = vst [vmem:[%s316 + $0x90] sm:$0xff] %v2400
      %2473 = vst [vmem:[%s316 + $0x98] sm:$0xff] %v2403
      %2474 = vst [vmem:[%s316 + $0xa0] sm:$0xff] %v2408
      %2475 = vst [vmem:[%s316 + $0xa8] sm:$0xff] %v2411
      %2476 = vst [vmem:[%s316 + $0xb0] sm:$0xff] %v2416
      %2477 = vst [vmem:[%s316 + $0xb8] sm:$0xff] %v2419
      %2478 = vst [vmem:[%s316 + $0xc0] sm:$0xff] %v2424
      %2479 = vst [vmem:[%s316 + $0xc8] sm:$0xff] %v2427
      %2480 = vst [vmem:[%s316 + $0xd0] sm:$0xff] %v2432
      %2481 = vst [vmem:[%s316 + $0xd8] sm:$0xff] %v2435
      %2482 = vst [vmem:[%s316 + $0xe0] sm:$0xff] %v2440
      %2483 = vst [vmem:[%s316 + $0xe8] sm:$0xff] %v2443
      %2484 = vst [vmem:[%s316 + $0xf0] sm:$0xff] %v2448
      %2485 = vst [vmem:[%s316 + $0xf8] sm:$0xff] %v2451
      %v2486 = vadd.f32 %v2328, %v2331
      %v2487 = vadd.f32 %v2486, %v2336
      %v2488 = vadd.f32 %v2487, %v2339
      %v2489 = vadd.f32 %v2488, %v2344
      %v2490 = vadd.f32 %v2489, %v2347
      %v2491 = vadd.f32 %v2490, %v2352
      %v2492 = vadd.f32 %v2491, %v2355
      %v2493 = vadd.f32 %v2492, %v2360
      %v2494 = vadd.f32 %v2493, %v2363
      %v2495 = vadd.f32 %v2494, %v2368
      %v2496 = vadd.f32 %v2495, %v2371
      %v2497 = vadd.f32 %v2496, %v2376
      %v2498 = vadd.f32 %v2497, %v2379
      %v2499 = vadd.f32 %v2498, %v2384
      %v2500 = vadd.f32 %v2499, %v2387
      %v2501 = vadd.f32 %v2500, %v2392
      %v2502 = vadd.f32 %v2501, %v2395
      %v2503 = vadd.f32 %v2502, %v2400
      %v2504 = vadd.f32 %v2503, %v2403
      %v2505 = vadd.f32 %v2504, %v2408
      %v2506 = vadd.f32 %v2505, %v2411
      %v2507 = vadd.f32 %v2506, %v2416
      %v2508 = vadd.f32 %v2507, %v2419
      %v2509 = vadd.f32 %v2508, %v2424
      %v2510 = vadd.f32 %v2509, %v2427
      %v2511 = vadd.f32 %v2510, %v2432
      %v2512 = vadd.f32 %v2511, %v2435
      %v2513 = vadd.f32 %v2512, %v2440
      %v2514 = vadd.f32 %v2513, %v2443
      %v2515 = vadd.f32 %v2514, %v2448
      %v2516 = vadd.f32 %v2515, %v2451
      %v2517 = vrot.slane %v2516, 4
      %v2518 = vadd.f32 %v2516, %v2517
      %v2519 = vrot.slane %v2518, 2
      %v2520 = vadd.f32 %v2518, %v2519
      %v2521 = vrot.slane %v2520, 1
      %v2522 = vadd.f32 %v2520, %v2521
      %2523 = vst [vmem:[%s319] sm:$0x1] %v2522
      %v2524 = vmul.f32 %v2328, %v2328
      %v2525 = vmul.f32 %v2331, %v2331
      %v2526 = vmul.f32 %v2336, %v2336
      %v2527 = vmul.f32 %v2339, %v2339
      %v2528 = vmul.f32 %v2344, %v2344
      %v2529 = vmul.f32 %v2347, %v2347
      %v2530 = vmul.f32 %v2352, %v2352
      %v2531 = vmul.f32 %v2355, %v2355
      %v2532 = vmul.f32 %v2360, %v2360
      %v2533 = vmul.f32 %v2363, %v2363
      %v2534 = vmul.f32 %v2368, %v2368
      %v2535 = vmul.f32 %v2371, %v2371
      %v2536 = vmul.f32 %v2376, %v2376
      %v2537 = vmul.f32 %v2379, %v2379
      %v2538 = vmul.f32 %v2384, %v2384
      %v2539 = vmul.f32 %v2387, %v2387
      %v2540 = vmul.f32 %v2392, %v2392
      %v2541 = vmul.f32 %v2395, %v2395
      %v2542 = vmul.f32 %v2400, %v2400
      %v2543 = vmul.f32 %v2403, %v2403
      %v2544 = vmul.f32 %v2408, %v2408
      %v2545 = vmul.f32 %v2411, %v2411
      %v2546 = vmul.f32 %v2416, %v2416
      %v2547 = vmul.f32 %v2419, %v2419
      %v2548 = vmul.f32 %v2424, %v2424
      %v2549 = vmul.f32 %v2427, %v2427
      %v2550 = vmul.f32 %v2432, %v2432
      %v2551 = vmul.f32 %v2435, %v2435
      %v2552 = vmul.f32 %v2440, %v2440
      %v2553 = vmul.f32 %v2443, %v2443
      %v2554 = vmul.f32 %v2448, %v2448
      %v2555 = vmul.f32 %v2451, %v2451
      %v2556 = vadd.f32 %v2524, %v2525
      %v2557 = vadd.f32 %v2556, %v2526
      %v2558 = vadd.f32 %v2557, %v2527
      %v2559 = vadd.f32 %v2558, %v2528
      %v2560 = vadd.f32 %v2559, %v2529
      %v2561 = vadd.f32 %v2560, %v2530
      %v2562 = vadd.f32 %v2561, %v2531
      %v2563 = vadd.f32 %v2562, %v2532
      %v2564 = vadd.f32 %v2563, %v2533
      %v2565 = vadd.f32 %v2564, %v2534
      %v2566 = vadd.f32 %v2565, %v2535
      %v2567 = vadd.f32 %v2566, %v2536
      %v2568 = vadd.f32 %v2567, %v2537
      %v2569 = vadd.f32 %v2568, %v2538
      %v2570 = vadd.f32 %v2569, %v2539
      %v2571 = vadd.f32 %v2570, %v2540
      %v2572 = vadd.f32 %v2571, %v2541
      %v2573 = vadd.f32 %v2572, %v2542
      %v2574 = vadd.f32 %v2573, %v2543
      %v2575 = vadd.f32 %v2574, %v2544
      %v2576 = vadd.f32 %v2575, %v2545
      %v2577 = vadd.f32 %v2576, %v2546
      %v2578 = vadd.f32 %v2577, %v2547
      %v2579 = vadd.f32 %v2578, %v2548
      %v2580 = vadd.f32 %v2579, %v2549
      %v2581 = vadd.f32 %v2580, %v2550
      %v2582 = vadd.f32 %v2581, %v2551
      %v2583 = vadd.f32 %v2582, %v2552
      %v2584 = vadd.f32 %v2583, %v2553
      %v2585 = vadd.f32 %v2584, %v2554
      %v2586 = vadd.f32 %v2585, %v2555
      %v2587 = vrot.slane %v2586, 4
      %v2588 = vadd.f32 %v2586, %v2587
      %v2589 = vrot.slane %v2588, 2
      %v2590 = vadd.f32 %v2588, %v2589
      %v2591 = vrot.slane %v2590, 1
      %v2592 = vadd.f32 %v2590, %v2591
      %2593 = vst [vmem:[%s322] sm:$0x1] %v2592
      %p2594 = scmp.lt.s32.totalorder %s20, 1
      %s2595 = scalar_select %p2594, %s20, 1
      %s2596 = smul.addr %s2595, 32
      %s2597 = smul.addr %s2596, 8
      %s2598 = scalar_lea.vmem %s6, %s2597
      %p2599 = scmp.lt.s32.totalorder %s20, 1
      %s2600 = scalar_select %p2599, %s20, 1
      %s2601 = scalar_lea.vmem %s7, %s2600
      %p2602 = scmp.lt.s32.totalorder %s20, 1
      %s2603 = scalar_select %p2602, %s20, 1
      %s2604 = scalar_lea.vmem %s8, %s2603
      // Predicated region
      $region45: #{basic_block_forward.4} parent=43 // pred_check
        %p2605 = pneg %p169
      $region46: #{basic_block_forward.4} parent=43 // pred_check_branch
        %2607 = sbr.rel (%p2605) target = $region48
      $region47: #{basic_block_forward.4} parent=43 // pred_region
        _
      $region48: #{basic_block_forward.4} parent=43 // pred_fallthru
        _
      // Predicated region
      $region49: #{basic_block_forward.4} parent=43 // pred_check
        %p2608 = pneg %p195
      $region50: #{basic_block_forward.4} parent=43 // pred_check_branch
        %2610 = sbr.rel (%p2608) target = $region52
      $region51: #{basic_block_forward.4} parent=43 // pred_region
        _
      $region52: #{basic_block_forward.4} parent=43 // pred_fallthru
        _
      // Predicated region
      $region53: #{basic_block_forward.4} parent=43 // pred_check
        %p2611 = pneg %p221
      $region54: #{basic_block_forward.4} parent=43 // pred_check_branch
        %2613 = sbr.rel (%p2611) target = $region56
      $region55: #{basic_block_forward.4} parent=43 // pred_region
        _
      $region56: #{basic_block_forward.4} parent=43 // pred_fallthru
        _
    $region44: #{basic_block_forward.4} parent=5 // pred_fallthru
      _
    %p2614 = scmp.le.s32.totalorder 2, %s15
    // Predicated region
    $region57: #{basic_block_forward.4} parent=5 // pred_check
      %p2615 = pneg %p2614
    $region58: #{basic_block_forward.4} parent=5 // pred_check_branch
      %2617 = sbr.rel (%p2615) target = $region60
    $region59: #{basic_block_forward.4} parent=5 // pred_region
      %s2618 = ssub.s32 %s15, 2
      // Predicated region
      $region61: #{basic_block_forward.4} parent=59 // pred_check
        %p2619 = pneg %p175
      $region62: #{basic_block_forward.4} parent=59 // pred_check_branch
        %2621 = sbr.rel (%p2619) target = $region64
      $region63: #{basic_block_forward.4} parent=59 // pred_region
        %p2622 = scmp.lt.s32.totalorder %s21, 1
        %s2623 = scalar_select %p2622, %s21, 1
        %s2624 = smul.addr %s2623, 32
        %s2625 = smul.addr %s2624, 8
        %s2626 = scalar_lea.vmem %s6, %s2625
      $region64: #{basic_block_forward.4} parent=59 // pred_fallthru
        _
      // Predicated region
      $region65: #{basic_block_forward.4} parent=59 // pred_check
        %p2627 = pneg %p201
      $region66: #{basic_block_forward.4} parent=59 // pred_check_branch
        %2629 = sbr.rel (%p2627) target = $region68
      $region67: #{basic_block_forward.4} parent=59 // pred_region
        %p2630 = scmp.lt.s32.totalorder %s21, 1
        %s2631 = scalar_select %p2630, %s21, 1
        %s2632 = scalar_lea.vmem %s7, %s2631
      $region68: #{basic_block_forward.4} parent=59 // pred_fallthru
        _
      // Predicated region
      $region69: #{basic_block_forward.4} parent=59 // pred_check
        %p2633 = pneg %p227
      $region70: #{basic_block_forward.4} parent=59 // pred_check_branch
        %2635 = sbr.rel (%p2633) target = $region72
      $region71: #{basic_block_forward.4} parent=59 // pred_region
        %p2636 = scmp.lt.s32.totalorder %s21, 1
        %s2637 = scalar_select %p2636, %s21, 1
        %s2638 = scalar_lea.vmem %s8, %s2637
      $region72: #{basic_block_forward.4} parent=59 // pred_fallthru
        _
    $region60: #{basic_block_forward.4} parent=5 // pred_fallthru
      _
  $region6: #{basic_block_forward.4} parent=0 // loop_footer
    %s19 = sadd.s32 1, %s15
  $region7: #{basic_block_forward.4} parent=0 // loop_footer_branch
    %14 = sbr.rel target = $region3
  $region8: #{basic_block_forward.4} parent=0 // loop_exit
    _

// kernel: basic_block_forward.3
$region0: #{basic_block_forward.3}
  #allocation0 [shape = 'u32[]', space=smem, size = 0x4, offset = 0x4, fixed_abs, tag = 'smem constant byte address 0x4 - core index']
  #allocation1 [shape = 'u32[144,128]{1,0:T(1,128)}', space=vmem, size = 0x12000, scoped, tag = 'internal scratch']
  %s0 = inlined_call_operand.vmem [shape: bf16[2,18,18,128], index: 0, kind: input, shape index: {}]
  %s1 = inlined_call_operand.vmem [shape: bf16[1152,128], index: 1, kind: input, shape index: {}]
  %s2 = inlined_call_operand.vmem [shape: f32[2,16,16,128], index: 2, kind: output, shape index: {0}]
  %s3 = inlined_call_operand.vmem [shape: f32[2,1,128], index: 3, kind: output, shape index: {1}]
  %s4 = inlined_call_operand.vmem [shape: f32[2,1,128], index: 4, kind: output, shape index: {2}]
  %5 = xla_tuple %s2, %s3, %s4
  %s6 = sld [smem:[#allocation0]]
  $region57: #{basic_block_forward.3} parent=0
    _
  %s8 = ssub.s32 1, %s6
  %s9 = scalar_select 0, %s8, %s6
  loop: start=0, step=1, limit=4
  $region2: #{basic_block_forward.3} parent=0 // loop_pre_header
    _
  $region3: #{basic_block_forward.3} parent=0 // loop_header
    %s11 = sphi 0, %s15
    %p12 = scmp.ge.s32.totalorder %s11, 4
    %s21 = sphi 0, %s23
    %s24 = sphi 0, %s21
    %s25 = sphi 0, %s24
    %s41 = sphi 0, %s25
    %s45 = sphi 0, %s45
    %s47 = sphi 0, %s45
    %s48 = sphi 0, %s47
    %s62 = sphi 0, %s48
    %s68 = sphi 0, %s70
    %s71 = sphi 0, %s68
    %s72 = sphi 0, %s71
    %s88 = sphi 0, %s72
    %s94 = sphi 0, %s96
    %s97 = sphi 0, %s94
    %s98 = sphi 0, %s97
    %s114 = sphi 0, %s98
    %s120 = sphi 0, %s122
    %s123 = sphi 0, %s120
    %s124 = sphi 0, %s123
    %s140 = sphi 0, %s124
  $region4: #{basic_block_forward.3} parent=0 // loop_header_branch
    %14 = sbr.rel (%p12) target = $region8
  $region5: #{basic_block_forward.3} parent=0 // loop_body
    %s16 = ssub.s32 %s11, 1
    %s17 = ssub.s32 %s11, 2
    %s18 = sadd.s32 %s11, 1
    %s19 = ssub.s32 %s11, %s18
    %p20 = scmp.eq.s32.totalorder %s19, 0
    %s22 = sadd.s32 %s21, 1
    %s23 = scalar_select %p20, %s21, %s22
    %p26 = pneg %p20
    %p27 = scmp.eq.s32.totalorder %s11, 1
    %p28 = por %p26, %p27
    %p29 = scmp.ne.s32.totalorder %s21, %s24
    %p30 = scmp.eq.s32.totalorder %s11, 0
    %p31 = por %p29, %p30
    %p32 = scmp.ne.s32.totalorder %s21, %s24
    %p33 = scmp.eq.s32.totalorder %s16, 1
    %p34 = por %p32, %p33
    %p35 = scmp.ne.s32.totalorder %s24, %s25
    %p36 = scmp.eq.s32.totalorder %s16, 0
    %p37 = por %p35, %p36
    %p38 = scmp.ne.s32.totalorder %s24, %s25
    %p39 = scmp.eq.s32.totalorder %s17, 1
    %p40 = por %p38, %p39
    %p42 = scmp.ne.s32.totalorder %s25, %s41
    %p43 = scmp.eq.s32.totalorder %s17, 0
    %p44 = por %p42, %p43
    %s46 = sadd.s32 %s45, 1
    %p49 = scmp.eq.s32.totalorder %s11, 1
    %p50 = scmp.ne.s32.totalorder %s45, %s47
    %p51 = scmp.eq.s32.totalorder %s11, 0
    %p52 = por %p50, %p51
    %p53 = scmp.ne.s32.totalorder %s45, %s47
    %p54 = scmp.eq.s32.totalorder %s16, 1
    %p55 = por %p53, %p54
    %p56 = scmp.ne.s32.totalorder %s47, %s48
    %p57 = scmp.eq.s32.totalorder %s16, 0
    %p58 = por %p56, %p57
    %p59 = scmp.ne.s32.totalorder %s47, %s48
    %p60 = scmp.eq.s32.totalorder %s17, 1
    %p61 = por %p59, %p60
    %p63 = scmp.ne.s32.totalorder %s48, %s62
    %p64 = scmp.eq.s32.totalorder %s17, 0
    %p65 = por %p63, %p64
    %s66 = ssub.s32 %s11, %s18
    %p67 = scmp.eq.s32.totalorder %s66, 0
    %s69 = sadd.s32 %s68, 1
    %s70 = scalar_select %p67, %s68, %s69
    %p73 = pneg %p67
    %p74 = scmp.eq.s32.totalorder %s11, 1
    %p75 = por %p73, %p74
    %p76 = scmp.ne.s32.totalorder %s68, %s71
    %p77 = scmp.eq.s32.totalorder %s11, 0
    %p78 = por %p76, %p77
    %p79 = scmp.ne.s32.totalorder %s68, %s71
    %p80 = scmp.eq.s32.totalorder %s16, 1
    %p81 = por %p79, %p80
    %p82 = scmp.ne.s32.totalorder %s71, %s72
    %p83 = scmp.eq.s32.totalorder %s16, 0
    %p84 = por %p82, %p83
    %p85 = scmp.ne.s32.totalorder %s71, %s72
    %p86 = scmp.eq.s32.totalorder %s17, 1
    %p87 = por %p85, %p86
    %p89 = scmp.ne.s32.totalorder %s72, %s88
    %p90 = scmp.eq.s32.totalorder %s17, 0
    %p91 = por %p89, %p90
    %s92 = ssub.s32 %s11, %s18
    %p93 = scmp.eq.s32.totalorder %s92, 0
    %s95 = sadd.s32 %s94, 1
    %s96 = scalar_select %p93, %s94, %s95
    %p99 = pneg %p93
    %p100 = scmp.eq.s32.totalorder %s11, 1
    %p101 = por %p99, %p100
    %p102 = scmp.ne.s32.totalorder %s94, %s97
    %p103 = scmp.eq.s32.totalorder %s11, 0
    %p104 = por %p102, %p103
    %p105 = scmp.ne.s32.totalorder %s94, %s97
    %p106 = scmp.eq.s32.totalorder %s16, 1
    %p107 = por %p105, %p106
    %p108 = scmp.ne.s32.totalorder %s97, %s98
    %p109 = scmp.eq.s32.totalorder %s16, 0
    %p110 = por %p108, %p109
    %p111 = scmp.ne.s32.totalorder %s97, %s98
    %p112 = scmp.eq.s32.totalorder %s17, 1
    %p113 = por %p111, %p112
    %p115 = scmp.ne.s32.totalorder %s98, %s114
    %p116 = scmp.eq.s32.totalorder %s17, 0
    %p117 = por %p115, %p116
    %s118 = ssub.s32 %s11, %s18
    %p119 = scmp.eq.s32.totalorder %s118, 0
    %s121 = sadd.s32 %s120, 1
    %s122 = scalar_select %p119, %s120, %s121
    %p125 = pneg %p119
    %p126 = scmp.eq.s32.totalorder %s11, 1
    %p127 = por %p125, %p126
    %p128 = scmp.ne.s32.totalorder %s120, %s123
    %p129 = scmp.eq.s32.totalorder %s11, 0
    %p130 = por %p128, %p129
    %p131 = scmp.ne.s32.totalorder %s120, %s123
    %p132 = scmp.eq.s32.totalorder %s16, 1
    %p133 = por %p131, %p132
    %p134 = scmp.ne.s32.totalorder %s123, %s124
    %p135 = scmp.eq.s32.totalorder %s16, 0
    %p136 = por %p134, %p135
    %p137 = scmp.ne.s32.totalorder %s123, %s124
    %p138 = scmp.eq.s32.totalorder %s17, 1
    %p139 = por %p137, %p138
    %p141 = scmp.ne.s32.totalorder %s124, %s140
    %p142 = scmp.eq.s32.totalorder %s17, 0
    %p143 = por %p141, %p142
    %p144 = scmp.le.s32.totalorder 1, %s11
    %p145 = scmp.lt.s32.totalorder %s11, 3
    %p146 = pnand %p144, %p145
    %p147 = pneg %p146
    // Predicated region
    $region9: #{basic_block_forward.3} parent=5 // pred_check
      _
    $region10: #{basic_block_forward.3} parent=5 // pred_check_branch
      %149 = sbr.rel (%p146) target = $region12
    $region11: #{basic_block_forward.3} parent=5 // pred_region
      %s150 = ssub.s32 %s11, 1
      // Predicated region
      $region13: #{basic_block_forward.3} parent=11 // pred_check
        %p151 = pneg %p58
      $region14: #{basic_block_forward.3} parent=11 // pred_check_branch
        %153 = sbr.rel (%p151) target = $region16
      $region15: #{basic_block_forward.3} parent=11 // pred_region
        _
      $region16: #{basic_block_forward.3} parent=11 // pred_fallthru
        _
    $region12: #{basic_block_forward.3} parent=5 // pred_fallthru
      _
    %p154 = scmp.lt.s32.totalorder %s11, 2
    // Predicated region
    $region17: #{basic_block_forward.3} parent=5 // pred_check
      %p155 = pneg %p154
    $region18: #{basic_block_forward.3} parent=5 // pred_check_branch
      %157 = sbr.rel (%p155) target = $region20
    $region19: #{basic_block_forward.3} parent=5 // pred_region
      // Predicated region
      $region21: #{basic_block_forward.3} parent=19 // pred_check
        %p158 = pneg %p31
      $region22: #{basic_block_forward.3} parent=19 // pred_check_branch
        %160 = sbr.rel (%p158) target = $region24
      $region23: #{basic_block_forward.3} parent=19 // pred_region
        %p161 = scmp.lt.s32.totalorder %s11, 1
        %s162 = scalar_select %p161, %s11, 1
        %s163 = smul.addr %s162, 54
        %s164 = smul.addr %s163, 4
        %s165 = scalar_lea.vmem %s0, %s164
      $region24: #{basic_block_forward.3} parent=19 // pred_fallthru
        _
    $region20: #{basic_block_forward.3} parent=5 // pred_fallthru
      _
    %p166 = scmp.le.s32.totalorder 1, %s11
    %p167 = scmp.lt.s32.totalorder %s11, 3
    %p168 = pnand %p166, %p167
    %p169 = pneg %p168
    // Predicated region
    $region25: #{basic_block_forward.3} parent=5 // pred_check
      _
    $region26: #{basic_block_forward.3} parent=5 // pred_check_branch
      %171 = sbr.rel (%p168) target = $region28
    $region27: #{basic_block_forward.3} parent=5 // pred_region
      %s172 = ssub.s32 %s11, 1
      %p173 = scmp.lt.s32.totalorder %s16, 1
      %s174 = scalar_select %p173, %s16, 1
      %s175 = smul.addr %s174, 54
      %s176 = smul.addr %s175, 4
      %s177 = scalar_lea.vmem %s0, %s176
      %p178 = pneg %p37
      %p179 = pneg %p34
      %p180 = pneg %p58
      %p181 = pneg %p55
      %p182 = pneg %p84
      %p183 = pneg %p81
      %p184 = scmp.lt.s32.totalorder %s16, 1
      %s185 = scalar_select %p184, %s16, 1
      %s186 = smul.addr %s185, 32
      %s187 = smul.addr %s186, 8
      %s188 = scalar_lea.vmem %s2, %s187
      %p189 = pneg %p110
      %p190 = pneg %p107
      %p191 = scmp.lt.s32.totalorder %s16, 1
      %s192 = scalar_select %p191, %s16, 1
      %s193 = scalar_lea.vmem %s3, %s192
      %p194 = pneg %p136
      %p195 = pneg %p133
      %p196 = scmp.lt.s32.totalorder %s16, 1
      %s197 = scalar_select %p196, %s16, 1
      %s198 = scalar_lea.vmem %s4, %s197
      %p199 = scmp.lt.s32.totalorder %s16, 1
      %s200 = scalar_select %p199, %s16, 1
      %s201 = smul.addr %s200, 54
      %s202 = smul.addr %s201, 4
      %s203 = scalar_lea.vmem %s0, %s202
      %p204 = scmp.lt.s32.totalorder %s16, 1
      %s205 = scalar_select %p204, %s16, 1
      %s206 = smul.addr %s205, 32
      %s207 = smul.addr %s206, 8
      %s208 = scalar_lea.vmem %s2, %s207
      %p209 = scmp.lt.s32.totalorder %s16, 1
      %s210 = scalar_select %p209, %s16, 1
      %s211 = scalar_lea.vmem %s3, %s210
      %p212 = scmp.lt.s32.totalorder %s16, 1
      %s213 = scalar_select %p212, %s16, 1
      %s214 = scalar_lea.vmem %s4, %s213
      %v216 = vld [vmem:[%s203] sm:$0xf]
      %v217 = vld [vmem:[%s203 + $0x4] sm:$0xf]
      %v218 = vld [vmem:[%s203 + $0xc] sm:$0xf]
      %v219 = vld [vmem:[%s203 + $0x10] sm:$0xf]
      %v220 = vld [vmem:[%s203 + $0x18] sm:$0xf]
      %v221 = vld [vmem:[%s203 + $0x1c] sm:$0xf]
      %v222 = vld [vmem:[%s203 + $0x24] sm:$0xf]
      %v223 = vld [vmem:[%s203 + $0x28] sm:$0xf]
      %v224 = vld [vmem:[%s203 + $0x30] sm:$0xf]
      %v225 = vld [vmem:[%s203 + $0x34] sm:$0xf]
      %v226 = vld [vmem:[%s203 + $0x3c] sm:$0xf]
      %v227 = vld [vmem:[%s203 + $0x40] sm:$0xf]
      %v228 = vld [vmem:[%s203 + $0x48] sm:$0xf]
      %v229 = vld [vmem:[%s203 + $0x4c] sm:$0xf]
      %v230 = vld [vmem:[%s203 + $0x54] sm:$0xf]
      %v231 = vld [vmem:[%s203 + $0x58] sm:$0xf]
      %v232 = vld [vmem:[%s203 + $0x60] sm:$0xf]
      %v233 = vld [vmem:[%s203 + $0x64] sm:$0xf]
      %v234 = vld [vmem:[%s203 + $0x6c] sm:$0xf]
      %v235 = vld [vmem:[%s203 + $0x70] sm:$0xf]
      %v236 = vld [vmem:[%s203 + $0x78] sm:$0xf]
      %v237 = vld [vmem:[%s203 + $0x7c] sm:$0xf]
      %v238 = vld [vmem:[%s203 + $0x84] sm:$0xf]
      %v239 = vld [vmem:[%s203 + $0x88] sm:$0xf]
      %v240 = vld [vmem:[%s203 + $0x90] sm:$0xf]
      %v241 = vld [vmem:[%s203 + $0x94] sm:$0xf]
      %v242 = vld [vmem:[%s203 + $0x9c] sm:$0xf]
      %v243 = vld [vmem:[%s203 + $0xa0] sm:$0xf]
      %v244 = vld [vmem:[%s203 + $0xa8] sm:$0xf]
      %v245 = vld [vmem:[%s203 + $0xac] sm:$0xf]
      %v246 = vld [vmem:[%s203 + $0xb4] sm:$0xf]
      %v247 = vld [vmem:[%s203 + $0xb8] sm:$0xf]
      %v248 = vld [vmem:[%s203 + $0x8] sm:$0x1]
      %v249 = vld [vmem:[%s203 + $0x14] sm:$0x1]
      %v250 = vld [vmem:[%s203 + $0x20] sm:$0x1]
      %v251 = vld [vmem:[%s203 + $0x2c] sm:$0x1]
      %v252 = vld [vmem:[%s203 + $0x38] sm:$0x1]
      %v253 = vld [vmem:[%s203 + $0x44] sm:$0x1]
      %v254 = vld [vmem:[%s203 + $0x50] sm:$0x1]
      %v255 = vld [vmem:[%s203 + $0x5c] sm:$0x1]
      %v256 = vld [vmem:[%s203 + $0x68] sm:$0x1]
      %v257 = vld [vmem:[%s203 + $0x74] sm:$0x1]
      %v258 = vld [vmem:[%s203 + $0x80] sm:$0x1]
      %v259 = vld [vmem:[%s203 + $0x8c] sm:$0x1]
      %v260 = vld [vmem:[%s203 + $0x98] sm:$0x1]
      %v261 = vld [vmem:[%s203 + $0xa4] sm:$0x1]
      %v262 = vld [vmem:[%s203 + $0xb0] sm:$0x1]
      %v263 = vld [vmem:[%s203 + $0xbc] sm:$0x1]
      %vm264 = vsmask.f32 3328
      %vm265 = vsmask.f32 7440
      %vm266 = vmor %vm264, %vm265
      %v268 = vshrl.u32 %v216, 16
      %v270 = vrot.slane %v268, 4
      %v271 = vshll.u32 %v216, 16
      %v273 = vrot.slane %v271, 5
      %v274 = vor.u32 %v270, %v273
      %v275 = vrot.slane %v274, 4
      %v277 = vshll.u32 %v217, 16
      %v279 = vrot.slane %v277, 5
      %v280 = vsel %vm266, %v275, %v279
      %v281 = vshrl.u32 %v217, 16
      %v283 = vrot.slane %v281, 4
      %v284 = vor.u32 %v283, %v279
      %v285 = vrot.slane %v284, 4
      %v287 = vshll.u32 %v248, 16
      %v289 = vrot.slane %v287, 5
      %v290 = vsel %vm266, %v285, %v289
      %v292 = vshrl.u32 %v218, 16
      %v294 = vrot.slane %v292, 4
      %v295 = vshll.u32 %v218, 16
      %v297 = vrot.slane %v295, 5
      %v298 = vor.u32 %v294, %v297
      %v299 = vrot.slane %v298, 4
      %v301 = vshll.u32 %v219, 16
      %v303 = vrot.slane %v301, 5
      %v304 = vsel %vm266, %v299, %v303
      %v305 = vshrl.u32 %v219, 16
      %v307 = vrot.slane %v305, 4
      %v308 = vor.u32 %v307, %v303
      %v309 = vrot.slane %v308, 4
      %v311 = vshll.u32 %v249, 16
      %v313 = vrot.slane %v311, 5
      %v314 = vsel %vm266, %v309, %v313
      %v316 = vshrl.u32 %v220, 16
      %v318 = vrot.slane %v316, 4
      %v319 = vshll.u32 %v220, 16
      %v321 = vrot.slane %v319, 5
      %v322 = vor.u32 %v318, %v321
      %v323 = vrot.slane %v322, 4
      %v325 = vshll.u32 %v221, 16
      %v327 = vrot.slane %v325, 5
      %v328 = vsel %vm266, %v323, %v327
      %v329 = vshrl.u32 %v221, 16
      %v331 = vrot.slane %v329, 4
      %v332 = vor.u32 %v331, %v327
      %v333 = vrot.slane %v332, 4
      %v335 = vshll.u32 %v250, 16
      %v337 = vrot.slane %v335, 5
      %v338 = vsel %vm266, %v333, %v337
      %v340 = vshrl.u32 %v222, 16
      %v342 = vrot.slane %v340, 4
      %v343 = vshll.u32 %v222, 16
      %v345 = vrot.slane %v343, 5
      %v346 = vor.u32 %v342, %v345
      %v347 = vrot.slane %v346, 4
      %v349 = vshll.u32 %v223, 16
      %v351 = vrot.slane %v349, 5
      %v352 = vsel %vm266, %v347, %v351
      %v353 = vshrl.u32 %v223, 16
      %v355 = vrot.slane %v353, 4
      %v356 = vor.u32 %v355, %v351
      %v357 = vrot.slane %v356, 4
      %v359 = vshll.u32 %v251, 16
      %v361 = vrot.slane %v359, 5
      %v362 = vsel %vm266, %v357, %v361
      %v364 = vshrl.u32 %v224, 16
      %v366 = vrot.slane %v364, 4
      %v367 = vshll.u32 %v224, 16
      %v369 = vrot.slane %v367, 5
      %v370 = vor.u32 %v366, %v369
      %v371 = vrot.slane %v370, 4
      %v373 = vshll.u32 %v225, 16
      %v375 = vrot.slane %v373, 5
      %v376 = vsel %vm266, %v371, %v375
      %v377 = vshrl.u32 %v225, 16
      %v379 = vrot.slane %v377, 4
      %v380 = vor.u32 %v379, %v375
      %v381 = vrot.slane %v380, 4
      %v383 = vshll.u32 %v252, 16
      %v385 = vrot.slane %v383, 5
      %v386 = vsel %vm266, %v381, %v385
      %v388 = vshrl.u32 %v226, 16
      %v390 = vrot.slane %v388, 4
      %v391 = vshll.u32 %v226, 16
      %v393 = vrot.slane %v391, 5
      %v394 = vor.u32 %v390, %v393
      %v395 = vrot.slane %v394, 4
      %v397 = vshll.u32 %v227, 16
      %v399 = vrot.slane %v397, 5
      %v400 = vsel %vm266, %v395, %v399
      %v401 = vshrl.u32 %v227, 16
      %v403 = vrot.slane %v401, 4
      %v404 = vor.u32 %v403, %v399
      %v405 = vrot.slane %v404, 4
      %v407 = vshll.u32 %v253, 16
      %v409 = vrot.slane %v407, 5
      %v410 = vsel %vm266, %v405, %v409
      %v412 = vshrl.u32 %v228, 16
      %v414 = vrot.slane %v412, 4
      %v415 = vshll.u32 %v228, 16
      %v417 = vrot.slane %v415, 5
      %v418 = vor.u32 %v414, %v417
      %v419 = vrot.slane %v418, 4
      %v421 = vshll.u32 %v229, 16
      %v423 = vrot.slane %v421, 5
      %v424 = vsel %vm266, %v419, %v423
      %v425 = vshrl.u32 %v229, 16
      %v427 = vrot.slane %v425, 4
      %v428 = vor.u32 %v427, %v423
      %v429 = vrot.slane %v428, 4
      %v431 = vshll.u32 %v254, 16
      %v433 = vrot.slane %v431, 5
      %v434 = vsel %vm266, %v429, %v433
      %v436 = vshrl.u32 %v230, 16
      %v438 = vrot.slane %v436, 4
      %v439 = vshll.u32 %v230, 16
      %v441 = vrot.slane %v439, 5
      %v442 = vor.u32 %v438, %v441
      %v443 = vrot.slane %v442, 4
      %v445 = vshll.u32 %v231, 16
      %v447 = vrot.slane %v445, 5
      %v448 = vsel %vm266, %v443, %v447
      %v449 = vshrl.u32 %v231, 16
      %v451 = vrot.slane %v449, 4
      %v452 = vor.u32 %v451, %v447
      %v453 = vrot.slane %v452, 4
      %v455 = vshll.u32 %v255, 16
      %v457 = vrot.slane %v455, 5
      %v458 = vsel %vm266, %v453, %v457
      %v460 = vshrl.u32 %v232, 16
      %v462 = vrot.slane %v460, 4
      %v463 = vshll.u32 %v232, 16
      %v465 = vrot.slane %v463, 5
      %v466 = vor.u32 %v462, %v465
      %v467 = vrot.slane %v466, 4
      %v469 = vshll.u32 %v233, 16
      %v471 = vrot.slane %v469, 5
      %v472 = vsel %vm266, %v467, %v471
      %v473 = vshrl.u32 %v233, 16
      %v475 = vrot.slane %v473, 4
      %v476 = vor.u32 %v475, %v471
      %v477 = vrot.slane %v476, 4
      %v479 = vshll.u32 %v256, 16
      %v481 = vrot.slane %v479, 5
      %v482 = vsel %vm266, %v477, %v481
      %v484 = vshrl.u32 %v234, 16
      %v486 = vrot.slane %v484, 4
      %v487 = vshll.u32 %v234, 16
      %v489 = vrot.slane %v487, 5
      %v490 = vor.u32 %v486, %v489
      %v491 = vrot.slane %v490, 4
      %v493 = vshll.u32 %v235, 16
      %v495 = vrot.slane %v493, 5
      %v496 = vsel %vm266, %v491, %v495
      %v497 = vshrl.u32 %v235, 16
      %v499 = vrot.slane %v497, 4
      %v500 = vor.u32 %v499, %v495
      %v501 = vrot.slane %v500, 4
      %v503 = vshll.u32 %v257, 16
      %v505 = vrot.slane %v503, 5
      %v506 = vsel %vm266, %v501, %v505
      %v508 = vshrl.u32 %v236, 16
      %v510 = vrot.slane %v508, 4
      %v511 = vshll.u32 %v236, 16
      %v513 = vrot.slane %v511, 5
      %v514 = vor.u32 %v510, %v513
      %v515 = vrot.slane %v514, 4
      %v517 = vshll.u32 %v237, 16
      %v519 = vrot.slane %v517, 5
      %v520 = vsel %vm266, %v515, %v519
      %v521 = vshrl.u32 %v237, 16
      %v523 = vrot.slane %v521, 4
      %v524 = vor.u32 %v523, %v519
      %v525 = vrot.slane %v524, 4
      %v527 = vshll.u32 %v258, 16
      %v529 = vrot.slane %v527, 5
      %v530 = vsel %vm266, %v525, %v529
      %v532 = vshrl.u32 %v238, 16
      %v534 = vrot.slane %v532, 4
      %v535 = vshll.u32 %v238, 16
      %v537 = vrot.slane %v535, 5
      %v538 = vor.u32 %v534, %v537
      %v539 = vrot.slane %v538, 4
      %v541 = vshll.u32 %v239, 16
      %v543 = vrot.slane %v541, 5
      %v544 = vsel %vm266, %v539, %v543
      %v545 = vshrl.u32 %v239, 16
      %v547 = vrot.slane %v545, 4
      %v548 = vor.u32 %v547, %v543
      %v549 = vrot.slane %v548, 4
      %v551 = vshll.u32 %v259, 16
      %v553 = vrot.slane %v551, 5
      %v554 = vsel %vm266, %v549, %v553
      %v556 = vshrl.u32 %v240, 16
      %v558 = vrot.slane %v556, 4
      %v559 = vshll.u32 %v240, 16
      %v561 = vrot.slane %v559, 5
      %v562 = vor.u32 %v558, %v561
      %v563 = vrot.slane %v562, 4
      %v565 = vshll.u32 %v241, 16
      %v567 = vrot.slane %v565, 5
      %v568 = vsel %vm266, %v563, %v567
      %v569 = vshrl.u32 %v241, 16
      %v571 = vrot.slane %v569, 4
      %v572 = vor.u32 %v571, %v567
      %v573 = vrot.slane %v572, 4
      %v575 = vshll.u32 %v260, 16
      %v577 = vrot.slane %v575, 5
      %v578 = vsel %vm266, %v573, %v577
      %v580 = vshrl.u32 %v242, 16
      %v582 = vrot.slane %v580, 4
      %v583 = vshll.u32 %v242, 16
      %v585 = vrot.slane %v583, 5
      %v586 = vor.u32 %v582, %v585
      %v587 = vrot.slane %v586, 4
      %v589 = vshll.u32 %v243, 16
      %v591 = vrot.slane %v589, 5
      %v592 = vsel %vm266, %v587, %v591
      %v593 = vshrl.u32 %v243, 16
      %v595 = vrot.slane %v593, 4
      %v596 = vor.u32 %v595, %v591
      %v597 = vrot.slane %v596, 4
      %v599 = vshll.u32 %v261, 16
      %v601 = vrot.slane %v599, 5
      %v602 = vsel %vm266, %v597, %v601
      %v604 = vshrl.u32 %v244, 16
      %v606 = vrot.slane %v604, 4
      %v607 = vshll.u32 %v244, 16
      %v609 = vrot.slane %v607, 5
      %v610 = vor.u32 %v606, %v609
      %v611 = vrot.slane %v610, 4
      %v613 = vshll.u32 %v245, 16
      %v615 = vrot.slane %v613, 5
      %v616 = vsel %vm266, %v611, %v615
      %v617 = vshrl.u32 %v245, 16
      %v619 = vrot.slane %v617, 4
      %v620 = vor.u32 %v619, %v615
      %v621 = vrot.slane %v620, 4
      %v623 = vshll.u32 %v262, 16
      %v625 = vrot.slane %v623, 5
      %v626 = vsel %vm266, %v621, %v625
      %v628 = vshrl.u32 %v246, 16
      %v630 = vrot.slane %v628, 4
      %v631 = vshll.u32 %v246, 16
      %v633 = vrot.slane %v631, 5
      %v634 = vor.u32 %v630, %v633
      %v635 = vrot.slane %v634, 4
      %v637 = vshll.u32 %v247, 16
      %v639 = vrot.slane %v637, 5
      %v640 = vsel %vm266, %v635, %v639
      %v641 = vshrl.u32 %v247, 16
      %v643 = vrot.slane %v641, 4
      %v644 = vor.u32 %v643, %v639
      %v645 = vrot.slane %v644, 4
      %v647 = vshll.u32 %v263, 16
      %v649 = vrot.slane %v647, 5
      %v650 = vsel %vm266, %v645, %v649
      %v651 = vld [vmem:[%s203] sm:$0xe]
      %v652 = vld [vmem:[%s203 + $0xc] sm:$0xe]
      %v653 = vld [vmem:[%s203 + $0x18] sm:$0xe]
      %v654 = vld [vmem:[%s203 + $0x24] sm:$0xe]
      %v655 = vld [vmem:[%s203 + $0x30] sm:$0xe]
      %v656 = vld [vmem:[%s203 + $0x3c] sm:$0xe]
      %v657 = vld [vmem:[%s203 + $0x48] sm:$0xe]
      %v658 = vld [vmem:[%s203 + $0x54] sm:$0xe]
      %v659 = vld [vmem:[%s203 + $0x60] sm:$0xe]
      %v660 = vld [vmem:[%s203 + $0x6c] sm:$0xe]
      %v661 = vld [vmem:[%s203 + $0x78] sm:$0xe]
      %v662 = vld [vmem:[%s203 + $0x84] sm:$0xe]
      %v663 = vld [vmem:[%s203 + $0x90] sm:$0xe]
      %v664 = vld [vmem:[%s203 + $0x9c] sm:$0xe]
      %v665 = vld [vmem:[%s203 + $0xa8] sm:$0xe]
      %v666 = vld [vmem:[%s203 + $0xb4] sm:$0xe]
      %vm715 = vcmask 1042432
      %vm716 = vcmask 1046532
      %vm717 = vmor %vm715, %vm716
      %v718 = vrot.slane %v651, 5
      %v719 = vrot.slane %v718, 4
      %v720 = vrot.slane %v217, 5
      %v721 = vsel %vm717, %v719, %v720
      %v722 = vrot.slane %v720, 4
      %v723 = vrot.slane %v248, 5
      %v724 = vsel %vm717, %v722, %v723
      %v725 = vrot.slane %v652, 5
      %v726 = vrot.slane %v725, 4
      %v727 = vrot.slane %v219, 5
      %v728 = vsel %vm717, %v726, %v727
      %v729 = vrot.slane %v727, 4
      %v730 = vrot.slane %v249, 5
      %v731 = vsel %vm717, %v729, %v730
      %v732 = vrot.slane %v653, 5
      %v733 = vrot.slane %v732, 4
      %v734 = vrot.slane %v221, 5
      %v735 = vsel %vm717, %v733, %v734
      %v736 = vrot.slane %v734, 4
      %v737 = vrot.slane %v250, 5
      %v738 = vsel %vm717, %v736, %v737
      %v739 = vrot.slane %v654, 5
      %v740 = vrot.slane %v739, 4
      %v741 = vrot.slane %v223, 5
      %v742 = vsel %vm717, %v740, %v741
      %v743 = vrot.slane %v741, 4
      %v744 = vrot.slane %v251, 5
      %v745 = vsel %vm717, %v743, %v744
      %v746 = vrot.slane %v655, 5
      %v747 = vrot.slane %v746, 4
      %v748 = vrot.slane %v225, 5
      %v749 = vsel %vm717, %v747, %v748
      %v750 = vrot.slane %v748, 4
      %v751 = vrot.slane %v252, 5
      %v752 = vsel %vm717, %v750, %v751
      %v753 = vrot.slane %v656, 5
      %v754 = vrot.slane %v753, 4
      %v755 = vrot.slane %v227, 5
      %v756 = vsel %vm717, %v754, %v755
      %v757 = vrot.slane %v755, 4
      %v758 = vrot.slane %v253, 5
      %v759 = vsel %vm717, %v757, %v758
      %v760 = vrot.slane %v657, 5
      %v761 = vrot.slane %v760, 4
      %v762 = vrot.slane %v229, 5
      %v763 = vsel %vm717, %v761, %v762
      %v764 = vrot.slane %v762, 4
      %v765 = vrot.slane %v254, 5
      %v766 = vsel %vm717, %v764, %v765
      %v767 = vrot.slane %v658, 5
      %v768 = vrot.slane %v767, 4
      %v769 = vrot.slane %v231, 5
      %v770 = vsel %vm717, %v768, %v769
      %v771 = vrot.slane %v769, 4
      %v772 = vrot.slane %v255, 5
      %v773 = vsel %vm717, %v771, %v772
      %v774 = vrot.slane %v659, 5
      %v775 = vrot.slane %v774, 4
      %v776 = vrot.slane %v233, 5
      %v777 = vsel %vm717, %v775, %v776
      %v778 = vrot.slane %v776, 4
      %v779 = vrot.slane %v256, 5
      %v780 = vsel %vm717, %v778, %v779
      %v781 = vrot.slane %v660, 5
      %v782 = vrot.slane %v781, 4
      %v783 = vrot.slane %v235, 5
      %v784 = vsel %vm717, %v782, %v783
      %v785 = vrot.slane %v783, 4
      %v786 = vrot.slane %v257, 5
      %v787 = vsel %vm717, %v785, %v786
      %v788 = vrot.slane %v661, 5
      %v789 = vrot.slane %v788, 4
      %v790 = vrot.slane %v237, 5
      %v791 = vsel %vm717, %v789, %v790
      %v792 = vrot.slane %v790, 4
      %v793 = vrot.slane %v258, 5
      %v794 = vsel %vm717, %v792, %v793
      %v795 = vrot.slane %v662, 5
      %v796 = vrot.slane %v795, 4
      %v797 = vrot.slane %v239, 5
      %v798 = vsel %vm717, %v796, %v797
      %v799 = vrot.slane %v797, 4
      %v800 = vrot.slane %v259, 5
      %v801 = vsel %vm717, %v799, %v800
      %v802 = vrot.slane %v663, 5
      %v803 = vrot.slane %v802, 4
      %v804 = vrot.slane %v241, 5
      %v805 = vsel %vm717, %v803, %v804
      %v806 = vrot.slane %v804, 4
      %v807 = vrot.slane %v260, 5
      %v808 = vsel %vm717, %v806, %v807
      %v809 = vrot.slane %v664, 5
      %v810 = vrot.slane %v809, 4
      %v811 = vrot.slane %v243, 5
      %v812 = vsel %vm717, %v810, %v811
      %v813 = vrot.slane %v811, 4
      %v814 = vrot.slane %v261, 5
      %v815 = vsel %vm717, %v813, %v814
      %v816 = vrot.slane %v665, 5
      %v817 = vrot.slane %v816, 4
      %v818 = vrot.slane %v245, 5
      %v819 = vsel %vm717, %v817, %v818
      %v820 = vrot.slane %v818, 4
      %v821 = vrot.slane %v262, 5
      %v822 = vsel %vm717, %v820, %v821
      %v823 = vrot.slane %v666, 5
      %v824 = vrot.slane %v823, 4
      %v825 = vrot.slane %v247, 5
      %v826 = vsel %vm717, %v824, %v825
      %v827 = vrot.slane %v825, 4
      %v828 = vrot.slane %v263, 5
      %v829 = vsel %vm717, %v827, %v828
      %s830 = scalar_lea.vmem %s203, 12
      %v831 = vld [vmem:[%s830] sm:$0xf]
      %v832 = vld [vmem:[%s830 + $0x4] sm:$0xf]
      %v833 = vld [vmem:[%s830 + $0xc] sm:$0xf]
      %v834 = vld [vmem:[%s830 + $0x10] sm:$0xf]
      %v835 = vld [vmem:[%s830 + $0x18] sm:$0xf]
      %v836 = vld [vmem:[%s830 + $0x1c] sm:$0xf]
      %v837 = vld [vmem:[%s830 + $0x24] sm:$0xf]
      %v838 = vld [vmem:[%s830 + $0x28] sm:$0xf]
      %v839 = vld [vmem:[%s830 + $0x30] sm:$0xf]
      %v840 = vld [vmem:[%s830 + $0x34] sm:$0xf]
      %v841 = vld [vmem:[%s830 + $0x3c] sm:$0xf]
      %v842 = vld [vmem:[%s830 + $0x40] sm:$0xf]
      %v843 = vld [vmem:[%s830 + $0x48] sm:$0xf]
      %v844 = vld [vmem:[%s830 + $0x4c] sm:$0xf]
      %v845 = vld [vmem:[%s830 + $0x54] sm:$0xf]
      %v846 = vld [vmem:[%s830 + $0x58] sm:$0xf]
      %v847 = vld [vmem:[%s830 + $0x60] sm:$0xf]
      %v848 = vld [vmem:[%s830 + $0x64] sm:$0xf]
      %v849 = vld [vmem:[%s830 + $0x6c] sm:$0xf]
      %v850 = vld [vmem:[%s830 + $0x70] sm:$0xf]
      %v851 = vld [vmem:[%s830 + $0x78] sm:$0xf]
      %v852 = vld [vmem:[%s830 + $0x7c] sm:$0xf]
      %v853 = vld [vmem:[%s830 + $0x84] sm:$0xf]
      %v854 = vld [vmem:[%s830 + $0x88] sm:$0xf]
      %v855 = vld [vmem:[%s830 + $0x90] sm:$0xf]
      %v856 = vld [vmem:[%s830 + $0x94] sm:$0xf]
      %v857 = vld [vmem:[%s830 + $0x9c] sm:$0xf]
      %v858 = vld [vmem:[%s830 + $0xa0] sm:$0xf]
      %v859 = vld [vmem:[%s830 + $0xa8] sm:$0xf]
      %v860 = vld [vmem:[%s830 + $0xac] sm:$0xf]
      %v861 = vld [vmem:[%s830 + $0xb4] sm:$0xf]
      %v862 = vld [vmem:[%s830 + $0xb8] sm:$0xf]
      %v863 = vld [vmem:[%s830 + $0x8] sm:$0x1]
      %v864 = vld [vmem:[%s830 + $0x14] sm:$0x1]
      %v865 = vld [vmem:[%s830 + $0x20] sm:$0x1]
      %v866 = vld [vmem:[%s830 + $0x2c] sm:$0x1]
      %v867 = vld [vmem:[%s830 + $0x38] sm:$0x1]
      %v868 = vld [vmem:[%s830 + $0x44] sm:$0x1]
      %v869 = vld [vmem:[%s830 + $0x50] sm:$0x1]
      %v870 = vld [vmem:[%s830 + $0x5c] sm:$0x1]
      %v871 = vld [vmem:[%s830 + $0x68] sm:$0x1]
      %v872 = vld [vmem:[%s830 + $0x74] sm:$0x1]
      %v873 = vld [vmem:[%s830 + $0x80] sm:$0x1]
      %v874 = vld [vmem:[%s830 + $0x8c] sm:$0x1]
      %v875 = vld [vmem:[%s830 + $0x98] sm:$0x1]
      %v876 = vld [vmem:[%s830 + $0xa4] sm:$0x1]
      %v877 = vld [vmem:[%s830 + $0xb0] sm:$0x1]
      %v878 = vld [vmem:[%s830 + $0xbc] sm:$0x1]
      %v880 = vshrl.u32 %v831, 16
      %v882 = vrot.slane %v880, 4
      %v883 = vshll.u32 %v831, 16
      %v885 = vrot.slane %v883, 5
      %v886 = vor.u32 %v882, %v885
      %v887 = vrot.slane %v886, 4
      %v889 = vshll.u32 %v832, 16
      %v891 = vrot.slane %v889, 5
      %v892 = vsel %vm266, %v887, %v891
      %v893 = vshrl.u32 %v832, 16
      %v895 = vrot.slane %v893, 4
      %v896 = vor.u32 %v895, %v891
      %v897 = vrot.slane %v896, 4
      %v899 = vshll.u32 %v863, 16
      %v901 = vrot.slane %v899, 5
      %v902 = vsel %vm266, %v897, %v901
      %v904 = vshrl.u32 %v833, 16
      %v906 = vrot.slane %v904, 4
      %v907 = vshll.u32 %v833, 16
      %v909 = vrot.slane %v907, 5
      %v910 = vor.u32 %v906, %v909
      %v911 = vrot.slane %v910, 4
      %v913 = vshll.u32 %v834, 16
      %v915 = vrot.slane %v913, 5
      %v916 = vsel %vm266, %v911, %v915
      %v917 = vshrl.u32 %v834, 16
      %v919 = vrot.slane %v917, 4
      %v920 = vor.u32 %v919, %v915
      %v921 = vrot.slane %v920, 4
      %v923 = vshll.u32 %v864, 16
      %v925 = vrot.slane %v923, 5
      %v926 = vsel %vm266, %v921, %v925
      %v928 = vshrl.u32 %v835, 16
      %v930 = vrot.slane %v928, 4
      %v931 = vshll.u32 %v835, 16
      %v933 = vrot.slane %v931, 5
      %v934 = vor.u32 %v930, %v933
      %v935 = vrot.slane %v934, 4
      %v937 = vshll.u32 %v836, 16
      %v939 = vrot.slane %v937, 5
      %v940 = vsel %vm266, %v935, %v939
      %v941 = vshrl.u32 %v836, 16
      %v943 = vrot.slane %v941, 4
      %v944 = vor.u32 %v943, %v939
      %v945 = vrot.slane %v944, 4
      %v947 = vshll.u32 %v865, 16
      %v949 = vrot.slane %v947, 5
      %v950 = vsel %vm266, %v945, %v949
      %v952 = vshrl.u32 %v837, 16
      %v954 = vrot.slane %v952, 4
      %v955 = vshll.u32 %v837, 16
      %v957 = vrot.slane %v955, 5
      %v958 = vor.u32 %v954, %v957
      %v959 = vrot.slane %v958, 4
      %v961 = vshll.u32 %v838, 16
      %v963 = vrot.slane %v961, 5
      %v964 = vsel %vm266, %v959, %v963
      %v965 = vshrl.u32 %v838, 16
      %v967 = vrot.slane %v965, 4
      %v968 = vor.u32 %v967, %v963
      %v969 = vrot.slane %v968, 4
      %v971 = vshll.u32 %v866, 16
      %v973 = vrot.slane %v971, 5
      %v974 = vsel %vm266, %v969, %v973
      %v976 = vshrl.u32 %v839, 16
      %v978 = vrot.slane %v976, 4
      %v979 = vshll.u32 %v839, 16
      %v981 = vrot.slane %v979, 5
      %v982 = vor.u32 %v978, %v981
      %v983 = vrot.slane %v982, 4
      %v985 = vshll.u32 %v840, 16
      %v987 = vrot.slane %v985, 5
      %v988 = vsel %vm266, %v983, %v987
      %v989 = vshrl.u32 %v840, 16
      %v991 = vrot.slane %v989, 4
      %v992 = vor.u32 %v991, %v987
      %v993 = vrot.slane %v992, 4
      %v995 = vshll.u32 %v867, 16
      %v997 = vrot.slane %v995, 5
      %v998 = vsel %vm266, %v993, %v997
      %v1000 = vshrl.u32 %v841, 16
      %v1002 = vrot.slane %v1000, 4
      %v1003 = vshll.u32 %v841, 16
      %v1005 = vrot.slane %v1003, 5
      %v1006 = vor.u32 %v1002, %v1005
      %v1007 = vrot.slane %v1006, 4
      %v1009 = vshll.u32 %v842, 16
      %v1011 = vrot.slane %v1009, 5
      %v1012 = vsel %vm266, %v1007, %v1011
      %v1013 = vshrl.u32 %v842, 16
      %v1015 = vrot.slane %v1013, 4
      %v1016 = vor.u32 %v1015, %v1011
      %v1017 = vrot.slane %v1016, 4
      %v1019 = vshll.u32 %v868, 16
      %v1021 = vrot.slane %v1019, 5
      %v1022 = vsel %vm266, %v1017, %v1021
      %v1024 = vshrl.u32 %v843, 16
      %v1026 = vrot.slane %v1024, 4
      %v1027 = vshll.u32 %v843, 16
      %v1029 = vrot.slane %v1027, 5
      %v1030 = vor.u32 %v1026, %v1029
      %v1031 = vrot.slane %v1030, 4
      %v1033 = vshll.u32 %v844, 16
      %v1035 = vrot.slane %v1033, 5
      %v1036 = vsel %vm266, %v1031, %v1035
      %v1037 = vshrl.u32 %v844, 16
      %v1039 = vrot.slane %v1037, 4
      %v1040 = vor.u32 %v1039, %v1035
      %v1041 = vrot.slane %v1040, 4
      %v1043 = vshll.u32 %v869, 16
      %v1045 = vrot.slane %v1043, 5
      %v1046 = vsel %vm266, %v1041, %v1045
      %v1048 = vshrl.u32 %v845, 16
      %v1050 = vrot.slane %v1048, 4
      %v1051 = vshll.u32 %v845, 16
      %v1053 = vrot.slane %v1051, 5
      %v1054 = vor.u32 %v1050, %v1053
      %v1055 = vrot.slane %v1054, 4
      %v1057 = vshll.u32 %v846, 16
      %v1059 = vrot.slane %v1057, 5
      %v1060 = vsel %vm266, %v1055, %v1059
      %v1061 = vshrl.u32 %v846, 16
      %v1063 = vrot.slane %v1061, 4
      %v1064 = vor.u32 %v1063, %v1059
      %v1065 = vrot.slane %v1064, 4
      %v1067 = vshll.u32 %v870, 16
      %v1069 = vrot.slane %v1067, 5
      %v1070 = vsel %vm266, %v1065, %v1069
      %v1072 = vshrl.u32 %v847, 16
      %v1074 = vrot.slane %v1072, 4
      %v1075 = vshll.u32 %v847, 16
      %v1077 = vrot.slane %v1075, 5
      %v1078 = vor.u32 %v1074, %v1077
      %v1079 = vrot.slane %v1078, 4
      %v1081 = vshll.u32 %v848, 16
      %v1083 = vrot.slane %v1081, 5
      %v1084 = vsel %vm266, %v1079, %v1083
      %v1085 = vshrl.u32 %v848, 16
      %v1087 = vrot.slane %v1085, 4
      %v1088 = vor.u32 %v1087, %v1083
      %v1089 = vrot.slane %v1088, 4
      %v1091 = vshll.u32 %v871, 16
      %v1093 = vrot.slane %v1091, 5
      %v1094 = vsel %vm266, %v1089, %v1093
      %v1096 = vshrl.u32 %v849, 16
      %v1098 = vrot.slane %v1096, 4
      %v1099 = vshll.u32 %v849, 16
      %v1101 = vrot.slane %v1099, 5
      %v1102 = vor.u32 %v1098, %v1101
      %v1103 = vrot.slane %v1102, 4
      %v1105 = vshll.u32 %v850, 16
      %v1107 = vrot.slane %v1105, 5
      %v1108 = vsel %vm266, %v1103, %v1107
      %v1109 = vshrl.u32 %v850, 16
      %v1111 = vrot.slane %v1109, 4
      %v1112 = vor.u32 %v1111, %v1107
      %v1113 = vrot.slane %v1112, 4
      %v1115 = vshll.u32 %v872, 16
      %v1117 = vrot.slane %v1115, 5
      %v1118 = vsel %vm266, %v1113, %v1117
      %v1120 = vshrl.u32 %v851, 16
      %v1122 = vrot.slane %v1120, 4
      %v1123 = vshll.u32 %v851, 16
      %v1125 = vrot.slane %v1123, 5
      %v1126 = vor.u32 %v1122, %v1125
      %v1127 = vrot.slane %v1126, 4
      %v1129 = vshll.u32 %v852, 16
      %v1131 = vrot.slane %v1129, 5
      %v1132 = vsel %vm266, %v1127, %v1131
      %v1133 = vshrl.u32 %v852, 16
      %v1135 = vrot.slane %v1133, 4
      %v1136 = vor.u32 %v1135, %v1131
      %v1137 = vrot.slane %v1136, 4
      %v1139 = vshll.u32 %v873, 16
      %v1141 = vrot.slane %v1139, 5
      %v1142 = vsel %vm266, %v1137, %v1141
      %v1144 = vshrl.u32 %v853, 16
      %v1146 = vrot.slane %v1144, 4
      %v1147 = vshll.u32 %v853, 16
      %v1149 = vrot.slane %v1147, 5
      %v1150 = vor.u32 %v1146, %v1149
      %v1151 = vrot.slane %v1150, 4
      %v1153 = vshll.u32 %v854, 16
      %v1155 = vrot.slane %v1153, 5
      %v1156 = vsel %vm266, %v1151, %v1155
      %v1157 = vshrl.u32 %v854, 16
      %v1159 = vrot.slane %v1157, 4
      %v1160 = vor.u32 %v1159, %v1155
      %v1161 = vrot.slane %v1160, 4
      %v1163 = vshll.u32 %v874, 16
      %v1165 = vrot.slane %v1163, 5
      %v1166 = vsel %vm266, %v1161, %v1165
      %v1168 = vshrl.u32 %v855, 16
      %v1170 = vrot.slane %v1168, 4
      %v1171 = vshll.u32 %v855, 16
      %v1173 = vrot.slane %v1171, 5
      %v1174 = vor.u32 %v1170, %v1173
      %v1175 = vrot.slane %v1174, 4
      %v1177 = vshll.u32 %v856, 16
      %v1179 = vrot.slane %v1177, 5
      %v1180 = vsel %vm266, %v1175, %v1179
      %v1181 = vshrl.u32 %v856, 16
      %v1183 = vrot.slane %v1181, 4
      %v1184 = vor.u32 %v1183, %v1179
      %v1185 = vrot.slane %v1184, 4
      %v1187 = vshll.u32 %v875, 16
      %v1189 = vrot.slane %v1187, 5
      %v1190 = vsel %vm266, %v1185, %v1189
      %v1192 = vshrl.u32 %v857, 16
      %v1194 = vrot.slane %v1192, 4
      %v1195 = vshll.u32 %v857, 16
      %v1197 = vrot.slane %v1195, 5
      %v1198 = vor.u32 %v1194, %v1197
      %v1199 = vrot.slane %v1198, 4
      %v1201 = vshll.u32 %v858, 16
      %v1203 = vrot.slane %v1201, 5
      %v1204 = vsel %vm266, %v1199, %v1203
      %v1205 = vshrl.u32 %v858, 16
      %v1207 = vrot.slane %v1205, 4
      %v1208 = vor.u32 %v1207, %v1203
      %v1209 = vrot.slane %v1208, 4
      %v1211 = vshll.u32 %v876, 16
      %v1213 = vrot.slane %v1211, 5
      %v1214 = vsel %vm266, %v1209, %v1213
      %v1216 = vshrl.u32 %v859, 16
      %v1218 = vrot.slane %v1216, 4
      %v1219 = vshll.u32 %v859, 16
      %v1221 = vrot.slane %v1219, 5
      %v1222 = vor.u32 %v1218, %v1221
      %v1223 = vrot.slane %v1222, 4
      %v1225 = vshll.u32 %v860, 16
      %v1227 = vrot.slane %v1225, 5
      %v1228 = vsel %vm266, %v1223, %v1227
      %v1229 = vshrl.u32 %v860, 16
      %v1231 = vrot.slane %v1229, 4
      %v1232 = vor.u32 %v1231, %v1227
      %v1233 = vrot.slane %v1232, 4
      %v1235 = vshll.u32 %v877, 16
      %v1237 = vrot.slane %v1235, 5
      %v1238 = vsel %vm266, %v1233, %v1237
      %v1240 = vshrl.u32 %v861, 16
      %v1242 = vrot.slane %v1240, 4
      %v1243 = vshll.u32 %v861, 16
      %v1245 = vrot.slane %v1243, 5
      %v1246 = vor.u32 %v1242, %v1245
      %v1247 = vrot.slane %v1246, 4
      %v1249 = vshll.u32 %v862, 16
      %v1251 = vrot.slane %v1249, 5
      %v1252 = vsel %vm266, %v1247, %v1251
      %v1253 = vshrl.u32 %v862, 16
      %v1255 = vrot.slane %v1253, 4
      %v1256 = vor.u32 %v1255, %v1251
      %v1257 = vrot.slane %v1256, 4
      %v1259 = vshll.u32 %v878, 16
      %v1261 = vrot.slane %v1259, 5
      %v1262 = vsel %vm266, %v1257, %v1261
      %v1263 = vld [vmem:[%s830] sm:$0xe]
      %v1264 = vld [vmem:[%s830 + $0xc] sm:$0xe]
      %v1265 = vld [vmem:[%s830 + $0x18] sm:$0xe]
      %v1266 = vld [vmem:[%s830 + $0x24] sm:$0xe]
      %v1267 = vld [vmem:[%s830 + $0x30] sm:$0xe]
      %v1268 = vld [vmem:[%s830 + $0x3c] sm:$0xe]
      %v1269 = vld [vmem:[%s830 + $0x48] sm:$0xe]
      %v1270 = vld [vmem:[%s830 + $0x54] sm:$0xe]
      %v1271 = vld [vmem:[%s830 + $0x60] sm:$0xe]
      %v1272 = vld [vmem:[%s830 + $0x6c] sm:$0xe]
      %v1273 = vld [vmem:[%s830 + $0x78] sm:$0xe]
      %v1274 = vld [vmem:[%s830 + $0x84] sm:$0xe]
      %v1275 = vld [vmem:[%s830 + $0x90] sm:$0xe]
      %v1276 = vld [vmem:[%s830 + $0x9c] sm:$0xe]
      %v1277 = vld [vmem:[%s830 + $0xa8] sm:$0xe]
      %v1278 = vld [vmem:[%s830 + $0xb4] sm:$0xe]
      %v1327 = vrot.slane %v1263, 5
      %v1328 = vrot.slane %v1327, 4
      %v1329 = vrot.slane %v832, 5
      %v1330 = vsel %vm717, %v1328, %v1329
      %v1331 = vrot.slane %v1329, 4
      %v1332 = vrot.slane %v863, 5
      %v1333 = vsel %vm717, %v1331, %v1332
      %v1334 = vrot.slane %v1264, 5
      %v1335 = vrot.slane %v1334, 4
      %v1336 = vrot.slane %v834, 5
      %v1337 = vsel %vm717, %v1335, %v1336
      %v1338 = vrot.slane %v1336, 4
      %v1339 = vrot.slane %v864, 5
      %v1340 = vsel %vm717, %v1338, %v1339
      %v1341 = vrot.slane %v1265, 5
      %v1342 = vrot.slane %v1341, 4
      %v1343 = vrot.slane %v836, 5
      %v1344 = vsel %vm717, %v1342, %v1343
      %v1345 = vrot.slane %v1343, 4
      %v1346 = vrot.slane %v865, 5
      %v1347 = vsel %vm717, %v1345, %v1346
      %v1348 = vrot.slane %v1266, 5
      %v1349 = vrot.slane %v1348, 4
      %v1350 = vrot.slane %v838, 5
      %v1351 = vsel %vm717, %v1349, %v1350
      %v1352 = vrot.slane %v1350, 4
      %v1353 = vrot.slane %v866, 5
      %v1354 = vsel %vm717, %v1352, %v1353
      %v1355 = vrot.slane %v1267, 5
      %v1356 = vrot.slane %v1355, 4
      %v1357 = vrot.slane %v840, 5
      %v1358 = vsel %vm717, %v1356, %v1357
      %v1359 = vrot.slane %v1357, 4
      %v1360 = vrot.slane %v867, 5
      %v1361 = vsel %vm717, %v1359, %v1360
      %v1362 = vrot.slane %v1268, 5
      %v1363 = vrot.slane %v1362, 4
      %v1364 = vrot.slane %v842, 5
      %v1365 = vsel %vm717, %v1363, %v1364
      %v1366 = vrot.slane %v1364, 4
      %v1367 = vrot.slane %v868, 5
      %v1368 = vsel %vm717, %v1366, %v1367
      %v1369 = vrot.slane %v1269, 5
      %v1370 = vrot.slane %v1369, 4
      %v1371 = vrot.slane %v844, 5
      %v1372 = vsel %vm717, %v1370, %v1371
      %v1373 = vrot.slane %v1371, 4
      %v1374 = vrot.slane %v869, 5
      %v1375 = vsel %vm717, %v1373, %v1374
      %v1376 = vrot.slane %v1270, 5
      %v1377 = vrot.slane %v1376, 4
      %v1378 = vrot.slane %v846, 5
      %v1379 = vsel %vm717, %v1377, %v1378
      %v1380 = vrot.slane %v1378, 4
      %v1381 = vrot.slane %v870, 5
      %v1382 = vsel %vm717, %v1380, %v1381
      %v1383 = vrot.slane %v1271, 5
      %v1384 = vrot.slane %v1383, 4
      %v1385 = vrot.slane %v848, 5
      %v1386 = vsel %vm717, %v1384, %v1385
      %v1387 = vrot.slane %v1385, 4
      %v1388 = vrot.slane %v871, 5
      %v1389 = vsel %vm717, %v1387, %v1388
      %v1390 = vrot.slane %v1272, 5
      %v1391 = vrot.slane %v1390, 4
      %v1392 = vrot.slane %v850, 5
      %v1393 = vsel %vm717, %v1391, %v1392
      %v1394 = vrot.slane %v1392, 4
      %v1395 = vrot.slane %v872, 5
      %v1396 = vsel %vm717, %v1394, %v1395
      %v1397 = vrot.slane %v1273, 5
      %v1398 = vrot.slane %v1397, 4
      %v1399 = vrot.slane %v852, 5
      %v1400 = vsel %vm717, %v1398, %v1399
      %v1401 = vrot.slane %v1399, 4
      %v1402 = vrot.slane %v873, 5
      %v1403 = vsel %vm717, %v1401, %v1402
      %v1404 = vrot.slane %v1274, 5
      %v1405 = vrot.slane %v1404, 4
      %v1406 = vrot.slane %v854, 5
      %v1407 = vsel %vm717, %v1405, %v1406
      %v1408 = vrot.slane %v1406, 4
      %v1409 = vrot.slane %v874, 5
      %v1410 = vsel %vm717, %v1408, %v1409
      %v1411 = vrot.slane %v1275, 5
      %v1412 = vrot.slane %v1411, 4
      %v1413 = vrot.slane %v856, 5
      %v1414 = vsel %vm717, %v1412, %v1413
      %v1415 = vrot.slane %v1413, 4
      %v1416 = vrot.slane %v875, 5
      %v1417 = vsel %vm717, %v1415, %v1416
      %v1418 = vrot.slane %v1276, 5
      %v1419 = vrot.slane %v1418, 4
      %v1420 = vrot.slane %v858, 5
      %v1421 = vsel %vm717, %v1419, %v1420
      %v1422 = vrot.slane %v1420, 4
      %v1423 = vrot.slane %v876, 5
      %v1424 = vsel %vm717, %v1422, %v1423
      %v1425 = vrot.slane %v1277, 5
      %v1426 = vrot.slane %v1425, 4
      %v1427 = vrot.slane %v860, 5
      %v1428 = vsel %vm717, %v1426, %v1427
      %v1429 = vrot.slane %v1427, 4
      %v1430 = vrot.slane %v877, 5
      %v1431 = vsel %vm717, %v1429, %v1430
      %v1432 = vrot.slane %v1278, 5
      %v1433 = vrot.slane %v1432, 4
      %v1434 = vrot.slane %v862, 5
      %v1435 = vsel %vm717, %v1433, %v1434
      %v1436 = vrot.slane %v1434, 4
      %v1437 = vrot.slane %v878, 5
      %v1438 = vsel %vm717, %v1436, %v1437
      %s1439 = scalar_lea.vmem %s203, 24
      %v1440 = vld [vmem:[%s1439] sm:$0xf]
      %v1441 = vld [vmem:[%s1439 + $0x4] sm:$0xf]
      %v1442 = vld [vmem:[%s1439 + $0xc] sm:$0xf]
      %v1443 = vld [vmem:[%s1439 + $0x10] sm:$0xf]
      %v1444 = vld [vmem:[%s1439 + $0x18] sm:$0xf]
      %v1445 = vld [vmem:[%s1439 + $0x1c] sm:$0xf]
      %v1446 = vld [vmem:[%s1439 + $0x24] sm:$0xf]
      %v1447 = vld [vmem:[%s1439 + $0x28] sm:$0xf]
      %v1448 = vld [vmem:[%s1439 + $0x30] sm:$0xf]
      %v1449 = vld [vmem:[%s1439 + $0x34] sm:$0xf]
      %v1450 = vld [vmem:[%s1439 + $0x3c] sm:$0xf]
      %v1451 = vld [vmem:[%s1439 + $0x40] sm:$0xf]
      %v1452 = vld [vmem:[%s1439 + $0x48] sm:$0xf]
      %v1453 = vld [vmem:[%s1439 + $0x4c] sm:$0xf]
      %v1454 = vld [vmem:[%s1439 + $0x54] sm:$0xf]
      %v1455 = vld [vmem:[%s1439 + $0x58] sm:$0xf]
      %v1456 = vld [vmem:[%s1439 + $0x60] sm:$0xf]
      %v1457 = vld [vmem:[%s1439 + $0x64] sm:$0xf]
      %v1458 = vld [vmem:[%s1439 + $0x6c] sm:$0xf]
      %v1459 = vld [vmem:[%s1439 + $0x70] sm:$0xf]
      %v1460 = vld [vmem:[%s1439 + $0x78] sm:$0xf]
      %v1461 = vld [vmem:[%s1439 + $0x7c] sm:$0xf]
      %v1462 = vld [vmem:[%s1439 + $0x84] sm:$0xf]
      %v1463 = vld [vmem:[%s1439 + $0x88] sm:$0xf]
      %v1464 = vld [vmem:[%s1439 + $0x90] sm:$0xf]
      %v1465 = vld [vmem:[%s1439 + $0x94] sm:$0xf]
      %v1466 = vld [vmem:[%s1439 + $0x9c] sm:$0xf]
      %v1467 = vld [vmem:[%s1439 + $0xa0] sm:$0xf]
      %v1468 = vld [vmem:[%s1439 + $0xa8] sm:$0xf]
      %v1469 = vld [vmem:[%s1439 + $0xac] sm:$0xf]
      %v1470 = vld [vmem:[%s1439 + $0xb4] sm:$0xf]
      %v1471 = vld [vmem:[%s1439 + $0xb8] sm:$0xf]
      %v1472 = vld [vmem:[%s1439 + $0x8] sm:$0x1]
      %v1473 = vld [vmem:[%s1439 + $0x14] sm:$0x1]
      %v1474 = vld [vmem:[%s1439 + $0x20] sm:$0x1]
      %v1475 = vld [vmem:[%s1439 + $0x2c] sm:$0x1]
      %v1476 = vld [vmem:[%s1439 + $0x38] sm:$0x1]
      %v1477 = vld [vmem:[%s1439 + $0x44] sm:$0x1]
      %v1478 = vld [vmem:[%s1439 + $0x50] sm:$0x1]
      %v1479 = vld [vmem:[%s1439 + $0x5c] sm:$0x1]
      %v1480 = vld [vmem:[%s1439 + $0x68] sm:$0x1]
      %v1481 = vld [vmem:[%s1439 + $0x74] sm:$0x1]
      %v1482 = vld [vmem:[%s1439 + $0x80] sm:$0x1]
      %v1483 = vld [vmem:[%s1439 + $0x8c] sm:$0x1]
      %v1484 = vld [vmem:[%s1439 + $0x98] sm:$0x1]
      %v1485 = vld [vmem:[%s1439 + $0xa4] sm:$0x1]
      %v1486 = vld [vmem:[%s1439 + $0xb0] sm:$0x1]
      %v1487 = vld [vmem:[%s1439 + $0xbc] sm:$0x1]
      %v1489 = vshrl.u32 %v1440, 16
      %v1491 = vrot.slane %v1489, 4
      %v1492 = vshll.u32 %v1440, 16
      %v1494 = vrot.slane %v1492, 5
      %v1495 = vor.u32 %v1491, %v1494
      %v1496 = vrot.slane %v1495, 4
      %v1498 = vshll.u32 %v1441, 16
      %v1500 = vrot.slane %v1498, 5
      %v1501 = vsel %vm266, %v1496, %v1500
      %v1502 = vshrl.u32 %v1441, 16
      %v1504 = vrot.slane %v1502, 4
      %v1505 = vor.u32 %v1504, %v1500
      %v1506 = vrot.slane %v1505, 4
      %v1508 = vshll.u32 %v1472, 16
      %v1510 = vrot.slane %v1508, 5
      %v1511 = vsel %vm266, %v1506, %v1510
      %v1513 = vshrl.u32 %v1442, 16
      %v1515 = vrot.slane %v1513, 4
      %v1516 = vshll.u32 %v1442, 16
      %v1518 = vrot.slane %v1516, 5
      %v1519 = vor.u32 %v1515, %v1518
      %v1520 = vrot.slane %v1519, 4
      %v1522 = vshll.u32 %v1443, 16
      %v1524 = vrot.slane %v1522, 5
      %v1525 = vsel %vm266, %v1520, %v1524
      %v1526 = vshrl.u32 %v1443, 16
      %v1528 = vrot.slane %v1526, 4
      %v1529 = vor.u32 %v1528, %v1524
      %v1530 = vrot.slane %v1529, 4
      %v1532 = vshll.u32 %v1473, 16
      %v1534 = vrot.slane %v1532, 5
      %v1535 = vsel %vm266, %v1530, %v1534
      %v1537 = vshrl.u32 %v1444, 16
      %v1539 = vrot.slane %v1537, 4
      %v1540 = vshll.u32 %v1444, 16
      %v1542 = vrot.slane %v1540, 5
      %v1543 = vor.u32 %v1539, %v1542
      %v1544 = vrot.slane %v1543, 4
      %v1546 = vshll.u32 %v1445, 16
      %v1548 = vrot.slane %v1546, 5
      %v1549 = vsel %vm266, %v1544, %v1548
      %v1550 = vshrl.u32 %v1445, 16
      %v1552 = vrot.slane %v1550, 4
      %v1553 = vor.u32 %v1552, %v1548
      %v1554 = vrot.slane %v1553, 4
      %v1556 = vshll.u32 %v1474, 16
      %v1558 = vrot.slane %v1556, 5
      %v1559 = vsel %vm266, %v1554, %v1558
      %v1561 = vshrl.u32 %v1446, 16
      %v1563 = vrot.slane %v1561, 4
      %v1564 = vshll.u32 %v1446, 16
      %v1566 = vrot.slane %v1564, 5
      %v1567 = vor.u32 %v1563, %v1566
      %v1568 = vrot.slane %v1567, 4
      %v1570 = vshll.u32 %v1447, 16
      %v1572 = vrot.slane %v1570, 5
      %v1573 = vsel %vm266, %v1568, %v1572
      %v1574 = vshrl.u32 %v1447, 16
      %v1576 = vrot.slane %v1574, 4
      %v1577 = vor.u32 %v1576, %v1572
      %v1578 = vrot.slane %v1577, 4
      %v1580 = vshll.u32 %v1475, 16
      %v1582 = vrot.slane %v1580, 5
      %v1583 = vsel %vm266, %v1578, %v1582
      %v1585 = vshrl.u32 %v1448, 16
      %v1587 = vrot.slane %v1585, 4
      %v1588 = vshll.u32 %v1448, 16
      %v1590 = vrot.slane %v1588, 5
      %v1591 = vor.u32 %v1587, %v1590
      %v1592 = vrot.slane %v1591, 4
      %v1594 = vshll.u32 %v1449, 16
      %v1596 = vrot.slane %v1594, 5
      %v1597 = vsel %vm266, %v1592, %v1596
      %v1598 = vshrl.u32 %v1449, 16
      %v1600 = vrot.slane %v1598, 4
      %v1601 = vor.u32 %v1600, %v1596
      %v1602 = vrot.slane %v1601, 4
      %v1604 = vshll.u32 %v1476, 16
      %v1606 = vrot.slane %v1604, 5
      %v1607 = vsel %vm266, %v1602, %v1606
      %v1609 = vshrl.u32 %v1450, 16
      %v1611 = vrot.slane %v1609, 4
      %v1612 = vshll.u32 %v1450, 16
      %v1614 = vrot.slane %v1612, 5
      %v1615 = vor.u32 %v1611, %v1614
      %v1616 = vrot.slane %v1615, 4
      %v1618 = vshll.u32 %v1451, 16
      %v1620 = vrot.slane %v1618, 5
      %v1621 = vsel %vm266, %v1616, %v1620
      %v1622 = vshrl.u32 %v1451, 16
      %v1624 = vrot.slane %v1622, 4
      %v1625 = vor.u32 %v1624, %v1620
      %v1626 = vrot.slane %v1625, 4
      %v1628 = vshll.u32 %v1477, 16
      %v1630 = vrot.slane %v1628, 5
      %v1631 = vsel %vm266, %v1626, %v1630
      %v1633 = vshrl.u32 %v1452, 16
      %v1635 = vrot.slane %v1633, 4
      %v1636 = vshll.u32 %v1452, 16
      %v1638 = vrot.slane %v1636, 5
      %v1639 = vor.u32 %v1635, %v1638
      %v1640 = vrot.slane %v1639, 4
      %v1642 = vshll.u32 %v1453, 16
      %v1644 = vrot.slane %v1642, 5
      %v1645 = vsel %vm266, %v1640, %v1644
      %v1646 = vshrl.u32 %v1453, 16
      %v1648 = vrot.slane %v1646, 4
      %v1649 = vor.u32 %v1648, %v1644
      %v1650 = vrot.slane %v1649, 4
      %v1652 = vshll.u32 %v1478, 16
      %v1654 = vrot.slane %v1652, 5
      %v1655 = vsel %vm266, %v1650, %v1654
      %v1657 = vshrl.u32 %v1454, 16
      %v1659 = vrot.slane %v1657, 4
      %v1660 = vshll.u32 %v1454, 16
      %v1662 = vrot.slane %v1660, 5
      %v1663 = vor.u32 %v1659, %v1662
      %v1664 = vrot.slane %v1663, 4
      %v1666 = vshll.u32 %v1455, 16
      %v1668 = vrot.slane %v1666, 5
      %v1669 = vsel %vm266, %v1664, %v1668
      %v1670 = vshrl.u32 %v1455, 16
      %v1672 = vrot.slane %v1670, 4
      %v1673 = vor.u32 %v1672, %v1668
      %v1674 = vrot.slane %v1673, 4
      %v1676 = vshll.u32 %v1479, 16
      %v1678 = vrot.slane %v1676, 5
      %v1679 = vsel %vm266, %v1674, %v1678
      %v1681 = vshrl.u32 %v1456, 16
      %v1683 = vrot.slane %v1681, 4
      %v1684 = vshll.u32 %v1456, 16
      %v1686 = vrot.slane %v1684, 5
      %v1687 = vor.u32 %v1683, %v1686
      %v1688 = vrot.slane %v1687, 4
      %v1690 = vshll.u32 %v1457, 16
      %v1692 = vrot.slane %v1690, 5
      %v1693 = vsel %vm266, %v1688, %v1692
      %v1694 = vshrl.u32 %v1457, 16
      %v1696 = vrot.slane %v1694, 4
      %v1697 = vor.u32 %v1696, %v1692
      %v1698 = vrot.slane %v1697, 4
      %v1700 = vshll.u32 %v1480, 16
      %v1702 = vrot.slane %v1700, 5
      %v1703 = vsel %vm266, %v1698, %v1702
      %v1705 = vshrl.u32 %v1458, 16
      %v1707 = vrot.slane %v1705, 4
      %v1708 = vshll.u32 %v1458, 16
      %v1710 = vrot.slane %v1708, 5
      %v1711 = vor.u32 %v1707, %v1710
      %v1712 = vrot.slane %v1711, 4
      %v1714 = vshll.u32 %v1459, 16
      %v1716 = vrot.slane %v1714, 5
      %v1717 = vsel %vm266, %v1712, %v1716
      %v1718 = vshrl.u32 %v1459, 16
      %v1720 = vrot.slane %v1718, 4
      %v1721 = vor.u32 %v1720, %v1716
      %v1722 = vrot.slane %v1721, 4
      %v1724 = vshll.u32 %v1481, 16
      %v1726 = vrot.slane %v1724, 5
      %v1727 = vsel %vm266, %v1722, %v1726
      %v1729 = vshrl.u32 %v1460, 16
      %v1731 = vrot.slane %v1729, 4
      %v1732 = vshll.u32 %v1460, 16
      %v1734 = vrot.slane %v1732, 5
      %v1735 = vor.u32 %v1731, %v1734
      %v1736 = vrot.slane %v1735, 4
      %v1738 = vshll.u32 %v1461, 16
      %v1740 = vrot.slane %v1738, 5
      %v1741 = vsel %vm266, %v1736, %v1740
      %v1742 = vshrl.u32 %v1461, 16
      %v1744 = vrot.slane %v1742, 4
      %v1745 = vor.u32 %v1744, %v1740
      %v1746 = vrot.slane %v1745, 4
      %v1748 = vshll.u32 %v1482, 16
      %v1750 = vrot.slane %v1748, 5
      %v1751 = vsel %vm266, %v1746, %v1750
      %v1753 = vshrl.u32 %v1462, 16
      %v1755 = vrot.slane %v1753, 4
      %v1756 = vshll.u32 %v1462, 16
      %v1758 = vrot.slane %v1756, 5
      %v1759 = vor.u32 %v1755, %v1758
      %v1760 = vrot.slane %v1759, 4
      %v1762 = vshll.u32 %v1463, 16
      %v1764 = vrot.slane %v1762, 5
      %v1765 = vsel %vm266, %v1760, %v1764
      %v1766 = vshrl.u32 %v1463, 16
      %v1768 = vrot.slane %v1766, 4
      %v1769 = vor.u32 %v1768, %v1764
      %v1770 = vrot.slane %v1769, 4
      %v1772 = vshll.u32 %v1483, 16
      %v1774 = vrot.slane %v1772, 5
      %v1775 = vsel %vm266, %v1770, %v1774
      %v1777 = vshrl.u32 %v1464, 16
      %v1779 = vrot.slane %v1777, 4
      %v1780 = vshll.u32 %v1464, 16
      %v1782 = vrot.slane %v1780, 5
      %v1783 = vor.u32 %v1779, %v1782
      %v1784 = vrot.slane %v1783, 4
      %v1786 = vshll.u32 %v1465, 16
      %v1788 = vrot.slane %v1786, 5
      %v1789 = vsel %vm266, %v1784, %v1788
      %v1790 = vshrl.u32 %v1465, 16
      %v1792 = vrot.slane %v1790, 4
      %v1793 = vor.u32 %v1792, %v1788
      %v1794 = vrot.slane %v1793, 4
      %v1796 = vshll.u32 %v1484, 16
      %v1798 = vrot.slane %v1796, 5
      %v1799 = vsel %vm266, %v1794, %v1798
      %v1801 = vshrl.u32 %v1466, 16
      %v1803 = vrot.slane %v1801, 4
      %v1804 = vshll.u32 %v1466, 16
      %v1806 = vrot.slane %v1804, 5
      %v1807 = vor.u32 %v1803, %v1806
      %v1808 = vrot.slane %v1807, 4
      %v1810 = vshll.u32 %v1467, 16
      %v1812 = vrot.slane %v1810, 5
      %v1813 = vsel %vm266, %v1808, %v1812
      %v1814 = vshrl.u32 %v1467, 16
      %v1816 = vrot.slane %v1814, 4
      %v1817 = vor.u32 %v1816, %v1812
      %v1818 = vrot.slane %v1817, 4
      %v1820 = vshll.u32 %v1485, 16
      %v1822 = vrot.slane %v1820, 5
      %v1823 = vsel %vm266, %v1818, %v1822
      %v1825 = vshrl.u32 %v1468, 16
      %v1827 = vrot.slane %v1825, 4
      %v1828 = vshll.u32 %v1468, 16
      %v1830 = vrot.slane %v1828, 5
      %v1831 = vor.u32 %v1827, %v1830
      %v1832 = vrot.slane %v1831, 4
      %v1834 = vshll.u32 %v1469, 16
      %v1836 = vrot.slane %v1834, 5
      %v1837 = vsel %vm266, %v1832, %v1836
      %v1838 = vshrl.u32 %v1469, 16
      %v1840 = vrot.slane %v1838, 4
      %v1841 = vor.u32 %v1840, %v1836
      %v1842 = vrot.slane %v1841, 4
      %v1844 = vshll.u32 %v1486, 16
      %v1846 = vrot.slane %v1844, 5
      %v1847 = vsel %vm266, %v1842, %v1846
      %v1849 = vshrl.u32 %v1470, 16
      %v1851 = vrot.slane %v1849, 4
      %v1852 = vshll.u32 %v1470, 16
      %v1854 = vrot.slane %v1852, 5
      %v1855 = vor.u32 %v1851, %v1854
      %v1856 = vrot.slane %v1855, 4
      %v1858 = vshll.u32 %v1471, 16
      %v1860 = vrot.slane %v1858, 5
      %v1861 = vsel %vm266, %v1856, %v1860
      %v1862 = vshrl.u32 %v1471, 16
      %v1864 = vrot.slane %v1862, 4
      %v1865 = vor.u32 %v1864, %v1860
      %v1866 = vrot.slane %v1865, 4
      %v1868 = vshll.u32 %v1487, 16
      %v1870 = vrot.slane %v1868, 5
      %v1871 = vsel %vm266, %v1866, %v1870
      %v1872 = vld [vmem:[%s1439] sm:$0xe]
      %v1873 = vld [vmem:[%s1439 + $0xc] sm:$0xe]
      %v1874 = vld [vmem:[%s1439 + $0x18] sm:$0xe]
      %v1875 = vld [vmem:[%s1439 + $0x24] sm:$0xe]
      %v1876 = vld [vmem:[%s1439 + $0x30] sm:$0xe]
      %v1877 = vld [vmem:[%s1439 + $0x3c] sm:$0xe]
      %v1878 = vld [vmem:[%s1439 + $0x48] sm:$0xe]
      %v1879 = vld [vmem:[%s1439 + $0x54] sm:$0xe]
      %v1880 = vld [vmem:[%s1439 + $0x60] sm:$0xe]
      %v1881 = vld [vmem:[%s1439 + $0x6c] sm:$0xe]
      %v1882 = vld [vmem:[%s1439 + $0x78] sm:$0xe]
      %v1883 = vld [vmem:[%s1439 + $0x84] sm:$0xe]
      %v1884 = vld [vmem:[%s1439 + $0x90] sm:$0xe]
      %v1885 = vld [vmem:[%s1439 + $0x9c] sm:$0xe]
      %v1886 = vld [vmem:[%s1439 + $0xa8] sm:$0xe]
      %v1887 = vld [vmem:[%s1439 + $0xb4] sm:$0xe]
      %v1936 = vrot.slane %v1872, 5
      %v1937 = vrot.slane %v1936, 4
      %v1938 = vrot.slane %v1441, 5
      %v1939 = vsel %vm717, %v1937, %v1938
      %v1940 = vrot.slane %v1938, 4
      %v1941 = vrot.slane %v1472, 5
      %v1942 = vsel %vm717, %v1940, %v1941
      %v1943 = vrot.slane %v1873, 5
      %v1944 = vrot.slane %v1943, 4
      %v1945 = vrot.slane %v1443, 5
      %v1946 = vsel %vm717, %v1944, %v1945
      %v1947 = vrot.slane %v1945, 4
      %v1948 = vrot.slane %v1473, 5
      %v1949 = vsel %vm717, %v1947, %v1948
      %v1950 = vrot.slane %v1874, 5
      %v1951 = vrot.slane %v1950, 4
      %v1952 = vrot.slane %v1445, 5
      %v1953 = vsel %vm717, %v1951, %v1952
      %v1954 = vrot.slane %v1952, 4
      %v1955 = vrot.slane %v1474, 5
      %v1956 = vsel %vm717, %v1954, %v1955
      %v1957 = vrot.slane %v1875, 5
      %v1958 = vrot.slane %v1957, 4
      %v1959 = vrot.slane %v1447, 5
      %v1960 = vsel %vm717, %v1958, %v1959
      %v1961 = vrot.slane %v1959, 4
      %v1962 = vrot.slane %v1475, 5
      %v1963 = vsel %vm717, %v1961, %v1962
      %v1964 = vrot.slane %v1876, 5
      %v1965 = vrot.slane %v1964, 4
      %v1966 = vrot.slane %v1449, 5
      %v1967 = vsel %vm717, %v1965, %v1966
      %v1968 = vrot.slane %v1966, 4
      %v1969 = vrot.slane %v1476, 5
      %v1970 = vsel %vm717, %v1968, %v1969
      %v1971 = vrot.slane %v1877, 5
      %v1972 = vrot.slane %v1971, 4
      %v1973 = vrot.slane %v1451, 5
      %v1974 = vsel %vm717, %v1972, %v1973
      %v1975 = vrot.slane %v1973, 4
      %v1976 = vrot.slane %v1477, 5
      %v1977 = vsel %vm717, %v1975, %v1976
      %v1978 = vrot.slane %v1878, 5
      %v1979 = vrot.slane %v1978, 4
      %v1980 = vrot.slane %v1453, 5
      %v1981 = vsel %vm717, %v1979, %v1980
      %v1982 = vrot.slane %v1980, 4
      %v1983 = vrot.slane %v1478, 5
      %v1984 = vsel %vm717, %v1982, %v1983
      %v1985 = vrot.slane %v1879, 5
      %v1986 = vrot.slane %v1985, 4
      %v1987 = vrot.slane %v1455, 5
      %v1988 = vsel %vm717, %v1986, %v1987
      %v1989 = vrot.slane %v1987, 4
      %v1990 = vrot.slane %v1479, 5
      %v1991 = vsel %vm717, %v1989, %v1990
      %v1992 = vrot.slane %v1880, 5
      %v1993 = vrot.slane %v1992, 4
      %v1994 = vrot.slane %v1457, 5
      %v1995 = vsel %vm717, %v1993, %v1994
      %v1996 = vrot.slane %v1994, 4
      %v1997 = vrot.slane %v1480, 5
      %v1998 = vsel %vm717, %v1996, %v1997
      %v1999 = vrot.slane %v1881, 5
      %v2000 = vrot.slane %v1999, 4
      %v2001 = vrot.slane %v1459, 5
      %v2002 = vsel %vm717, %v2000, %v2001
      %v2003 = vrot.slane %v2001, 4
      %v2004 = vrot.slane %v1481, 5
      %v2005 = vsel %vm717, %v2003, %v2004
      %v2006 = vrot.slane %v1882, 5
      %v2007 = vrot.slane %v2006, 4
      %v2008 = vrot.slane %v1461, 5
      %v2009 = vsel %vm717, %v2007, %v2008
      %v2010 = vrot.slane %v2008, 4
      %v2011 = vrot.slane %v1482, 5
      %v2012 = vsel %vm717, %v2010, %v2011
      %v2013 = vrot.slane %v1883, 5
      %v2014 = vrot.slane %v2013, 4
      %v2015 = vrot.slane %v1463, 5
      %v2016 = vsel %vm717, %v2014, %v2015
      %v2017 = vrot.slane %v2015, 4
      %v2018 = vrot.slane %v1483, 5
      %v2019 = vsel %vm717, %v2017, %v2018
      %v2020 = vrot.slane %v1884, 5
      %v2021 = vrot.slane %v2020, 4
      %v2022 = vrot.slane %v1465, 5
      %v2023 = vsel %vm717, %v2021, %v2022
      %v2024 = vrot.slane %v2022, 4
      %v2025 = vrot.slane %v1484, 5
      %v2026 = vsel %vm717, %v2024, %v2025
      %v2027 = vrot.slane %v1885, 5
      %v2028 = vrot.slane %v2027, 4
      %v2029 = vrot.slane %v1467, 5
      %v2030 = vsel %vm717, %v2028, %v2029
      %v2031 = vrot.slane %v2029, 4
      %v2032 = vrot.slane %v1485, 5
      %v2033 = vsel %vm717, %v2031, %v2032
      %v2034 = vrot.slane %v1886, 5
      %v2035 = vrot.slane %v2034, 4
      %v2036 = vrot.slane %v1469, 5
      %v2037 = vsel %vm717, %v2035, %v2036
      %v2038 = vrot.slane %v2036, 4
      %v2039 = vrot.slane %v1486, 5
      %v2040 = vsel %vm717, %v2038, %v2039
      %v2041 = vrot.slane %v1887, 5
      %v2042 = vrot.slane %v2041, 4
      %v2043 = vrot.slane %v1471, 5
      %v2044 = vsel %vm717, %v2042, %v2043
      %v2045 = vrot.slane %v2043, 4
      %v2046 = vrot.slane %v1487, 5
      %v2047 = vsel %vm717, %v2045, %v2046
      %v2064 = vunpack.c.l.b16 %v216
      %v2065 = vunpack.c.l.b16 %v217
      %v2066 = vunpack.c.l.b16 %v218
      %v2067 = vunpack.c.l.b16 %v219
      %v2068 = vunpack.c.l.b16 %v220
      %v2069 = vunpack.c.l.b16 %v221
      %v2070 = vunpack.c.l.b16 %v222
      %v2071 = vunpack.c.l.b16 %v223
      %v2072 = vunpack.c.l.b16 %v224
      %v2073 = vunpack.c.l.b16 %v225
      %v2074 = vunpack.c.l.b16 %v226
      %v2075 = vunpack.c.l.b16 %v227
      %v2076 = vunpack.c.l.b16 %v228
      %v2077 = vunpack.c.l.b16 %v229
      %v2078 = vunpack.c.l.b16 %v230
      %v2079 = vunpack.c.l.b16 %v231
      %v2080 = vunpack.c.l.b16 %v232
      %v2081 = vunpack.c.l.b16 %v233
      %v2082 = vunpack.c.l.b16 %v234
      %v2083 = vunpack.c.l.b16 %v235
      %v2084 = vunpack.c.l.b16 %v236
      %v2085 = vunpack.c.l.b16 %v237
      %v2086 = vunpack.c.l.b16 %v238
      %v2087 = vunpack.c.l.b16 %v239
      %v2088 = vunpack.c.l.b16 %v240
      %v2089 = vunpack.c.l.b16 %v241
      %v2090 = vunpack.c.l.b16 %v242
      %v2091 = vunpack.c.l.b16 %v243
      %v2092 = vunpack.c.l.b16 %v244
      %v2093 = vunpack.c.l.b16 %v245
      %v2094 = vunpack.c.l.b16 %v246
      %v2095 = vunpack.c.l.b16 %v247
      %v2096 = vpack.c.b16 %v2065, %v2064
      %v2097 = vpack.c.b16 %v2067, %v2066
      %v2098 = vpack.c.b16 %v2069, %v2068
      %v2099 = vpack.c.b16 %v2071, %v2070
      %v2100 = vpack.c.b16 %v2073, %v2072
      %v2101 = vpack.c.b16 %v2075, %v2074
      %v2102 = vpack.c.b16 %v2077, %v2076
      %v2103 = vpack.c.b16 %v2079, %v2078
      %v2104 = vpack.c.b16 %v2081, %v2080
      %v2105 = vpack.c.b16 %v2083, %v2082
      %v2106 = vpack.c.b16 %v2085, %v2084
      %v2107 = vpack.c.b16 %v2087, %v2086
      %v2108 = vpack.c.b16 %v2089, %v2088
      %v2109 = vpack.c.b16 %v2091, %v2090
      %v2110 = vpack.c.b16 %v2093, %v2092
      %v2111 = vpack.c.b16 %v2095, %v2094
      %v2128 = vunpack.c.l.b16 %v280
      %v2129 = vunpack.c.l.b16 %v290
      %v2130 = vunpack.c.l.b16 %v304
      %v2131 = vunpack.c.l.b16 %v314
      %v2132 = vunpack.c.l.b16 %v328
      %v2133 = vunpack.c.l.b16 %v338
      %v2134 = vunpack.c.l.b16 %v352
      %v2135 = vunpack.c.l.b16 %v362
      %v2136 = vunpack.c.l.b16 %v376
      %v2137 = vunpack.c.l.b16 %v386
      %v2138 = vunpack.c.l.b16 %v400
      %v2139 = vunpack.c.l.b16 %v410
      %v2140 = vunpack.c.l.b16 %v424
      %v2141 = vunpack.c.l.b16 %v434
      %v2142 = vunpack.c.l.b16 %v448
      %v2143 = vunpack.c.l.b16 %v458
      %v2144 = vunpack.c.l.b16 %v472
      %v2145 = vunpack.c.l.b16 %v482
      %v2146 = vunpack.c.l.b16 %v496
      %v2147 = vunpack.c.l.b16 %v506
      %v2148 = vunpack.c.l.b16 %v520
      %v2149 = vunpack.c.l.b16 %v530
      %v2150 = vunpack.c.l.b16 %v544
      %v2151 = vunpack.c.l.b16 %v554
      %v2152 = vunpack.c.l.b16 %v568
      %v2153 = vunpack.c.l.b16 %v578
      %v2154 = vunpack.c.l.b16 %v592
      %v2155 = vunpack.c.l.b16 %v602
      %v2156 = vunpack.c.l.b16 %v616
      %v2157 = vunpack.c.l.b16 %v626
      %v2158 = vunpack.c.l.b16 %v640
      %v2159 = vunpack.c.l.b16 %v650
      %v2160 = vpack.c.b16 %v2129, %v2128
      %v2161 = vpack.c.b16 %v2131, %v2130
      %v2162 = vpack.c.b16 %v2133, %v2132
      %v2163 = vpack.c.b16 %v2135, %v2134
      %v2164 = vpack.c.b16 %v2137, %v2136
      %v2165 = vpack.c.b16 %v2139, %v2138
      %v2166 = vpack.c.b16 %v2141, %v2140
      %v2167 = vpack.c.b16 %v2143, %v2142
      %v2168 = vpack.c.b16 %v2145, %v2144
      %v2169 = vpack.c.b16 %v2147, %v2146
      %v2170 = vpack.c.b16 %v2149, %v2148
      %v2171 = vpack.c.b16 %v2151, %v2150
      %v2172 = vpack.c.b16 %v2153, %v2152
      %v2173 = vpack.c.b16 %v2155, %v2154
      %v2174 = vpack.c.b16 %v2157, %v2156
      %v2175 = vpack.c.b16 %v2159, %v2158
      %v2192 = vunpack.c.l.b16 %v721
      %v2193 = vunpack.c.l.b16 %v724
      %v2194 = vunpack.c.l.b16 %v728
      %v2195 = vunpack.c.l.b16 %v731
      %v2196 = vunpack.c.l.b16 %v735
      %v2197 = vunpack.c.l.b16 %v738
      %v2198 = vunpack.c.l.b16 %v742
      %v2199 = vunpack.c.l.b16 %v745
      %v2200 = vunpack.c.l.b16 %v749
      %v2201 = vunpack.c.l.b16 %v752
      %v2202 = vunpack.c.l.b16 %v756
      %v2203 = vunpack.c.l.b16 %v759
      %v2204 = vunpack.c.l.b16 %v763
      %v2205 = vunpack.c.l.b16 %v766
      %v2206 = vunpack.c.l.b16 %v770
      %v2207 = vunpack.c.l.b16 %v773
      %v2208 = vunpack.c.l.b16 %v777
      %v2209 = vunpack.c.l.b16 %v780
      %v2210 = vunpack.c.l.b16 %v784
      %v2211 = vunpack.c.l.b16 %v787
      %v2212 = vunpack.c.l.b16 %v791
      %v2213 = vunpack.c.l.b16 %v794
      %v2214 = vunpack.c.l.b16 %v798
      %v2215 = vunpack.c.l.b16 %v801
      %v2216 = vunpack.c.l.b16 %v805
      %v2217 = vunpack.c.l.b16 %v808
      %v2218 = vunpack.c.l.b16 %v812
      %v2219 = vunpack.c.l.b16 %v815
      %v2220 = vunpack.c.l.b16 %v819
      %v2221 = vunpack.c.l.b16 %v822
      %v2222 = vunpack.c.l.b16 %v826
      %v2223 = vunpack.c.l.b16 %v829
      %v2224 = vpack.c.b16 %v2193, %v2192
      %v2225 = vpack.c.b16 %v2195, %v2194
      %v2226 = vpack.c.b16 %v2197, %v2196
      %v2227 = vpack.c.b16 %v2199, %v2198
      %v2228 = vpack.c.b16 %v2201, %v2200
      %v2229 = vpack.c.b16 %v2203, %v2202
      %v2230 = vpack.c.b16 %v2205, %v2204
      %v2231 = vpack.c.b16 %v2207, %v2206
      %v2232 = vpack.c.b16 %v2209, %v2208
      %v2233 = vpack.c.b16 %v2211, %v2210
      %v2234 = vpack.c.b16 %v2213, %v2212
      %v2235 = vpack.c.b16 %v2215, %v2214
      %v2236 = vpack.c.b16 %v2217, %v2216
      %v2237 = vpack.c.b16 %v2219, %v2218
      %v2238 = vpack.c.b16 %v2221, %v2220
      %v2239 = vpack.c.b16 %v2223, %v2222
      %v2272 = vunpack.c.l.b16 %v831
      %v2273 = vunpack.c.l.b16 %v832
      %v2274 = vunpack.c.l.b16 %v833
      %v2275 = vunpack.c.l.b16 %v834
      %v2276 = vunpack.c.l.b16 %v835
      %v2277 = vunpack.c.l.b16 %v836
      %v2278 = vunpack.c.l.b16 %v837
      %v2279 = vunpack.c.l.b16 %v838
      %v2280 = vunpack.c.l.b16 %v839
      %v2281 = vunpack.c.l.b16 %v840
      %v2282 = vunpack.c.l.b16 %v841
      %v2283 = vunpack.c.l.b16 %v842
      %v2284 = vunpack.c.l.b16 %v843
      %v2285 = vunpack.c.l.b16 %v844
      %v2286 = vunpack.c.l.b16 %v845
      %v2287 = vunpack.c.l.b16 %v846
      %v2288 = vunpack.c.l.b16 %v847
      %v2289 = vunpack.c.l.b16 %v848
      %v2290 = vunpack.c.l.b16 %v849
      %v2291 = vunpack.c.l.b16 %v850
      %v2292 = vunpack.c.l.b16 %v851
      %v2293 = vunpack.c.l.b16 %v852
      %v2294 = vunpack.c.l.b16 %v853
      %v2295 = vunpack.c.l.b16 %v854
      %v2296 = vunpack.c.l.b16 %v855
      %v2297 = vunpack.c.l.b16 %v856
      %v2298 = vunpack.c.l.b16 %v857
      %v2299 = vunpack.c.l.b16 %v858
      %v2300 = vunpack.c.l.b16 %v859
      %v2301 = vunpack.c.l.b16 %v860
      %v2302 = vunpack.c.l.b16 %v861
      %v2303 = vunpack.c.l.b16 %v862
      %v2304 = vpack.c.b16 %v2273, %v2272
      %v2305 = vpack.c.b16 %v2275, %v2274
      %v2306 = vpack.c.b16 %v2277, %v2276
      %v2307 = vpack.c.b16 %v2279, %v2278
      %v2308 = vpack.c.b16 %v2281, %v2280
      %v2309 = vpack.c.b16 %v2283, %v2282
      %v2310 = vpack.c.b16 %v2285, %v2284
      %v2311 = vpack.c.b16 %v2287, %v2286
      %v2312 = vpack.c.b16 %v2289, %v2288
      %v2313 = vpack.c.b16 %v2291, %v2290
      %v2314 = vpack.c.b16 %v2293, %v2292
      %v2315 = vpack.c.b16 %v2295, %v2294
      %v2316 = vpack.c.b16 %v2297, %v2296
      %v2317 = vpack.c.b16 %v2299, %v2298
      %v2318 = vpack.c.b16 %v2301, %v2300
      %v2319 = vpack.c.b16 %v2303, %v2302
      %v2336 = vunpack.c.l.b16 %v892
      %v2337 = vunpack.c.l.b16 %v902
      %v2338 = vunpack.c.l.b16 %v916
      %v2339 = vunpack.c.l.b16 %v926
      %v2340 = vunpack.c.l.b16 %v940
      %v2341 = vunpack.c.l.b16 %v950
      %v2342 = vunpack.c.l.b16 %v964
      %v2343 = vunpack.c.l.b16 %v974
      %v2344 = vunpack.c.l.b16 %v988
      %v2345 = vunpack.c.l.b16 %v998
      %v2346 = vunpack.c.l.b16 %v1012
      %v2347 = vunpack.c.l.b16 %v1022
      %v2348 = vunpack.c.l.b16 %v1036
      %v2349 = vunpack.c.l.b16 %v1046
      %v2350 = vunpack.c.l.b16 %v1060
      %v2351 = vunpack.c.l.b16 %v1070
      %v2352 = vunpack.c.l.b16 %v1084
      %v2353 = vunpack.c.l.b16 %v1094
      %v2354 = vunpack.c.l.b16 %v1108
      %v2355 = vunpack.c.l.b16 %v1118
      %v2356 = vunpack.c.l.b16 %v1132
      %v2357 = vunpack.c.l.b16 %v1142
      %v2358 = vunpack.c.l.b16 %v1156
      %v2359 = vunpack.c.l.b16 %v1166
      %v2360 = vunpack.c.l.b16 %v1180
      %v2361 = vunpack.c.l.b16 %v1190
      %v2362 = vunpack.c.l.b16 %v1204
      %v2363 = vunpack.c.l.b16 %v1214
      %v2364 = vunpack.c.l.b16 %v1228
      %v2365 = vunpack.c.l.b16 %v1238
      %v2366 = vunpack.c.l.b16 %v1252
      %v2367 = vunpack.c.l.b16 %v1262
      %v2368 = vpack.c.b16 %v2337, %v2336
      %v2369 = vpack.c.b16 %v2339, %v2338
      %v2370 = vpack.c.b16 %v2341, %v2340
      %v2371 = vpack.c.b16 %v2343, %v2342
      %v2372 = vpack.c.b16 %v2345, %v2344
      %v2373 = vpack.c.b16 %v2347, %v2346
      %v2374 = vpack.c.b16 %v2349, %v2348
      %v2375 = vpack.c.b16 %v2351, %v2350
      %v2376 = vpack.c.b16 %v2353, %v2352
      %v2377 = vpack.c.b16 %v2355, %v2354
      %v2378 = vpack.c.b16 %v2357, %v2356
      %v2379 = vpack.c.b16 %v2359, %v2358
      %v2380 = vpack.c.b16 %v2361, %v2360
      %v2381 = vpack.c.b16 %v2363, %v2362
      %v2382 = vpack.c.b16 %v2365, %v2364
      %v2383 = vpack.c.b16 %v2367, %v2366
      %v2400 = vunpack.c.l.b16 %v1330
      %v2401 = vunpack.c.l.b16 %v1333
      %v2402 = vunpack.c.l.b16 %v1337
      %v2403 = vunpack.c.l.b16 %v1340
      %v2404 = vunpack.c.l.b16 %v1344
      %v2405 = vunpack.c.l.b16 %v1347
      %v2406 = vunpack.c.l.b16 %v1351
      %v2407 = vunpack.c.l.b16 %v1354
      %v2408 = vunpack.c.l.b16 %v1358
      %v2409 = vunpack.c.l.b16 %v1361
      %v2410 = vunpack.c.l.b16 %v1365
      %v2411 = vunpack.c.l.b16 %v1368
      %v2412 = vunpack.c.l.b16 %v1372
      %v2413 = vunpack.c.l.b16 %v1375
      %v2414 = vunpack.c.l.b16 %v1379
      %v2415 = vunpack.c.l.b16 %v1382
      %v2416 = vunpack.c.l.b16 %v1386
      %v2417 = vunpack.c.l.b16 %v1389
      %v2418 = vunpack.c.l.b16 %v1393
      %v2419 = vunpack.c.l.b16 %v1396
      %v2420 = vunpack.c.l.b16 %v1400
      %v2421 = vunpack.c.l.b16 %v1403
      %v2422 = vunpack.c.l.b16 %v1407
      %v2423 = vunpack.c.l.b16 %v1410
      %v2424 = vunpack.c.l.b16 %v1414
      %v2425 = vunpack.c.l.b16 %v1417
      %v2426 = vunpack.c.l.b16 %v1421
      %v2427 = vunpack.c.l.b16 %v1424
      %v2428 = vunpack.c.l.b16 %v1428
      %v2429 = vunpack.c.l.b16 %v1431
      %v2430 = vunpack.c.l.b16 %v1435
      %v2431 = vunpack.c.l.b16 %v1438
      %v2432 = vpack.c.b16 %v2401, %v2400
      %v2433 = vpack.c.b16 %v2403, %v2402
      %v2434 = vpack.c.b16 %v2405, %v2404
      %v2435 = vpack.c.b16 %v2407, %v2406
      %v2436 = vpack.c.b16 %v2409, %v2408
      %v2437 = vpack.c.b16 %v2411, %v2410
      %v2438 = vpack.c.b16 %v2413, %v2412
      %v2439 = vpack.c.b16 %v2415, %v2414
      %v2440 = vpack.c.b16 %v2417, %v2416
      %v2441 = vpack.c.b16 %v2419, %v2418
      %v2442 = vpack.c.b16 %v2421, %v2420
      %v2443 = vpack.c.b16 %v2423, %v2422
      %v2444 = vpack.c.b16 %v2425, %v2424
      %v2445 = vpack.c.b16 %v2427, %v2426
      %v2446 = vpack.c.b16 %v2429, %v2428
      %v2447 = vpack.c.b16 %v2431, %v2430
      %v2480 = vunpack.c.l.b16 %v1440
      %v2481 = vunpack.c.l.b16 %v1441
      %v2482 = vunpack.c.l.b16 %v1442
      %v2483 = vunpack.c.l.b16 %v1443
      %v2484 = vunpack.c.l.b16 %v1444
      %v2485 = vunpack.c.l.b16 %v1445
      %v2486 = vunpack.c.l.b16 %v1446
      %v2487 = vunpack.c.l.b16 %v1447
      %v2488 = vunpack.c.l.b16 %v1448
      %v2489 = vunpack.c.l.b16 %v1449
      %v2490 = vunpack.c.l.b16 %v1450
      %v2491 = vunpack.c.l.b16 %v1451
      %v2492 = vunpack.c.l.b16 %v1452
      %v2493 = vunpack.c.l.b16 %v1453
      %v2494 = vunpack.c.l.b16 %v1454
      %v2495 = vunpack.c.l.b16 %v1455
      %v2496 = vunpack.c.l.b16 %v1456
      %v2497 = vunpack.c.l.b16 %v1457
      %v2498 = vunpack.c.l.b16 %v1458
      %v2499 = vunpack.c.l.b16 %v1459
      %v2500 = vunpack.c.l.b16 %v1460
      %v2501 = vunpack.c.l.b16 %v1461
      %v2502 = vunpack.c.l.b16 %v1462
      %v2503 = vunpack.c.l.b16 %v1463
      %v2504 = vunpack.c.l.b16 %v1464
      %v2505 = vunpack.c.l.b16 %v1465
      %v2506 = vunpack.c.l.b16 %v1466
      %v2507 = vunpack.c.l.b16 %v1467
      %v2508 = vunpack.c.l.b16 %v1468
      %v2509 = vunpack.c.l.b16 %v1469
      %v2510 = vunpack.c.l.b16 %v1470
      %v2511 = vunpack.c.l.b16 %v1471
      %v2512 = vpack.c.b16 %v2481, %v2480
      %v2513 = vpack.c.b16 %v2483, %v2482
      %v2514 = vpack.c.b16 %v2485, %v2484
      %v2515 = vpack.c.b16 %v2487, %v2486
      %v2516 = vpack.c.b16 %v2489, %v2488
      %v2517 = vpack.c.b16 %v2491, %v2490
      %v2518 = vpack.c.b16 %v2493, %v2492
      %v2519 = vpack.c.b16 %v2495, %v2494
      %v2520 = vpack.c.b16 %v2497, %v2496
      %v2521 = vpack.c.b16 %v2499, %v2498
      %v2522 = vpack.c.b16 %v2501, %v2500
      %v2523 = vpack.c.b16 %v2503, %v2502
      %v2524 = vpack.c.b16 %v2505, %v2504
      %v2525 = vpack.c.b16 %v2507, %v2506
      %v2526 = vpack.c.b16 %v2509, %v2508
      %v2527 = vpack.c.b16 %v2511, %v2510
      %v2544 = vunpack.c.l.b16 %v1501
      %v2545 = vunpack.c.l.b16 %v1511
      %v2546 = vunpack.c.l.b16 %v1525
      %v2547 = vunpack.c.l.b16 %v1535
      %v2548 = vunpack.c.l.b16 %v1549
      %v2549 = vunpack.c.l.b16 %v1559
      %v2550 = vunpack.c.l.b16 %v1573
      %v2551 = vunpack.c.l.b16 %v1583
      %v2552 = vunpack.c.l.b16 %v1597
      %v2553 = vunpack.c.l.b16 %v1607
      %v2554 = vunpack.c.l.b16 %v1621
      %v2555 = vunpack.c.l.b16 %v1631
      %v2556 = vunpack.c.l.b16 %v1645
      %v2557 = vunpack.c.l.b16 %v1655
      %v2558 = vunpack.c.l.b16 %v1669
      %v2559 = vunpack.c.l.b16 %v1679
      %v2560 = vunpack.c.l.b16 %v1693
      %v2561 = vunpack.c.l.b16 %v1703
      %v2562 = vunpack.c.l.b16 %v1717
      %v2563 = vunpack.c.l.b16 %v1727
      %v2564 = vunpack.c.l.b16 %v1741
      %v2565 = vunpack.c.l.b16 %v1751
      %v2566 = vunpack.c.l.b16 %v1765
      %v2567 = vunpack.c.l.b16 %v1775
      %v2568 = vunpack.c.l.b16 %v1789
      %v2569 = vunpack.c.l.b16 %v1799
      %v2570 = vunpack.c.l.b16 %v1813
      %v2571 = vunpack.c.l.b16 %v1823
      %v2572 = vunpack.c.l.b16 %v1837
      %v2573 = vunpack.c.l.b16 %v1847
      %v2574 = vunpack.c.l.b16 %v1861
      %v2575 = vunpack.c.l.b16 %v1871
      %v2576 = vpack.c.b16 %v2545, %v2544
      %v2577 = vpack.c.b16 %v2547, %v2546
      %v2578 = vpack.c.b16 %v2549, %v2548
      %v2579 = vpack.c.b16 %v2551, %v2550
      %v2580 = vpack.c.b16 %v2553, %v2552
      %v2581 = vpack.c.b16 %v2555, %v2554
      %v2582 = vpack.c.b16 %v2557, %v2556
      %v2583 = vpack.c.b16 %v2559, %v2558
      %v2584 = vpack.c.b16 %v2561, %v2560
      %v2585 = vpack.c.b16 %v2563, %v2562
      %v2586 = vpack.c.b16 %v2565, %v2564
      %v2587 = vpack.c.b16 %v2567, %v2566
      %v2588 = vpack.c.b16 %v2569, %v2568
      %v2589 = vpack.c.b16 %v2571, %v2570
      %v2590 = vpack.c.b16 %v2573, %v2572
      %v2591 = vpack.c.b16 %v2575, %v2574
      %v2608 = vunpack.c.l.b16 %v1939
      %v2609 = vunpack.c.l.b16 %v1942
      %v2610 = vunpack.c.l.b16 %v1946
      %v2611 = vunpack.c.l.b16 %v1949
      %v2612 = vunpack.c.l.b16 %v1953
      %v2613 = vunpack.c.l.b16 %v1956
      %v2614 = vunpack.c.l.b16 %v1960
      %v2615 = vunpack.c.l.b16 %v1963
      %v2616 = vunpack.c.l.b16 %v1967
      %v2617 = vunpack.c.l.b16 %v1970
      %v2618 = vunpack.c.l.b16 %v1974
      %v2619 = vunpack.c.l.b16 %v1977
      %v2620 = vunpack.c.l.b16 %v1981
      %v2621 = vunpack.c.l.b16 %v1984
      %v2622 = vunpack.c.l.b16 %v1988
      %v2623 = vunpack.c.l.b16 %v1991
      %v2624 = vunpack.c.l.b16 %v1995
      %v2625 = vunpack.c.l.b16 %v1998
      %v2626 = vunpack.c.l.b16 %v2002
      %v2627 = vunpack.c.l.b16 %v2005
      %v2628 = vunpack.c.l.b16 %v2009
      %v2629 = vunpack.c.l.b16 %v2012
      %v2630 = vunpack.c.l.b16 %v2016
      %v2631 = vunpack.c.l.b16 %v2019
      %v2632 = vunpack.c.l.b16 %v2023
      %v2633 = vunpack.c.l.b16 %v2026
      %v2634 = vunpack.c.l.b16 %v2030
      %v2635 = vunpack.c.l.b16 %v2033
      %v2636 = vunpack.c.l.b16 %v2037
      %v2637 = vunpack.c.l.b16 %v2040
      %v2638 = vunpack.c.l.b16 %v2044
      %v2639 = vunpack.c.l.b16 %v2047
      %v2640 = vpack.c.b16 %v2609, %v2608
      %v2641 = vpack.c.b16 %v2611, %v2610
      %v2642 = vpack.c.b16 %v2613, %v2612
      %v2643 = vpack.c.b16 %v2615, %v2614
      %v2644 = vpack.c.b16 %v2617, %v2616
      %v2645 = vpack.c.b16 %v2619, %v2618
      %v2646 = vpack.c.b16 %v2621, %v2620
      %v2647 = vpack.c.b16 %v2623, %v2622
      %v2648 = vpack.c.b16 %v2625, %v2624
      %v2649 = vpack.c.b16 %v2627, %v2626
      %v2650 = vpack.c.b16 %v2629, %v2628
      %v2651 = vpack.c.b16 %v2631, %v2630
      %v2652 = vpack.c.b16 %v2633, %v2632
      %v2653 = vpack.c.b16 %v2635, %v2634
      %v2654 = vpack.c.b16 %v2637, %v2636
      %v2655 = vpack.c.b16 %v2639, %v2638
      %v2672 = vld [vmem:[%s1] sm:$0xf]
      %v2673 = vld [vmem:[%s1 + $0x4] sm:$0xf]
      %v2674 = vld [vmem:[%s1 + $0x8] sm:$0xf]
      %v2675 = vld [vmem:[%s1 + $0xc] sm:$0xf]
      %v2676 = vld [vmem:[%s1 + $0x10] sm:$0xf]
      %v2677 = vld [vmem:[%s1 + $0x14] sm:$0xf]
      %v2678 = vld [vmem:[%s1 + $0x18] sm:$0xf]
      %v2679 = vld [vmem:[%s1 + $0x1c] sm:$0xf]
      %v2680 = vld [vmem:[%s1 + $0x20] sm:$0xf]
      %v2681 = vld [vmem:[%s1 + $0x24] sm:$0xf]
      %v2682 = vld [vmem:[%s1 + $0x28] sm:$0xf]
      %v2683 = vld [vmem:[%s1 + $0x2c] sm:$0xf]
      %v2684 = vld [vmem:[%s1 + $0x30] sm:$0xf]
      %v2685 = vld [vmem:[%s1 + $0x34] sm:$0xf]
      %v2686 = vld [vmem:[%s1 + $0x38] sm:$0xf]
      %v2687 = vld [vmem:[%s1 + $0x3c] sm:$0xf]
      %v2688 = vld [vmem:[%s1 + $0x40] sm:$0xf]
      %v2689 = vld [vmem:[%s1 + $0x44] sm:$0xf]
      %v2690 = vld [vmem:[%s1 + $0x48] sm:$0xf]
      %v2691 = vld [vmem:[%s1 + $0x4c] sm:$0xf]
      %v2692 = vld [vmem:[%s1 + $0x50] sm:$0xf]
      %v2693 = vld [vmem:[%s1 + $0x54] sm:$0xf]
      %v2694 = vld [vmem:[%s1 + $0x58] sm:$0xf]
      %v2695 = vld [vmem:[%s1 + $0x5c] sm:$0xf]
      %v2696 = vld [vmem:[%s1 + $0x60] sm:$0xf]
      %v2697 = vld [vmem:[%s1 + $0x64] sm:$0xf]
      %v2698 = vld [vmem:[%s1 + $0x68] sm:$0xf]
      %v2699 = vld [vmem:[%s1 + $0x6c] sm:$0xf]
      %v2700 = vld [vmem:[%s1 + $0x70] sm:$0xf]
      %v2701 = vld [vmem:[%s1 + $0x74] sm:$0xf]
      %v2702 = vld [vmem:[%s1 + $0x78] sm:$0xf]
      %v2703 = vld [vmem:[%s1 + $0x7c] sm:$0xf]
      %v2704 = vld [vmem:[%s1 + $0x80] sm:$0xf]
      %v2705 = vld [vmem:[%s1 + $0x84] sm:$0xf]
      %v2706 = vld [vmem:[%s1 + $0x88] sm:$0xf]
      %v2707 = vld [vmem:[%s1 + $0x8c] sm:$0xf]
      %v2708 = vld [vmem:[%s1 + $0x90] sm:$0xf]
      %v2709 = vld [vmem:[%s1 + $0x94] sm:$0xf]
      %v2710 = vld [vmem:[%s1 + $0x98] sm:$0xf]
      %v2711 = vld [vmem:[%s1 + $0x9c] sm:$0xf]
      %v2712 = vld [vmem:[%s1 + $0xa0] sm:$0xf]
      %v2713 = vld [vmem:[%s1 + $0xa4] sm:$0xf]
      %v2714 = vld [vmem:[%s1 + $0xa8] sm:$0xf]
      %v2715 = vld [vmem:[%s1 + $0xac] sm:$0xf]
      %v2716 = vld [vmem:[%s1 + $0xb0] sm:$0xf]
      %v2717 = vld [vmem:[%s1 + $0xb4] sm:$0xf]
      %v2718 = vld [vmem:[%s1 + $0xb8] sm:$0xf]
      %v2719 = vld [vmem:[%s1 + $0xbc] sm:$0xf]
      %v2720 = vld [vmem:[%s1 + $0xc0] sm:$0xf]
      %v2721 = vld [vmem:[%s1 + $0xc4] sm:$0xf]
      %v2722 = vld [vmem:[%s1 + $0xc8] sm:$0xf]
      %v2723 = vld [vmem:[%s1 + $0xcc] sm:$0xf]
      %v2724 = vld [vmem:[%s1 + $0xd0] sm:$0xf]
      %v2725 = vld [vmem:[%s1 + $0xd4] sm:$0xf]
      %v2726 = vld [vmem:[%s1 + $0xd8] sm:$0xf]
      %v2727 = vld [vmem:[%s1 + $0xdc] sm:$0xf]
      %v2728 = vld [vmem:[%s1 + $0xe0] sm:$0xf]
      %v2729 = vld [vmem:[%s1 + $0xe4] sm:$0xf]
      %v2730 = vld [vmem:[%s1 + $0xe8] sm:$0xf]
      %v2731 = vld [vmem:[%s1 + $0xec] sm:$0xf]
      %v2732 = vld [vmem:[%s1 + $0xf0] sm:$0xf]
      %v2733 = vld [vmem:[%s1 + $0xf4] sm:$0xf]
      %v2734 = vld [vmem:[%s1 + $0xf8] sm:$0xf]
      %v2735 = vld [vmem:[%s1 + $0xfc] sm:$0xf]
      %v2736 = vld [vmem:[%s1 + $0x100] sm:$0xf]
      %v2737 = vld [vmem:[%s1 + $0x104] sm:$0xf]
      %v2738 = vld [vmem:[%s1 + $0x108] sm:$0xf]
      %v2739 = vld [vmem:[%s1 + $0x10c] sm:$0xf]
      %v2740 = vld [vmem:[%s1 + $0x110] sm:$0xf]
      %v2741 = vld [vmem:[%s1 + $0x114] sm:$0xf]
      %v2742 = vld [vmem:[%s1 + $0x118] sm:$0xf]
      %v2743 = vld [vmem:[%s1 + $0x11c] sm:$0xf]
      %v2744 = vld [vmem:[%s1 + $0x120] sm:$0xf]
      %v2745 = vld [vmem:[%s1 + $0x124] sm:$0xf]
      %v2746 = vld [vmem:[%s1 + $0x128] sm:$0xf]
      %v2747 = vld [vmem:[%s1 + $0x12c] sm:$0xf]
      %v2748 = vld [vmem:[%s1 + $0x130] sm:$0xf]
      %v2749 = vld [vmem:[%s1 + $0x134] sm:$0xf]
      %v2750 = vld [vmem:[%s1 + $0x138] sm:$0xf]
      %v2751 = vld [vmem:[%s1 + $0x13c] sm:$0xf]
      %v2752 = vld [vmem:[%s1 + $0x140] sm:$0xf]
      %v2753 = vld [vmem:[%s1 + $0x144] sm:$0xf]
      %v2754 = vld [vmem:[%s1 + $0x148] sm:$0xf]
      %v2755 = vld [vmem:[%s1 + $0x14c] sm:$0xf]
      %v2756 = vld [vmem:[%s1 + $0x150] sm:$0xf]
      %v2757 = vld [vmem:[%s1 + $0x154] sm:$0xf]
      %v2758 = vld [vmem:[%s1 + $0x158] sm:$0xf]
      %v2759 = vld [vmem:[%s1 + $0x15c] sm:$0xf]
      %v2760 = vld [vmem:[%s1 + $0x160] sm:$0xf]
      %v2761 = vld [vmem:[%s1 + $0x164] sm:$0xf]
      %v2762 = vld [vmem:[%s1 + $0x168] sm:$0xf]
      %v2763 = vld [vmem:[%s1 + $0x16c] sm:$0xf]
      %v2764 = vld [vmem:[%s1 + $0x170] sm:$0xf]
      %v2765 = vld [vmem:[%s1 + $0x174] sm:$0xf]
      %v2766 = vld [vmem:[%s1 + $0x178] sm:$0xf]
      %v2767 = vld [vmem:[%s1 + $0x17c] sm:$0xf]
      %v2768 = vld [vmem:[%s1 + $0x180] sm:$0xf]
      %v2769 = vld [vmem:[%s1 + $0x184] sm:$0xf]
      %v2770 = vld [vmem:[%s1 + $0x188] sm:$0xf]
      %v2771 = vld [vmem:[%s1 + $0x18c] sm:$0xf]
      %v2772 = vld [vmem:[%s1 + $0x190] sm:$0xf]
      %v2773 = vld [vmem:[%s1 + $0x194] sm:$0xf]
      %v2774 = vld [vmem:[%s1 + $0x198] sm:$0xf]
      %v2775 = vld [vmem:[%s1 + $0x19c] sm:$0xf]
      %v2776 = vld [vmem:[%s1 + $0x1a0] sm:$0xf]
      %v2777 = vld [vmem:[%s1 + $0x1a4] sm:$0xf]
      %v2778 = vld [vmem:[%s1 + $0x1a8] sm:$0xf]
      %v2779 = vld [vmem:[%s1 + $0x1ac] sm:$0xf]
      %v2780 = vld [vmem:[%s1 + $0x1b0] sm:$0xf]
      %v2781 = vld [vmem:[%s1 + $0x1b4] sm:$0xf]
      %v2782 = vld [vmem:[%s1 + $0x1b8] sm:$0xf]
      %v2783 = vld [vmem:[%s1 + $0x1bc] sm:$0xf]
      %v2784 = vld [vmem:[%s1 + $0x1c0] sm:$0xf]
      %v2785 = vld [vmem:[%s1 + $0x1c4] sm:$0xf]
      %v2786 = vld [vmem:[%s1 + $0x1c8] sm:$0xf]
      %v2787 = vld [vmem:[%s1 + $0x1cc] sm:$0xf]
      %v2788 = vld [vmem:[%s1 + $0x1d0] sm:$0xf]
      %v2789 = vld [vmem:[%s1 + $0x1d4] sm:$0xf]
      %v2790 = vld [vmem:[%s1 + $0x1d8] sm:$0xf]
      %v2791 = vld [vmem:[%s1 + $0x1dc] sm:$0xf]
      %v2792 = vld [vmem:[%s1 + $0x1e0] sm:$0xf]
      %v2793 = vld [vmem:[%s1 + $0x1e4] sm:$0xf]
      %v2794 = vld [vmem:[%s1 + $0x1e8] sm:$0xf]
      %v2795 = vld [vmem:[%s1 + $0x1ec] sm:$0xf]
      %v2796 = vld [vmem:[%s1 + $0x1f0] sm:$0xf]
      %v2797 = vld [vmem:[%s1 + $0x1f4] sm:$0xf]
      %v2798 = vld [vmem:[%s1 + $0x1f8] sm:$0xf]
      %v2799 = vld [vmem:[%s1 + $0x1fc] sm:$0xf]
      %v2800 = vld [vmem:[%s1 + $0x200] sm:$0xf]
      %v2801 = vld [vmem:[%s1 + $0x204] sm:$0xf]
      %v2802 = vld [vmem:[%s1 + $0x208] sm:$0xf]
      %v2803 = vld [vmem:[%s1 + $0x20c] sm:$0xf]
      %v2804 = vld [vmem:[%s1 + $0x210] sm:$0xf]
      %v2805 = vld [vmem:[%s1 + $0x214] sm:$0xf]
      %v2806 = vld [vmem:[%s1 + $0x218] sm:$0xf]
      %v2807 = vld [vmem:[%s1 + $0x21c] sm:$0xf]
      %v2808 = vld [vmem:[%s1 + $0x220] sm:$0xf]
      %v2809 = vld [vmem:[%s1 + $0x224] sm:$0xf]
      %v2810 = vld [vmem:[%s1 + $0x228] sm:$0xf]
      %v2811 = vld [vmem:[%s1 + $0x22c] sm:$0xf]
      %v2812 = vld [vmem:[%s1 + $0x230] sm:$0xf]
      %v2813 = vld [vmem:[%s1 + $0x234] sm:$0xf]
      %v2814 = vld [vmem:[%s1 + $0x238] sm:$0xf]
      %v2815 = vld [vmem:[%s1 + $0x23c] sm:$0xf]
      %v2960 = vunpack.c.l.b16 %v2672
      %v2961 = vunpack.c.l.b16 %v2673
      %v2962 = vunpack.c.l.b16 %v2674
      %v2963 = vunpack.c.l.b16 %v2675
      %v2964 = vunpack.c.l.b16 %v2676
      %v2965 = vunpack.c.l.b16 %v2677
      %v2966 = vunpack.c.l.b16 %v2678
      %v2967 = vunpack.c.l.b16 %v2679
      %v2968 = vunpack.c.l.b16 %v2680
      %v2969 = vunpack.c.l.b16 %v2681
      %v2970 = vunpack.c.l.b16 %v2682
      %v2971 = vunpack.c.l.b16 %v2683
      %v2972 = vunpack.c.l.b16 %v2684
      %v2973 = vunpack.c.l.b16 %v2685
      %v2974 = vunpack.c.l.b16 %v2686
      %v2975 = vunpack.c.l.b16 %v2687
      %v2976 = vunpack.c.l.b16 %v2688
      %v2977 = vunpack.c.l.b16 %v2689
      %v2978 = vunpack.c.l.b16 %v2690
      %v2979 = vunpack.c.l.b16 %v2691
      %v2980 = vunpack.c.l.b16 %v2692
      %v2981 = vunpack.c.l.b16 %v2693
      %v2982 = vunpack.c.l.b16 %v2694
      %v2983 = vunpack.c.l.b16 %v2695
      %v2984 = vunpack.c.l.b16 %v2696
      %v2985 = vunpack.c.l.b16 %v2697
      %v2986 = vunpack.c.l.b16 %v2698
      %v2987 = vunpack.c.l.b16 %v2699
      %v2988 = vunpack.c.l.b16 %v2700
      %v2989 = vunpack.c.l.b16 %v2701
      %v2990 = vunpack.c.l.b16 %v2702
      %v2991 = vunpack.c.l.b16 %v2703
      %v2992 = vunpack.c.l.b16 %v2704
      %v2993 = vunpack.c.l.b16 %v2705
      %v2994 = vunpack.c.l.b16 %v2706
      %v2995 = vunpack.c.l.b16 %v2707
      %v2996 = vunpack.c.l.b16 %v2708
      %v2997 = vunpack.c.l.b16 %v2709
      %v2998 = vunpack.c.l.b16 %v2710
      %v2999 = vunpack.c.l.b16 %v2711
      %v3000 = vunpack.c.l.b16 %v2712
      %v3001 = vunpack.c.l.b16 %v2713
      %v3002 = vunpack.c.l.b16 %v2714
      %v3003 = vunpack.c.l.b16 %v2715
      %v3004 = vunpack.c.l.b16 %v2716
      %v3005 = vunpack.c.l.b16 %v2717
      %v3006 = vunpack.c.l.b16 %v2718
      %v3007 = vunpack.c.l.b16 %v2719
      %v3008 = vunpack.c.l.b16 %v2720
      %v3009 = vunpack.c.l.b16 %v2721
      %v3010 = vunpack.c.l.b16 %v2722
      %v3011 = vunpack.c.l.b16 %v2723
      %v3012 = vunpack.c.l.b16 %v2724
      %v3013 = vunpack.c.l.b16 %v2725
      %v3014 = vunpack.c.l.b16 %v2726
      %v3015 = vunpack.c.l.b16 %v2727
      %v3016 = vunpack.c.l.b16 %v2728
      %v3017 = vunpack.c.l.b16 %v2729
      %v3018 = vunpack.c.l.b16 %v2730
      %v3019 = vunpack.c.l.b16 %v2731
      %v3020 = vunpack.c.l.b16 %v2732
      %v3021 = vunpack.c.l.b16 %v2733
      %v3022 = vunpack.c.l.b16 %v2734
      %v3023 = vunpack.c.l.b16 %v2735
      %v3024 = vunpack.c.l.b16 %v2736
      %v3025 = vunpack.c.l.b16 %v2737
      %v3026 = vunpack.c.l.b16 %v2738
      %v3027 = vunpack.c.l.b16 %v2739
      %v3028 = vunpack.c.l.b16 %v2740
      %v3029 = vunpack.c.l.b16 %v2741
      %v3030 = vunpack.c.l.b16 %v2742
      %v3031 = vunpack.c.l.b16 %v2743
      %v3032 = vunpack.c.l.b16 %v2744
      %v3033 = vunpack.c.l.b16 %v2745
      %v3034 = vunpack.c.l.b16 %v2746
      %v3035 = vunpack.c.l.b16 %v2747
      %v3036 = vunpack.c.l.b16 %v2748
      %v3037 = vunpack.c.l.b16 %v2749
      %v3038 = vunpack.c.l.b16 %v2750
      %v3039 = vunpack.c.l.b16 %v2751
      %v3040 = vunpack.c.l.b16 %v2752
      %v3041 = vunpack.c.l.b16 %v2753
      %v3042 = vunpack.c.l.b16 %v2754
      %v3043 = vunpack.c.l.b16 %v2755
      %v3044 = vunpack.c.l.b16 %v2756
      %v3045 = vunpack.c.l.b16 %v2757
      %v3046 = vunpack.c.l.b16 %v2758
      %v3047 = vunpack.c.l.b16 %v2759
      %v3048 = vunpack.c.l.b16 %v2760
      %v3049 = vunpack.c.l.b16 %v2761
      %v3050 = vunpack.c.l.b16 %v2762
      %v3051 = vunpack.c.l.b16 %v2763
      %v3052 = vunpack.c.l.b16 %v2764
      %v3053 = vunpack.c.l.b16 %v2765
      %v3054 = vunpack.c.l.b16 %v2766
      %v3055 = vunpack.c.l.b16 %v2767
      %v3056 = vunpack.c.l.b16 %v2768
      %v3057 = vunpack.c.l.b16 %v2769
      %v3058 = vunpack.c.l.b16 %v2770
      %v3059 = vunpack.c.l.b16 %v2771
      %v3060 = vunpack.c.l.b16 %v2772
      %v3061 = vunpack.c.l.b16 %v2773
      %v3062 = vunpack.c.l.b16 %v2774
      %v3063 = vunpack.c.l.b16 %v2775
      %v3064 = vunpack.c.l.b16 %v2776
      %v3065 = vunpack.c.l.b16 %v2777
      %v3066 = vunpack.c.l.b16 %v2778
      %v3067 = vunpack.c.l.b16 %v2779
      %v3068 = vunpack.c.l.b16 %v2780
      %v3069 = vunpack.c.l.b16 %v2781
      %v3070 = vunpack.c.l.b16 %v2782
      %v3071 = vunpack.c.l.b16 %v2783
      %v3072 = vunpack.c.l.b16 %v2784
      %v3073 = vunpack.c.l.b16 %v2785
      %v3074 = vunpack.c.l.b16 %v2786
      %v3075 = vunpack.c.l.b16 %v2787
      %v3076 = vunpack.c.l.b16 %v2788
      %v3077 = vunpack.c.l.b16 %v2789
      %v3078 = vunpack.c.l.b16 %v2790
      %v3079 = vunpack.c.l.b16 %v2791
      %v3080 = vunpack.c.l.b16 %v2792
      %v3081 = vunpack.c.l.b16 %v2793
      %v3082 = vunpack.c.l.b16 %v2794
      %v3083 = vunpack.c.l.b16 %v2795
      %v3084 = vunpack.c.l.b16 %v2796
      %v3085 = vunpack.c.l.b16 %v2797
      %v3086 = vunpack.c.l.b16 %v2798
      %v3087 = vunpack.c.l.b16 %v2799
      %v3088 = vunpack.c.l.b16 %v2800
      %v3089 = vunpack.c.l.b16 %v2801
      %v3090 = vunpack.c.l.b16 %v2802
      %v3091 = vunpack.c.l.b16 %v2803
      %v3092 = vunpack.c.l.b16 %v2804
      %v3093 = vunpack.c.l.b16 %v2805
      %v3094 = vunpack.c.l.b16 %v2806
      %v3095 = vunpack.c.l.b16 %v2807
      %v3096 = vunpack.c.l.b16 %v2808
      %v3097 = vunpack.c.l.b16 %v2809
      %v3098 = vunpack.c.l.b16 %v2810
      %v3099 = vunpack.c.l.b16 %v2811
      %v3100 = vunpack.c.l.b16 %v2812
      %v3101 = vunpack.c.l.b16 %v2813
      %v3102 = vunpack.c.l.b16 %v2814
      %v3103 = vunpack.c.l.b16 %v2815
      %v3104 = vpack.c.b16 %v2961, %v2960
      %v3105 = vpack.c.b16 %v2963, %v2962
      %v3106 = vpack.c.b16 %v2965, %v2964
      %v3107 = vpack.c.b16 %v2967, %v2966
      %v3108 = vpack.c.b16 %v2969, %v2968
      %v3109 = vpack.c.b16 %v2971, %v2970
      %v3110 = vpack.c.b16 %v2973, %v2972
      %v3111 = vpack.c.b16 %v2975, %v2974
      %v3112 = vpack.c.b16 %v2977, %v2976
      %v3113 = vpack.c.b16 %v2979, %v2978
      %v3114 = vpack.c.b16 %v2981, %v2980
      %v3115 = vpack.c.b16 %v2983, %v2982
      %v3116 = vpack.c.b16 %v2985, %v2984
      %v3117 = vpack.c.b16 %v2987, %v2986
      %v3118 = vpack.c.b16 %v2989, %v2988
      %v3119 = vpack.c.b16 %v2991, %v2990
      %v3120 = vpack.c.b16 %v2993, %v2992
      %v3121 = vpack.c.b16 %v2995, %v2994
      %v3122 = vpack.c.b16 %v2997, %v2996
      %v3123 = vpack.c.b16 %v2999, %v2998
      %v3124 = vpack.c.b16 %v3001, %v3000
      %v3125 = vpack.c.b16 %v3003, %v3002
      %v3126 = vpack.c.b16 %v3005, %v3004
      %v3127 = vpack.c.b16 %v3007, %v3006
      %v3128 = vpack.c.b16 %v3009, %v3008
      %v3129 = vpack.c.b16 %v3011, %v3010
      %v3130 = vpack.c.b16 %v3013, %v3012
      %v3131 = vpack.c.b16 %v3015, %v3014
      %v3132 = vpack.c.b16 %v3017, %v3016
      %v3133 = vpack.c.b16 %v3019, %v3018
      %v3134 = vpack.c.b16 %v3021, %v3020
      %v3135 = vpack.c.b16 %v3023, %v3022
      %v3136 = vpack.c.b16 %v3025, %v3024
      %v3137 = vpack.c.b16 %v3027, %v3026
      %v3138 = vpack.c.b16 %v3029, %v3028
      %v3139 = vpack.c.b16 %v3031, %v3030
      %v3140 = vpack.c.b16 %v3033, %v3032
      %v3141 = vpack.c.b16 %v3035, %v3034
      %v3142 = vpack.c.b16 %v3037, %v3036
      %v3143 = vpack.c.b16 %v3039, %v3038
      %v3144 = vpack.c.b16 %v3041, %v3040
      %v3145 = vpack.c.b16 %v3043, %v3042
      %v3146 = vpack.c.b16 %v3045, %v3044
      %v3147 = vpack.c.b16 %v3047, %v3046
      %v3148 = vpack.c.b16 %v3049, %v3048
      %v3149 = vpack.c.b16 %v3051, %v3050
      %v3150 = vpack.c.b16 %v3053, %v3052
      %v3151 = vpack.c.b16 %v3055, %v3054
      %v3152 = vpack.c.b16 %v3057, %v3056
      %v3153 = vpack.c.b16 %v3059, %v3058
      %v3154 = vpack.c.b16 %v3061, %v3060
      %v3155 = vpack.c.b16 %v3063, %v3062
      %v3156 = vpack.c.b16 %v3065, %v3064
      %v3157 = vpack.c.b16 %v3067, %v3066
      %v3158 = vpack.c.b16 %v3069, %v3068
      %v3159 = vpack.c.b16 %v3071, %v3070
      %v3160 = vpack.c.b16 %v3073, %v3072
      %v3161 = vpack.c.b16 %v3075, %v3074
      %v3162 = vpack.c.b16 %v3077, %v3076
      %v3163 = vpack.c.b16 %v3079, %v3078
      %v3164 = vpack.c.b16 %v3081, %v3080
      %v3165 = vpack.c.b16 %v3083, %v3082
      %v3166 = vpack.c.b16 %v3085, %v3084
      %v3167 = vpack.c.b16 %v3087, %v3086
      %v3168 = vpack.c.b16 %v3089, %v3088
      %v3169 = vpack.c.b16 %v3091, %v3090
      %v3170 = vpack.c.b16 %v3093, %v3092
      %v3171 = vpack.c.b16 %v3095, %v3094
      %v3172 = vpack.c.b16 %v3097, %v3096
      %v3173 = vpack.c.b16 %v3099, %v3098
      %v3174 = vpack.c.b16 %v3101, %v3100
      %v3175 = vpack.c.b16 %v3103, %v3102
      %3248 = vmatprep.subr.bf16.mxu0 0
      %3249 = vmatpush1.bf16.msra.mxu0 %v3111
      %3250 = vmatprep.subr.bf16.mxu0 0
      %3251 = vmatpush1.bf16.msra.mxu0 %v3110
      %3252 = vmatprep.subr.bf16.mxu0 0
      %3253 = vmatpush1.bf16.msra.mxu0 %v3109
      %3254 = vmatprep.subr.bf16.mxu0 0
      %3255 = vmatpush1.bf16.msra.mxu0 %v3108
      %3256 = vmatprep.subr.bf16.mxu0 0
      %3257 = vmatpush1.bf16.msra.mxu0 %v3107
      %3258 = vmatprep.subr.bf16.mxu0 0
      %3259 = vmatpush1.bf16.msra.mxu0 %v3106
      %3260 = vmatprep.subr.bf16.mxu0 0
      %3261 = vmatpush1.bf16.msra.mxu0 %v3105
      %3262 = vmatprep.subr.bf16.mxu0 0
      %3263 = vmatpush1.bf16.msra.mxu0 %v3104
      %3264 = vmatprep.subr.bf16.mxu0 0
      %3265 = vmatpush2.bf16.msra.mxu0 %v3119
      %3266 = vmatprep.subr.bf16.mxu0 0
      %3267 = vmatpush2.bf16.msra.mxu0 %v3118
      %3268 = vmatprep.subr.bf16.mxu0 0
      %3269 = vmatpush2.bf16.msra.mxu0 %v3117
      %3270 = vmatprep.subr.bf16.mxu0 0
      %3271 = vmatpush2.bf16.msra.mxu0 %v3116
      %3272 = vmatprep.subr.bf16.mxu0 0
      %3273 = vmatpush2.bf16.msra.mxu0 %v3115
      %3274 = vmatprep.subr.bf16.mxu0 0
      %3275 = vmatpush2.bf16.msra.mxu0 %v3114
      %3276 = vmatprep.subr.bf16.mxu0 0
      %3277 = vmatpush2.bf16.msra.mxu0 %v3113
      %3278 = vmatprep.subr.bf16.mxu0 0
      %3279 = vmatpush2.bf16.msra.mxu0 %v3112
      %3280 = vmatprep.mubr.bf16.mxu0 %v2160
      %3281 = vmatmul.mubr.bf16.gmra.mxu0 %v2096
      %v3282 = vpop.f32.mrf.mxu0
      %v3283 = vadd.f32 0.0, %v3282
      %v3284 = vpop.f32.mrf.mxu0
      %v3285 = vpop.f32.mrf.mxu0
      %v3286 = vadd.f32 0.0, %v3285
      %v3287 = vpop.f32.mrf.mxu0
      %3288 = vmatprep.mubr.bf16.mxu0 %v2161
      %3289 = vmatmul.mubr.bf16.gmra.mxu0 %v2097
      %v3290 = vpop.f32.mrf.mxu0
      %v3291 = vadd.f32 0.0, %v3290
      %v3292 = vpop.f32.mrf.mxu0
      %v3293 = vpop.f32.mrf.mxu0
      %v3294 = vadd.f32 0.0, %v3293
      %v3295 = vpop.f32.mrf.mxu0
      %3296 = vmatprep.mubr.bf16.mxu0 %v2162
      %3297 = vmatmul.mubr.bf16.gmra.mxu0 %v2098
      %v3298 = vpop.f32.mrf.mxu0
      %v3299 = vadd.f32 0.0, %v3298
      %v3300 = vpop.f32.mrf.mxu0
      %v3301 = vpop.f32.mrf.mxu0
      %v3302 = vadd.f32 0.0, %v3301
      %v3303 = vpop.f32.mrf.mxu0
      %3304 = vmatprep.mubr.bf16.mxu0 %v2163
      %3305 = vmatmul.mubr.bf16.gmra.mxu0 %v2099
      %v3306 = vpop.f32.mrf.mxu0
      %v3307 = vadd.f32 0.0, %v3306
      %v3308 = vpop.f32.mrf.mxu0
      %v3309 = vpop.f32.mrf.mxu0
      %v3310 = vadd.f32 0.0, %v3309
      %v3311 = vpop.f32.mrf.mxu0
      %3312 = vmatprep.mubr.bf16.mxu0 %v2164
      %3313 = vmatmul.mubr.bf16.gmra.mxu0 %v2100
      %v3314 = vpop.f32.mrf.mxu0
      %v3315 = vadd.f32 0.0, %v3314
      %v3316 = vpop.f32.mrf.mxu0
      %v3317 = vpop.f32.mrf.mxu0
      %v3318 = vadd.f32 0.0, %v3317
      %v3319 = vpop.f32.mrf.mxu0
      %3320 = vmatprep.mubr.bf16.mxu0 %v2165
      %3321 = vmatmul.mubr.bf16.gmra.mxu0 %v2101
      %v3322 = vpop.f32.mrf.mxu0
      %v3323 = vadd.f32 0.0, %v3322
      %v3324 = vpop.f32.mrf.mxu0
      %v3325 = vpop.f32.mrf.mxu0
      %v3326 = vadd.f32 0.0, %v3325
      %v3327 = vpop.f32.mrf.mxu0
      %3328 = vmatprep.mubr.bf16.mxu0 %v2166
      %3329 = vmatmul.mubr.bf16.gmra.mxu0 %v2102
      %v3330 = vpop.f32.mrf.mxu0
      %v3331 = vadd.f32 0.0, %v3330
      %v3332 = vpop.f32.mrf.mxu0
      %v3333 = vpop.f32.mrf.mxu0
      %v3334 = vadd.f32 0.0, %v3333
      %v3335 = vpop.f32.mrf.mxu0
      %3336 = vmatprep.mubr.bf16.mxu0 %v2167
      %3337 = vmatmul.mubr.bf16.gmra.mxu0 %v2103
      %v3338 = vpop.f32.mrf.mxu0
      %v3339 = vadd.f32 0.0, %v3338
      %v3340 = vpop.f32.mrf.mxu0
      %v3341 = vpop.f32.mrf.mxu0
      %v3342 = vadd.f32 0.0, %v3341
      %v3343 = vpop.f32.mrf.mxu0
      %3344 = vmatprep.mubr.bf16.mxu0 %v2168
      %3345 = vmatmul.mubr.bf16.gmra.mxu0 %v2104
      %v3346 = vpop.f32.mrf.mxu0
      %v3347 = vadd.f32 0.0, %v3346
      %v3348 = vpop.f32.mrf.mxu0
      %v3349 = vpop.f32.mrf.mxu0
      %v3350 = vadd.f32 0.0, %v3349
      %v3351 = vpop.f32.mrf.mxu0
      %3352 = vmatprep.mubr.bf16.mxu0 %v2169
      %3353 = vmatmul.mubr.bf16.gmra.mxu0 %v2105
      %v3354 = vpop.f32.mrf.mxu0
      %v3355 = vadd.f32 0.0, %v3354
      %v3356 = vpop.f32.mrf.mxu0
      %v3357 = vpop.f32.mrf.mxu0
      %v3358 = vadd.f32 0.0, %v3357
      %v3359 = vpop.f32.mrf.mxu0
      %3360 = vmatprep.mubr.bf16.mxu0 %v2170
      %3361 = vmatmul.mubr.bf16.gmra.mxu0 %v2106
      %v3362 = vpop.f32.mrf.mxu0
      %v3363 = vadd.f32 0.0, %v3362
      %v3364 = vpop.f32.mrf.mxu0
      %v3365 = vpop.f32.mrf.mxu0
      %v3366 = vadd.f32 0.0, %v3365
      %v3367 = vpop.f32.mrf.mxu0
      %3368 = vmatprep.mubr.bf16.mxu0 %v2171
      %3369 = vmatmul.mubr.bf16.gmra.mxu0 %v2107
      %v3370 = vpop.f32.mrf.mxu0
      %v3371 = vadd.f32 0.0, %v3370
      %v3372 = vpop.f32.mrf.mxu0
      %v3373 = vpop.f32.mrf.mxu0
      %v3374 = vadd.f32 0.0, %v3373
      %v3375 = vpop.f32.mrf.mxu0
      %3376 = vmatprep.mubr.bf16.mxu0 %v2172
      %3377 = vmatmul.mubr.bf16.gmra.mxu0 %v2108
      %v3378 = vpop.f32.mrf.mxu0
      %v3379 = vadd.f32 0.0, %v3378
      %v3380 = vpop.f32.mrf.mxu0
      %v3381 = vpop.f32.mrf.mxu0
      %v3382 = vadd.f32 0.0, %v3381
      %v3383 = vpop.f32.mrf.mxu0
      %3384 = vmatprep.mubr.bf16.mxu0 %v2173
      %3385 = vmatmul.mubr.bf16.gmra.mxu0 %v2109
      %v3386 = vpop.f32.mrf.mxu0
      %v3387 = vadd.f32 0.0, %v3386
      %v3388 = vpop.f32.mrf.mxu0
      %v3389 = vpop.f32.mrf.mxu0
      %v3390 = vadd.f32 0.0, %v3389
      %v3391 = vpop.f32.mrf.mxu0
      %3392 = vmatprep.mubr.bf16.mxu0 %v2174
      %3393 = vmatmul.mubr.bf16.gmra.mxu0 %v2110
      %v3394 = vpop.f32.mrf.mxu0
      %v3395 = vadd.f32 0.0, %v3394
      %v3396 = vpop.f32.mrf.mxu0
      %v3397 = vpop.f32.mrf.mxu0
      %v3398 = vadd.f32 0.0, %v3397
      %v3399 = vpop.f32.mrf.mxu0
      %3400 = vmatprep.mubr.bf16.mxu0 %v2175
      %3401 = vmatmul.mubr.bf16.gmra.mxu0 %v2111
      %v3402 = vpop.f32.mrf.mxu0
      %v3403 = vadd.f32 0.0, %v3402
      %v3404 = vpop.f32.mrf.mxu0
      %v3405 = vpop.f32.mrf.mxu0
      %v3406 = vadd.f32 0.0, %v3405
      %v3407 = vpop.f32.mrf.mxu0
      %3408 = vdwg.mxu0
      %3409 = vmatprep.subr.bf16.mxu0 0
      %3410 = vmatpush1.bf16.msra.mxu0 %v3127
      %3411 = vmatprep.subr.bf16.mxu0 0
      %3412 = vmatpush1.bf16.msra.mxu0 %v3126
      %3413 = vmatprep.subr.bf16.mxu0 0
      %3414 = vmatpush1.bf16.msra.mxu0 %v3125
      %3415 = vmatprep.subr.bf16.mxu0 0
      %3416 = vmatpush1.bf16.msra.mxu0 %v3124
      %3417 = vmatprep.subr.bf16.mxu0 0
      %3418 = vmatpush1.bf16.msra.mxu0 %v3123
      %3419 = vmatprep.subr.bf16.mxu0 0
      %3420 = vmatpush1.bf16.msra.mxu0 %v3122
      %3421 = vmatprep.subr.bf16.mxu0 0
      %3422 = vmatpush1.bf16.msra.mxu0 %v3121
      %3423 = vmatprep.subr.bf16.mxu0 0
      %3424 = vmatpush1.bf16.msra.mxu0 %v3120
      %3425 = vmatprep.subr.bf16.mxu0 0
      %3426 = vmatpush2.bf16.msra.mxu0 %v3135
      %3427 = vmatprep.subr.bf16.mxu0 0
      %3428 = vmatpush2.bf16.msra.mxu0 %v3134
      %3429 = vmatprep.subr.bf16.mxu0 0
      %3430 = vmatpush2.bf16.msra.mxu0 %v3133
      %3431 = vmatprep.subr.bf16.mxu0 0
      %3432 = vmatpush2.bf16.msra.mxu0 %v3132
      %3433 = vmatprep.subr.bf16.mxu0 0
      %3434 = vmatpush2.bf16.msra.mxu0 %v3131
      %3435 = vmatprep.subr.bf16.mxu0 0
      %3436 = vmatpush2.bf16.msra.mxu0 %v3130
      %3437 = vmatprep.subr.bf16.mxu0 0
      %3438 = vmatpush2.bf16.msra.mxu0 %v3129
      %3439 = vmatprep.subr.bf16.mxu0 0
      %3440 = vmatpush2.bf16.msra.mxu0 %v3128
      %3441 = vmatprep.mubr.bf16.mxu0 %v2304
      %3442 = vmatmul.mubr.bf16.gmra.mxu0 %v2224
      %v3443 = vpop.f32.mrf.mxu0
      %v3444 = vadd.f32 %v3283, %v3443
      %v3445 = vpop.f32.mrf.mxu0
      %v3446 = vpop.f32.mrf.mxu0
      %v3447 = vadd.f32 %v3286, %v3446
      %v3448 = vpop.f32.mrf.mxu0
      %3449 = vmatprep.mubr.bf16.mxu0 %v2305
      %3450 = vmatmul.mubr.bf16.gmra.mxu0 %v2225
      %v3451 = vpop.f32.mrf.mxu0
      %v3452 = vadd.f32 %v3291, %v3451
      %v3453 = vpop.f32.mrf.mxu0
      %v3454 = vpop.f32.mrf.mxu0
      %v3455 = vadd.f32 %v3294, %v3454
      %v3456 = vpop.f32.mrf.mxu0
      %3457 = vmatprep.mubr.bf16.mxu0 %v2306
      %3458 = vmatmul.mubr.bf16.gmra.mxu0 %v2226
      %v3459 = vpop.f32.mrf.mxu0
      %v3460 = vadd.f32 %v3299, %v3459
      %v3461 = vpop.f32.mrf.mxu0
      %v3462 = vpop.f32.mrf.mxu0
      %v3463 = vadd.f32 %v3302, %v3462
      %v3464 = vpop.f32.mrf.mxu0
      %3465 = vmatprep.mubr.bf16.mxu0 %v2307
      %3466 = vmatmul.mubr.bf16.gmra.mxu0 %v2227
      %v3467 = vpop.f32.mrf.mxu0
      %v3468 = vadd.f32 %v3307, %v3467
      %v3469 = vpop.f32.mrf.mxu0
      %v3470 = vpop.f32.mrf.mxu0
      %v3471 = vadd.f32 %v3310, %v3470
      %v3472 = vpop.f32.mrf.mxu0
      %3473 = vmatprep.mubr.bf16.mxu0 %v2308
      %3474 = vmatmul.mubr.bf16.gmra.mxu0 %v2228
      %v3475 = vpop.f32.mrf.mxu0
      %v3476 = vadd.f32 %v3315, %v3475
      %v3477 = vpop.f32.mrf.mxu0
      %v3478 = vpop.f32.mrf.mxu0
      %v3479 = vadd.f32 %v3318, %v3478
      %v3480 = vpop.f32.mrf.mxu0
      %3481 = vmatprep.mubr.bf16.mxu0 %v2309
      %3482 = vmatmul.mubr.bf16.gmra.mxu0 %v2229
      %v3483 = vpop.f32.mrf.mxu0
      %v3484 = vadd.f32 %v3323, %v3483
      %v3485 = vpop.f32.mrf.mxu0
      %v3486 = vpop.f32.mrf.mxu0
      %v3487 = vadd.f32 %v3326, %v3486
      %v3488 = vpop.f32.mrf.mxu0
      %3489 = vmatprep.mubr.bf16.mxu0 %v2310
      %3490 = vmatmul.mubr.bf16.gmra.mxu0 %v2230
      %v3491 = vpop.f32.mrf.mxu0
      %v3492 = vadd.f32 %v3331, %v3491
      %v3493 = vpop.f32.mrf.mxu0
      %v3494 = vpop.f32.mrf.mxu0
      %v3495 = vadd.f32 %v3334, %v3494
      %v3496 = vpop.f32.mrf.mxu0
      %3497 = vmatprep.mubr.bf16.mxu0 %v2311
      %3498 = vmatmul.mubr.bf16.gmra.mxu0 %v2231
      %v3499 = vpop.f32.mrf.mxu0
      %v3500 = vadd.f32 %v3339, %v3499
      %v3501 = vpop.f32.mrf.mxu0
      %v3502 = vpop.f32.mrf.mxu0
      %v3503 = vadd.f32 %v3342, %v3502
      %v3504 = vpop.f32.mrf.mxu0
      %3505 = vmatprep.mubr.bf16.mxu0 %v2312
      %3506 = vmatmul.mubr.bf16.gmra.mxu0 %v2232
      %v3507 = vpop.f32.mrf.mxu0
      %v3508 = vadd.f32 %v3347, %v3507
      %v3509 = vpop.f32.mrf.mxu0
      %v3510 = vpop.f32.mrf.mxu0
      %v3511 = vadd.f32 %v3350, %v3510
      %v3512 = vpop.f32.mrf.mxu0
      %3513 = vmatprep.mubr.bf16.mxu0 %v2313
      %3514 = vmatmul.mubr.bf16.gmra.mxu0 %v2233
      %v3515 = vpop.f32.mrf.mxu0
      %v3516 = vadd.f32 %v3355, %v3515
      %v3517 = vpop.f32.mrf.mxu0
      %v3518 = vpop.f32.mrf.mxu0
      %v3519 = vadd.f32 %v3358, %v3518
      %v3520 = vpop.f32.mrf.mxu0
      %3521 = vmatprep.mubr.bf16.mxu0 %v2314
      %3522 = vmatmul.mubr.bf16.gmra.mxu0 %v2234
      %v3523 = vpop.f32.mrf.mxu0
      %v3524 = vadd.f32 %v3363, %v3523
      %v3525 = vpop.f32.mrf.mxu0
      %v3526 = vpop.f32.mrf.mxu0
      %v3527 = vadd.f32 %v3366, %v3526
      %v3528 = vpop.f32.mrf.mxu0
      %3529 = vmatprep.mubr.bf16.mxu0 %v2315
      %3530 = vmatmul.mubr.bf16.gmra.mxu0 %v2235
      %v3531 = vpop.f32.mrf.mxu0
      %v3532 = vadd.f32 %v3371, %v3531
      %v3533 = vpop.f32.mrf.mxu0
      %v3534 = vpop.f32.mrf.mxu0
      %v3535 = vadd.f32 %v3374, %v3534
      %v3536 = vpop.f32.mrf.mxu0
      %3537 = vmatprep.mubr.bf16.mxu0 %v2316
      %3538 = vmatmul.mubr.bf16.gmra.mxu0 %v2236
      %v3539 = vpop.f32.mrf.mxu0
      %v3540 = vadd.f32 %v3379, %v3539
      %v3541 = vpop.f32.mrf.mxu0
      %v3542 = vpop.f32.mrf.mxu0
      %v3543 = vadd.f32 %v3382, %v3542
      %v3544 = vpop.f32.mrf.mxu0
      %3545 = vmatprep.mubr.bf16.mxu0 %v2317
      %3546 = vmatmul.mubr.bf16.gmra.mxu0 %v2237
      %v3547 = vpop.f32.mrf.mxu0
      %v3548 = vadd.f32 %v3387, %v3547
      %v3549 = vpop.f32.mrf.mxu0
      %v3550 = vpop.f32.mrf.mxu0
      %v3551 = vadd.f32 %v3390, %v3550
      %v3552 = vpop.f32.mrf.mxu0
      %3553 = vmatprep.mubr.bf16.mxu0 %v2318
      %3554 = vmatmul.mubr.bf16.gmra.mxu0 %v2238
      %v3555 = vpop.f32.mrf.mxu0
      %v3556 = vadd.f32 %v3395, %v3555
      %v3557 = vpop.f32.mrf.mxu0
      %v3558 = vpop.f32.mrf.mxu0
      %v3559 = vadd.f32 %v3398, %v3558
      %v3560 = vpop.f32.mrf.mxu0
      %3561 = vmatprep.mubr.bf16.mxu0 %v2319
      %3562 = vmatmul.mubr.bf16.gmra.mxu0 %v2239
      %v3563 = vpop.f32.mrf.mxu0
      %v3564 = vadd.f32 %v3403, %v3563
      %v3565 = vpop.f32.mrf.mxu0
      %v3566 = vpop.f32.mrf.mxu0
      %v3567 = vadd.f32 %v3406, %v3566
      %v3568 = vpop.f32.mrf.mxu0
      %3569 = vdwg.mxu0
      %3570 = vmatprep.subr.bf16.mxu0 0
      %3571 = vmatpush1.bf16.msra.mxu0 %v3143
      %3572 = vmatprep.subr.bf16.mxu0 0
      %3573 = vmatpush1.bf16.msra.mxu0 %v3142
      %3574 = vmatprep.subr.bf16.mxu0 0
      %3575 = vmatpush1.bf16.msra.mxu0 %v3141
      %3576 = vmatprep.subr.bf16.mxu0 0
      %3577 = vmatpush1.bf16.msra.mxu0 %v3140
      %3578 = vmatprep.subr.bf16.mxu0 0
      %3579 = vmatpush1.bf16.msra.mxu0 %v3139
      %3580 = vmatprep.subr.bf16.mxu0 0
      %3581 = vmatpush1.bf16.msra.mxu0 %v3138
      %3582 = vmatprep.subr.bf16.mxu0 0
      %3583 = vmatpush1.bf16.msra.mxu0 %v3137
      %3584 = vmatprep.subr.bf16.mxu0 0
      %3585 = vmatpush1.bf16.msra.mxu0 %v3136
      %3586 = vmatprep.subr.bf16.mxu0 0
      %3587 = vmatpush2.bf16.msra.mxu0 %v3151
      %3588 = vmatprep.subr.bf16.mxu0 0
      %3589 = vmatpush2.bf16.msra.mxu0 %v3150
      %3590 = vmatprep.subr.bf16.mxu0 0
      %3591 = vmatpush2.bf16.msra.mxu0 %v3149
      %3592 = vmatprep.subr.bf16.mxu0 0
      %3593 = vmatpush2.bf16.msra.mxu0 %v3148
      %3594 = vmatprep.subr.bf16.mxu0 0
      %3595 = vmatpush2.bf16.msra.mxu0 %v3147
      %3596 = vmatprep.subr.bf16.mxu0 0
      %3597 = vmatpush2.bf16.msra.mxu0 %v3146
      %3598 = vmatprep.subr.bf16.mxu0 0
      %3599 = vmatpush2.bf16.msra.mxu0 %v3145
      %3600 = vmatprep.subr.bf16.mxu0 0
      %3601 = vmatpush2.bf16.msra.mxu0 %v3144
      %3602 = vmatprep.mubr.bf16.mxu0 %v2432
      %3603 = vmatmul.mubr.bf16.gmra.mxu0 %v2368
      %v3604 = vpop.f32.mrf.mxu0
      %v3605 = vadd.f32 %v3444, %v3604
      %v3606 = vpop.f32.mrf.mxu0
      %v3607 = vpop.f32.mrf.mxu0
      %v3608 = vadd.f32 %v3447, %v3607
      %v3609 = vpop.f32.mrf.mxu0
      %3610 = vmatprep.mubr.bf16.mxu0 %v2433
      %3611 = vmatmul.mubr.bf16.gmra.mxu0 %v2369
      %v3612 = vpop.f32.mrf.mxu0
      %v3613 = vadd.f32 %v3452, %v3612
      %v3614 = vpop.f32.mrf.mxu0
      %v3615 = vpop.f32.mrf.mxu0
      %v3616 = vadd.f32 %v3455, %v3615
      %v3617 = vpop.f32.mrf.mxu0
      %3618 = vmatprep.mubr.bf16.mxu0 %v2434
      %3619 = vmatmul.mubr.bf16.gmra.mxu0 %v2370
      %v3620 = vpop.f32.mrf.mxu0
      %v3621 = vadd.f32 %v3460, %v3620
      %v3622 = vpop.f32.mrf.mxu0
      %v3623 = vpop.f32.mrf.mxu0
      %v3624 = vadd.f32 %v3463, %v3623
      %v3625 = vpop.f32.mrf.mxu0
      %3626 = vmatprep.mubr.bf16.mxu0 %v2435
      %3627 = vmatmul.mubr.bf16.gmra.mxu0 %v2371
      %v3628 = vpop.f32.mrf.mxu0
      %v3629 = vadd.f32 %v3468, %v3628
      %v3630 = vpop.f32.mrf.mxu0
      %v3631 = vpop.f32.mrf.mxu0
      %v3632 = vadd.f32 %v3471, %v3631
      %v3633 = vpop.f32.mrf.mxu0
      %3634 = vmatprep.mubr.bf16.mxu0 %v2436
      %3635 = vmatmul.mubr.bf16.gmra.mxu0 %v2372
      %v3636 = vpop.f32.mrf.mxu0
      %v3637 = vadd.f32 %v3476, %v3636
      %v3638 = vpop.f32.mrf.mxu0
      %v3639 = vpop.f32.mrf.mxu0
      %v3640 = vadd.f32 %v3479, %v3639
      %v3641 = vpop.f32.mrf.mxu0
      %3642 = vmatprep.mubr.bf16.mxu0 %v2437
      %3643 = vmatmul.mubr.bf16.gmra.mxu0 %v2373
      %v3644 = vpop.f32.mrf.mxu0
      %v3645 = vadd.f32 %v3484, %v3644
      %v3646 = vpop.f32.mrf.mxu0
      %v3647 = vpop.f32.mrf.mxu0
      %v3648 = vadd.f32 %v3487, %v3647
      %v3649 = vpop.f32.mrf.mxu0
      %3650 = vmatprep.mubr.bf16.mxu0 %v2438
      %3651 = vmatmul.mubr.bf16.gmra.mxu0 %v2374
      %v3652 = vpop.f32.mrf.mxu0
      %v3653 = vadd.f32 %v3492, %v3652
      %v3654 = vpop.f32.mrf.mxu0
      %v3655 = vpop.f32.mrf.mxu0
      %v3656 = vadd.f32 %v3495, %v3655
      %v3657 = vpop.f32.mrf.mxu0
      %3658 = vmatprep.mubr.bf16.mxu0 %v2439
      %3659 = vmatmul.mubr.bf16.gmra.mxu0 %v2375
      %v3660 = vpop.f32.mrf.mxu0
      %v3661 = vadd.f32 %v3500, %v3660
      %v3662 = vpop.f32.mrf.mxu0
      %v3663 = vpop.f32.mrf.mxu0
      %v3664 = vadd.f32 %v3503, %v3663
      %v3665 = vpop.f32.mrf.mxu0
      %3666 = vmatprep.mubr.bf16.mxu0 %v2440
      %3667 = vmatmul.mubr.bf16.gmra.mxu0 %v2376
      %v3668 = vpop.f32.mrf.mxu0
      %v3669 = vadd.f32 %v3508, %v3668
      %v3670 = vpop.f32.mrf.mxu0
      %v3671 = vpop.f32.mrf.mxu0
      %v3672 = vadd.f32 %v3511, %v3671
      %v3673 = vpop.f32.mrf.mxu0
      %3674 = vmatprep.mubr.bf16.mxu0 %v2441
      %3675 = vmatmul.mubr.bf16.gmra.mxu0 %v2377
      %v3676 = vpop.f32.mrf.mxu0
      %v3677 = vadd.f32 %v3516, %v3676
      %v3678 = vpop.f32.mrf.mxu0
      %v3679 = vpop.f32.mrf.mxu0
      %v3680 = vadd.f32 %v3519, %v3679
      %v3681 = vpop.f32.mrf.mxu0
      %3682 = vmatprep.mubr.bf16.mxu0 %v2442
      %3683 = vmatmul.mubr.bf16.gmra.mxu0 %v2378
      %v3684 = vpop.f32.mrf.mxu0
      %v3685 = vadd.f32 %v3524, %v3684
      %v3686 = vpop.f32.mrf.mxu0
      %v3687 = vpop.f32.mrf.mxu0
      %v3688 = vadd.f32 %v3527, %v3687
      %v3689 = vpop.f32.mrf.mxu0
      %3690 = vmatprep.mubr.bf16.mxu0 %v2443
      %3691 = vmatmul.mubr.bf16.gmra.mxu0 %v2379
      %v3692 = vpop.f32.mrf.mxu0
      %v3693 = vadd.f32 %v3532, %v3692
      %v3694 = vpop.f32.mrf.mxu0
      %v3695 = vpop.f32.mrf.mxu0
      %v3696 = vadd.f32 %v3535, %v3695
      %v3697 = vpop.f32.mrf.mxu0
      %3698 = vmatprep.mubr.bf16.mxu0 %v2444
      %3699 = vmatmul.mubr.bf16.gmra.mxu0 %v2380
      %v3700 = vpop.f32.mrf.mxu0
      %v3701 = vadd.f32 %v3540, %v3700
      %v3702 = vpop.f32.mrf.mxu0
      %v3703 = vpop.f32.mrf.mxu0
      %v3704 = vadd.f32 %v3543, %v3703
      %v3705 = vpop.f32.mrf.mxu0
      %3706 = vmatprep.mubr.bf16.mxu0 %v2445
      %3707 = vmatmul.mubr.bf16.gmra.mxu0 %v2381
      %v3708 = vpop.f32.mrf.mxu0
      %v3709 = vadd.f32 %v3548, %v3708
      %v3710 = vpop.f32.mrf.mxu0
      %v3711 = vpop.f32.mrf.mxu0
      %v3712 = vadd.f32 %v3551, %v3711
      %v3713 = vpop.f32.mrf.mxu0
      %3714 = vmatprep.mubr.bf16.mxu0 %v2446
      %3715 = vmatmul.mubr.bf16.gmra.mxu0 %v2382
      %v3716 = vpop.f32.mrf.mxu0
      %v3717 = vadd.f32 %v3556, %v3716
      %v3718 = vpop.f32.mrf.mxu0
      %v3719 = vpop.f32.mrf.mxu0
      %v3720 = vadd.f32 %v3559, %v3719
      %v3721 = vpop.f32.mrf.mxu0
      %3722 = vmatprep.mubr.bf16.mxu0 %v2447
      %3723 = vmatmul.mubr.bf16.gmra.mxu0 %v2383
      %v3724 = vpop.f32.mrf.mxu0
      %v3725 = vadd.f32 %v3564, %v3724
      %v3726 = vpop.f32.mrf.mxu0
      %v3727 = vpop.f32.mrf.mxu0
      %v3728 = vadd.f32 %v3567, %v3727
      %v3729 = vpop.f32.mrf.mxu0
      %3730 = vdwg.mxu0
      %3731 = vmatprep.subr.bf16.mxu0 0
      %3732 = vmatpush1.bf16.msra.mxu0 %v3159
      %3733 = vmatprep.subr.bf16.mxu0 0
      %3734 = vmatpush1.bf16.msra.mxu0 %v3158
      %3735 = vmatprep.subr.bf16.mxu0 0
      %3736 = vmatpush1.bf16.msra.mxu0 %v3157
      %3737 = vmatprep.subr.bf16.mxu0 0
      %3738 = vmatpush1.bf16.msra.mxu0 %v3156
      %3739 = vmatprep.subr.bf16.mxu0 0
      %3740 = vmatpush1.bf16.msra.mxu0 %v3155
      %3741 = vmatprep.subr.bf16.mxu0 0
      %3742 = vmatpush1.bf16.msra.mxu0 %v3154
      %3743 = vmatprep.subr.bf16.mxu0 0
      %3744 = vmatpush1.bf16.msra.mxu0 %v3153
      %3745 = vmatprep.subr.bf16.mxu0 0
      %3746 = vmatpush1.bf16.msra.mxu0 %v3152
      %3747 = vmatprep.subr.bf16.mxu0 0
      %3748 = vmatpush2.bf16.msra.mxu0 %v3167
      %3749 = vmatprep.subr.bf16.mxu0 0
      %3750 = vmatpush2.bf16.msra.mxu0 %v3166
      %3751 = vmatprep.subr.bf16.mxu0 0
      %3752 = vmatpush2.bf16.msra.mxu0 %v3165
      %3753 = vmatprep.subr.bf16.mxu0 0
      %3754 = vmatpush2.bf16.msra.mxu0 %v3164
      %3755 = vmatprep.subr.bf16.mxu0 0
      %3756 = vmatpush2.bf16.msra.mxu0 %v3163
      %3757 = vmatprep.subr.bf16.mxu0 0
      %3758 = vmatpush2.bf16.msra.mxu0 %v3162
      %3759 = vmatprep.subr.bf16.mxu0 0
      %3760 = vmatpush2.bf16.msra.mxu0 %v3161
      %3761 = vmatprep.subr.bf16.mxu0 0
      %3762 = vmatpush2.bf16.msra.mxu0 %v3160
      %3763 = vmatprep.mubr.bf16.mxu0 %v2576
      %3764 = vmatmul.mubr.bf16.gmra.mxu0 %v2512
      %v3765 = vpop.f32.mrf.mxu0
      %v3766 = vadd.f32 %v3605, %v3765
      %v3767 = vpop.f32.mrf.mxu0
      %v3768 = vpop.f32.mrf.mxu0
      %v3769 = vadd.f32 %v3608, %v3768
      %v3770 = vpop.f32.mrf.mxu0
      %3771 = vmatprep.mubr.bf16.mxu0 %v2577
      %3772 = vmatmul.mubr.bf16.gmra.mxu0 %v2513
      %v3773 = vpop.f32.mrf.mxu0
      %v3774 = vadd.f32 %v3613, %v3773
      %v3775 = vpop.f32.mrf.mxu0
      %v3776 = vpop.f32.mrf.mxu0
      %v3777 = vadd.f32 %v3616, %v3776
      %v3778 = vpop.f32.mrf.mxu0
      %3779 = vmatprep.mubr.bf16.mxu0 %v2578
      %3780 = vmatmul.mubr.bf16.gmra.mxu0 %v2514
      %v3781 = vpop.f32.mrf.mxu0
      %v3782 = vadd.f32 %v3621, %v3781
      %v3783 = vpop.f32.mrf.mxu0
      %v3784 = vpop.f32.mrf.mxu0
      %v3785 = vadd.f32 %v3624, %v3784
      %v3786 = vpop.f32.mrf.mxu0
      %3787 = vmatprep.mubr.bf16.mxu0 %v2579
      %3788 = vmatmul.mubr.bf16.gmra.mxu0 %v2515
      %v3789 = vpop.f32.mrf.mxu0
      %v3790 = vadd.f32 %v3629, %v3789
      %v3791 = vpop.f32.mrf.mxu0
      %v3792 = vpop.f32.mrf.mxu0
      %v3793 = vadd.f32 %v3632, %v3792
      %v3794 = vpop.f32.mrf.mxu0
      %3795 = vmatprep.mubr.bf16.mxu0 %v2580
      %3796 = vmatmul.mubr.bf16.gmra.mxu0 %v2516
      %v3797 = vpop.f32.mrf.mxu0
      %v3798 = vadd.f32 %v3637, %v3797
      %v3799 = vpop.f32.mrf.mxu0
      %v3800 = vpop.f32.mrf.mxu0
      %v3801 = vadd.f32 %v3640, %v3800
      %v3802 = vpop.f32.mrf.mxu0
      %3803 = vmatprep.mubr.bf16.mxu0 %v2581
      %3804 = vmatmul.mubr.bf16.gmra.mxu0 %v2517
      %v3805 = vpop.f32.mrf.mxu0
      %v3806 = vadd.f32 %v3645, %v3805
      %v3807 = vpop.f32.mrf.mxu0
      %v3808 = vpop.f32.mrf.mxu0
      %v3809 = vadd.f32 %v3648, %v3808
      %v3810 = vpop.f32.mrf.mxu0
      %3811 = vmatprep.mubr.bf16.mxu0 %v2582
      %3812 = vmatmul.mubr.bf16.gmra.mxu0 %v2518
      %v3813 = vpop.f32.mrf.mxu0
      %v3814 = vadd.f32 %v3653, %v3813
      %v3815 = vpop.f32.mrf.mxu0
      %v3816 = vpop.f32.mrf.mxu0
      %v3817 = vadd.f32 %v3656, %v3816
      %v3818 = vpop.f32.mrf.mxu0
      %3819 = vmatprep.mubr.bf16.mxu0 %v2583
      %3820 = vmatmul.mubr.bf16.gmra.mxu0 %v2519
      %v3821 = vpop.f32.mrf.mxu0
      %v3822 = vadd.f32 %v3661, %v3821
      %v3823 = vpop.f32.mrf.mxu0
      %v3824 = vpop.f32.mrf.mxu0
      %v3825 = vadd.f32 %v3664, %v3824
      %v3826 = vpop.f32.mrf.mxu0
      %3827 = vmatprep.mubr.bf16.mxu0 %v2584
      %3828 = vmatmul.mubr.bf16.gmra.mxu0 %v2520
      %v3829 = vpop.f32.mrf.mxu0
      %v3830 = vadd.f32 %v3669, %v3829
      %v3831 = vpop.f32.mrf.mxu0
      %v3832 = vpop.f32.mrf.mxu0
      %v3833 = vadd.f32 %v3672, %v3832
      %v3834 = vpop.f32.mrf.mxu0
      %3835 = vmatprep.mubr.bf16.mxu0 %v2585
      %3836 = vmatmul.mubr.bf16.gmra.mxu0 %v2521
      %v3837 = vpop.f32.mrf.mxu0
      %v3838 = vadd.f32 %v3677, %v3837
      %v3839 = vpop.f32.mrf.mxu0
      %v3840 = vpop.f32.mrf.mxu0
      %v3841 = vadd.f32 %v3680, %v3840
      %v3842 = vpop.f32.mrf.mxu0
      %3843 = vmatprep.mubr.bf16.mxu0 %v2586
      %3844 = vmatmul.mubr.bf16.gmra.mxu0 %v2522
      %v3845 = vpop.f32.mrf.mxu0
      %v3846 = vadd.f32 %v3685, %v3845
      %v3847 = vpop.f32.mrf.mxu0
      %v3848 = vpop.f32.mrf.mxu0
      %v3849 = vadd.f32 %v3688, %v3848
      %v3850 = vpop.f32.mrf.mxu0
      %3851 = vmatprep.mubr.bf16.mxu0 %v2587
      %3852 = vmatmul.mubr.bf16.gmra.mxu0 %v2523
      %v3853 = vpop.f32.mrf.mxu0
      %v3854 = vadd.f32 %v3693, %v3853
      %v3855 = vpop.f32.mrf.mxu0
      %v3856 = vpop.f32.mrf.mxu0
      %v3857 = vadd.f32 %v3696, %v3856
      %v3858 = vpop.f32.mrf.mxu0
      %3859 = vmatprep.mubr.bf16.mxu0 %v2588
      %3860 = vmatmul.mubr.bf16.gmra.mxu0 %v2524
      %v3861 = vpop.f32.mrf.mxu0
      %v3862 = vadd.f32 %v3701, %v3861
      %v3863 = vpop.f32.mrf.mxu0
      %v3864 = vpop.f32.mrf.mxu0
      %v3865 = vadd.f32 %v3704, %v3864
      %v3866 = vpop.f32.mrf.mxu0
      %3867 = vmatprep.mubr.bf16.mxu0 %v2589
      %3868 = vmatmul.mubr.bf16.gmra.mxu0 %v2525
      %v3869 = vpop.f32.mrf.mxu0
      %v3870 = vadd.f32 %v3709, %v3869
      %v3871 = vpop.f32.mrf.mxu0
      %v3872 = vpop.f32.mrf.mxu0
      %v3873 = vadd.f32 %v3712, %v3872
      %v3874 = vpop.f32.mrf.mxu0
      %3875 = vmatprep.mubr.bf16.mxu0 %v2590
      %3876 = vmatmul.mubr.bf16.gmra.mxu0 %v2526
      %v3877 = vpop.f32.mrf.mxu0
      %v3878 = vadd.f32 %v3717, %v3877
      %v3879 = vpop.f32.mrf.mxu0
      %v3880 = vpop.f32.mrf.mxu0
      %v3881 = vadd.f32 %v3720, %v3880
      %v3882 = vpop.f32.mrf.mxu0
      %3883 = vmatprep.mubr.bf16.mxu0 %v2591
      %3884 = vmatmul.mubr.bf16.gmra.mxu0 %v2527
      %v3885 = vpop.f32.mrf.mxu0
      %v3886 = vadd.f32 %v3725, %v3885
      %v3887 = vpop.f32.mrf.mxu0
      %v3888 = vpop.f32.mrf.mxu0
      %v3889 = vadd.f32 %v3728, %v3888
      %v3890 = vpop.f32.mrf.mxu0
      %3891 = vdwg.mxu0
      %3892 = vmatprep.subr.bf16.mxu0 0
      %3893 = vmatpush1.bf16.msra.mxu0 %v3175
      %3894 = vmatprep.subr.bf16.mxu0 0
      %3895 = vmatpush1.bf16.msra.mxu0 %v3174
      %3896 = vmatprep.subr.bf16.mxu0 0
      %3897 = vmatpush1.bf16.msra.mxu0 %v3173
      %3898 = vmatprep.subr.bf16.mxu0 0
      %3899 = vmatpush1.bf16.msra.mxu0 %v3172
      %3900 = vmatprep.subr.bf16.mxu0 0
      %3901 = vmatpush1.bf16.msra.mxu0 %v3171
      %3902 = vmatprep.subr.bf16.mxu0 0
      %3903 = vmatpush1.bf16.msra.mxu0 %v3170
      %3904 = vmatprep.subr.bf16.mxu0 0
      %3905 = vmatpush1.bf16.msra.mxu0 %v3169
      %3906 = vmatprep.subr.bf16.mxu0 0
      %3907 = vmatpush1.bf16.msra.mxu0 %v3168
      %3908 = vmatprep.subr.bf16.mxu0 0
      %3909 = vmatpush2.bf16.msra.mxu0 0
      %3910 = vmatprep.subr.bf16.mxu0 0
      %3911 = vmatpush2.bf16.msra.mxu0 0
      %3912 = vmatprep.subr.bf16.mxu0 0
      %3913 = vmatpush2.bf16.msra.mxu0 0
      %3914 = vmatprep.subr.bf16.mxu0 0
      %3915 = vmatpush2.bf16.msra.mxu0 0
      %3916 = vmatprep.subr.bf16.mxu0 0
      %3917 = vmatpush2.bf16.msra.mxu0 0
      %3918 = vmatprep.subr.bf16.mxu0 0
      %3919 = vmatpush2.bf16.msra.mxu0 0
      %3920 = vmatprep.subr.bf16.mxu0 0
      %3921 = vmatpush2.bf16.msra.mxu0 0
      %3922 = vmatprep.subr.bf16.mxu0 0
      %3923 = vmatpush2.bf16.msra.mxu0 0
      %3924 = vmatprep.mubr.bf16.mxu0 0
      %3925 = vmatmul.mubr.bf16.gmra.mxu0 %v2640
      %v3926 = vpop.f32.mrf.mxu0
      %v3927 = vadd.f32 %v3766, %v3926
      %v3928 = vpop.f32.mrf.mxu0
      %v3929 = vpop.f32.mrf.mxu0
      %v3930 = vadd.f32 %v3769, %v3929
      %v3931 = vpop.f32.mrf.mxu0
      %3932 = vmatprep.mubr.bf16.mxu0 0
      %3933 = vmatmul.mubr.bf16.gmra.mxu0 %v2641
      %v3934 = vpop.f32.mrf.mxu0
      %v3935 = vadd.f32 %v3774, %v3934
      %v3936 = vpop.f32.mrf.mxu0
      %v3937 = vpop.f32.mrf.mxu0
      %v3938 = vadd.f32 %v3777, %v3937
      %v3939 = vpop.f32.mrf.mxu0
      %3940 = vmatprep.mubr.bf16.mxu0 0
      %3941 = vmatmul.mubr.bf16.gmra.mxu0 %v2642
      %v3942 = vpop.f32.mrf.mxu0
      %v3943 = vadd.f32 %v3782, %v3942
      %v3944 = vpop.f32.mrf.mxu0
      %v3945 = vpop.f32.mrf.mxu0
      %v3946 = vadd.f32 %v3785, %v3945
      %v3947 = vpop.f32.mrf.mxu0
      %3948 = vmatprep.mubr.bf16.mxu0 0
      %3949 = vmatmul.mubr.bf16.gmra.mxu0 %v2643
      %v3950 = vpop.f32.mrf.mxu0
      %v3951 = vadd.f32 %v3790, %v3950
      %v3952 = vpop.f32.mrf.mxu0
      %v3953 = vpop.f32.mrf.mxu0
      %v3954 = vadd.f32 %v3793, %v3953
      %v3955 = vpop.f32.mrf.mxu0
      %3956 = vmatprep.mubr.bf16.mxu0 0
      %3957 = vmatmul.mubr.bf16.gmra.mxu0 %v2644
      %v3958 = vpop.f32.mrf.mxu0
      %v3959 = vadd.f32 %v3798, %v3958
      %v3960 = vpop.f32.mrf.mxu0
      %v3961 = vpop.f32.mrf.mxu0
      %v3962 = vadd.f32 %v3801, %v3961
      %v3963 = vpop.f32.mrf.mxu0
      %3964 = vmatprep.mubr.bf16.mxu0 0
      %3965 = vmatmul.mubr.bf16.gmra.mxu0 %v2645
      %v3966 = vpop.f32.mrf.mxu0
      %v3967 = vadd.f32 %v3806, %v3966
      %v3968 = vpop.f32.mrf.mxu0
      %v3969 = vpop.f32.mrf.mxu0
      %v3970 = vadd.f32 %v3809, %v3969
      %v3971 = vpop.f32.mrf.mxu0
      %3972 = vmatprep.mubr.bf16.mxu0 0
      %3973 = vmatmul.mubr.bf16.gmra.mxu0 %v2646
      %v3974 = vpop.f32.mrf.mxu0
      %v3975 = vadd.f32 %v3814, %v3974
      %v3976 = vpop.f32.mrf.mxu0
      %v3977 = vpop.f32.mrf.mxu0
      %v3978 = vadd.f32 %v3817, %v3977
      %v3979 = vpop.f32.mrf.mxu0
      %3980 = vmatprep.mubr.bf16.mxu0 0
      %3981 = vmatmul.mubr.bf16.gmra.mxu0 %v2647
      %v3982 = vpop.f32.mrf.mxu0
      %v3983 = vadd.f32 %v3822, %v3982
      %v3984 = vpop.f32.mrf.mxu0
      %v3985 = vpop.f32.mrf.mxu0
      %v3986 = vadd.f32 %v3825, %v3985
      %v3987 = vpop.f32.mrf.mxu0
      %3988 = vmatprep.mubr.bf16.mxu0 0
      %3989 = vmatmul.mubr.bf16.gmra.mxu0 %v2648
      %v3990 = vpop.f32.mrf.mxu0
      %v3991 = vadd.f32 %v3830, %v3990
      %v3992 = vpop.f32.mrf.mxu0
      %v3993 = vpop.f32.mrf.mxu0
      %v3994 = vadd.f32 %v3833, %v3993
      %v3995 = vpop.f32.mrf.mxu0
      %3996 = vmatprep.mubr.bf16.mxu0 0
      %3997 = vmatmul.mubr.bf16.gmra.mxu0 %v2649
      %v3998 = vpop.f32.mrf.mxu0
      %v3999 = vadd.f32 %v3838, %v3998
      %v4000 = vpop.f32.mrf.mxu0
      %v4001 = vpop.f32.mrf.mxu0
      %v4002 = vadd.f32 %v3841, %v4001
      %v4003 = vpop.f32.mrf.mxu0
      %4004 = vmatprep.mubr.bf16.mxu0 0
      %4005 = vmatmul.mubr.bf16.gmra.mxu0 %v2650
      %v4006 = vpop.f32.mrf.mxu0
      %v4007 = vadd.f32 %v3846, %v4006
      %v4008 = vpop.f32.mrf.mxu0
      %v4009 = vpop.f32.mrf.mxu0
      %v4010 = vadd.f32 %v3849, %v4009
      %v4011 = vpop.f32.mrf.mxu0
      %4012 = vmatprep.mubr.bf16.mxu0 0
      %4013 = vmatmul.mubr.bf16.gmra.mxu0 %v2651
      %v4014 = vpop.f32.mrf.mxu0
      %v4015 = vadd.f32 %v3854, %v4014
      %v4016 = vpop.f32.mrf.mxu0
      %v4017 = vpop.f32.mrf.mxu0
      %v4018 = vadd.f32 %v3857, %v4017
      %v4019 = vpop.f32.mrf.mxu0
      %4020 = vmatprep.mubr.bf16.mxu0 0
      %4021 = vmatmul.mubr.bf16.gmra.mxu0 %v2652
      %v4022 = vpop.f32.mrf.mxu0
      %v4023 = vadd.f32 %v3862, %v4022
      %v4024 = vpop.f32.mrf.mxu0
      %v4025 = vpop.f32.mrf.mxu0
      %v4026 = vadd.f32 %v3865, %v4025
      %v4027 = vpop.f32.mrf.mxu0
      %4028 = vmatprep.mubr.bf16.mxu0 0
      %4029 = vmatmul.mubr.bf16.gmra.mxu0 %v2653
      %v4030 = vpop.f32.mrf.mxu0
      %v4031 = vadd.f32 %v3870, %v4030
      %v4032 = vpop.f32.mrf.mxu0
      %v4033 = vpop.f32.mrf.mxu0
      %v4034 = vadd.f32 %v3873, %v4033
      %v4035 = vpop.f32.mrf.mxu0
      %4036 = vmatprep.mubr.bf16.mxu0 0
      %4037 = vmatmul.mubr.bf16.gmra.mxu0 %v2654
      %v4038 = vpop.f32.mrf.mxu0
      %v4039 = vadd.f32 %v3878, %v4038
      %v4040 = vpop.f32.mrf.mxu0
      %v4041 = vpop.f32.mrf.mxu0
      %v4042 = vadd.f32 %v3881, %v4041
      %v4043 = vpop.f32.mrf.mxu0
      %4044 = vmatprep.mubr.bf16.mxu0 0
      %4045 = vmatmul.mubr.bf16.gmra.mxu0 %v2655
      %v4046 = vpop.f32.mrf.mxu0
      %v4047 = vadd.f32 %v3886, %v4046
      %v4048 = vpop.f32.mrf.mxu0
      %v4049 = vpop.f32.mrf.mxu0
      %v4050 = vadd.f32 %v3889, %v4049
      %v4051 = vpop.f32.mrf.mxu0
      %4052 = vdwg.mxu0
      %4053 = vst [vmem:[%s208] sm:$0xff] %v3927
      %4054 = vst [vmem:[%s208 + $0x8] sm:$0xff] %v3930
      %4055 = vst [vmem:[%s208 + $0x10] sm:$0xff] %v3935
      %4056 = vst [vmem:[%s208 + $0x18] sm:$0xff] %v3938
      %4057 = vst [vmem:[%s208 + $0x20] sm:$0xff] %v3943
      %4058 = vst [vmem:[%s208 + $0x28] sm:$0xff] %v3946
      %4059 = vst [vmem:[%s208 + $0x30] sm:$0xff] %v3951
      %4060 = vst [vmem:[%s208 + $0x38] sm:$0xff] %v3954
      %4061 = vst [vmem:[%s208 + $0x40] sm:$0xff] %v3959
      %4062 = vst [vmem:[%s208 + $0x48] sm:$0xff] %v3962
      %4063 = vst [vmem:[%s208 + $0x50] sm:$0xff] %v3967
      %4064 = vst [vmem:[%s208 + $0x58] sm:$0xff] %v3970
      %4065 = vst [vmem:[%s208 + $0x60] sm:$0xff] %v3975
      %4066 = vst [vmem:[%s208 + $0x68] sm:$0xff] %v3978
      %4067 = vst [vmem:[%s208 + $0x70] sm:$0xff] %v3983
      %4068 = vst [vmem:[%s208 + $0x78] sm:$0xff] %v3986
      %4069 = vst [vmem:[%s208 + $0x80] sm:$0xff] %v3991
      %4070 = vst [vmem:[%s208 + $0x88] sm:$0xff] %v3994
      %4071 = vst [vmem:[%s208 + $0x90] sm:$0xff] %v3999
      %4072 = vst [vmem:[%s208 + $0x98] sm:$0xff] %v4002
      %4073 = vst [vmem:[%s208 + $0xa0] sm:$0xff] %v4007
      %4074 = vst [vmem:[%s208 + $0xa8] sm:$0xff] %v4010
      %4075 = vst [vmem:[%s208 + $0xb0] sm:$0xff] %v4015
      %4076 = vst [vmem:[%s208 + $0xb8] sm:$0xff] %v4018
      %4077 = vst [vmem:[%s208 + $0xc0] sm:$0xff] %v4023
      %4078 = vst [vmem:[%s208 + $0xc8] sm:$0xff] %v4026
      %4079 = vst [vmem:[%s208 + $0xd0] sm:$0xff] %v4031
      %4080 = vst [vmem:[%s208 + $0xd8] sm:$0xff] %v4034
      %4081 = vst [vmem:[%s208 + $0xe0] sm:$0xff] %v4039
      %4082 = vst [vmem:[%s208 + $0xe8] sm:$0xff] %v4042
      %4083 = vst [vmem:[%s208 + $0xf0] sm:$0xff] %v4047
      %4084 = vst [vmem:[%s208 + $0xf8] sm:$0xff] %v4050
      %v4085 = vadd.f32 %v3927, %v3930
      %v4086 = vadd.f32 %v4085, %v3935
      %v4087 = vadd.f32 %v4086, %v3938
      %v4088 = vadd.f32 %v4087, %v3943
      %v4089 = vadd.f32 %v4088, %v3946
      %v4090 = vadd.f32 %v4089, %v3951
      %v4091 = vadd.f32 %v4090, %v3954
      %v4092 = vadd.f32 %v4091, %v3959
      %v4093 = vadd.f32 %v4092, %v3962
      %v4094 = vadd.f32 %v4093, %v3967
      %v4095 = vadd.f32 %v4094, %v3970
      %v4096 = vadd.f32 %v4095, %v3975
      %v4097 = vadd.f32 %v4096, %v3978
      %v4098 = vadd.f32 %v4097, %v3983
      %v4099 = vadd.f32 %v4098, %v3986
      %v4100 = vadd.f32 %v4099, %v3991
      %v4101 = vadd.f32 %v4100, %v3994
      %v4102 = vadd.f32 %v4101, %v3999
      %v4103 = vadd.f32 %v4102, %v4002
      %v4104 = vadd.f32 %v4103, %v4007
      %v4105 = vadd.f32 %v4104, %v4010
      %v4106 = vadd.f32 %v4105, %v4015
      %v4107 = vadd.f32 %v4106, %v4018
      %v4108 = vadd.f32 %v4107, %v4023
      %v4109 = vadd.f32 %v4108, %v4026
      %v4110 = vadd.f32 %v4109, %v4031
      %v4111 = vadd.f32 %v4110, %v4034
      %v4112 = vadd.f32 %v4111, %v4039
      %v4113 = vadd.f32 %v4112, %v4042
      %v4114 = vadd.f32 %v4113, %v4047
      %v4115 = vadd.f32 %v4114, %v4050
      %v4116 = vrot.slane %v4115, 4
      %v4117 = vadd.f32 %v4115, %v4116
      %v4118 = vrot.slane %v4117, 2
      %v4119 = vadd.f32 %v4117, %v4118
      %v4120 = vrot.slane %v4119, 1
      %v4121 = vadd.f32 %v4119, %v4120
      %4122 = vst [vmem:[%s211] sm:$0x1] %v4121
      %v4123 = vmul.f32 %v3927, %v3927
      %v4124 = vmul.f32 %v3930, %v3930
      %v4125 = vmul.f32 %v3935, %v3935
      %v4126 = vmul.f32 %v3938, %v3938
      %v4127 = vmul.f32 %v3943, %v3943
      %v4128 = vmul.f32 %v3946, %v3946
      %v4129 = vmul.f32 %v3951, %v3951
      %v4130 = vmul.f32 %v3954, %v3954
      %v4131 = vmul.f32 %v3959, %v3959
      %v4132 = vmul.f32 %v3962, %v3962
      %v4133 = vmul.f32 %v3967, %v3967
      %v4134 = vmul.f32 %v3970, %v3970
      %v4135 = vmul.f32 %v3975, %v3975
      %v4136 = vmul.f32 %v3978, %v3978
      %v4137 = vmul.f32 %v3983, %v3983
      %v4138 = vmul.f32 %v3986, %v3986
      %v4139 = vmul.f32 %v3991, %v3991
      %v4140 = vmul.f32 %v3994, %v3994
      %v4141 = vmul.f32 %v3999, %v3999
      %v4142 = vmul.f32 %v4002, %v4002
      %v4143 = vmul.f32 %v4007, %v4007
      %v4144 = vmul.f32 %v4010, %v4010
      %v4145 = vmul.f32 %v4015, %v4015
      %v4146 = vmul.f32 %v4018, %v4018
      %v4147 = vmul.f32 %v4023, %v4023
      %v4148 = vmul.f32 %v4026, %v4026
      %v4149 = vmul.f32 %v4031, %v4031
      %v4150 = vmul.f32 %v4034, %v4034
      %v4151 = vmul.f32 %v4039, %v4039
      %v4152 = vmul.f32 %v4042, %v4042
      %v4153 = vmul.f32 %v4047, %v4047
      %v4154 = vmul.f32 %v4050, %v4050
      %v4155 = vadd.f32 %v4123, %v4124
      %v4156 = vadd.f32 %v4155, %v4125
      %v4157 = vadd.f32 %v4156, %v4126
      %v4158 = vadd.f32 %v4157, %v4127
      %v4159 = vadd.f32 %v4158, %v4128
      %v4160 = vadd.f32 %v4159, %v4129
      %v4161 = vadd.f32 %v4160, %v4130
      %v4162 = vadd.f32 %v4161, %v4131
      %v4163 = vadd.f32 %v4162, %v4132
      %v4164 = vadd.f32 %v4163, %v4133
      %v4165 = vadd.f32 %v4164, %v4134
      %v4166 = vadd.f32 %v4165, %v4135
      %v4167 = vadd.f32 %v4166, %v4136
      %v4168 = vadd.f32 %v4167, %v4137
      %v4169 = vadd.f32 %v4168, %v4138
      %v4170 = vadd.f32 %v4169, %v4139
      %v4171 = vadd.f32 %v4170, %v4140
      %v4172 = vadd.f32 %v4171, %v4141
      %v4173 = vadd.f32 %v4172, %v4142
      %v4174 = vadd.f32 %v4173, %v4143
      %v4175 = vadd.f32 %v4174, %v4144
      %v4176 = vadd.f32 %v4175, %v4145
      %v4177 = vadd.f32 %v4176, %v4146
      %v4178 = vadd.f32 %v4177, %v4147
      %v4179 = vadd.f32 %v4178, %v4148
      %v4180 = vadd.f32 %v4179, %v4149
      %v4181 = vadd.f32 %v4180, %v4150
      %v4182 = vadd.f32 %v4181, %v4151
      %v4183 = vadd.f32 %v4182, %v4152
      %v4184 = vadd.f32 %v4183, %v4153
      %v4185 = vadd.f32 %v4184, %v4154
      %v4186 = vrot.slane %v4185, 4
      %v4187 = vadd.f32 %v4185, %v4186
      %v4188 = vrot.slane %v4187, 2
      %v4189 = vadd.f32 %v4187, %v4188
      %v4190 = vrot.slane %v4189, 1
      %v4191 = vadd.f32 %v4189, %v4190
      %4192 = vst [vmem:[%s214] sm:$0x1] %v4191
      %p4193 = scmp.lt.s32.totalorder %s16, 1
      %s4194 = scalar_select %p4193, %s16, 1
      %s4195 = smul.addr %s4194, 32
      %s4196 = smul.addr %s4195, 8
      %s4197 = scalar_lea.vmem %s2, %s4196
      %p4198 = scmp.lt.s32.totalorder %s16, 1
      %s4199 = scalar_select %p4198, %s16, 1
      %s4200 = scalar_lea.vmem %s3, %s4199
      %p4201 = scmp.lt.s32.totalorder %s16, 1
      %s4202 = scalar_select %p4201, %s16, 1
      %s4203 = scalar_lea.vmem %s4, %s4202
      // Predicated region
      $region29: #{basic_block_forward.3} parent=27 // pred_check
        %p4204 = pneg %p81
      $region30: #{basic_block_forward.3} parent=27 // pred_check_branch
        %4206 = sbr.rel (%p4204) target = $region32
      $region31: #{basic_block_forward.3} parent=27 // pred_region
        _
      $region32: #{basic_block_forward.3} parent=27 // pred_fallthru
        _
      // Predicated region
      $region33: #{basic_block_forward.3} parent=27 // pred_check
        %p4207 = pneg %p107
      $region34: #{basic_block_forward.3} parent=27 // pred_check_branch
        %4209 = sbr.rel (%p4207) target = $region36
      $region35: #{basic_block_forward.3} parent=27 // pred_region
        _
      $region36: #{basic_block_forward.3} parent=27 // pred_fallthru
        _
      // Predicated region
      $region37: #{basic_block_forward.3} parent=27 // pred_check
        %p4210 = pneg %p133
      $region38: #{basic_block_forward.3} parent=27 // pred_check_branch
        %4212 = sbr.rel (%p4210) target = $region40
      $region39: #{basic_block_forward.3} parent=27 // pred_region
        _
      $region40: #{basic_block_forward.3} parent=27 // pred_fallthru
        _
    $region28: #{basic_block_forward.3} parent=5 // pred_fallthru
      _
    %p4213 = scmp.le.s32.totalorder 2, %s11
    // Predicated region
    $region41: #{basic_block_forward.3} parent=5 // pred_check
      %p4214 = pneg %p4213
    $region42: #{basic_block_forward.3} parent=5 // pred_check_branch
      %4216 = sbr.rel (%p4214) target = $region44
    $region43: #{basic_block_forward.3} parent=5 // pred_region
      %s4217 = ssub.s32 %s11, 2
      // Predicated region
      $region45: #{basic_block_forward.3} parent=43 // pred_check
        %p4218 = pneg %p87
      $region46: #{basic_block_forward.3} parent=43 // pred_check_branch
        %4220 = sbr.rel (%p4218) target = $region48
      $region47: #{basic_block_forward.3} parent=43 // pred_region
        %p4221 = scmp.lt.s32.totalorder %s17, 1
        %s4222 = scalar_select %p4221, %s17, 1
        %s4223 = smul.addr %s4222, 32
        %s4224 = smul.addr %s4223, 8
        %s4225 = scalar_lea.vmem %s2, %s4224
      $region48: #{basic_block_forward.3} parent=43 // pred_fallthru
        _
      // Predicated region
      $region49: #{basic_block_forward.3} parent=43 // pred_check
        %p4226 = pneg %p113
      $region50: #{basic_block_forward.3} parent=43 // pred_check_branch
        %4228 = sbr.rel (%p4226) target = $region52
      $region51: #{basic_block_forward.3} parent=43 // pred_region
        %p4229 = scmp.lt.s32.totalorder %s17, 1
        %s4230 = scalar_select %p4229, %s17, 1
        %s4231 = scalar_lea.vmem %s3, %s4230
      $region52: #{basic_block_forward.3} parent=43 // pred_fallthru
        _
      // Predicated region
      $region53: #{basic_block_forward.3} parent=43 // pred_check
        %p4232 = pneg %p139
      $region54: #{basic_block_forward.3} parent=43 // pred_check_branch
        %4234 = sbr.rel (%p4232) target = $region56
      $region55: #{basic_block_forward.3} parent=43 // pred_region
        %p4235 = scmp.lt.s32.totalorder %s17, 1
        %s4236 = scalar_select %p4235, %s17, 1
        %s4237 = scalar_lea.vmem %s4, %s4236
      $region56: #{basic_block_forward.3} parent=43 // pred_fallthru
        _
    $region44: #{basic_block_forward.3} parent=5 // pred_fallthru
      _
  $region6: #{basic_block_forward.3} parent=0 // loop_footer
    %s15 = sadd.s32 1, %s11
  $region7: #{basic_block_forward.3} parent=0 // loop_footer_branch
    %10 = sbr.rel target = $region3
  $region8: #{basic_block_forward.3} parent=0 // loop_exit
    _

</llo_original>
